<compile_context>
chip_gen: v7x
topology: tpu7x:2x2x1
jax: 0.10.0
libtpu: 0.0.40
codegen_flags: <defaults>
</compile_context>

<pallas_src>
import jax
import jax.numpy as jnp
from jax.experimental import pallas as pl
from jax.experimental.pallas import tpu as pltpu

EPS = 1e-5


def _bn2d_kernel(x_ref, gb_ref, o_ref):
    # x_ref: (tc, S) -- one tile of channels, all N*H*W elements per channel.
    # gb_ref: (tc, 2) -- column 0 = gamma, column 1 = beta (f32).
    x = x_ref[...]
    xf = x.astype(jnp.float32)
    inv_s = 1.0 / x_ref.shape[-1]

    # Single-pass statistics: both reductions consume the tile once (no
    # mean-then-recenter second traversal).
    s1 = jnp.sum(xf, axis=-1, keepdims=True)          # (tc, 1) sum(x)
    s2 = jnp.sum(xf * xf, axis=-1, keepdims=True)     # (tc, 1) sum(x^2)
    mean = s1 * inv_s
    var = jnp.maximum(s2 * inv_s - mean * mean, 0.0)  # clamp tiny negative rounding
    inv = jax.lax.rsqrt(var + EPS)

    gamma = gb_ref[:, 0:1]                             # (tc, 1)
    beta = gb_ref[:, 1:2]                              # (tc, 1)
    scale = inv * gamma
    shift = beta - mean * scale

    if o_ref.dtype == jnp.bfloat16:
        # bf16 VPU path (v6e/v7x): stats in f32, dominant elementwise pass and
        # store in bf16 to halve vreg/VMEM traffic.
        o_ref[...] = x * scale.astype(jnp.bfloat16) + shift.astype(jnp.bfloat16)
    else:
        o_ref[...] = (xf * scale + shift).astype(o_ref.dtype)


def batchnorm2d_pallas(x, gamma, beta, num_tiles=2):
    """BatchNorm2d forward (training-mode batch statistics), NCHW input.

    num_tiles=2 gives a 1:1 channel split across the two v7x TensorCores and
    keeps per-step overhead negligible on v5e/v6e (2 steps, each ~1.1 MB block).
    num_tiles=1 (grid=1, full-C block) is a valid alternative to benchmark on
    single-TC chips.
    """
    N, C, H, W = x.shape
    S = N * H * W
    # Channel-tile granularity: 8 sublanes for f32, 16 for bf16 (2-row packing).
    gran = 16 if x.dtype == jnp.bfloat16 else 8
    step = num_tiles * gran
    C_pad = pl.cdiv(C, step) * step
    tc = C_pad // num_tiles

    if N == 1:
        # NCHW with N=1 is already channel-major: pure reshape, no copy.
        xc = x.reshape(C, S)
    else:
        # TODO(synk): for N>1 this transpose is a full HBM round trip; if it
        # matters, handle NCHW inside the kernel (grid over (c_tile, n) with an
        # accumulator) instead.
        xc = jnp.transpose(x, (1, 0, 2, 3)).reshape(C, S)

    if C_pad != C:
        # Padded channels only see zeros and are sliced off below -- they never
        # contaminate the real channels' statistics.
        xc = jnp.pad(xc, ((0, C_pad - C), (0, 0)))

    # Merged (C_pad, 2) parameter slab: one lane-padded VMEM stream instead of
    # two separate (C, 1) streams.
    g = jnp.pad(gamma.astype(jnp.float32), (0, C_pad - C), constant_values=1.0)
    b = jnp.pad(beta.astype(jnp.float32), (0, C_pad - C), constant_values=0.0)
    gb = jnp.stack([g, b], axis=-1)                    # (C_pad, 2) f32

    out = pl.pallas_call(
        _bn2d_kernel,
        out_shape=jax.ShapeDtypeStruct((C_pad, S), x.dtype),
        grid_spec=pltpu.PrefetchScalarGridSpec(
            num_scalar_prefetch=0,
            grid=(num_tiles,),
            in_specs=[
                pl.BlockSpec((tc, S), lambda i: (i, 0)),
                pl.BlockSpec((tc, 2), lambda i: (i, 0)),
            ],
            out_specs=pl.BlockSpec((tc, S), lambda i: (i, 0)),
        ),
        # Output reuses the (temporary) channel-major input slab's HBM buffer.
        input_output_aliases={0: 0},
        compiler_params=pltpu.CompilerParams(
            dimension_semantics=("parallel",),
        ),
    )(xc, gb)

    out = out[:C]
    if N == 1:
        return out.reshape(N, C, H, W)
    return out.reshape(C, N, H, W).transpose(1, 0, 2, 3)


def batchnorm2d_ref(x, gamma, beta):
    mean = jnp.mean(x, axis=(0, 2, 3), keepdims=True)
    var = jnp.mean((x - mean) ** 2, axis=(0, 2, 3), keepdims=True)
    return (x - mean) / jnp.sqrt(var + EPS) * gamma.reshape(1, -1, 1, 1) + beta.reshape(1, -1, 1, 1)


if __name__ == "__main__":
    # Shapes from the module's forward: x157 = randn([1, 2904, 14, 14]),
    # BatchNorm2d(2904), module in train mode -> batch statistics are used.
    # TODO(synk): running_mean/running_var buffer updates (momentum=0.1) are a
    # training-state side effect, not part of the returned tensor; not modeled.
    N, C, H, W = 1, 2904, 14, 14

    key = jax.random.PRNGKey(0)
    kx, kg, kb = jax.random.split(key, 3)
    x = jax.random.normal(kx, (N, C, H, W), dtype=jnp.float32)
    # Deterministic, non-trivial affine parameters (PyTorch default would be 1/0).
    gamma = 1.0 + 0.1 * jax.random.normal(kg, (C,), dtype=jnp.float32)
    beta = 0.1 * jax.random.normal(kb, (C,), dtype=jnp.float32)

    bn = jax.jit(batchnorm2d_pallas)
    y = jax.block_until_ready(bn(x, gamma, beta))

    y_ref = batchnorm2d_ref(x, gamma, beta)
    assert y.shape == (N, C, H, W)
    assert jnp.allclose(y, y_ref, rtol=1e-4, atol=1e-4), "mismatch vs reference"

    print("KERNEL_OK")
</pallas_src>

<mosaic_0001>
module attributes {stable_mosaic.version = 11 : i64} {
  func.func @_bn2d_kernel(%arg0: i32, %arg1: memref<1456x196xf32, #tpu.memory_space<vmem>>, %arg2: memref<1456x2xf32, #tpu.memory_space<vmem>>, %arg3: memref<1456x196xf32, #tpu.memory_space<vmem>>) attributes {dimension_semantics = [#tpu.dimension_semantics<parallel>], iteration_bounds = array<i64: 2>, scalar_prefetch = 0 : i64, scratch_operands = 0 : i64, tpu.core_type = #tpu.core_type<tc>, window_params = [{transform_indices = @transform_0, window_bounds = array<i64: 1456, 196>}, {transform_indices = @transform_1, window_bounds = array<i64: 1456, 2>}, {transform_indices = @transform_2, window_bounds = array<i64: 1456, 196>}]} {
    %c0 = arith.constant 0 : index
    %c0_0 = arith.constant 0 : index
    %0 = vector.load %arg1[%c0, %c0_0] : memref<1456x196xf32, #tpu.memory_space<vmem>>, vector<1456x196xf32>
    %cst = arith.constant dense<0.000000e+00> : vector<1456xf32>
    %1 = vector.multi_reduction <add>, %0, %cst [1] : vector<1456x196xf32> to vector<1456xf32>
    %2 = vector.shape_cast %1 : vector<1456xf32> to vector<1456x1xf32>
    %3 = arith.mulf %0, %0 : vector<1456x196xf32>
    %cst_1 = arith.constant dense<0.000000e+00> : vector<1456xf32>
    %4 = vector.multi_reduction <add>, %3, %cst_1 [1] : vector<1456x196xf32> to vector<1456xf32>
    %5 = vector.shape_cast %4 : vector<1456xf32> to vector<1456x1xf32>
    %cst_2 = arith.constant 0.00510204071 : f32
    %6 = vector.broadcast %cst_2 : f32 to vector<1456x1xf32>
    %7 = arith.mulf %2, %6 : vector<1456x1xf32>
    %cst_3 = arith.constant 0.00510204071 : f32
    %8 = vector.broadcast %cst_3 : f32 to vector<1456x1xf32>
    %9 = arith.mulf %5, %8 : vector<1456x1xf32>
    %10 = arith.mulf %7, %7 : vector<1456x1xf32>
    %11 = arith.subf %9, %10 : vector<1456x1xf32>
    %cst_4 = arith.constant 0.000000e+00 : f32
    %12 = vector.broadcast %cst_4 : f32 to vector<1456x1xf32>
    %13 = arith.maximumf %11, %12 : vector<1456x1xf32>
    %cst_5 = arith.constant 9.99999974E-6 : f32
    %14 = vector.broadcast %cst_5 : f32 to vector<1456x1xf32>
    %15 = arith.addf %13, %14 : vector<1456x1xf32>
    %16 = math.rsqrt %15 : vector<1456x1xf32>
    %c0_6 = arith.constant 0 : index
    %c0_7 = arith.constant 0 : index
    %17 = vector.load %arg2[%c0_6, %c0_7] : memref<1456x2xf32, #tpu.memory_space<vmem>>, vector<1456x1xf32>
    %c0_8 = arith.constant 0 : index
    %c1 = arith.constant 1 : index
    %18 = vector.load %arg2[%c0_8, %c1] : memref<1456x2xf32, #tpu.memory_space<vmem>>, vector<1456x1xf32>
    %19 = arith.mulf %16, %17 : vector<1456x1xf32>
    %20 = arith.mulf %7, %19 : vector<1456x1xf32>
    %21 = arith.subf %18, %20 : vector<1456x1xf32>
    %22 = vector.broadcast %19 : vector<1456x1xf32> to vector<1456x196xf32>
    %23 = arith.mulf %0, %22 : vector<1456x196xf32>
    %24 = vector.broadcast %21 : vector<1456x1xf32> to vector<1456x196xf32>
    %25 = arith.addf %23, %24 : vector<1456x196xf32>
    %c0_9 = arith.constant 0 : index
    %c0_10 = arith.constant 0 : index
    %26 = vector.load %arg3[%c0_9, %c0_10] : memref<1456x196xf32, #tpu.memory_space<vmem>>, vector<1456x196xf32>
    tpu.vector_store %arg3[%c0_9, %c0_10], %25 {strides = array<i32>} : memref<1456x196xf32, #tpu.memory_space<vmem>>, vector<1456x196xf32>,
    return
  }
  func.func @transform_0(%arg0: i32) -> (i32, i32) {
    %c0_i32 = arith.constant 0 : i32
    %c0_i32_0 = arith.constant 0 : i32
    return %arg0, %c0_i32 : i32, i32
  }
  func.func @transform_1(%arg0: i32) -> (i32, i32) {
    %c0_i32 = arith.constant 0 : i32
    %c0_i32_0 = arith.constant 0 : i32
    return %arg0, %c0_i32 : i32, i32
  }
  func.func @transform_2(%arg0: i32) -> (i32, i32) {
    %c0_i32 = arith.constant 0 : i32
    %c0_i32_0 = arith.constant 0 : i32
    return %arg0, %c0_i32 : i32, i32
  }
}

</mosaic_0001>

<llo_original>
// kernel: batchnorm2d_pallas.1
$region0: #{batchnorm2d_pallas.1}
  #allocation0 [shape = 'u32[]', space=smem, size = 0x4, offset = 0x4, fixed_abs, tag = 'smem constant byte address 0x4 - core index']
  #allocation1 [shape = 'u32[144,128]{1,0:T(1,128)}', space=vmem, size = 0x12000, scoped, tag = 'internal scratch']
  %s0 = inlined_call_operand.vmem [shape: f32[2912,196], index: 0, kind: input, shape index: {}, may-alias: {0,2}]
  %s1 = inlined_call_operand.vmem [shape: f32[2912,2], index: 1, kind: input, shape index: {}]
  %s2 = inlined_call_operand.vmem [shape: f32[2912,196], index: 2, kind: output, shape index: {}, may-alias: {0,2}]
  %s3 = sld [smem:[#allocation0]]
  $region41: #{batchnorm2d_pallas.1} parent=0
    _
  %s5 = ssub.s32 1, %s3
  %s6 = scalar_select 0, %s5, %s3
  loop: start=0, step=1, limit=4
  $region2: #{batchnorm2d_pallas.1} parent=0 // loop_pre_header
    _
  $region3: #{batchnorm2d_pallas.1} parent=0 // loop_header
    %s8 = sphi 0, %s12
    %p9 = scmp.ge.s32.totalorder %s8, 4
    %s18 = sphi 0, %s20
    %s21 = sphi 0, %s18
    %s22 = sphi 0, %s21
    %s38 = sphi 0, %s22
    %s44 = sphi 0, %s46
    %s47 = sphi 0, %s44
    %s48 = sphi 0, %s47
    %s64 = sphi 0, %s48
    %s70 = sphi 0, %s72
    %s73 = sphi 0, %s70
    %s74 = sphi 0, %s73
    %s90 = sphi 0, %s74
  $region4: #{batchnorm2d_pallas.1} parent=0 // loop_header_branch
    %11 = sbr.rel (%p9) target = $region8
  $region5: #{batchnorm2d_pallas.1} parent=0 // loop_body
    %s13 = ssub.s32 %s8, 1
    %s14 = ssub.s32 %s8, 2
    %s15 = sadd.s32 %s8, 1
    %s16 = ssub.s32 %s8, %s15
    %p17 = scmp.eq.s32.totalorder %s16, 0
    %s19 = sadd.s32 %s18, 1
    %s20 = scalar_select %p17, %s18, %s19
    %p23 = pneg %p17
    %p24 = scmp.eq.s32.totalorder %s8, 1
    %p25 = por %p23, %p24
    %p26 = scmp.ne.s32.totalorder %s18, %s21
    %p27 = scmp.eq.s32.totalorder %s8, 0
    %p28 = por %p26, %p27
    %p29 = scmp.ne.s32.totalorder %s18, %s21
    %p30 = scmp.eq.s32.totalorder %s13, 1
    %p31 = por %p29, %p30
    %p32 = scmp.ne.s32.totalorder %s21, %s22
    %p33 = scmp.eq.s32.totalorder %s13, 0
    %p34 = por %p32, %p33
    %p35 = scmp.ne.s32.totalorder %s21, %s22
    %p36 = scmp.eq.s32.totalorder %s14, 1
    %p37 = por %p35, %p36
    %p39 = scmp.ne.s32.totalorder %s22, %s38
    %p40 = scmp.eq.s32.totalorder %s14, 0
    %p41 = por %p39, %p40
    %s42 = ssub.s32 %s8, %s15
    %p43 = scmp.eq.s32.totalorder %s42, 0
    %s45 = sadd.s32 %s44, 1
    %s46 = scalar_select %p43, %s44, %s45
    %p49 = pneg %p43
    %p50 = scmp.eq.s32.totalorder %s8, 1
    %p51 = por %p49, %p50
    %p52 = scmp.ne.s32.totalorder %s44, %s47
    %p53 = scmp.eq.s32.totalorder %s8, 0
    %p54 = por %p52, %p53
    %p55 = scmp.ne.s32.totalorder %s44, %s47
    %p56 = scmp.eq.s32.totalorder %s13, 1
    %p57 = por %p55, %p56
    %p58 = scmp.ne.s32.totalorder %s47, %s48
    %p59 = scmp.eq.s32.totalorder %s13, 0
    %p60 = por %p58, %p59
    %p61 = scmp.ne.s32.totalorder %s47, %s48
    %p62 = scmp.eq.s32.totalorder %s14, 1
    %p63 = por %p61, %p62
    %p65 = scmp.ne.s32.totalorder %s48, %s64
    %p66 = scmp.eq.s32.totalorder %s14, 0
    %p67 = por %p65, %p66
    %s68 = ssub.s32 %s8, %s15
    %p69 = scmp.eq.s32.totalorder %s68, 0
    %s71 = sadd.s32 %s70, 1
    %s72 = scalar_select %p69, %s70, %s71
    %p75 = pneg %p69
    %p76 = scmp.eq.s32.totalorder %s8, 1
    %p77 = por %p75, %p76
    %p78 = scmp.ne.s32.totalorder %s70, %s73
    %p79 = scmp.eq.s32.totalorder %s8, 0
    %p80 = por %p78, %p79
    %p81 = scmp.ne.s32.totalorder %s70, %s73
    %p82 = scmp.eq.s32.totalorder %s13, 1
    %p83 = por %p81, %p82
    %p84 = scmp.ne.s32.totalorder %s73, %s74
    %p85 = scmp.eq.s32.totalorder %s13, 0
    %p86 = por %p84, %p85
    %p87 = scmp.ne.s32.totalorder %s73, %s74
    %p88 = scmp.eq.s32.totalorder %s14, 1
    %p89 = por %p87, %p88
    %p91 = scmp.ne.s32.totalorder %s74, %s90
    %p92 = scmp.eq.s32.totalorder %s14, 0
    %p93 = por %p91, %p92
    %p94 = scmp.le.s32.totalorder 1, %s8
    %p95 = scmp.lt.s32.totalorder %s8, 3
    %p96 = pnand %p94, %p95
    %p97 = pneg %p96
    // Predicated region
    $region9: #{batchnorm2d_pallas.1} parent=5 // pred_check
      _
    $region10: #{batchnorm2d_pallas.1} parent=5 // pred_check_branch
      %99 = sbr.rel (%p96) target = $region12
    $region11: #{batchnorm2d_pallas.1} parent=5 // pred_region
      %s100 = ssub.s32 %s8, 1
    $region12: #{batchnorm2d_pallas.1} parent=5 // pred_fallthru
      _
    %p101 = scmp.lt.s32.totalorder %s8, 2
    // Predicated region
    $region13: #{batchnorm2d_pallas.1} parent=5 // pred_check
      %p102 = pneg %p101
    $region14: #{batchnorm2d_pallas.1} parent=5 // pred_check_branch
      %104 = sbr.rel (%p102) target = $region16
    $region15: #{batchnorm2d_pallas.1} parent=5 // pred_region
      // Predicated region
      $region17: #{batchnorm2d_pallas.1} parent=15 // pred_check
        %p105 = pneg %p28
      $region18: #{batchnorm2d_pallas.1} parent=15 // pred_check_branch
        %107 = sbr.rel (%p105) target = $region20
      $region19: #{batchnorm2d_pallas.1} parent=15 // pred_region
        %s108 = smul.u32 182, %s8
        %p109 = scmp.lt.s32.totalorder %s108, 363
        %s110 = scalar_select %p109, %s108, 363
        %s111 = smul.addr %s110, 2
        %s112 = smul.addr %s111, 8
        %s113 = scalar_lea.vmem %s0, %s112
        %s114 = smul.u32 182, %s8
      $region20: #{batchnorm2d_pallas.1} parent=15 // pred_fallthru
        _
      // Predicated region
      $region21: #{batchnorm2d_pallas.1} parent=15 // pred_check
        %p115 = pneg %p54
      $region22: #{batchnorm2d_pallas.1} parent=15 // pred_check_branch
        %117 = sbr.rel (%p115) target = $region24
      $region23: #{batchnorm2d_pallas.1} parent=15 // pred_region
        %s118 = smul.u32 182, %s8
        %p119 = scmp.lt.s32.totalorder %s118, 363
        %s120 = scalar_select %p119, %s118, 363
        %s121 = smul.addr %s120, 8
        %s122 = scalar_lea.vmem %s1, %s121
        %s123 = smul.u32 182, %s8
      $region24: #{batchnorm2d_pallas.1} parent=15 // pred_fallthru
        _
    $region16: #{batchnorm2d_pallas.1} parent=5 // pred_fallthru
      _
    %p124 = scmp.le.s32.totalorder 1, %s8
    %p125 = scmp.lt.s32.totalorder %s8, 3
    %p126 = pnand %p124, %p125
    %p127 = pneg %p126
    // Predicated region
    $region25: #{batchnorm2d_pallas.1} parent=5 // pred_check
      _
    $region26: #{batchnorm2d_pallas.1} parent=5 // pred_check_branch
      %129 = sbr.rel (%p126) target = $region28
    $region27: #{batchnorm2d_pallas.1} parent=5 // pred_region
      %s130 = ssub.s32 %s8, 1
      %s131 = smul.u32 182, %s13
      %p132 = scmp.lt.s32.totalorder %s131, 363
      %s133 = scalar_select %p132, %s131, 363
      %s134 = smul.addr %s133, 2
      %s135 = smul.addr %s134, 8
      %s136 = scalar_lea.vmem %s0, %s135
      %p137 = pneg %p34
      %p138 = pneg %p31
      %s139 = smul.u32 182, %s13
      %p140 = scmp.lt.s32.totalorder %s139, 363
      %s141 = scalar_select %p140, %s139, 363
      %s142 = smul.addr %s141, 8
      %s143 = scalar_lea.vmem %s1, %s142
      %p144 = pneg %p60
      %p145 = pneg %p57
      %p146 = pneg %p86
      %p147 = pneg %p83
      %s148 = smul.u32 182, %s13
      %p149 = scmp.lt.s32.totalorder %s148, 363
      %s150 = scalar_select %p149, %s148, 363
      %s151 = smul.addr %s150, 2
      %s152 = smul.addr %s151, 8
      %s153 = scalar_lea.vmem %s2, %s152
      %s154 = smul.u32 182, %s13
      %p155 = scmp.lt.s32.totalorder %s154, 363
      %s156 = scalar_select %p155, %s154, 363
      %s157 = smul.addr %s156, 2
      %s158 = smul.addr %s157, 8
      %s159 = scalar_lea.vmem %s0, %s158
      %s160 = smul.u32 182, %s13
      %s161 = smul.u32 182, %s13
      %p162 = scmp.lt.s32.totalorder %s161, 363
      %s163 = scalar_select %p162, %s161, 363
      %s164 = smul.addr %s163, 8
      %s165 = scalar_lea.vmem %s1, %s164
      %s166 = smul.u32 182, %s13
      %s167 = smul.u32 182, %s13
      %p168 = scmp.lt.s32.totalorder %s167, 363
      %s169 = scalar_select %p168, %s167, 363
      %s170 = smul.addr %s169, 2
      %s171 = smul.addr %s170, 8
      %s172 = scalar_lea.vmem %s2, %s171
      %s173 = smul.u32 182, %s13
      %v174 = vld [vmem:[%s159] sm:$0xff]
      %v175 = vld [vmem:[%s159 + $0x8] sm:$0xff]
      %v176 = vld [vmem:[%s159 + $0x10] sm:$0xff]
      %v177 = vld [vmem:[%s159 + $0x18] sm:$0xff]
      %v178 = vld [vmem:[%s159 + $0x20] sm:$0xff]
      %v179 = vld [vmem:[%s159 + $0x28] sm:$0xff]
      %v180 = vld [vmem:[%s159 + $0x30] sm:$0xff]
      %v181 = vld [vmem:[%s159 + $0x38] sm:$0xff]
      %v182 = vld [vmem:[%s159 + $0x40] sm:$0xff]
      %v183 = vld [vmem:[%s159 + $0x48] sm:$0xff]
      %v184 = vld [vmem:[%s159 + $0x50] sm:$0xff]
      %v185 = vld [vmem:[%s159 + $0x58] sm:$0xff]
      %v186 = vld [vmem:[%s159 + $0x60] sm:$0xff]
      %v187 = vld [vmem:[%s159 + $0x68] sm:$0xff]
      %v188 = vld [vmem:[%s159 + $0x70] sm:$0xff]
      %v189 = vld [vmem:[%s159 + $0x78] sm:$0xff]
      %v190 = vld [vmem:[%s159 + $0x80] sm:$0xff]
      %v191 = vld [vmem:[%s159 + $0x88] sm:$0xff]
      %v192 = vld [vmem:[%s159 + $0x90] sm:$0xff]
      %v193 = vld [vmem:[%s159 + $0x98] sm:$0xff]
      %v194 = vld [vmem:[%s159 + $0xa0] sm:$0xff]
      %v195 = vld [vmem:[%s159 + $0xa8] sm:$0xff]
      %v196 = vld [vmem:[%s159 + $0xb0] sm:$0xff]
      %v197 = vld [vmem:[%s159 + $0xb8] sm:$0xff]
      %v198 = vld [vmem:[%s159 + $0xc0] sm:$0xff]
      %v199 = vld [vmem:[%s159 + $0xc8] sm:$0xff]
      %v200 = vld [vmem:[%s159 + $0xd0] sm:$0xff]
      %v201 = vld [vmem:[%s159 + $0xd8] sm:$0xff]
      %v202 = vld [vmem:[%s159 + $0xe0] sm:$0xff]
      %v203 = vld [vmem:[%s159 + $0xe8] sm:$0xff]
      %v204 = vld [vmem:[%s159 + $0xf0] sm:$0xff]
      %v205 = vld [vmem:[%s159 + $0xf8] sm:$0xff]
      %v206 = vld [vmem:[%s159 + $0x100] sm:$0xff]
      %v207 = vld [vmem:[%s159 + $0x108] sm:$0xff]
      %v208 = vld [vmem:[%s159 + $0x110] sm:$0xff]
      %v209 = vld [vmem:[%s159 + $0x118] sm:$0xff]
      %v210 = vld [vmem:[%s159 + $0x120] sm:$0xff]
      %v211 = vld [vmem:[%s159 + $0x128] sm:$0xff]
      %v212 = vld [vmem:[%s159 + $0x130] sm:$0xff]
      %v213 = vld [vmem:[%s159 + $0x138] sm:$0xff]
      %v214 = vld [vmem:[%s159 + $0x140] sm:$0xff]
      %v215 = vld [vmem:[%s159 + $0x148] sm:$0xff]
      %v216 = vld [vmem:[%s159 + $0x150] sm:$0xff]
      %v217 = vld [vmem:[%s159 + $0x158] sm:$0xff]
      %v218 = vld [vmem:[%s159 + $0x160] sm:$0xff]
      %v219 = vld [vmem:[%s159 + $0x168] sm:$0xff]
      %v220 = vld [vmem:[%s159 + $0x170] sm:$0xff]
      %v221 = vld [vmem:[%s159 + $0x178] sm:$0xff]
      %v222 = vld [vmem:[%s159 + $0x180] sm:$0xff]
      %v223 = vld [vmem:[%s159 + $0x188] sm:$0xff]
      %v224 = vld [vmem:[%s159 + $0x190] sm:$0xff]
      %v225 = vld [vmem:[%s159 + $0x198] sm:$0xff]
      %v226 = vld [vmem:[%s159 + $0x1a0] sm:$0xff]
      %v227 = vld [vmem:[%s159 + $0x1a8] sm:$0xff]
      %v228 = vld [vmem:[%s159 + $0x1b0] sm:$0xff]
      %v229 = vld [vmem:[%s159 + $0x1b8] sm:$0xff]
      %v230 = vld [vmem:[%s159 + $0x1c0] sm:$0xff]
      %v231 = vld [vmem:[%s159 + $0x1c8] sm:$0xff]
      %v232 = vld [vmem:[%s159 + $0x1d0] sm:$0xff]
      %v233 = vld [vmem:[%s159 + $0x1d8] sm:$0xff]
      %v234 = vld [vmem:[%s159 + $0x1e0] sm:$0xff]
      %v235 = vld [vmem:[%s159 + $0x1e8] sm:$0xff]
      %v236 = vld [vmem:[%s159 + $0x1f0] sm:$0xff]
      %v237 = vld [vmem:[%s159 + $0x1f8] sm:$0xff]
      %v238 = vld [vmem:[%s159 + $0x200] sm:$0xff]
      %v239 = vld [vmem:[%s159 + $0x208] sm:$0xff]
      %v240 = vld [vmem:[%s159 + $0x210] sm:$0xff]
      %v241 = vld [vmem:[%s159 + $0x218] sm:$0xff]
      %v242 = vld [vmem:[%s159 + $0x220] sm:$0xff]
      %v243 = vld [vmem:[%s159 + $0x228] sm:$0xff]
      %v244 = vld [vmem:[%s159 + $0x230] sm:$0xff]
      %v245 = vld [vmem:[%s159 + $0x238] sm:$0xff]
      %v246 = vld [vmem:[%s159 + $0x240] sm:$0xff]
      %v247 = vld [vmem:[%s159 + $0x248] sm:$0xff]
      %v248 = vld [vmem:[%s159 + $0x250] sm:$0xff]
      %v249 = vld [vmem:[%s159 + $0x258] sm:$0xff]
      %v250 = vld [vmem:[%s159 + $0x260] sm:$0xff]
      %v251 = vld [vmem:[%s159 + $0x268] sm:$0xff]
      %v252 = vld [vmem:[%s159 + $0x270] sm:$0xff]
      %v253 = vld [vmem:[%s159 + $0x278] sm:$0xff]
      %v254 = vld [vmem:[%s159 + $0x280] sm:$0xff]
      %v255 = vld [vmem:[%s159 + $0x288] sm:$0xff]
      %v256 = vld [vmem:[%s159 + $0x290] sm:$0xff]
      %v257 = vld [vmem:[%s159 + $0x298] sm:$0xff]
      %v258 = vld [vmem:[%s159 + $0x2a0] sm:$0xff]
      %v259 = vld [vmem:[%s159 + $0x2a8] sm:$0xff]
      %v260 = vld [vmem:[%s159 + $0x2b0] sm:$0xff]
      %v261 = vld [vmem:[%s159 + $0x2b8] sm:$0xff]
      %v262 = vld [vmem:[%s159 + $0x2c0] sm:$0xff]
      %v263 = vld [vmem:[%s159 + $0x2c8] sm:$0xff]
      %v264 = vld [vmem:[%s159 + $0x2d0] sm:$0xff]
      %v265 = vld [vmem:[%s159 + $0x2d8] sm:$0xff]
      %v266 = vld [vmem:[%s159 + $0x2e0] sm:$0xff]
      %v267 = vld [vmem:[%s159 + $0x2e8] sm:$0xff]
      %v268 = vld [vmem:[%s159 + $0x2f0] sm:$0xff]
      %v269 = vld [vmem:[%s159 + $0x2f8] sm:$0xff]
      %v270 = vld [vmem:[%s159 + $0x300] sm:$0xff]
      %v271 = vld [vmem:[%s159 + $0x308] sm:$0xff]
      %v272 = vld [vmem:[%s159 + $0x310] sm:$0xff]
      %v273 = vld [vmem:[%s159 + $0x318] sm:$0xff]
      %v274 = vld [vmem:[%s159 + $0x320] sm:$0xff]
      %v275 = vld [vmem:[%s159 + $0x328] sm:$0xff]
      %v276 = vld [vmem:[%s159 + $0x330] sm:$0xff]
      %v277 = vld [vmem:[%s159 + $0x338] sm:$0xff]
      %v278 = vld [vmem:[%s159 + $0x340] sm:$0xff]
      %v279 = vld [vmem:[%s159 + $0x348] sm:$0xff]
      %v280 = vld [vmem:[%s159 + $0x350] sm:$0xff]
      %v281 = vld [vmem:[%s159 + $0x358] sm:$0xff]
      %v282 = vld [vmem:[%s159 + $0x360] sm:$0xff]
      %v283 = vld [vmem:[%s159 + $0x368] sm:$0xff]
      %v284 = vld [vmem:[%s159 + $0x370] sm:$0xff]
      %v285 = vld [vmem:[%s159 + $0x378] sm:$0xff]
      %v286 = vld [vmem:[%s159 + $0x380] sm:$0xff]
      %v287 = vld [vmem:[%s159 + $0x388] sm:$0xff]
      %v288 = vld [vmem:[%s159 + $0x390] sm:$0xff]
      %v289 = vld [vmem:[%s159 + $0x398] sm:$0xff]
      %v290 = vld [vmem:[%s159 + $0x3a0] sm:$0xff]
      %v291 = vld [vmem:[%s159 + $0x3a8] sm:$0xff]
      %v292 = vld [vmem:[%s159 + $0x3b0] sm:$0xff]
      %v293 = vld [vmem:[%s159 + $0x3b8] sm:$0xff]
      %v294 = vld [vmem:[%s159 + $0x3c0] sm:$0xff]
      %v295 = vld [vmem:[%s159 + $0x3c8] sm:$0xff]
      %v296 = vld [vmem:[%s159 + $0x3d0] sm:$0xff]
      %v297 = vld [vmem:[%s159 + $0x3d8] sm:$0xff]
      %v298 = vld [vmem:[%s159 + $0x3e0] sm:$0xff]
      %v299 = vld [vmem:[%s159 + $0x3e8] sm:$0xff]
      %v300 = vld [vmem:[%s159 + $0x3f0] sm:$0xff]
      %v301 = vld [vmem:[%s159 + $0x3f8] sm:$0xff]
      %v302 = vld [vmem:[%s159 + $0x400] sm:$0xff]
      %v303 = vld [vmem:[%s159 + $0x408] sm:$0xff]
      %v304 = vld [vmem:[%s159 + $0x410] sm:$0xff]
      %v305 = vld [vmem:[%s159 + $0x418] sm:$0xff]
      %v306 = vld [vmem:[%s159 + $0x420] sm:$0xff]
      %v307 = vld [vmem:[%s159 + $0x428] sm:$0xff]
      %v308 = vld [vmem:[%s159 + $0x430] sm:$0xff]
      %v309 = vld [vmem:[%s159 + $0x438] sm:$0xff]
      %v310 = vld [vmem:[%s159 + $0x440] sm:$0xff]
      %v311 = vld [vmem:[%s159 + $0x448] sm:$0xff]
      %v312 = vld [vmem:[%s159 + $0x450] sm:$0xff]
      %v313 = vld [vmem:[%s159 + $0x458] sm:$0xff]
      %v314 = vld [vmem:[%s159 + $0x460] sm:$0xff]
      %v315 = vld [vmem:[%s159 + $0x468] sm:$0xff]
      %v316 = vld [vmem:[%s159 + $0x470] sm:$0xff]
      %v317 = vld [vmem:[%s159 + $0x478] sm:$0xff]
      %v318 = vld [vmem:[%s159 + $0x480] sm:$0xff]
      %v319 = vld [vmem:[%s159 + $0x488] sm:$0xff]
      %v320 = vld [vmem:[%s159 + $0x490] sm:$0xff]
      %v321 = vld [vmem:[%s159 + $0x498] sm:$0xff]
      %v322 = vld [vmem:[%s159 + $0x4a0] sm:$0xff]
      %v323 = vld [vmem:[%s159 + $0x4a8] sm:$0xff]
      %v324 = vld [vmem:[%s159 + $0x4b0] sm:$0xff]
      %v325 = vld [vmem:[%s159 + $0x4b8] sm:$0xff]
      %v326 = vld [vmem:[%s159 + $0x4c0] sm:$0xff]
      %v327 = vld [vmem:[%s159 + $0x4c8] sm:$0xff]
      %v328 = vld [vmem:[%s159 + $0x4d0] sm:$0xff]
      %v329 = vld [vmem:[%s159 + $0x4d8] sm:$0xff]
      %v330 = vld [vmem:[%s159 + $0x4e0] sm:$0xff]
      %v331 = vld [vmem:[%s159 + $0x4e8] sm:$0xff]
      %v332 = vld [vmem:[%s159 + $0x4f0] sm:$0xff]
      %v333 = vld [vmem:[%s159 + $0x4f8] sm:$0xff]
      %v334 = vld [vmem:[%s159 + $0x500] sm:$0xff]
      %v335 = vld [vmem:[%s159 + $0x508] sm:$0xff]
      %v336 = vld [vmem:[%s159 + $0x510] sm:$0xff]
      %v337 = vld [vmem:[%s159 + $0x518] sm:$0xff]
      %v338 = vld [vmem:[%s159 + $0x520] sm:$0xff]
      %v339 = vld [vmem:[%s159 + $0x528] sm:$0xff]
      %v340 = vld [vmem:[%s159 + $0x530] sm:$0xff]
      %v341 = vld [vmem:[%s159 + $0x538] sm:$0xff]
      %v342 = vld [vmem:[%s159 + $0x540] sm:$0xff]
      %v343 = vld [vmem:[%s159 + $0x548] sm:$0xff]
      %v344 = vld [vmem:[%s159 + $0x550] sm:$0xff]
      %v345 = vld [vmem:[%s159 + $0x558] sm:$0xff]
      %v346 = vld [vmem:[%s159 + $0x560] sm:$0xff]
      %v347 = vld [vmem:[%s159 + $0x568] sm:$0xff]
      %v348 = vld [vmem:[%s159 + $0x570] sm:$0xff]
      %v349 = vld [vmem:[%s159 + $0x578] sm:$0xff]
      %v350 = vld [vmem:[%s159 + $0x580] sm:$0xff]
      %v351 = vld [vmem:[%s159 + $0x588] sm:$0xff]
      %v352 = vld [vmem:[%s159 + $0x590] sm:$0xff]
      %v353 = vld [vmem:[%s159 + $0x598] sm:$0xff]
      %v354 = vld [vmem:[%s159 + $0x5a0] sm:$0xff]
      %v355 = vld [vmem:[%s159 + $0x5a8] sm:$0xff]
      %v356 = vld [vmem:[%s159 + $0x5b0] sm:$0xff]
      %v357 = vld [vmem:[%s159 + $0x5b8] sm:$0xff]
      %v358 = vld [vmem:[%s159 + $0x5c0] sm:$0xff]
      %v359 = vld [vmem:[%s159 + $0x5c8] sm:$0xff]
      %v360 = vld [vmem:[%s159 + $0x5d0] sm:$0xff]
      %v361 = vld [vmem:[%s159 + $0x5d8] sm:$0xff]
      %v362 = vld [vmem:[%s159 + $0x5e0] sm:$0xff]
      %v363 = vld [vmem:[%s159 + $0x5e8] sm:$0xff]
      %v364 = vld [vmem:[%s159 + $0x5f0] sm:$0xff]
      %v365 = vld [vmem:[%s159 + $0x5f8] sm:$0xff]
      %v366 = vld [vmem:[%s159 + $0x600] sm:$0xff]
      %v367 = vld [vmem:[%s159 + $0x608] sm:$0xff]
      %v368 = vld [vmem:[%s159 + $0x610] sm:$0xff]
      %v369 = vld [vmem:[%s159 + $0x618] sm:$0xff]
      %v370 = vld [vmem:[%s159 + $0x620] sm:$0xff]
      %v371 = vld [vmem:[%s159 + $0x628] sm:$0xff]
      %v372 = vld [vmem:[%s159 + $0x630] sm:$0xff]
      %v373 = vld [vmem:[%s159 + $0x638] sm:$0xff]
      %v374 = vld [vmem:[%s159 + $0x640] sm:$0xff]
      %v375 = vld [vmem:[%s159 + $0x648] sm:$0xff]
      %v376 = vld [vmem:[%s159 + $0x650] sm:$0xff]
      %v377 = vld [vmem:[%s159 + $0x658] sm:$0xff]
      %v378 = vld [vmem:[%s159 + $0x660] sm:$0xff]
      %v379 = vld [vmem:[%s159 + $0x668] sm:$0xff]
      %v380 = vld [vmem:[%s159 + $0x670] sm:$0xff]
      %v381 = vld [vmem:[%s159 + $0x678] sm:$0xff]
      %v382 = vld [vmem:[%s159 + $0x680] sm:$0xff]
      %v383 = vld [vmem:[%s159 + $0x688] sm:$0xff]
      %v384 = vld [vmem:[%s159 + $0x690] sm:$0xff]
      %v385 = vld [vmem:[%s159 + $0x698] sm:$0xff]
      %v386 = vld [vmem:[%s159 + $0x6a0] sm:$0xff]
      %v387 = vld [vmem:[%s159 + $0x6a8] sm:$0xff]
      %v388 = vld [vmem:[%s159 + $0x6b0] sm:$0xff]
      %v389 = vld [vmem:[%s159 + $0x6b8] sm:$0xff]
      %v390 = vld [vmem:[%s159 + $0x6c0] sm:$0xff]
      %v391 = vld [vmem:[%s159 + $0x6c8] sm:$0xff]
      %v392 = vld [vmem:[%s159 + $0x6d0] sm:$0xff]
      %v393 = vld [vmem:[%s159 + $0x6d8] sm:$0xff]
      %v394 = vld [vmem:[%s159 + $0x6e0] sm:$0xff]
      %v395 = vld [vmem:[%s159 + $0x6e8] sm:$0xff]
      %v396 = vld [vmem:[%s159 + $0x6f0] sm:$0xff]
      %v397 = vld [vmem:[%s159 + $0x6f8] sm:$0xff]
      %v398 = vld [vmem:[%s159 + $0x700] sm:$0xff]
      %v399 = vld [vmem:[%s159 + $0x708] sm:$0xff]
      %v400 = vld [vmem:[%s159 + $0x710] sm:$0xff]
      %v401 = vld [vmem:[%s159 + $0x718] sm:$0xff]
      %v402 = vld [vmem:[%s159 + $0x720] sm:$0xff]
      %v403 = vld [vmem:[%s159 + $0x728] sm:$0xff]
      %v404 = vld [vmem:[%s159 + $0x730] sm:$0xff]
      %v405 = vld [vmem:[%s159 + $0x738] sm:$0xff]
      %v406 = vld [vmem:[%s159 + $0x740] sm:$0xff]
      %v407 = vld [vmem:[%s159 + $0x748] sm:$0xff]
      %v408 = vld [vmem:[%s159 + $0x750] sm:$0xff]
      %v409 = vld [vmem:[%s159 + $0x758] sm:$0xff]
      %v410 = vld [vmem:[%s159 + $0x760] sm:$0xff]
      %v411 = vld [vmem:[%s159 + $0x768] sm:$0xff]
      %v412 = vld [vmem:[%s159 + $0x770] sm:$0xff]
      %v413 = vld [vmem:[%s159 + $0x778] sm:$0xff]
      %v414 = vld [vmem:[%s159 + $0x780] sm:$0xff]
      %v415 = vld [vmem:[%s159 + $0x788] sm:$0xff]
      %v416 = vld [vmem:[%s159 + $0x790] sm:$0xff]
      %v417 = vld [vmem:[%s159 + $0x798] sm:$0xff]
      %v418 = vld [vmem:[%s159 + $0x7a0] sm:$0xff]
      %v419 = vld [vmem:[%s159 + $0x7a8] sm:$0xff]
      %v420 = vld [vmem:[%s159 + $0x7b0] sm:$0xff]
      %v421 = vld [vmem:[%s159 + $0x7b8] sm:$0xff]
      %v422 = vld [vmem:[%s159 + $0x7c0] sm:$0xff]
      %v423 = vld [vmem:[%s159 + $0x7c8] sm:$0xff]
      %v424 = vld [vmem:[%s159 + $0x7d0] sm:$0xff]
      %v425 = vld [vmem:[%s159 + $0x7d8] sm:$0xff]
      %v426 = vld [vmem:[%s159 + $0x7e0] sm:$0xff]
      %v427 = vld [vmem:[%s159 + $0x7e8] sm:$0xff]
      %v428 = vld [vmem:[%s159 + $0x7f0] sm:$0xff]
      %v429 = vld [vmem:[%s159 + $0x7f8] sm:$0xff]
      %v430 = vld [vmem:[%s159 + $0x800] sm:$0xff]
      %v431 = vld [vmem:[%s159 + $0x808] sm:$0xff]
      %v432 = vld [vmem:[%s159 + $0x810] sm:$0xff]
      %v433 = vld [vmem:[%s159 + $0x818] sm:$0xff]
      %v434 = vld [vmem:[%s159 + $0x820] sm:$0xff]
      %v435 = vld [vmem:[%s159 + $0x828] sm:$0xff]
      %v436 = vld [vmem:[%s159 + $0x830] sm:$0xff]
      %v437 = vld [vmem:[%s159 + $0x838] sm:$0xff]
      %v438 = vld [vmem:[%s159 + $0x840] sm:$0xff]
      %v439 = vld [vmem:[%s159 + $0x848] sm:$0xff]
      %v440 = vld [vmem:[%s159 + $0x850] sm:$0xff]
      %v441 = vld [vmem:[%s159 + $0x858] sm:$0xff]
      %v442 = vld [vmem:[%s159 + $0x860] sm:$0xff]
      %v443 = vld [vmem:[%s159 + $0x868] sm:$0xff]
      %v444 = vld [vmem:[%s159 + $0x870] sm:$0xff]
      %v445 = vld [vmem:[%s159 + $0x878] sm:$0xff]
      %v446 = vld [vmem:[%s159 + $0x880] sm:$0xff]
      %v447 = vld [vmem:[%s159 + $0x888] sm:$0xff]
      %v448 = vld [vmem:[%s159 + $0x890] sm:$0xff]
      %v449 = vld [vmem:[%s159 + $0x898] sm:$0xff]
      %v450 = vld [vmem:[%s159 + $0x8a0] sm:$0xff]
      %v451 = vld [vmem:[%s159 + $0x8a8] sm:$0xff]
      %v452 = vld [vmem:[%s159 + $0x8b0] sm:$0xff]
      %v453 = vld [vmem:[%s159 + $0x8b8] sm:$0xff]
      %v454 = vld [vmem:[%s159 + $0x8c0] sm:$0xff]
      %v455 = vld [vmem:[%s159 + $0x8c8] sm:$0xff]
      %v456 = vld [vmem:[%s159 + $0x8d0] sm:$0xff]
      %v457 = vld [vmem:[%s159 + $0x8d8] sm:$0xff]
      %v458 = vld [vmem:[%s159 + $0x8e0] sm:$0xff]
      %v459 = vld [vmem:[%s159 + $0x8e8] sm:$0xff]
      %v460 = vld [vmem:[%s159 + $0x8f0] sm:$0xff]
      %v461 = vld [vmem:[%s159 + $0x8f8] sm:$0xff]
      %v462 = vld [vmem:[%s159 + $0x900] sm:$0xff]
      %v463 = vld [vmem:[%s159 + $0x908] sm:$0xff]
      %v464 = vld [vmem:[%s159 + $0x910] sm:$0xff]
      %v465 = vld [vmem:[%s159 + $0x918] sm:$0xff]
      %v466 = vld [vmem:[%s159 + $0x920] sm:$0xff]
      %v467 = vld [vmem:[%s159 + $0x928] sm:$0xff]
      %v468 = vld [vmem:[%s159 + $0x930] sm:$0xff]
      %v469 = vld [vmem:[%s159 + $0x938] sm:$0xff]
      %v470 = vld [vmem:[%s159 + $0x940] sm:$0xff]
      %v471 = vld [vmem:[%s159 + $0x948] sm:$0xff]
      %v472 = vld [vmem:[%s159 + $0x950] sm:$0xff]
      %v473 = vld [vmem:[%s159 + $0x958] sm:$0xff]
      %v474 = vld [vmem:[%s159 + $0x960] sm:$0xff]
      %v475 = vld [vmem:[%s159 + $0x968] sm:$0xff]
      %v476 = vld [vmem:[%s159 + $0x970] sm:$0xff]
      %v477 = vld [vmem:[%s159 + $0x978] sm:$0xff]
      %v478 = vld [vmem:[%s159 + $0x980] sm:$0xff]
      %v479 = vld [vmem:[%s159 + $0x988] sm:$0xff]
      %v480 = vld [vmem:[%s159 + $0x990] sm:$0xff]
      %v481 = vld [vmem:[%s159 + $0x998] sm:$0xff]
      %v482 = vld [vmem:[%s159 + $0x9a0] sm:$0xff]
      %v483 = vld [vmem:[%s159 + $0x9a8] sm:$0xff]
      %v484 = vld [vmem:[%s159 + $0x9b0] sm:$0xff]
      %v485 = vld [vmem:[%s159 + $0x9b8] sm:$0xff]
      %v486 = vld [vmem:[%s159 + $0x9c0] sm:$0xff]
      %v487 = vld [vmem:[%s159 + $0x9c8] sm:$0xff]
      %v488 = vld [vmem:[%s159 + $0x9d0] sm:$0xff]
      %v489 = vld [vmem:[%s159 + $0x9d8] sm:$0xff]
      %v490 = vld [vmem:[%s159 + $0x9e0] sm:$0xff]
      %v491 = vld [vmem:[%s159 + $0x9e8] sm:$0xff]
      %v492 = vld [vmem:[%s159 + $0x9f0] sm:$0xff]
      %v493 = vld [vmem:[%s159 + $0x9f8] sm:$0xff]
      %v494 = vld [vmem:[%s159 + $0xa00] sm:$0xff]
      %v495 = vld [vmem:[%s159 + $0xa08] sm:$0xff]
      %v496 = vld [vmem:[%s159 + $0xa10] sm:$0xff]
      %v497 = vld [vmem:[%s159 + $0xa18] sm:$0xff]
      %v498 = vld [vmem:[%s159 + $0xa20] sm:$0xff]
      %v499 = vld [vmem:[%s159 + $0xa28] sm:$0xff]
      %v500 = vld [vmem:[%s159 + $0xa30] sm:$0xff]
      %v501 = vld [vmem:[%s159 + $0xa38] sm:$0xff]
      %v502 = vld [vmem:[%s159 + $0xa40] sm:$0xff]
      %v503 = vld [vmem:[%s159 + $0xa48] sm:$0xff]
      %v504 = vld [vmem:[%s159 + $0xa50] sm:$0xff]
      %v505 = vld [vmem:[%s159 + $0xa58] sm:$0xff]
      %v506 = vld [vmem:[%s159 + $0xa60] sm:$0xff]
      %v507 = vld [vmem:[%s159 + $0xa68] sm:$0xff]
      %v508 = vld [vmem:[%s159 + $0xa70] sm:$0xff]
      %v509 = vld [vmem:[%s159 + $0xa78] sm:$0xff]
      %v510 = vld [vmem:[%s159 + $0xa80] sm:$0xff]
      %v511 = vld [vmem:[%s159 + $0xa88] sm:$0xff]
      %v512 = vld [vmem:[%s159 + $0xa90] sm:$0xff]
      %v513 = vld [vmem:[%s159 + $0xa98] sm:$0xff]
      %v514 = vld [vmem:[%s159 + $0xaa0] sm:$0xff]
      %v515 = vld [vmem:[%s159 + $0xaa8] sm:$0xff]
      %v516 = vld [vmem:[%s159 + $0xab0] sm:$0xff]
      %v517 = vld [vmem:[%s159 + $0xab8] sm:$0xff]
      %v518 = vld [vmem:[%s159 + $0xac0] sm:$0xff]
      %v519 = vld [vmem:[%s159 + $0xac8] sm:$0xff]
      %v520 = vld [vmem:[%s159 + $0xad0] sm:$0xff]
      %v521 = vld [vmem:[%s159 + $0xad8] sm:$0xff]
      %v522 = vld [vmem:[%s159 + $0xae0] sm:$0xff]
      %v523 = vld [vmem:[%s159 + $0xae8] sm:$0xff]
      %v524 = vld [vmem:[%s159 + $0xaf0] sm:$0xff]
      %v525 = vld [vmem:[%s159 + $0xaf8] sm:$0xff]
      %v526 = vld [vmem:[%s159 + $0xb00] sm:$0xff]
      %v527 = vld [vmem:[%s159 + $0xb08] sm:$0xff]
      %v528 = vld [vmem:[%s159 + $0xb10] sm:$0xff]
      %v529 = vld [vmem:[%s159 + $0xb18] sm:$0xff]
      %v530 = vld [vmem:[%s159 + $0xb20] sm:$0xff]
      %v531 = vld [vmem:[%s159 + $0xb28] sm:$0xff]
      %v532 = vld [vmem:[%s159 + $0xb30] sm:$0xff]
      %v533 = vld [vmem:[%s159 + $0xb38] sm:$0xff]
      %v534 = vld [vmem:[%s159 + $0xb40] sm:$0xff]
      %v535 = vld [vmem:[%s159 + $0xb48] sm:$0xff]
      %v536 = vld [vmem:[%s159 + $0xb50] sm:$0xff]
      %v537 = vld [vmem:[%s159 + $0xb58] sm:$0xff]
      %vm538 = vcmask 556032
      %v539 = vsel %vm538, %v175, 0.0
      %v540 = vadd.f32 %v174, %v539
      %541 = vadd.xlane.f32.xlu0 %v540
      %v542 = vpop.xlane.xlu0 %541
      %v543 = vsel %vm538, %v177, 0.0
      %v544 = vadd.f32 %v176, %v543
      %545 = vadd.xlane.f32.xlu0 %v544
      %v546 = vpop.xlane.xlu0 %545
      %v547 = vsel %vm538, %v179, 0.0
      %v548 = vadd.f32 %v178, %v547
      %549 = vadd.xlane.f32.xlu0 %v548
      %v550 = vpop.xlane.xlu0 %549
      %v551 = vsel %vm538, %v181, 0.0
      %v552 = vadd.f32 %v180, %v551
      %553 = vadd.xlane.f32.xlu0 %v552
      %v554 = vpop.xlane.xlu0 %553
      %v555 = vsel %vm538, %v183, 0.0
      %v556 = vadd.f32 %v182, %v555
      %557 = vadd.xlane.f32.xlu0 %v556
      %v558 = vpop.xlane.xlu0 %557
      %v559 = vsel %vm538, %v185, 0.0
      %v560 = vadd.f32 %v184, %v559
      %561 = vadd.xlane.f32.xlu0 %v560
      %v562 = vpop.xlane.xlu0 %561
      %v563 = vsel %vm538, %v187, 0.0
      %v564 = vadd.f32 %v186, %v563
      %565 = vadd.xlane.f32.xlu0 %v564
      %v566 = vpop.xlane.xlu0 %565
      %v567 = vsel %vm538, %v189, 0.0
      %v568 = vadd.f32 %v188, %v567
      %569 = vadd.xlane.f32.xlu0 %v568
      %v570 = vpop.xlane.xlu0 %569
      %v571 = vsel %vm538, %v191, 0.0
      %v572 = vadd.f32 %v190, %v571
      %573 = vadd.xlane.f32.xlu0 %v572
      %v574 = vpop.xlane.xlu0 %573
      %v575 = vsel %vm538, %v193, 0.0
      %v576 = vadd.f32 %v192, %v575
      %577 = vadd.xlane.f32.xlu0 %v576
      %v578 = vpop.xlane.xlu0 %577
      %v579 = vsel %vm538, %v195, 0.0
      %v580 = vadd.f32 %v194, %v579
      %581 = vadd.xlane.f32.xlu0 %v580
      %v582 = vpop.xlane.xlu0 %581
      %v583 = vsel %vm538, %v197, 0.0
      %v584 = vadd.f32 %v196, %v583
      %585 = vadd.xlane.f32.xlu0 %v584
      %v586 = vpop.xlane.xlu0 %585
      %v587 = vsel %vm538, %v199, 0.0
      %v588 = vadd.f32 %v198, %v587
      %589 = vadd.xlane.f32.xlu0 %v588
      %v590 = vpop.xlane.xlu0 %589
      %v591 = vsel %vm538, %v201, 0.0
      %v592 = vadd.f32 %v200, %v591
      %593 = vadd.xlane.f32.xlu0 %v592
      %v594 = vpop.xlane.xlu0 %593
      %v595 = vsel %vm538, %v203, 0.0
      %v596 = vadd.f32 %v202, %v595
      %597 = vadd.xlane.f32.xlu0 %v596
      %v598 = vpop.xlane.xlu0 %597
      %v599 = vsel %vm538, %v205, 0.0
      %v600 = vadd.f32 %v204, %v599
      %601 = vadd.xlane.f32.xlu0 %v600
      %v602 = vpop.xlane.xlu0 %601
      %v603 = vsel %vm538, %v207, 0.0
      %v604 = vadd.f32 %v206, %v603
      %605 = vadd.xlane.f32.xlu0 %v604
      %v606 = vpop.xlane.xlu0 %605
      %v607 = vsel %vm538, %v209, 0.0
      %v608 = vadd.f32 %v208, %v607
      %609 = vadd.xlane.f32.xlu0 %v608
      %v610 = vpop.xlane.xlu0 %609
      %v611 = vsel %vm538, %v211, 0.0
      %v612 = vadd.f32 %v210, %v611
      %613 = vadd.xlane.f32.xlu0 %v612
      %v614 = vpop.xlane.xlu0 %613
      %v615 = vsel %vm538, %v213, 0.0
      %v616 = vadd.f32 %v212, %v615
      %617 = vadd.xlane.f32.xlu0 %v616
      %v618 = vpop.xlane.xlu0 %617
      %v619 = vsel %vm538, %v215, 0.0
      %v620 = vadd.f32 %v214, %v619
      %621 = vadd.xlane.f32.xlu0 %v620
      %v622 = vpop.xlane.xlu0 %621
      %v623 = vsel %vm538, %v217, 0.0
      %v624 = vadd.f32 %v216, %v623
      %625 = vadd.xlane.f32.xlu0 %v624
      %v626 = vpop.xlane.xlu0 %625
      %v627 = vsel %vm538, %v219, 0.0
      %v628 = vadd.f32 %v218, %v627
      %629 = vadd.xlane.f32.xlu0 %v628
      %v630 = vpop.xlane.xlu0 %629
      %v631 = vsel %vm538, %v221, 0.0
      %v632 = vadd.f32 %v220, %v631
      %633 = vadd.xlane.f32.xlu0 %v632
      %v634 = vpop.xlane.xlu0 %633
      %v635 = vsel %vm538, %v223, 0.0
      %v636 = vadd.f32 %v222, %v635
      %637 = vadd.xlane.f32.xlu0 %v636
      %v638 = vpop.xlane.xlu0 %637
      %v639 = vsel %vm538, %v225, 0.0
      %v640 = vadd.f32 %v224, %v639
      %641 = vadd.xlane.f32.xlu0 %v640
      %v642 = vpop.xlane.xlu0 %641
      %v643 = vsel %vm538, %v227, 0.0
      %v644 = vadd.f32 %v226, %v643
      %645 = vadd.xlane.f32.xlu0 %v644
      %v646 = vpop.xlane.xlu0 %645
      %v647 = vsel %vm538, %v229, 0.0
      %v648 = vadd.f32 %v228, %v647
      %649 = vadd.xlane.f32.xlu0 %v648
      %v650 = vpop.xlane.xlu0 %649
      %v651 = vsel %vm538, %v231, 0.0
      %v652 = vadd.f32 %v230, %v651
      %653 = vadd.xlane.f32.xlu0 %v652
      %v654 = vpop.xlane.xlu0 %653
      %v655 = vsel %vm538, %v233, 0.0
      %v656 = vadd.f32 %v232, %v655
      %657 = vadd.xlane.f32.xlu0 %v656
      %v658 = vpop.xlane.xlu0 %657
      %v659 = vsel %vm538, %v235, 0.0
      %v660 = vadd.f32 %v234, %v659
      %661 = vadd.xlane.f32.xlu0 %v660
      %v662 = vpop.xlane.xlu0 %661
      %v663 = vsel %vm538, %v237, 0.0
      %v664 = vadd.f32 %v236, %v663
      %665 = vadd.xlane.f32.xlu0 %v664
      %v666 = vpop.xlane.xlu0 %665
      %v667 = vsel %vm538, %v239, 0.0
      %v668 = vadd.f32 %v238, %v667
      %669 = vadd.xlane.f32.xlu0 %v668
      %v670 = vpop.xlane.xlu0 %669
      %v671 = vsel %vm538, %v241, 0.0
      %v672 = vadd.f32 %v240, %v671
      %673 = vadd.xlane.f32.xlu0 %v672
      %v674 = vpop.xlane.xlu0 %673
      %v675 = vsel %vm538, %v243, 0.0
      %v676 = vadd.f32 %v242, %v675
      %677 = vadd.xlane.f32.xlu0 %v676
      %v678 = vpop.xlane.xlu0 %677
      %v679 = vsel %vm538, %v245, 0.0
      %v680 = vadd.f32 %v244, %v679
      %681 = vadd.xlane.f32.xlu0 %v680
      %v682 = vpop.xlane.xlu0 %681
      %v683 = vsel %vm538, %v247, 0.0
      %v684 = vadd.f32 %v246, %v683
      %685 = vadd.xlane.f32.xlu0 %v684
      %v686 = vpop.xlane.xlu0 %685
      %v687 = vsel %vm538, %v249, 0.0
      %v688 = vadd.f32 %v248, %v687
      %689 = vadd.xlane.f32.xlu0 %v688
      %v690 = vpop.xlane.xlu0 %689
      %v691 = vsel %vm538, %v251, 0.0
      %v692 = vadd.f32 %v250, %v691
      %693 = vadd.xlane.f32.xlu0 %v692
      %v694 = vpop.xlane.xlu0 %693
      %v695 = vsel %vm538, %v253, 0.0
      %v696 = vadd.f32 %v252, %v695
      %697 = vadd.xlane.f32.xlu0 %v696
      %v698 = vpop.xlane.xlu0 %697
      %v699 = vsel %vm538, %v255, 0.0
      %v700 = vadd.f32 %v254, %v699
      %701 = vadd.xlane.f32.xlu0 %v700
      %v702 = vpop.xlane.xlu0 %701
      %v703 = vsel %vm538, %v257, 0.0
      %v704 = vadd.f32 %v256, %v703
      %705 = vadd.xlane.f32.xlu0 %v704
      %v706 = vpop.xlane.xlu0 %705
      %v707 = vsel %vm538, %v259, 0.0
      %v708 = vadd.f32 %v258, %v707
      %709 = vadd.xlane.f32.xlu0 %v708
      %v710 = vpop.xlane.xlu0 %709
      %v711 = vsel %vm538, %v261, 0.0
      %v712 = vadd.f32 %v260, %v711
      %713 = vadd.xlane.f32.xlu0 %v712
      %v714 = vpop.xlane.xlu0 %713
      %v715 = vsel %vm538, %v263, 0.0
      %v716 = vadd.f32 %v262, %v715
      %717 = vadd.xlane.f32.xlu0 %v716
      %v718 = vpop.xlane.xlu0 %717
      %v719 = vsel %vm538, %v265, 0.0
      %v720 = vadd.f32 %v264, %v719
      %721 = vadd.xlane.f32.xlu0 %v720
      %v722 = vpop.xlane.xlu0 %721
      %v723 = vsel %vm538, %v267, 0.0
      %v724 = vadd.f32 %v266, %v723
      %725 = vadd.xlane.f32.xlu0 %v724
      %v726 = vpop.xlane.xlu0 %725
      %v727 = vsel %vm538, %v269, 0.0
      %v728 = vadd.f32 %v268, %v727
      %729 = vadd.xlane.f32.xlu0 %v728
      %v730 = vpop.xlane.xlu0 %729
      %v731 = vsel %vm538, %v271, 0.0
      %v732 = vadd.f32 %v270, %v731
      %733 = vadd.xlane.f32.xlu0 %v732
      %v734 = vpop.xlane.xlu0 %733
      %v735 = vsel %vm538, %v273, 0.0
      %v736 = vadd.f32 %v272, %v735
      %737 = vadd.xlane.f32.xlu0 %v736
      %v738 = vpop.xlane.xlu0 %737
      %v739 = vsel %vm538, %v275, 0.0
      %v740 = vadd.f32 %v274, %v739
      %741 = vadd.xlane.f32.xlu0 %v740
      %v742 = vpop.xlane.xlu0 %741
      %v743 = vsel %vm538, %v277, 0.0
      %v744 = vadd.f32 %v276, %v743
      %745 = vadd.xlane.f32.xlu0 %v744
      %v746 = vpop.xlane.xlu0 %745
      %v747 = vsel %vm538, %v279, 0.0
      %v748 = vadd.f32 %v278, %v747
      %749 = vadd.xlane.f32.xlu0 %v748
      %v750 = vpop.xlane.xlu0 %749
      %v751 = vsel %vm538, %v281, 0.0
      %v752 = vadd.f32 %v280, %v751
      %753 = vadd.xlane.f32.xlu0 %v752
      %v754 = vpop.xlane.xlu0 %753
      %v755 = vsel %vm538, %v283, 0.0
      %v756 = vadd.f32 %v282, %v755
      %757 = vadd.xlane.f32.xlu0 %v756
      %v758 = vpop.xlane.xlu0 %757
      %v759 = vsel %vm538, %v285, 0.0
      %v760 = vadd.f32 %v284, %v759
      %761 = vadd.xlane.f32.xlu0 %v760
      %v762 = vpop.xlane.xlu0 %761
      %v763 = vsel %vm538, %v287, 0.0
      %v764 = vadd.f32 %v286, %v763
      %765 = vadd.xlane.f32.xlu0 %v764
      %v766 = vpop.xlane.xlu0 %765
      %v767 = vsel %vm538, %v289, 0.0
      %v768 = vadd.f32 %v288, %v767
      %769 = vadd.xlane.f32.xlu0 %v768
      %v770 = vpop.xlane.xlu0 %769
      %v771 = vsel %vm538, %v291, 0.0
      %v772 = vadd.f32 %v290, %v771
      %773 = vadd.xlane.f32.xlu0 %v772
      %v774 = vpop.xlane.xlu0 %773
      %v775 = vsel %vm538, %v293, 0.0
      %v776 = vadd.f32 %v292, %v775
      %777 = vadd.xlane.f32.xlu0 %v776
      %v778 = vpop.xlane.xlu0 %777
      %v779 = vsel %vm538, %v295, 0.0
      %v780 = vadd.f32 %v294, %v779
      %781 = vadd.xlane.f32.xlu0 %v780
      %v782 = vpop.xlane.xlu0 %781
      %v783 = vsel %vm538, %v297, 0.0
      %v784 = vadd.f32 %v296, %v783
      %785 = vadd.xlane.f32.xlu0 %v784
      %v786 = vpop.xlane.xlu0 %785
      %v787 = vsel %vm538, %v299, 0.0
      %v788 = vadd.f32 %v298, %v787
      %789 = vadd.xlane.f32.xlu0 %v788
      %v790 = vpop.xlane.xlu0 %789
      %v791 = vsel %vm538, %v301, 0.0
      %v792 = vadd.f32 %v300, %v791
      %793 = vadd.xlane.f32.xlu0 %v792
      %v794 = vpop.xlane.xlu0 %793
      %v795 = vsel %vm538, %v303, 0.0
      %v796 = vadd.f32 %v302, %v795
      %797 = vadd.xlane.f32.xlu0 %v796
      %v798 = vpop.xlane.xlu0 %797
      %v799 = vsel %vm538, %v305, 0.0
      %v800 = vadd.f32 %v304, %v799
      %801 = vadd.xlane.f32.xlu0 %v800
      %v802 = vpop.xlane.xlu0 %801
      %v803 = vsel %vm538, %v307, 0.0
      %v804 = vadd.f32 %v306, %v803
      %805 = vadd.xlane.f32.xlu0 %v804
      %v806 = vpop.xlane.xlu0 %805
      %v807 = vsel %vm538, %v309, 0.0
      %v808 = vadd.f32 %v308, %v807
      %809 = vadd.xlane.f32.xlu0 %v808
      %v810 = vpop.xlane.xlu0 %809
      %v811 = vsel %vm538, %v311, 0.0
      %v812 = vadd.f32 %v310, %v811
      %813 = vadd.xlane.f32.xlu0 %v812
      %v814 = vpop.xlane.xlu0 %813
      %v815 = vsel %vm538, %v313, 0.0
      %v816 = vadd.f32 %v312, %v815
      %817 = vadd.xlane.f32.xlu0 %v816
      %v818 = vpop.xlane.xlu0 %817
      %v819 = vsel %vm538, %v315, 0.0
      %v820 = vadd.f32 %v314, %v819
      %821 = vadd.xlane.f32.xlu0 %v820
      %v822 = vpop.xlane.xlu0 %821
      %v823 = vsel %vm538, %v317, 0.0
      %v824 = vadd.f32 %v316, %v823
      %825 = vadd.xlane.f32.xlu0 %v824
      %v826 = vpop.xlane.xlu0 %825
      %v827 = vsel %vm538, %v319, 0.0
      %v828 = vadd.f32 %v318, %v827
      %829 = vadd.xlane.f32.xlu0 %v828
      %v830 = vpop.xlane.xlu0 %829
      %v831 = vsel %vm538, %v321, 0.0
      %v832 = vadd.f32 %v320, %v831
      %833 = vadd.xlane.f32.xlu0 %v832
      %v834 = vpop.xlane.xlu0 %833
      %v835 = vsel %vm538, %v323, 0.0
      %v836 = vadd.f32 %v322, %v835
      %837 = vadd.xlane.f32.xlu0 %v836
      %v838 = vpop.xlane.xlu0 %837
      %v839 = vsel %vm538, %v325, 0.0
      %v840 = vadd.f32 %v324, %v839
      %841 = vadd.xlane.f32.xlu0 %v840
      %v842 = vpop.xlane.xlu0 %841
      %v843 = vsel %vm538, %v327, 0.0
      %v844 = vadd.f32 %v326, %v843
      %845 = vadd.xlane.f32.xlu0 %v844
      %v846 = vpop.xlane.xlu0 %845
      %v847 = vsel %vm538, %v329, 0.0
      %v848 = vadd.f32 %v328, %v847
      %849 = vadd.xlane.f32.xlu0 %v848
      %v850 = vpop.xlane.xlu0 %849
      %v851 = vsel %vm538, %v331, 0.0
      %v852 = vadd.f32 %v330, %v851
      %853 = vadd.xlane.f32.xlu0 %v852
      %v854 = vpop.xlane.xlu0 %853
      %v855 = vsel %vm538, %v333, 0.0
      %v856 = vadd.f32 %v332, %v855
      %857 = vadd.xlane.f32.xlu0 %v856
      %v858 = vpop.xlane.xlu0 %857
      %v859 = vsel %vm538, %v335, 0.0
      %v860 = vadd.f32 %v334, %v859
      %861 = vadd.xlane.f32.xlu0 %v860
      %v862 = vpop.xlane.xlu0 %861
      %v863 = vsel %vm538, %v337, 0.0
      %v864 = vadd.f32 %v336, %v863
      %865 = vadd.xlane.f32.xlu0 %v864
      %v866 = vpop.xlane.xlu0 %865
      %v867 = vsel %vm538, %v339, 0.0
      %v868 = vadd.f32 %v338, %v867
      %869 = vadd.xlane.f32.xlu0 %v868
      %v870 = vpop.xlane.xlu0 %869
      %v871 = vsel %vm538, %v341, 0.0
      %v872 = vadd.f32 %v340, %v871
      %873 = vadd.xlane.f32.xlu0 %v872
      %v874 = vpop.xlane.xlu0 %873
      %v875 = vsel %vm538, %v343, 0.0
      %v876 = vadd.f32 %v342, %v875
      %877 = vadd.xlane.f32.xlu0 %v876
      %v878 = vpop.xlane.xlu0 %877
      %v879 = vsel %vm538, %v345, 0.0
      %v880 = vadd.f32 %v344, %v879
      %881 = vadd.xlane.f32.xlu0 %v880
      %v882 = vpop.xlane.xlu0 %881
      %v883 = vsel %vm538, %v347, 0.0
      %v884 = vadd.f32 %v346, %v883
      %885 = vadd.xlane.f32.xlu0 %v884
      %v886 = vpop.xlane.xlu0 %885
      %v887 = vsel %vm538, %v349, 0.0
      %v888 = vadd.f32 %v348, %v887
      %889 = vadd.xlane.f32.xlu0 %v888
      %v890 = vpop.xlane.xlu0 %889
      %v891 = vsel %vm538, %v351, 0.0
      %v892 = vadd.f32 %v350, %v891
      %893 = vadd.xlane.f32.xlu0 %v892
      %v894 = vpop.xlane.xlu0 %893
      %v895 = vsel %vm538, %v353, 0.0
      %v896 = vadd.f32 %v352, %v895
      %897 = vadd.xlane.f32.xlu0 %v896
      %v898 = vpop.xlane.xlu0 %897
      %v899 = vsel %vm538, %v355, 0.0
      %v900 = vadd.f32 %v354, %v899
      %901 = vadd.xlane.f32.xlu0 %v900
      %v902 = vpop.xlane.xlu0 %901
      %v903 = vsel %vm538, %v357, 0.0
      %v904 = vadd.f32 %v356, %v903
      %905 = vadd.xlane.f32.xlu0 %v904
      %v906 = vpop.xlane.xlu0 %905
      %v907 = vsel %vm538, %v359, 0.0
      %v908 = vadd.f32 %v358, %v907
      %909 = vadd.xlane.f32.xlu0 %v908
      %v910 = vpop.xlane.xlu0 %909
      %v911 = vsel %vm538, %v361, 0.0
      %v912 = vadd.f32 %v360, %v911
      %913 = vadd.xlane.f32.xlu0 %v912
      %v914 = vpop.xlane.xlu0 %913
      %v915 = vsel %vm538, %v363, 0.0
      %v916 = vadd.f32 %v362, %v915
      %917 = vadd.xlane.f32.xlu0 %v916
      %v918 = vpop.xlane.xlu0 %917
      %v919 = vsel %vm538, %v365, 0.0
      %v920 = vadd.f32 %v364, %v919
      %921 = vadd.xlane.f32.xlu0 %v920
      %v922 = vpop.xlane.xlu0 %921
      %v923 = vsel %vm538, %v367, 0.0
      %v924 = vadd.f32 %v366, %v923
      %925 = vadd.xlane.f32.xlu0 %v924
      %v926 = vpop.xlane.xlu0 %925
      %v927 = vsel %vm538, %v369, 0.0
      %v928 = vadd.f32 %v368, %v927
      %929 = vadd.xlane.f32.xlu0 %v928
      %v930 = vpop.xlane.xlu0 %929
      %v931 = vsel %vm538, %v371, 0.0
      %v932 = vadd.f32 %v370, %v931
      %933 = vadd.xlane.f32.xlu0 %v932
      %v934 = vpop.xlane.xlu0 %933
      %v935 = vsel %vm538, %v373, 0.0
      %v936 = vadd.f32 %v372, %v935
      %937 = vadd.xlane.f32.xlu0 %v936
      %v938 = vpop.xlane.xlu0 %937
      %v939 = vsel %vm538, %v375, 0.0
      %v940 = vadd.f32 %v374, %v939
      %941 = vadd.xlane.f32.xlu0 %v940
      %v942 = vpop.xlane.xlu0 %941
      %v943 = vsel %vm538, %v377, 0.0
      %v944 = vadd.f32 %v376, %v943
      %945 = vadd.xlane.f32.xlu0 %v944
      %v946 = vpop.xlane.xlu0 %945
      %v947 = vsel %vm538, %v379, 0.0
      %v948 = vadd.f32 %v378, %v947
      %949 = vadd.xlane.f32.xlu0 %v948
      %v950 = vpop.xlane.xlu0 %949
      %v951 = vsel %vm538, %v381, 0.0
      %v952 = vadd.f32 %v380, %v951
      %953 = vadd.xlane.f32.xlu0 %v952
      %v954 = vpop.xlane.xlu0 %953
      %v955 = vsel %vm538, %v383, 0.0
      %v956 = vadd.f32 %v382, %v955
      %957 = vadd.xlane.f32.xlu0 %v956
      %v958 = vpop.xlane.xlu0 %957
      %v959 = vsel %vm538, %v385, 0.0
      %v960 = vadd.f32 %v384, %v959
      %961 = vadd.xlane.f32.xlu0 %v960
      %v962 = vpop.xlane.xlu0 %961
      %v963 = vsel %vm538, %v387, 0.0
      %v964 = vadd.f32 %v386, %v963
      %965 = vadd.xlane.f32.xlu0 %v964
      %v966 = vpop.xlane.xlu0 %965
      %v967 = vsel %vm538, %v389, 0.0
      %v968 = vadd.f32 %v388, %v967
      %969 = vadd.xlane.f32.xlu0 %v968
      %v970 = vpop.xlane.xlu0 %969
      %v971 = vsel %vm538, %v391, 0.0
      %v972 = vadd.f32 %v390, %v971
      %973 = vadd.xlane.f32.xlu0 %v972
      %v974 = vpop.xlane.xlu0 %973
      %v975 = vsel %vm538, %v393, 0.0
      %v976 = vadd.f32 %v392, %v975
      %977 = vadd.xlane.f32.xlu0 %v976
      %v978 = vpop.xlane.xlu0 %977
      %v979 = vsel %vm538, %v395, 0.0
      %v980 = vadd.f32 %v394, %v979
      %981 = vadd.xlane.f32.xlu0 %v980
      %v982 = vpop.xlane.xlu0 %981
      %v983 = vsel %vm538, %v397, 0.0
      %v984 = vadd.f32 %v396, %v983
      %985 = vadd.xlane.f32.xlu0 %v984
      %v986 = vpop.xlane.xlu0 %985
      %v987 = vsel %vm538, %v399, 0.0
      %v988 = vadd.f32 %v398, %v987
      %989 = vadd.xlane.f32.xlu0 %v988
      %v990 = vpop.xlane.xlu0 %989
      %v991 = vsel %vm538, %v401, 0.0
      %v992 = vadd.f32 %v400, %v991
      %993 = vadd.xlane.f32.xlu0 %v992
      %v994 = vpop.xlane.xlu0 %993
      %v995 = vsel %vm538, %v403, 0.0
      %v996 = vadd.f32 %v402, %v995
      %997 = vadd.xlane.f32.xlu0 %v996
      %v998 = vpop.xlane.xlu0 %997
      %v999 = vsel %vm538, %v405, 0.0
      %v1000 = vadd.f32 %v404, %v999
      %1001 = vadd.xlane.f32.xlu0 %v1000
      %v1002 = vpop.xlane.xlu0 %1001
      %v1003 = vsel %vm538, %v407, 0.0
      %v1004 = vadd.f32 %v406, %v1003
      %1005 = vadd.xlane.f32.xlu0 %v1004
      %v1006 = vpop.xlane.xlu0 %1005
      %v1007 = vsel %vm538, %v409, 0.0
      %v1008 = vadd.f32 %v408, %v1007
      %1009 = vadd.xlane.f32.xlu0 %v1008
      %v1010 = vpop.xlane.xlu0 %1009
      %v1011 = vsel %vm538, %v411, 0.0
      %v1012 = vadd.f32 %v410, %v1011
      %1013 = vadd.xlane.f32.xlu0 %v1012
      %v1014 = vpop.xlane.xlu0 %1013
      %v1015 = vsel %vm538, %v413, 0.0
      %v1016 = vadd.f32 %v412, %v1015
      %1017 = vadd.xlane.f32.xlu0 %v1016
      %v1018 = vpop.xlane.xlu0 %1017
      %v1019 = vsel %vm538, %v415, 0.0
      %v1020 = vadd.f32 %v414, %v1019
      %1021 = vadd.xlane.f32.xlu0 %v1020
      %v1022 = vpop.xlane.xlu0 %1021
      %v1023 = vsel %vm538, %v417, 0.0
      %v1024 = vadd.f32 %v416, %v1023
      %1025 = vadd.xlane.f32.xlu0 %v1024
      %v1026 = vpop.xlane.xlu0 %1025
      %v1027 = vsel %vm538, %v419, 0.0
      %v1028 = vadd.f32 %v418, %v1027
      %1029 = vadd.xlane.f32.xlu0 %v1028
      %v1030 = vpop.xlane.xlu0 %1029
      %v1031 = vsel %vm538, %v421, 0.0
      %v1032 = vadd.f32 %v420, %v1031
      %1033 = vadd.xlane.f32.xlu0 %v1032
      %v1034 = vpop.xlane.xlu0 %1033
      %v1035 = vsel %vm538, %v423, 0.0
      %v1036 = vadd.f32 %v422, %v1035
      %1037 = vadd.xlane.f32.xlu0 %v1036
      %v1038 = vpop.xlane.xlu0 %1037
      %v1039 = vsel %vm538, %v425, 0.0
      %v1040 = vadd.f32 %v424, %v1039
      %1041 = vadd.xlane.f32.xlu0 %v1040
      %v1042 = vpop.xlane.xlu0 %1041
      %v1043 = vsel %vm538, %v427, 0.0
      %v1044 = vadd.f32 %v426, %v1043
      %1045 = vadd.xlane.f32.xlu0 %v1044
      %v1046 = vpop.xlane.xlu0 %1045
      %v1047 = vsel %vm538, %v429, 0.0
      %v1048 = vadd.f32 %v428, %v1047
      %1049 = vadd.xlane.f32.xlu0 %v1048
      %v1050 = vpop.xlane.xlu0 %1049
      %v1051 = vsel %vm538, %v431, 0.0
      %v1052 = vadd.f32 %v430, %v1051
      %1053 = vadd.xlane.f32.xlu0 %v1052
      %v1054 = vpop.xlane.xlu0 %1053
      %v1055 = vsel %vm538, %v433, 0.0
      %v1056 = vadd.f32 %v432, %v1055
      %1057 = vadd.xlane.f32.xlu0 %v1056
      %v1058 = vpop.xlane.xlu0 %1057
      %v1059 = vsel %vm538, %v435, 0.0
      %v1060 = vadd.f32 %v434, %v1059
      %1061 = vadd.xlane.f32.xlu0 %v1060
      %v1062 = vpop.xlane.xlu0 %1061
      %v1063 = vsel %vm538, %v437, 0.0
      %v1064 = vadd.f32 %v436, %v1063
      %1065 = vadd.xlane.f32.xlu0 %v1064
      %v1066 = vpop.xlane.xlu0 %1065
      %v1067 = vsel %vm538, %v439, 0.0
      %v1068 = vadd.f32 %v438, %v1067
      %1069 = vadd.xlane.f32.xlu0 %v1068
      %v1070 = vpop.xlane.xlu0 %1069
      %v1071 = vsel %vm538, %v441, 0.0
      %v1072 = vadd.f32 %v440, %v1071
      %1073 = vadd.xlane.f32.xlu0 %v1072
      %v1074 = vpop.xlane.xlu0 %1073
      %v1075 = vsel %vm538, %v443, 0.0
      %v1076 = vadd.f32 %v442, %v1075
      %1077 = vadd.xlane.f32.xlu0 %v1076
      %v1078 = vpop.xlane.xlu0 %1077
      %v1079 = vsel %vm538, %v445, 0.0
      %v1080 = vadd.f32 %v444, %v1079
      %1081 = vadd.xlane.f32.xlu0 %v1080
      %v1082 = vpop.xlane.xlu0 %1081
      %v1083 = vsel %vm538, %v447, 0.0
      %v1084 = vadd.f32 %v446, %v1083
      %1085 = vadd.xlane.f32.xlu0 %v1084
      %v1086 = vpop.xlane.xlu0 %1085
      %v1087 = vsel %vm538, %v449, 0.0
      %v1088 = vadd.f32 %v448, %v1087
      %1089 = vadd.xlane.f32.xlu0 %v1088
      %v1090 = vpop.xlane.xlu0 %1089
      %v1091 = vsel %vm538, %v451, 0.0
      %v1092 = vadd.f32 %v450, %v1091
      %1093 = vadd.xlane.f32.xlu0 %v1092
      %v1094 = vpop.xlane.xlu0 %1093
      %v1095 = vsel %vm538, %v453, 0.0
      %v1096 = vadd.f32 %v452, %v1095
      %1097 = vadd.xlane.f32.xlu0 %v1096
      %v1098 = vpop.xlane.xlu0 %1097
      %v1099 = vsel %vm538, %v455, 0.0
      %v1100 = vadd.f32 %v454, %v1099
      %1101 = vadd.xlane.f32.xlu0 %v1100
      %v1102 = vpop.xlane.xlu0 %1101
      %v1103 = vsel %vm538, %v457, 0.0
      %v1104 = vadd.f32 %v456, %v1103
      %1105 = vadd.xlane.f32.xlu0 %v1104
      %v1106 = vpop.xlane.xlu0 %1105
      %v1107 = vsel %vm538, %v459, 0.0
      %v1108 = vadd.f32 %v458, %v1107
      %1109 = vadd.xlane.f32.xlu0 %v1108
      %v1110 = vpop.xlane.xlu0 %1109
      %v1111 = vsel %vm538, %v461, 0.0
      %v1112 = vadd.f32 %v460, %v1111
      %1113 = vadd.xlane.f32.xlu0 %v1112
      %v1114 = vpop.xlane.xlu0 %1113
      %v1115 = vsel %vm538, %v463, 0.0
      %v1116 = vadd.f32 %v462, %v1115
      %1117 = vadd.xlane.f32.xlu0 %v1116
      %v1118 = vpop.xlane.xlu0 %1117
      %v1119 = vsel %vm538, %v465, 0.0
      %v1120 = vadd.f32 %v464, %v1119
      %1121 = vadd.xlane.f32.xlu0 %v1120
      %v1122 = vpop.xlane.xlu0 %1121
      %v1123 = vsel %vm538, %v467, 0.0
      %v1124 = vadd.f32 %v466, %v1123
      %1125 = vadd.xlane.f32.xlu0 %v1124
      %v1126 = vpop.xlane.xlu0 %1125
      %v1127 = vsel %vm538, %v469, 0.0
      %v1128 = vadd.f32 %v468, %v1127
      %1129 = vadd.xlane.f32.xlu0 %v1128
      %v1130 = vpop.xlane.xlu0 %1129
      %v1131 = vsel %vm538, %v471, 0.0
      %v1132 = vadd.f32 %v470, %v1131
      %1133 = vadd.xlane.f32.xlu0 %v1132
      %v1134 = vpop.xlane.xlu0 %1133
      %v1135 = vsel %vm538, %v473, 0.0
      %v1136 = vadd.f32 %v472, %v1135
      %1137 = vadd.xlane.f32.xlu0 %v1136
      %v1138 = vpop.xlane.xlu0 %1137
      %v1139 = vsel %vm538, %v475, 0.0
      %v1140 = vadd.f32 %v474, %v1139
      %1141 = vadd.xlane.f32.xlu0 %v1140
      %v1142 = vpop.xlane.xlu0 %1141
      %v1143 = vsel %vm538, %v477, 0.0
      %v1144 = vadd.f32 %v476, %v1143
      %1145 = vadd.xlane.f32.xlu0 %v1144
      %v1146 = vpop.xlane.xlu0 %1145
      %v1147 = vsel %vm538, %v479, 0.0
      %v1148 = vadd.f32 %v478, %v1147
      %1149 = vadd.xlane.f32.xlu0 %v1148
      %v1150 = vpop.xlane.xlu0 %1149
      %v1151 = vsel %vm538, %v481, 0.0
      %v1152 = vadd.f32 %v480, %v1151
      %1153 = vadd.xlane.f32.xlu0 %v1152
      %v1154 = vpop.xlane.xlu0 %1153
      %v1155 = vsel %vm538, %v483, 0.0
      %v1156 = vadd.f32 %v482, %v1155
      %1157 = vadd.xlane.f32.xlu0 %v1156
      %v1158 = vpop.xlane.xlu0 %1157
      %v1159 = vsel %vm538, %v485, 0.0
      %v1160 = vadd.f32 %v484, %v1159
      %1161 = vadd.xlane.f32.xlu0 %v1160
      %v1162 = vpop.xlane.xlu0 %1161
      %v1163 = vsel %vm538, %v487, 0.0
      %v1164 = vadd.f32 %v486, %v1163
      %1165 = vadd.xlane.f32.xlu0 %v1164
      %v1166 = vpop.xlane.xlu0 %1165
      %v1167 = vsel %vm538, %v489, 0.0
      %v1168 = vadd.f32 %v488, %v1167
      %1169 = vadd.xlane.f32.xlu0 %v1168
      %v1170 = vpop.xlane.xlu0 %1169
      %v1171 = vsel %vm538, %v491, 0.0
      %v1172 = vadd.f32 %v490, %v1171
      %1173 = vadd.xlane.f32.xlu0 %v1172
      %v1174 = vpop.xlane.xlu0 %1173
      %v1175 = vsel %vm538, %v493, 0.0
      %v1176 = vadd.f32 %v492, %v1175
      %1177 = vadd.xlane.f32.xlu0 %v1176
      %v1178 = vpop.xlane.xlu0 %1177
      %v1179 = vsel %vm538, %v495, 0.0
      %v1180 = vadd.f32 %v494, %v1179
      %1181 = vadd.xlane.f32.xlu0 %v1180
      %v1182 = vpop.xlane.xlu0 %1181
      %v1183 = vsel %vm538, %v497, 0.0
      %v1184 = vadd.f32 %v496, %v1183
      %1185 = vadd.xlane.f32.xlu0 %v1184
      %v1186 = vpop.xlane.xlu0 %1185
      %v1187 = vsel %vm538, %v499, 0.0
      %v1188 = vadd.f32 %v498, %v1187
      %1189 = vadd.xlane.f32.xlu0 %v1188
      %v1190 = vpop.xlane.xlu0 %1189
      %v1191 = vsel %vm538, %v501, 0.0
      %v1192 = vadd.f32 %v500, %v1191
      %1193 = vadd.xlane.f32.xlu0 %v1192
      %v1194 = vpop.xlane.xlu0 %1193
      %v1195 = vsel %vm538, %v503, 0.0
      %v1196 = vadd.f32 %v502, %v1195
      %1197 = vadd.xlane.f32.xlu0 %v1196
      %v1198 = vpop.xlane.xlu0 %1197
      %v1199 = vsel %vm538, %v505, 0.0
      %v1200 = vadd.f32 %v504, %v1199
      %1201 = vadd.xlane.f32.xlu0 %v1200
      %v1202 = vpop.xlane.xlu0 %1201
      %v1203 = vsel %vm538, %v507, 0.0
      %v1204 = vadd.f32 %v506, %v1203
      %1205 = vadd.xlane.f32.xlu0 %v1204
      %v1206 = vpop.xlane.xlu0 %1205
      %v1207 = vsel %vm538, %v509, 0.0
      %v1208 = vadd.f32 %v508, %v1207
      %1209 = vadd.xlane.f32.xlu0 %v1208
      %v1210 = vpop.xlane.xlu0 %1209
      %v1211 = vsel %vm538, %v511, 0.0
      %v1212 = vadd.f32 %v510, %v1211
      %1213 = vadd.xlane.f32.xlu0 %v1212
      %v1214 = vpop.xlane.xlu0 %1213
      %v1215 = vsel %vm538, %v513, 0.0
      %v1216 = vadd.f32 %v512, %v1215
      %1217 = vadd.xlane.f32.xlu0 %v1216
      %v1218 = vpop.xlane.xlu0 %1217
      %v1219 = vsel %vm538, %v515, 0.0
      %v1220 = vadd.f32 %v514, %v1219
      %1221 = vadd.xlane.f32.xlu0 %v1220
      %v1222 = vpop.xlane.xlu0 %1221
      %v1223 = vsel %vm538, %v517, 0.0
      %v1224 = vadd.f32 %v516, %v1223
      %1225 = vadd.xlane.f32.xlu0 %v1224
      %v1226 = vpop.xlane.xlu0 %1225
      %v1227 = vsel %vm538, %v519, 0.0
      %v1228 = vadd.f32 %v518, %v1227
      %1229 = vadd.xlane.f32.xlu0 %v1228
      %v1230 = vpop.xlane.xlu0 %1229
      %v1231 = vsel %vm538, %v521, 0.0
      %v1232 = vadd.f32 %v520, %v1231
      %1233 = vadd.xlane.f32.xlu0 %v1232
      %v1234 = vpop.xlane.xlu0 %1233
      %v1235 = vsel %vm538, %v523, 0.0
      %v1236 = vadd.f32 %v522, %v1235
      %1237 = vadd.xlane.f32.xlu0 %v1236
      %v1238 = vpop.xlane.xlu0 %1237
      %v1239 = vsel %vm538, %v525, 0.0
      %v1240 = vadd.f32 %v524, %v1239
      %1241 = vadd.xlane.f32.xlu0 %v1240
      %v1242 = vpop.xlane.xlu0 %1241
      %v1243 = vsel %vm538, %v527, 0.0
      %v1244 = vadd.f32 %v526, %v1243
      %1245 = vadd.xlane.f32.xlu0 %v1244
      %v1246 = vpop.xlane.xlu0 %1245
      %v1247 = vsel %vm538, %v529, 0.0
      %v1248 = vadd.f32 %v528, %v1247
      %1249 = vadd.xlane.f32.xlu0 %v1248
      %v1250 = vpop.xlane.xlu0 %1249
      %v1251 = vsel %vm538, %v531, 0.0
      %v1252 = vadd.f32 %v530, %v1251
      %1253 = vadd.xlane.f32.xlu0 %v1252
      %v1254 = vpop.xlane.xlu0 %1253
      %v1255 = vsel %vm538, %v533, 0.0
      %v1256 = vadd.f32 %v532, %v1255
      %1257 = vadd.xlane.f32.xlu0 %v1256
      %v1258 = vpop.xlane.xlu0 %1257
      %v1259 = vsel %vm538, %v535, 0.0
      %v1260 = vadd.f32 %v534, %v1259
      %1261 = vadd.xlane.f32.xlu0 %v1260
      %v1262 = vpop.xlane.xlu0 %1261
      %v1263 = vsel %vm538, %v537, 0.0
      %v1264 = vadd.f32 %v536, %v1263
      %1265 = vadd.xlane.f32.xlu0 %v1264
      %v1266 = vpop.xlane.xlu0 %1265
      %v1267 = vmul.f32 %v174, %v174
      %v1268 = vmul.f32 %v175, %v175
      %v1269 = vmul.f32 %v176, %v176
      %v1270 = vmul.f32 %v177, %v177
      %v1271 = vmul.f32 %v178, %v178
      %v1272 = vmul.f32 %v179, %v179
      %v1273 = vmul.f32 %v180, %v180
      %v1274 = vmul.f32 %v181, %v181
      %v1275 = vmul.f32 %v182, %v182
      %v1276 = vmul.f32 %v183, %v183
      %v1277 = vmul.f32 %v184, %v184
      %v1278 = vmul.f32 %v185, %v185
      %v1279 = vmul.f32 %v186, %v186
      %v1280 = vmul.f32 %v187, %v187
      %v1281 = vmul.f32 %v188, %v188
      %v1282 = vmul.f32 %v189, %v189
      %v1283 = vmul.f32 %v190, %v190
      %v1284 = vmul.f32 %v191, %v191
      %v1285 = vmul.f32 %v192, %v192
      %v1286 = vmul.f32 %v193, %v193
      %v1287 = vmul.f32 %v194, %v194
      %v1288 = vmul.f32 %v195, %v195
      %v1289 = vmul.f32 %v196, %v196
      %v1290 = vmul.f32 %v197, %v197
      %v1291 = vmul.f32 %v198, %v198
      %v1292 = vmul.f32 %v199, %v199
      %v1293 = vmul.f32 %v200, %v200
      %v1294 = vmul.f32 %v201, %v201
      %v1295 = vmul.f32 %v202, %v202
      %v1296 = vmul.f32 %v203, %v203
      %v1297 = vmul.f32 %v204, %v204
      %v1298 = vmul.f32 %v205, %v205
      %v1299 = vmul.f32 %v206, %v206
      %v1300 = vmul.f32 %v207, %v207
      %v1301 = vmul.f32 %v208, %v208
      %v1302 = vmul.f32 %v209, %v209
      %v1303 = vmul.f32 %v210, %v210
      %v1304 = vmul.f32 %v211, %v211
      %v1305 = vmul.f32 %v212, %v212
      %v1306 = vmul.f32 %v213, %v213
      %v1307 = vmul.f32 %v214, %v214
      %v1308 = vmul.f32 %v215, %v215
      %v1309 = vmul.f32 %v216, %v216
      %v1310 = vmul.f32 %v217, %v217
      %v1311 = vmul.f32 %v218, %v218
      %v1312 = vmul.f32 %v219, %v219
      %v1313 = vmul.f32 %v220, %v220
      %v1314 = vmul.f32 %v221, %v221
      %v1315 = vmul.f32 %v222, %v222
      %v1316 = vmul.f32 %v223, %v223
      %v1317 = vmul.f32 %v224, %v224
      %v1318 = vmul.f32 %v225, %v225
      %v1319 = vmul.f32 %v226, %v226
      %v1320 = vmul.f32 %v227, %v227
      %v1321 = vmul.f32 %v228, %v228
      %v1322 = vmul.f32 %v229, %v229
      %v1323 = vmul.f32 %v230, %v230
      %v1324 = vmul.f32 %v231, %v231
      %v1325 = vmul.f32 %v232, %v232
      %v1326 = vmul.f32 %v233, %v233
      %v1327 = vmul.f32 %v234, %v234
      %v1328 = vmul.f32 %v235, %v235
      %v1329 = vmul.f32 %v236, %v236
      %v1330 = vmul.f32 %v237, %v237
      %v1331 = vmul.f32 %v238, %v238
      %v1332 = vmul.f32 %v239, %v239
      %v1333 = vmul.f32 %v240, %v240
      %v1334 = vmul.f32 %v241, %v241
      %v1335 = vmul.f32 %v242, %v242
      %v1336 = vmul.f32 %v243, %v243
      %v1337 = vmul.f32 %v244, %v244
      %v1338 = vmul.f32 %v245, %v245
      %v1339 = vmul.f32 %v246, %v246
      %v1340 = vmul.f32 %v247, %v247
      %v1341 = vmul.f32 %v248, %v248
      %v1342 = vmul.f32 %v249, %v249
      %v1343 = vmul.f32 %v250, %v250
      %v1344 = vmul.f32 %v251, %v251
      %v1345 = vmul.f32 %v252, %v252
      %v1346 = vmul.f32 %v253, %v253
      %v1347 = vmul.f32 %v254, %v254
      %v1348 = vmul.f32 %v255, %v255
      %v1349 = vmul.f32 %v256, %v256
      %v1350 = vmul.f32 %v257, %v257
      %v1351 = vmul.f32 %v258, %v258
      %v1352 = vmul.f32 %v259, %v259
      %v1353 = vmul.f32 %v260, %v260
      %v1354 = vmul.f32 %v261, %v261
      %v1355 = vmul.f32 %v262, %v262
      %v1356 = vmul.f32 %v263, %v263
      %v1357 = vmul.f32 %v264, %v264
      %v1358 = vmul.f32 %v265, %v265
      %v1359 = vmul.f32 %v266, %v266
      %v1360 = vmul.f32 %v267, %v267
      %v1361 = vmul.f32 %v268, %v268
      %v1362 = vmul.f32 %v269, %v269
      %v1363 = vmul.f32 %v270, %v270
      %v1364 = vmul.f32 %v271, %v271
      %v1365 = vmul.f32 %v272, %v272
      %v1366 = vmul.f32 %v273, %v273
      %v1367 = vmul.f32 %v274, %v274
      %v1368 = vmul.f32 %v275, %v275
      %v1369 = vmul.f32 %v276, %v276
      %v1370 = vmul.f32 %v277, %v277
      %v1371 = vmul.f32 %v278, %v278
      %v1372 = vmul.f32 %v279, %v279
      %v1373 = vmul.f32 %v280, %v280
      %v1374 = vmul.f32 %v281, %v281
      %v1375 = vmul.f32 %v282, %v282
      %v1376 = vmul.f32 %v283, %v283
      %v1377 = vmul.f32 %v284, %v284
      %v1378 = vmul.f32 %v285, %v285
      %v1379 = vmul.f32 %v286, %v286
      %v1380 = vmul.f32 %v287, %v287
      %v1381 = vmul.f32 %v288, %v288
      %v1382 = vmul.f32 %v289, %v289
      %v1383 = vmul.f32 %v290, %v290
      %v1384 = vmul.f32 %v291, %v291
      %v1385 = vmul.f32 %v292, %v292
      %v1386 = vmul.f32 %v293, %v293
      %v1387 = vmul.f32 %v294, %v294
      %v1388 = vmul.f32 %v295, %v295
      %v1389 = vmul.f32 %v296, %v296
      %v1390 = vmul.f32 %v297, %v297
      %v1391 = vmul.f32 %v298, %v298
      %v1392 = vmul.f32 %v299, %v299
      %v1393 = vmul.f32 %v300, %v300
      %v1394 = vmul.f32 %v301, %v301
      %v1395 = vmul.f32 %v302, %v302
      %v1396 = vmul.f32 %v303, %v303
      %v1397 = vmul.f32 %v304, %v304
      %v1398 = vmul.f32 %v305, %v305
      %v1399 = vmul.f32 %v306, %v306
      %v1400 = vmul.f32 %v307, %v307
      %v1401 = vmul.f32 %v308, %v308
      %v1402 = vmul.f32 %v309, %v309
      %v1403 = vmul.f32 %v310, %v310
      %v1404 = vmul.f32 %v311, %v311
      %v1405 = vmul.f32 %v312, %v312
      %v1406 = vmul.f32 %v313, %v313
      %v1407 = vmul.f32 %v314, %v314
      %v1408 = vmul.f32 %v315, %v315
      %v1409 = vmul.f32 %v316, %v316
      %v1410 = vmul.f32 %v317, %v317
      %v1411 = vmul.f32 %v318, %v318
      %v1412 = vmul.f32 %v319, %v319
      %v1413 = vmul.f32 %v320, %v320
      %v1414 = vmul.f32 %v321, %v321
      %v1415 = vmul.f32 %v322, %v322
      %v1416 = vmul.f32 %v323, %v323
      %v1417 = vmul.f32 %v324, %v324
      %v1418 = vmul.f32 %v325, %v325
      %v1419 = vmul.f32 %v326, %v326
      %v1420 = vmul.f32 %v327, %v327
      %v1421 = vmul.f32 %v328, %v328
      %v1422 = vmul.f32 %v329, %v329
      %v1423 = vmul.f32 %v330, %v330
      %v1424 = vmul.f32 %v331, %v331
      %v1425 = vmul.f32 %v332, %v332
      %v1426 = vmul.f32 %v333, %v333
      %v1427 = vmul.f32 %v334, %v334
      %v1428 = vmul.f32 %v335, %v335
      %v1429 = vmul.f32 %v336, %v336
      %v1430 = vmul.f32 %v337, %v337
      %v1431 = vmul.f32 %v338, %v338
      %v1432 = vmul.f32 %v339, %v339
      %v1433 = vmul.f32 %v340, %v340
      %v1434 = vmul.f32 %v341, %v341
      %v1435 = vmul.f32 %v342, %v342
      %v1436 = vmul.f32 %v343, %v343
      %v1437 = vmul.f32 %v344, %v344
      %v1438 = vmul.f32 %v345, %v345
      %v1439 = vmul.f32 %v346, %v346
      %v1440 = vmul.f32 %v347, %v347
      %v1441 = vmul.f32 %v348, %v348
      %v1442 = vmul.f32 %v349, %v349
      %v1443 = vmul.f32 %v350, %v350
      %v1444 = vmul.f32 %v351, %v351
      %v1445 = vmul.f32 %v352, %v352
      %v1446 = vmul.f32 %v353, %v353
      %v1447 = vmul.f32 %v354, %v354
      %v1448 = vmul.f32 %v355, %v355
      %v1449 = vmul.f32 %v356, %v356
      %v1450 = vmul.f32 %v357, %v357
      %v1451 = vmul.f32 %v358, %v358
      %v1452 = vmul.f32 %v359, %v359
      %v1453 = vmul.f32 %v360, %v360
      %v1454 = vmul.f32 %v361, %v361
      %v1455 = vmul.f32 %v362, %v362
      %v1456 = vmul.f32 %v363, %v363
      %v1457 = vmul.f32 %v364, %v364
      %v1458 = vmul.f32 %v365, %v365
      %v1459 = vmul.f32 %v366, %v366
      %v1460 = vmul.f32 %v367, %v367
      %v1461 = vmul.f32 %v368, %v368
      %v1462 = vmul.f32 %v369, %v369
      %v1463 = vmul.f32 %v370, %v370
      %v1464 = vmul.f32 %v371, %v371
      %v1465 = vmul.f32 %v372, %v372
      %v1466 = vmul.f32 %v373, %v373
      %v1467 = vmul.f32 %v374, %v374
      %v1468 = vmul.f32 %v375, %v375
      %v1469 = vmul.f32 %v376, %v376
      %v1470 = vmul.f32 %v377, %v377
      %v1471 = vmul.f32 %v378, %v378
      %v1472 = vmul.f32 %v379, %v379
      %v1473 = vmul.f32 %v380, %v380
      %v1474 = vmul.f32 %v381, %v381
      %v1475 = vmul.f32 %v382, %v382
      %v1476 = vmul.f32 %v383, %v383
      %v1477 = vmul.f32 %v384, %v384
      %v1478 = vmul.f32 %v385, %v385
      %v1479 = vmul.f32 %v386, %v386
      %v1480 = vmul.f32 %v387, %v387
      %v1481 = vmul.f32 %v388, %v388
      %v1482 = vmul.f32 %v389, %v389
      %v1483 = vmul.f32 %v390, %v390
      %v1484 = vmul.f32 %v391, %v391
      %v1485 = vmul.f32 %v392, %v392
      %v1486 = vmul.f32 %v393, %v393
      %v1487 = vmul.f32 %v394, %v394
      %v1488 = vmul.f32 %v395, %v395
      %v1489 = vmul.f32 %v396, %v396
      %v1490 = vmul.f32 %v397, %v397
      %v1491 = vmul.f32 %v398, %v398
      %v1492 = vmul.f32 %v399, %v399
      %v1493 = vmul.f32 %v400, %v400
      %v1494 = vmul.f32 %v401, %v401
      %v1495 = vmul.f32 %v402, %v402
      %v1496 = vmul.f32 %v403, %v403
      %v1497 = vmul.f32 %v404, %v404
      %v1498 = vmul.f32 %v405, %v405
      %v1499 = vmul.f32 %v406, %v406
      %v1500 = vmul.f32 %v407, %v407
      %v1501 = vmul.f32 %v408, %v408
      %v1502 = vmul.f32 %v409, %v409
      %v1503 = vmul.f32 %v410, %v410
      %v1504 = vmul.f32 %v411, %v411
      %v1505 = vmul.f32 %v412, %v412
      %v1506 = vmul.f32 %v413, %v413
      %v1507 = vmul.f32 %v414, %v414
      %v1508 = vmul.f32 %v415, %v415
      %v1509 = vmul.f32 %v416, %v416
      %v1510 = vmul.f32 %v417, %v417
      %v1511 = vmul.f32 %v418, %v418
      %v1512 = vmul.f32 %v419, %v419
      %v1513 = vmul.f32 %v420, %v420
      %v1514 = vmul.f32 %v421, %v421
      %v1515 = vmul.f32 %v422, %v422
      %v1516 = vmul.f32 %v423, %v423
      %v1517 = vmul.f32 %v424, %v424
      %v1518 = vmul.f32 %v425, %v425
      %v1519 = vmul.f32 %v426, %v426
      %v1520 = vmul.f32 %v427, %v427
      %v1521 = vmul.f32 %v428, %v428
      %v1522 = vmul.f32 %v429, %v429
      %v1523 = vmul.f32 %v430, %v430
      %v1524 = vmul.f32 %v431, %v431
      %v1525 = vmul.f32 %v432, %v432
      %v1526 = vmul.f32 %v433, %v433
      %v1527 = vmul.f32 %v434, %v434
      %v1528 = vmul.f32 %v435, %v435
      %v1529 = vmul.f32 %v436, %v436
      %v1530 = vmul.f32 %v437, %v437
      %v1531 = vmul.f32 %v438, %v438
      %v1532 = vmul.f32 %v439, %v439
      %v1533 = vmul.f32 %v440, %v440
      %v1534 = vmul.f32 %v441, %v441
      %v1535 = vmul.f32 %v442, %v442
      %v1536 = vmul.f32 %v443, %v443
      %v1537 = vmul.f32 %v444, %v444
      %v1538 = vmul.f32 %v445, %v445
      %v1539 = vmul.f32 %v446, %v446
      %v1540 = vmul.f32 %v447, %v447
      %v1541 = vmul.f32 %v448, %v448
      %v1542 = vmul.f32 %v449, %v449
      %v1543 = vmul.f32 %v450, %v450
      %v1544 = vmul.f32 %v451, %v451
      %v1545 = vmul.f32 %v452, %v452
      %v1546 = vmul.f32 %v453, %v453
      %v1547 = vmul.f32 %v454, %v454
      %v1548 = vmul.f32 %v455, %v455
      %v1549 = vmul.f32 %v456, %v456
      %v1550 = vmul.f32 %v457, %v457
      %v1551 = vmul.f32 %v458, %v458
      %v1552 = vmul.f32 %v459, %v459
      %v1553 = vmul.f32 %v460, %v460
      %v1554 = vmul.f32 %v461, %v461
      %v1555 = vmul.f32 %v462, %v462
      %v1556 = vmul.f32 %v463, %v463
      %v1557 = vmul.f32 %v464, %v464
      %v1558 = vmul.f32 %v465, %v465
      %v1559 = vmul.f32 %v466, %v466
      %v1560 = vmul.f32 %v467, %v467
      %v1561 = vmul.f32 %v468, %v468
      %v1562 = vmul.f32 %v469, %v469
      %v1563 = vmul.f32 %v470, %v470
      %v1564 = vmul.f32 %v471, %v471
      %v1565 = vmul.f32 %v472, %v472
      %v1566 = vmul.f32 %v473, %v473
      %v1567 = vmul.f32 %v474, %v474
      %v1568 = vmul.f32 %v475, %v475
      %v1569 = vmul.f32 %v476, %v476
      %v1570 = vmul.f32 %v477, %v477
      %v1571 = vmul.f32 %v478, %v478
      %v1572 = vmul.f32 %v479, %v479
      %v1573 = vmul.f32 %v480, %v480
      %v1574 = vmul.f32 %v481, %v481
      %v1575 = vmul.f32 %v482, %v482
      %v1576 = vmul.f32 %v483, %v483
      %v1577 = vmul.f32 %v484, %v484
      %v1578 = vmul.f32 %v485, %v485
      %v1579 = vmul.f32 %v486, %v486
      %v1580 = vmul.f32 %v487, %v487
      %v1581 = vmul.f32 %v488, %v488
      %v1582 = vmul.f32 %v489, %v489
      %v1583 = vmul.f32 %v490, %v490
      %v1584 = vmul.f32 %v491, %v491
      %v1585 = vmul.f32 %v492, %v492
      %v1586 = vmul.f32 %v493, %v493
      %v1587 = vmul.f32 %v494, %v494
      %v1588 = vmul.f32 %v495, %v495
      %v1589 = vmul.f32 %v496, %v496
      %v1590 = vmul.f32 %v497, %v497
      %v1591 = vmul.f32 %v498, %v498
      %v1592 = vmul.f32 %v499, %v499
      %v1593 = vmul.f32 %v500, %v500
      %v1594 = vmul.f32 %v501, %v501
      %v1595 = vmul.f32 %v502, %v502
      %v1596 = vmul.f32 %v503, %v503
      %v1597 = vmul.f32 %v504, %v504
      %v1598 = vmul.f32 %v505, %v505
      %v1599 = vmul.f32 %v506, %v506
      %v1600 = vmul.f32 %v507, %v507
      %v1601 = vmul.f32 %v508, %v508
      %v1602 = vmul.f32 %v509, %v509
      %v1603 = vmul.f32 %v510, %v510
      %v1604 = vmul.f32 %v511, %v511
      %v1605 = vmul.f32 %v512, %v512
      %v1606 = vmul.f32 %v513, %v513
      %v1607 = vmul.f32 %v514, %v514
      %v1608 = vmul.f32 %v515, %v515
      %v1609 = vmul.f32 %v516, %v516
      %v1610 = vmul.f32 %v517, %v517
      %v1611 = vmul.f32 %v518, %v518
      %v1612 = vmul.f32 %v519, %v519
      %v1613 = vmul.f32 %v520, %v520
      %v1614 = vmul.f32 %v521, %v521
      %v1615 = vmul.f32 %v522, %v522
      %v1616 = vmul.f32 %v523, %v523
      %v1617 = vmul.f32 %v524, %v524
      %v1618 = vmul.f32 %v525, %v525
      %v1619 = vmul.f32 %v526, %v526
      %v1620 = vmul.f32 %v527, %v527
      %v1621 = vmul.f32 %v528, %v528
      %v1622 = vmul.f32 %v529, %v529
      %v1623 = vmul.f32 %v530, %v530
      %v1624 = vmul.f32 %v531, %v531
      %v1625 = vmul.f32 %v532, %v532
      %v1626 = vmul.f32 %v533, %v533
      %v1627 = vmul.f32 %v534, %v534
      %v1628 = vmul.f32 %v535, %v535
      %v1629 = vmul.f32 %v536, %v536
      %v1630 = vmul.f32 %v537, %v537
      %v1631 = vsel %vm538, %v1268, 0.0
      %v1632 = vadd.f32 %v1267, %v1631
      %1633 = vadd.xlane.f32.xlu0 %v1632
      %v1634 = vpop.xlane.xlu0 %1633
      %v1635 = vsel %vm538, %v1270, 0.0
      %v1636 = vadd.f32 %v1269, %v1635
      %1637 = vadd.xlane.f32.xlu0 %v1636
      %v1638 = vpop.xlane.xlu0 %1637
      %v1639 = vsel %vm538, %v1272, 0.0
      %v1640 = vadd.f32 %v1271, %v1639
      %1641 = vadd.xlane.f32.xlu0 %v1640
      %v1642 = vpop.xlane.xlu0 %1641
      %v1643 = vsel %vm538, %v1274, 0.0
      %v1644 = vadd.f32 %v1273, %v1643
      %1645 = vadd.xlane.f32.xlu0 %v1644
      %v1646 = vpop.xlane.xlu0 %1645
      %v1647 = vsel %vm538, %v1276, 0.0
      %v1648 = vadd.f32 %v1275, %v1647
      %1649 = vadd.xlane.f32.xlu0 %v1648
      %v1650 = vpop.xlane.xlu0 %1649
      %v1651 = vsel %vm538, %v1278, 0.0
      %v1652 = vadd.f32 %v1277, %v1651
      %1653 = vadd.xlane.f32.xlu0 %v1652
      %v1654 = vpop.xlane.xlu0 %1653
      %v1655 = vsel %vm538, %v1280, 0.0
      %v1656 = vadd.f32 %v1279, %v1655
      %1657 = vadd.xlane.f32.xlu0 %v1656
      %v1658 = vpop.xlane.xlu0 %1657
      %v1659 = vsel %vm538, %v1282, 0.0
      %v1660 = vadd.f32 %v1281, %v1659
      %1661 = vadd.xlane.f32.xlu0 %v1660
      %v1662 = vpop.xlane.xlu0 %1661
      %v1663 = vsel %vm538, %v1284, 0.0
      %v1664 = vadd.f32 %v1283, %v1663
      %1665 = vadd.xlane.f32.xlu0 %v1664
      %v1666 = vpop.xlane.xlu0 %1665
      %v1667 = vsel %vm538, %v1286, 0.0
      %v1668 = vadd.f32 %v1285, %v1667
      %1669 = vadd.xlane.f32.xlu0 %v1668
      %v1670 = vpop.xlane.xlu0 %1669
      %v1671 = vsel %vm538, %v1288, 0.0
      %v1672 = vadd.f32 %v1287, %v1671
      %1673 = vadd.xlane.f32.xlu0 %v1672
      %v1674 = vpop.xlane.xlu0 %1673
      %v1675 = vsel %vm538, %v1290, 0.0
      %v1676 = vadd.f32 %v1289, %v1675
      %1677 = vadd.xlane.f32.xlu0 %v1676
      %v1678 = vpop.xlane.xlu0 %1677
      %v1679 = vsel %vm538, %v1292, 0.0
      %v1680 = vadd.f32 %v1291, %v1679
      %1681 = vadd.xlane.f32.xlu0 %v1680
      %v1682 = vpop.xlane.xlu0 %1681
      %v1683 = vsel %vm538, %v1294, 0.0
      %v1684 = vadd.f32 %v1293, %v1683
      %1685 = vadd.xlane.f32.xlu0 %v1684
      %v1686 = vpop.xlane.xlu0 %1685
      %v1687 = vsel %vm538, %v1296, 0.0
      %v1688 = vadd.f32 %v1295, %v1687
      %1689 = vadd.xlane.f32.xlu0 %v1688
      %v1690 = vpop.xlane.xlu0 %1689
      %v1691 = vsel %vm538, %v1298, 0.0
      %v1692 = vadd.f32 %v1297, %v1691
      %1693 = vadd.xlane.f32.xlu0 %v1692
      %v1694 = vpop.xlane.xlu0 %1693
      %v1695 = vsel %vm538, %v1300, 0.0
      %v1696 = vadd.f32 %v1299, %v1695
      %1697 = vadd.xlane.f32.xlu0 %v1696
      %v1698 = vpop.xlane.xlu0 %1697
      %v1699 = vsel %vm538, %v1302, 0.0
      %v1700 = vadd.f32 %v1301, %v1699
      %1701 = vadd.xlane.f32.xlu0 %v1700
      %v1702 = vpop.xlane.xlu0 %1701
      %v1703 = vsel %vm538, %v1304, 0.0
      %v1704 = vadd.f32 %v1303, %v1703
      %1705 = vadd.xlane.f32.xlu0 %v1704
      %v1706 = vpop.xlane.xlu0 %1705
      %v1707 = vsel %vm538, %v1306, 0.0
      %v1708 = vadd.f32 %v1305, %v1707
      %1709 = vadd.xlane.f32.xlu0 %v1708
      %v1710 = vpop.xlane.xlu0 %1709
      %v1711 = vsel %vm538, %v1308, 0.0
      %v1712 = vadd.f32 %v1307, %v1711
      %1713 = vadd.xlane.f32.xlu0 %v1712
      %v1714 = vpop.xlane.xlu0 %1713
      %v1715 = vsel %vm538, %v1310, 0.0
      %v1716 = vadd.f32 %v1309, %v1715
      %1717 = vadd.xlane.f32.xlu0 %v1716
      %v1718 = vpop.xlane.xlu0 %1717
      %v1719 = vsel %vm538, %v1312, 0.0
      %v1720 = vadd.f32 %v1311, %v1719
      %1721 = vadd.xlane.f32.xlu0 %v1720
      %v1722 = vpop.xlane.xlu0 %1721
      %v1723 = vsel %vm538, %v1314, 0.0
      %v1724 = vadd.f32 %v1313, %v1723
      %1725 = vadd.xlane.f32.xlu0 %v1724
      %v1726 = vpop.xlane.xlu0 %1725
      %v1727 = vsel %vm538, %v1316, 0.0
      %v1728 = vadd.f32 %v1315, %v1727
      %1729 = vadd.xlane.f32.xlu0 %v1728
      %v1730 = vpop.xlane.xlu0 %1729
      %v1731 = vsel %vm538, %v1318, 0.0
      %v1732 = vadd.f32 %v1317, %v1731
      %1733 = vadd.xlane.f32.xlu0 %v1732
      %v1734 = vpop.xlane.xlu0 %1733
      %v1735 = vsel %vm538, %v1320, 0.0
      %v1736 = vadd.f32 %v1319, %v1735
      %1737 = vadd.xlane.f32.xlu0 %v1736
      %v1738 = vpop.xlane.xlu0 %1737
      %v1739 = vsel %vm538, %v1322, 0.0
      %v1740 = vadd.f32 %v1321, %v1739
      %1741 = vadd.xlane.f32.xlu0 %v1740
      %v1742 = vpop.xlane.xlu0 %1741
      %v1743 = vsel %vm538, %v1324, 0.0
      %v1744 = vadd.f32 %v1323, %v1743
      %1745 = vadd.xlane.f32.xlu0 %v1744
      %v1746 = vpop.xlane.xlu0 %1745
      %v1747 = vsel %vm538, %v1326, 0.0
      %v1748 = vadd.f32 %v1325, %v1747
      %1749 = vadd.xlane.f32.xlu0 %v1748
      %v1750 = vpop.xlane.xlu0 %1749
      %v1751 = vsel %vm538, %v1328, 0.0
      %v1752 = vadd.f32 %v1327, %v1751
      %1753 = vadd.xlane.f32.xlu0 %v1752
      %v1754 = vpop.xlane.xlu0 %1753
      %v1755 = vsel %vm538, %v1330, 0.0
      %v1756 = vadd.f32 %v1329, %v1755
      %1757 = vadd.xlane.f32.xlu0 %v1756
      %v1758 = vpop.xlane.xlu0 %1757
      %v1759 = vsel %vm538, %v1332, 0.0
      %v1760 = vadd.f32 %v1331, %v1759
      %1761 = vadd.xlane.f32.xlu0 %v1760
      %v1762 = vpop.xlane.xlu0 %1761
      %v1763 = vsel %vm538, %v1334, 0.0
      %v1764 = vadd.f32 %v1333, %v1763
      %1765 = vadd.xlane.f32.xlu0 %v1764
      %v1766 = vpop.xlane.xlu0 %1765
      %v1767 = vsel %vm538, %v1336, 0.0
      %v1768 = vadd.f32 %v1335, %v1767
      %1769 = vadd.xlane.f32.xlu0 %v1768
      %v1770 = vpop.xlane.xlu0 %1769
      %v1771 = vsel %vm538, %v1338, 0.0
      %v1772 = vadd.f32 %v1337, %v1771
      %1773 = vadd.xlane.f32.xlu0 %v1772
      %v1774 = vpop.xlane.xlu0 %1773
      %v1775 = vsel %vm538, %v1340, 0.0
      %v1776 = vadd.f32 %v1339, %v1775
      %1777 = vadd.xlane.f32.xlu0 %v1776
      %v1778 = vpop.xlane.xlu0 %1777
      %v1779 = vsel %vm538, %v1342, 0.0
      %v1780 = vadd.f32 %v1341, %v1779
      %1781 = vadd.xlane.f32.xlu0 %v1780
      %v1782 = vpop.xlane.xlu0 %1781
      %v1783 = vsel %vm538, %v1344, 0.0
      %v1784 = vadd.f32 %v1343, %v1783
      %1785 = vadd.xlane.f32.xlu0 %v1784
      %v1786 = vpop.xlane.xlu0 %1785
      %v1787 = vsel %vm538, %v1346, 0.0
      %v1788 = vadd.f32 %v1345, %v1787
      %1789 = vadd.xlane.f32.xlu0 %v1788
      %v1790 = vpop.xlane.xlu0 %1789
      %v1791 = vsel %vm538, %v1348, 0.0
      %v1792 = vadd.f32 %v1347, %v1791
      %1793 = vadd.xlane.f32.xlu0 %v1792
      %v1794 = vpop.xlane.xlu0 %1793
      %v1795 = vsel %vm538, %v1350, 0.0
      %v1796 = vadd.f32 %v1349, %v1795
      %1797 = vadd.xlane.f32.xlu0 %v1796
      %v1798 = vpop.xlane.xlu0 %1797
      %v1799 = vsel %vm538, %v1352, 0.0
      %v1800 = vadd.f32 %v1351, %v1799
      %1801 = vadd.xlane.f32.xlu0 %v1800
      %v1802 = vpop.xlane.xlu0 %1801
      %v1803 = vsel %vm538, %v1354, 0.0
      %v1804 = vadd.f32 %v1353, %v1803
      %1805 = vadd.xlane.f32.xlu0 %v1804
      %v1806 = vpop.xlane.xlu0 %1805
      %v1807 = vsel %vm538, %v1356, 0.0
      %v1808 = vadd.f32 %v1355, %v1807
      %1809 = vadd.xlane.f32.xlu0 %v1808
      %v1810 = vpop.xlane.xlu0 %1809
      %v1811 = vsel %vm538, %v1358, 0.0
      %v1812 = vadd.f32 %v1357, %v1811
      %1813 = vadd.xlane.f32.xlu0 %v1812
      %v1814 = vpop.xlane.xlu0 %1813
      %v1815 = vsel %vm538, %v1360, 0.0
      %v1816 = vadd.f32 %v1359, %v1815
      %1817 = vadd.xlane.f32.xlu0 %v1816
      %v1818 = vpop.xlane.xlu0 %1817
      %v1819 = vsel %vm538, %v1362, 0.0
      %v1820 = vadd.f32 %v1361, %v1819
      %1821 = vadd.xlane.f32.xlu0 %v1820
      %v1822 = vpop.xlane.xlu0 %1821
      %v1823 = vsel %vm538, %v1364, 0.0
      %v1824 = vadd.f32 %v1363, %v1823
      %1825 = vadd.xlane.f32.xlu0 %v1824
      %v1826 = vpop.xlane.xlu0 %1825
      %v1827 = vsel %vm538, %v1366, 0.0
      %v1828 = vadd.f32 %v1365, %v1827
      %1829 = vadd.xlane.f32.xlu0 %v1828
      %v1830 = vpop.xlane.xlu0 %1829
      %v1831 = vsel %vm538, %v1368, 0.0
      %v1832 = vadd.f32 %v1367, %v1831
      %1833 = vadd.xlane.f32.xlu0 %v1832
      %v1834 = vpop.xlane.xlu0 %1833
      %v1835 = vsel %vm538, %v1370, 0.0
      %v1836 = vadd.f32 %v1369, %v1835
      %1837 = vadd.xlane.f32.xlu0 %v1836
      %v1838 = vpop.xlane.xlu0 %1837
      %v1839 = vsel %vm538, %v1372, 0.0
      %v1840 = vadd.f32 %v1371, %v1839
      %1841 = vadd.xlane.f32.xlu0 %v1840
      %v1842 = vpop.xlane.xlu0 %1841
      %v1843 = vsel %vm538, %v1374, 0.0
      %v1844 = vadd.f32 %v1373, %v1843
      %1845 = vadd.xlane.f32.xlu0 %v1844
      %v1846 = vpop.xlane.xlu0 %1845
      %v1847 = vsel %vm538, %v1376, 0.0
      %v1848 = vadd.f32 %v1375, %v1847
      %1849 = vadd.xlane.f32.xlu0 %v1848
      %v1850 = vpop.xlane.xlu0 %1849
      %v1851 = vsel %vm538, %v1378, 0.0
      %v1852 = vadd.f32 %v1377, %v1851
      %1853 = vadd.xlane.f32.xlu0 %v1852
      %v1854 = vpop.xlane.xlu0 %1853
      %v1855 = vsel %vm538, %v1380, 0.0
      %v1856 = vadd.f32 %v1379, %v1855
      %1857 = vadd.xlane.f32.xlu0 %v1856
      %v1858 = vpop.xlane.xlu0 %1857
      %v1859 = vsel %vm538, %v1382, 0.0
      %v1860 = vadd.f32 %v1381, %v1859
      %1861 = vadd.xlane.f32.xlu0 %v1860
      %v1862 = vpop.xlane.xlu0 %1861
      %v1863 = vsel %vm538, %v1384, 0.0
      %v1864 = vadd.f32 %v1383, %v1863
      %1865 = vadd.xlane.f32.xlu0 %v1864
      %v1866 = vpop.xlane.xlu0 %1865
      %v1867 = vsel %vm538, %v1386, 0.0
      %v1868 = vadd.f32 %v1385, %v1867
      %1869 = vadd.xlane.f32.xlu0 %v1868
      %v1870 = vpop.xlane.xlu0 %1869
      %v1871 = vsel %vm538, %v1388, 0.0
      %v1872 = vadd.f32 %v1387, %v1871
      %1873 = vadd.xlane.f32.xlu0 %v1872
      %v1874 = vpop.xlane.xlu0 %1873
      %v1875 = vsel %vm538, %v1390, 0.0
      %v1876 = vadd.f32 %v1389, %v1875
      %1877 = vadd.xlane.f32.xlu0 %v1876
      %v1878 = vpop.xlane.xlu0 %1877
      %v1879 = vsel %vm538, %v1392, 0.0
      %v1880 = vadd.f32 %v1391, %v1879
      %1881 = vadd.xlane.f32.xlu0 %v1880
      %v1882 = vpop.xlane.xlu0 %1881
      %v1883 = vsel %vm538, %v1394, 0.0
      %v1884 = vadd.f32 %v1393, %v1883
      %1885 = vadd.xlane.f32.xlu0 %v1884
      %v1886 = vpop.xlane.xlu0 %1885
      %v1887 = vsel %vm538, %v1396, 0.0
      %v1888 = vadd.f32 %v1395, %v1887
      %1889 = vadd.xlane.f32.xlu0 %v1888
      %v1890 = vpop.xlane.xlu0 %1889
      %v1891 = vsel %vm538, %v1398, 0.0
      %v1892 = vadd.f32 %v1397, %v1891
      %1893 = vadd.xlane.f32.xlu0 %v1892
      %v1894 = vpop.xlane.xlu0 %1893
      %v1895 = vsel %vm538, %v1400, 0.0
      %v1896 = vadd.f32 %v1399, %v1895
      %1897 = vadd.xlane.f32.xlu0 %v1896
      %v1898 = vpop.xlane.xlu0 %1897
      %v1899 = vsel %vm538, %v1402, 0.0
      %v1900 = vadd.f32 %v1401, %v1899
      %1901 = vadd.xlane.f32.xlu0 %v1900
      %v1902 = vpop.xlane.xlu0 %1901
      %v1903 = vsel %vm538, %v1404, 0.0
      %v1904 = vadd.f32 %v1403, %v1903
      %1905 = vadd.xlane.f32.xlu0 %v1904
      %v1906 = vpop.xlane.xlu0 %1905
      %v1907 = vsel %vm538, %v1406, 0.0
      %v1908 = vadd.f32 %v1405, %v1907
      %1909 = vadd.xlane.f32.xlu0 %v1908
      %v1910 = vpop.xlane.xlu0 %1909
      %v1911 = vsel %vm538, %v1408, 0.0
      %v1912 = vadd.f32 %v1407, %v1911
      %1913 = vadd.xlane.f32.xlu0 %v1912
      %v1914 = vpop.xlane.xlu0 %1913
      %v1915 = vsel %vm538, %v1410, 0.0
      %v1916 = vadd.f32 %v1409, %v1915
      %1917 = vadd.xlane.f32.xlu0 %v1916
      %v1918 = vpop.xlane.xlu0 %1917
      %v1919 = vsel %vm538, %v1412, 0.0
      %v1920 = vadd.f32 %v1411, %v1919
      %1921 = vadd.xlane.f32.xlu0 %v1920
      %v1922 = vpop.xlane.xlu0 %1921
      %v1923 = vsel %vm538, %v1414, 0.0
      %v1924 = vadd.f32 %v1413, %v1923
      %1925 = vadd.xlane.f32.xlu0 %v1924
      %v1926 = vpop.xlane.xlu0 %1925
      %v1927 = vsel %vm538, %v1416, 0.0
      %v1928 = vadd.f32 %v1415, %v1927
      %1929 = vadd.xlane.f32.xlu0 %v1928
      %v1930 = vpop.xlane.xlu0 %1929
      %v1931 = vsel %vm538, %v1418, 0.0
      %v1932 = vadd.f32 %v1417, %v1931
      %1933 = vadd.xlane.f32.xlu0 %v1932
      %v1934 = vpop.xlane.xlu0 %1933
      %v1935 = vsel %vm538, %v1420, 0.0
      %v1936 = vadd.f32 %v1419, %v1935
      %1937 = vadd.xlane.f32.xlu0 %v1936
      %v1938 = vpop.xlane.xlu0 %1937
      %v1939 = vsel %vm538, %v1422, 0.0
      %v1940 = vadd.f32 %v1421, %v1939
      %1941 = vadd.xlane.f32.xlu0 %v1940
      %v1942 = vpop.xlane.xlu0 %1941
      %v1943 = vsel %vm538, %v1424, 0.0
      %v1944 = vadd.f32 %v1423, %v1943
      %1945 = vadd.xlane.f32.xlu0 %v1944
      %v1946 = vpop.xlane.xlu0 %1945
      %v1947 = vsel %vm538, %v1426, 0.0
      %v1948 = vadd.f32 %v1425, %v1947
      %1949 = vadd.xlane.f32.xlu0 %v1948
      %v1950 = vpop.xlane.xlu0 %1949
      %v1951 = vsel %vm538, %v1428, 0.0
      %v1952 = vadd.f32 %v1427, %v1951
      %1953 = vadd.xlane.f32.xlu0 %v1952
      %v1954 = vpop.xlane.xlu0 %1953
      %v1955 = vsel %vm538, %v1430, 0.0
      %v1956 = vadd.f32 %v1429, %v1955
      %1957 = vadd.xlane.f32.xlu0 %v1956
      %v1958 = vpop.xlane.xlu0 %1957
      %v1959 = vsel %vm538, %v1432, 0.0
      %v1960 = vadd.f32 %v1431, %v1959
      %1961 = vadd.xlane.f32.xlu0 %v1960
      %v1962 = vpop.xlane.xlu0 %1961
      %v1963 = vsel %vm538, %v1434, 0.0
      %v1964 = vadd.f32 %v1433, %v1963
      %1965 = vadd.xlane.f32.xlu0 %v1964
      %v1966 = vpop.xlane.xlu0 %1965
      %v1967 = vsel %vm538, %v1436, 0.0
      %v1968 = vadd.f32 %v1435, %v1967
      %1969 = vadd.xlane.f32.xlu0 %v1968
      %v1970 = vpop.xlane.xlu0 %1969
      %v1971 = vsel %vm538, %v1438, 0.0
      %v1972 = vadd.f32 %v1437, %v1971
      %1973 = vadd.xlane.f32.xlu0 %v1972
      %v1974 = vpop.xlane.xlu0 %1973
      %v1975 = vsel %vm538, %v1440, 0.0
      %v1976 = vadd.f32 %v1439, %v1975
      %1977 = vadd.xlane.f32.xlu0 %v1976
      %v1978 = vpop.xlane.xlu0 %1977
      %v1979 = vsel %vm538, %v1442, 0.0
      %v1980 = vadd.f32 %v1441, %v1979
      %1981 = vadd.xlane.f32.xlu0 %v1980
      %v1982 = vpop.xlane.xlu0 %1981
      %v1983 = vsel %vm538, %v1444, 0.0
      %v1984 = vadd.f32 %v1443, %v1983
      %1985 = vadd.xlane.f32.xlu0 %v1984
      %v1986 = vpop.xlane.xlu0 %1985
      %v1987 = vsel %vm538, %v1446, 0.0
      %v1988 = vadd.f32 %v1445, %v1987
      %1989 = vadd.xlane.f32.xlu0 %v1988
      %v1990 = vpop.xlane.xlu0 %1989
      %v1991 = vsel %vm538, %v1448, 0.0
      %v1992 = vadd.f32 %v1447, %v1991
      %1993 = vadd.xlane.f32.xlu0 %v1992
      %v1994 = vpop.xlane.xlu0 %1993
      %v1995 = vsel %vm538, %v1450, 0.0
      %v1996 = vadd.f32 %v1449, %v1995
      %1997 = vadd.xlane.f32.xlu0 %v1996
      %v1998 = vpop.xlane.xlu0 %1997
      %v1999 = vsel %vm538, %v1452, 0.0
      %v2000 = vadd.f32 %v1451, %v1999
      %2001 = vadd.xlane.f32.xlu0 %v2000
      %v2002 = vpop.xlane.xlu0 %2001
      %v2003 = vsel %vm538, %v1454, 0.0
      %v2004 = vadd.f32 %v1453, %v2003
      %2005 = vadd.xlane.f32.xlu0 %v2004
      %v2006 = vpop.xlane.xlu0 %2005
      %v2007 = vsel %vm538, %v1456, 0.0
      %v2008 = vadd.f32 %v1455, %v2007
      %2009 = vadd.xlane.f32.xlu0 %v2008
      %v2010 = vpop.xlane.xlu0 %2009
      %v2011 = vsel %vm538, %v1458, 0.0
      %v2012 = vadd.f32 %v1457, %v2011
      %2013 = vadd.xlane.f32.xlu0 %v2012
      %v2014 = vpop.xlane.xlu0 %2013
      %v2015 = vsel %vm538, %v1460, 0.0
      %v2016 = vadd.f32 %v1459, %v2015
      %2017 = vadd.xlane.f32.xlu0 %v2016
      %v2018 = vpop.xlane.xlu0 %2017
      %v2019 = vsel %vm538, %v1462, 0.0
      %v2020 = vadd.f32 %v1461, %v2019
      %2021 = vadd.xlane.f32.xlu0 %v2020
      %v2022 = vpop.xlane.xlu0 %2021
      %v2023 = vsel %vm538, %v1464, 0.0
      %v2024 = vadd.f32 %v1463, %v2023
      %2025 = vadd.xlane.f32.xlu0 %v2024
      %v2026 = vpop.xlane.xlu0 %2025
      %v2027 = vsel %vm538, %v1466, 0.0
      %v2028 = vadd.f32 %v1465, %v2027
      %2029 = vadd.xlane.f32.xlu0 %v2028
      %v2030 = vpop.xlane.xlu0 %2029
      %v2031 = vsel %vm538, %v1468, 0.0
      %v2032 = vadd.f32 %v1467, %v2031
      %2033 = vadd.xlane.f32.xlu0 %v2032
      %v2034 = vpop.xlane.xlu0 %2033
      %v2035 = vsel %vm538, %v1470, 0.0
      %v2036 = vadd.f32 %v1469, %v2035
      %2037 = vadd.xlane.f32.xlu0 %v2036
      %v2038 = vpop.xlane.xlu0 %2037
      %v2039 = vsel %vm538, %v1472, 0.0
      %v2040 = vadd.f32 %v1471, %v2039
      %2041 = vadd.xlane.f32.xlu0 %v2040
      %v2042 = vpop.xlane.xlu0 %2041
      %v2043 = vsel %vm538, %v1474, 0.0
      %v2044 = vadd.f32 %v1473, %v2043
      %2045 = vadd.xlane.f32.xlu0 %v2044
      %v2046 = vpop.xlane.xlu0 %2045
      %v2047 = vsel %vm538, %v1476, 0.0
      %v2048 = vadd.f32 %v1475, %v2047
      %2049 = vadd.xlane.f32.xlu0 %v2048
      %v2050 = vpop.xlane.xlu0 %2049
      %v2051 = vsel %vm538, %v1478, 0.0
      %v2052 = vadd.f32 %v1477, %v2051
      %2053 = vadd.xlane.f32.xlu0 %v2052
      %v2054 = vpop.xlane.xlu0 %2053
      %v2055 = vsel %vm538, %v1480, 0.0
      %v2056 = vadd.f32 %v1479, %v2055
      %2057 = vadd.xlane.f32.xlu0 %v2056
      %v2058 = vpop.xlane.xlu0 %2057
      %v2059 = vsel %vm538, %v1482, 0.0
      %v2060 = vadd.f32 %v1481, %v2059
      %2061 = vadd.xlane.f32.xlu0 %v2060
      %v2062 = vpop.xlane.xlu0 %2061
      %v2063 = vsel %vm538, %v1484, 0.0
      %v2064 = vadd.f32 %v1483, %v2063
      %2065 = vadd.xlane.f32.xlu0 %v2064
      %v2066 = vpop.xlane.xlu0 %2065
      %v2067 = vsel %vm538, %v1486, 0.0
      %v2068 = vadd.f32 %v1485, %v2067
      %2069 = vadd.xlane.f32.xlu0 %v2068
      %v2070 = vpop.xlane.xlu0 %2069
      %v2071 = vsel %vm538, %v1488, 0.0
      %v2072 = vadd.f32 %v1487, %v2071
      %2073 = vadd.xlane.f32.xlu0 %v2072
      %v2074 = vpop.xlane.xlu0 %2073
      %v2075 = vsel %vm538, %v1490, 0.0
      %v2076 = vadd.f32 %v1489, %v2075
      %2077 = vadd.xlane.f32.xlu0 %v2076
      %v2078 = vpop.xlane.xlu0 %2077
      %v2079 = vsel %vm538, %v1492, 0.0
      %v2080 = vadd.f32 %v1491, %v2079
      %2081 = vadd.xlane.f32.xlu0 %v2080
      %v2082 = vpop.xlane.xlu0 %2081
      %v2083 = vsel %vm538, %v1494, 0.0
      %v2084 = vadd.f32 %v1493, %v2083
      %2085 = vadd.xlane.f32.xlu0 %v2084
      %v2086 = vpop.xlane.xlu0 %2085
      %v2087 = vsel %vm538, %v1496, 0.0
      %v2088 = vadd.f32 %v1495, %v2087
      %2089 = vadd.xlane.f32.xlu0 %v2088
      %v2090 = vpop.xlane.xlu0 %2089
      %v2091 = vsel %vm538, %v1498, 0.0
      %v2092 = vadd.f32 %v1497, %v2091
      %2093 = vadd.xlane.f32.xlu0 %v2092
      %v2094 = vpop.xlane.xlu0 %2093
      %v2095 = vsel %vm538, %v1500, 0.0
      %v2096 = vadd.f32 %v1499, %v2095
      %2097 = vadd.xlane.f32.xlu0 %v2096
      %v2098 = vpop.xlane.xlu0 %2097
      %v2099 = vsel %vm538, %v1502, 0.0
      %v2100 = vadd.f32 %v1501, %v2099
      %2101 = vadd.xlane.f32.xlu0 %v2100
      %v2102 = vpop.xlane.xlu0 %2101
      %v2103 = vsel %vm538, %v1504, 0.0
      %v2104 = vadd.f32 %v1503, %v2103
      %2105 = vadd.xlane.f32.xlu0 %v2104
      %v2106 = vpop.xlane.xlu0 %2105
      %v2107 = vsel %vm538, %v1506, 0.0
      %v2108 = vadd.f32 %v1505, %v2107
      %2109 = vadd.xlane.f32.xlu0 %v2108
      %v2110 = vpop.xlane.xlu0 %2109
      %v2111 = vsel %vm538, %v1508, 0.0
      %v2112 = vadd.f32 %v1507, %v2111
      %2113 = vadd.xlane.f32.xlu0 %v2112
      %v2114 = vpop.xlane.xlu0 %2113
      %v2115 = vsel %vm538, %v1510, 0.0
      %v2116 = vadd.f32 %v1509, %v2115
      %2117 = vadd.xlane.f32.xlu0 %v2116
      %v2118 = vpop.xlane.xlu0 %2117
      %v2119 = vsel %vm538, %v1512, 0.0
      %v2120 = vadd.f32 %v1511, %v2119
      %2121 = vadd.xlane.f32.xlu0 %v2120
      %v2122 = vpop.xlane.xlu0 %2121
      %v2123 = vsel %vm538, %v1514, 0.0
      %v2124 = vadd.f32 %v1513, %v2123
      %2125 = vadd.xlane.f32.xlu0 %v2124
      %v2126 = vpop.xlane.xlu0 %2125
      %v2127 = vsel %vm538, %v1516, 0.0
      %v2128 = vadd.f32 %v1515, %v2127
      %2129 = vadd.xlane.f32.xlu0 %v2128
      %v2130 = vpop.xlane.xlu0 %2129
      %v2131 = vsel %vm538, %v1518, 0.0
      %v2132 = vadd.f32 %v1517, %v2131
      %2133 = vadd.xlane.f32.xlu0 %v2132
      %v2134 = vpop.xlane.xlu0 %2133
      %v2135 = vsel %vm538, %v1520, 0.0
      %v2136 = vadd.f32 %v1519, %v2135
      %2137 = vadd.xlane.f32.xlu0 %v2136
      %v2138 = vpop.xlane.xlu0 %2137
      %v2139 = vsel %vm538, %v1522, 0.0
      %v2140 = vadd.f32 %v1521, %v2139
      %2141 = vadd.xlane.f32.xlu0 %v2140
      %v2142 = vpop.xlane.xlu0 %2141
      %v2143 = vsel %vm538, %v1524, 0.0
      %v2144 = vadd.f32 %v1523, %v2143
      %2145 = vadd.xlane.f32.xlu0 %v2144
      %v2146 = vpop.xlane.xlu0 %2145
      %v2147 = vsel %vm538, %v1526, 0.0
      %v2148 = vadd.f32 %v1525, %v2147
      %2149 = vadd.xlane.f32.xlu0 %v2148
      %v2150 = vpop.xlane.xlu0 %2149
      %v2151 = vsel %vm538, %v1528, 0.0
      %v2152 = vadd.f32 %v1527, %v2151
      %2153 = vadd.xlane.f32.xlu0 %v2152
      %v2154 = vpop.xlane.xlu0 %2153
      %v2155 = vsel %vm538, %v1530, 0.0
      %v2156 = vadd.f32 %v1529, %v2155
      %2157 = vadd.xlane.f32.xlu0 %v2156
      %v2158 = vpop.xlane.xlu0 %2157
      %v2159 = vsel %vm538, %v1532, 0.0
      %v2160 = vadd.f32 %v1531, %v2159
      %2161 = vadd.xlane.f32.xlu0 %v2160
      %v2162 = vpop.xlane.xlu0 %2161
      %v2163 = vsel %vm538, %v1534, 0.0
      %v2164 = vadd.f32 %v1533, %v2163
      %2165 = vadd.xlane.f32.xlu0 %v2164
      %v2166 = vpop.xlane.xlu0 %2165
      %v2167 = vsel %vm538, %v1536, 0.0
      %v2168 = vadd.f32 %v1535, %v2167
      %2169 = vadd.xlane.f32.xlu0 %v2168
      %v2170 = vpop.xlane.xlu0 %2169
      %v2171 = vsel %vm538, %v1538, 0.0
      %v2172 = vadd.f32 %v1537, %v2171
      %2173 = vadd.xlane.f32.xlu0 %v2172
      %v2174 = vpop.xlane.xlu0 %2173
      %v2175 = vsel %vm538, %v1540, 0.0
      %v2176 = vadd.f32 %v1539, %v2175
      %2177 = vadd.xlane.f32.xlu0 %v2176
      %v2178 = vpop.xlane.xlu0 %2177
      %v2179 = vsel %vm538, %v1542, 0.0
      %v2180 = vadd.f32 %v1541, %v2179
      %2181 = vadd.xlane.f32.xlu0 %v2180
      %v2182 = vpop.xlane.xlu0 %2181
      %v2183 = vsel %vm538, %v1544, 0.0
      %v2184 = vadd.f32 %v1543, %v2183
      %2185 = vadd.xlane.f32.xlu0 %v2184
      %v2186 = vpop.xlane.xlu0 %2185
      %v2187 = vsel %vm538, %v1546, 0.0
      %v2188 = vadd.f32 %v1545, %v2187
      %2189 = vadd.xlane.f32.xlu0 %v2188
      %v2190 = vpop.xlane.xlu0 %2189
      %v2191 = vsel %vm538, %v1548, 0.0
      %v2192 = vadd.f32 %v1547, %v2191
      %2193 = vadd.xlane.f32.xlu0 %v2192
      %v2194 = vpop.xlane.xlu0 %2193
      %v2195 = vsel %vm538, %v1550, 0.0
      %v2196 = vadd.f32 %v1549, %v2195
      %2197 = vadd.xlane.f32.xlu0 %v2196
      %v2198 = vpop.xlane.xlu0 %2197
      %v2199 = vsel %vm538, %v1552, 0.0
      %v2200 = vadd.f32 %v1551, %v2199
      %2201 = vadd.xlane.f32.xlu0 %v2200
      %v2202 = vpop.xlane.xlu0 %2201
      %v2203 = vsel %vm538, %v1554, 0.0
      %v2204 = vadd.f32 %v1553, %v2203
      %2205 = vadd.xlane.f32.xlu0 %v2204
      %v2206 = vpop.xlane.xlu0 %2205
      %v2207 = vsel %vm538, %v1556, 0.0
      %v2208 = vadd.f32 %v1555, %v2207
      %2209 = vadd.xlane.f32.xlu0 %v2208
      %v2210 = vpop.xlane.xlu0 %2209
      %v2211 = vsel %vm538, %v1558, 0.0
      %v2212 = vadd.f32 %v1557, %v2211
      %2213 = vadd.xlane.f32.xlu0 %v2212
      %v2214 = vpop.xlane.xlu0 %2213
      %v2215 = vsel %vm538, %v1560, 0.0
      %v2216 = vadd.f32 %v1559, %v2215
      %2217 = vadd.xlane.f32.xlu0 %v2216
      %v2218 = vpop.xlane.xlu0 %2217
      %v2219 = vsel %vm538, %v1562, 0.0
      %v2220 = vadd.f32 %v1561, %v2219
      %2221 = vadd.xlane.f32.xlu0 %v2220
      %v2222 = vpop.xlane.xlu0 %2221
      %v2223 = vsel %vm538, %v1564, 0.0
      %v2224 = vadd.f32 %v1563, %v2223
      %2225 = vadd.xlane.f32.xlu0 %v2224
      %v2226 = vpop.xlane.xlu0 %2225
      %v2227 = vsel %vm538, %v1566, 0.0
      %v2228 = vadd.f32 %v1565, %v2227
      %2229 = vadd.xlane.f32.xlu0 %v2228
      %v2230 = vpop.xlane.xlu0 %2229
      %v2231 = vsel %vm538, %v1568, 0.0
      %v2232 = vadd.f32 %v1567, %v2231
      %2233 = vadd.xlane.f32.xlu0 %v2232
      %v2234 = vpop.xlane.xlu0 %2233
      %v2235 = vsel %vm538, %v1570, 0.0
      %v2236 = vadd.f32 %v1569, %v2235
      %2237 = vadd.xlane.f32.xlu0 %v2236
      %v2238 = vpop.xlane.xlu0 %2237
      %v2239 = vsel %vm538, %v1572, 0.0
      %v2240 = vadd.f32 %v1571, %v2239
      %2241 = vadd.xlane.f32.xlu0 %v2240
      %v2242 = vpop.xlane.xlu0 %2241
      %v2243 = vsel %vm538, %v1574, 0.0
      %v2244 = vadd.f32 %v1573, %v2243
      %2245 = vadd.xlane.f32.xlu0 %v2244
      %v2246 = vpop.xlane.xlu0 %2245
      %v2247 = vsel %vm538, %v1576, 0.0
      %v2248 = vadd.f32 %v1575, %v2247
      %2249 = vadd.xlane.f32.xlu0 %v2248
      %v2250 = vpop.xlane.xlu0 %2249
      %v2251 = vsel %vm538, %v1578, 0.0
      %v2252 = vadd.f32 %v1577, %v2251
      %2253 = vadd.xlane.f32.xlu0 %v2252
      %v2254 = vpop.xlane.xlu0 %2253
      %v2255 = vsel %vm538, %v1580, 0.0
      %v2256 = vadd.f32 %v1579, %v2255
      %2257 = vadd.xlane.f32.xlu0 %v2256
      %v2258 = vpop.xlane.xlu0 %2257
      %v2259 = vsel %vm538, %v1582, 0.0
      %v2260 = vadd.f32 %v1581, %v2259
      %2261 = vadd.xlane.f32.xlu0 %v2260
      %v2262 = vpop.xlane.xlu0 %2261
      %v2263 = vsel %vm538, %v1584, 0.0
      %v2264 = vadd.f32 %v1583, %v2263
      %2265 = vadd.xlane.f32.xlu0 %v2264
      %v2266 = vpop.xlane.xlu0 %2265
      %v2267 = vsel %vm538, %v1586, 0.0
      %v2268 = vadd.f32 %v1585, %v2267
      %2269 = vadd.xlane.f32.xlu0 %v2268
      %v2270 = vpop.xlane.xlu0 %2269
      %v2271 = vsel %vm538, %v1588, 0.0
      %v2272 = vadd.f32 %v1587, %v2271
      %2273 = vadd.xlane.f32.xlu0 %v2272
      %v2274 = vpop.xlane.xlu0 %2273
      %v2275 = vsel %vm538, %v1590, 0.0
      %v2276 = vadd.f32 %v1589, %v2275
      %2277 = vadd.xlane.f32.xlu0 %v2276
      %v2278 = vpop.xlane.xlu0 %2277
      %v2279 = vsel %vm538, %v1592, 0.0
      %v2280 = vadd.f32 %v1591, %v2279
      %2281 = vadd.xlane.f32.xlu0 %v2280
      %v2282 = vpop.xlane.xlu0 %2281
      %v2283 = vsel %vm538, %v1594, 0.0
      %v2284 = vadd.f32 %v1593, %v2283
      %2285 = vadd.xlane.f32.xlu0 %v2284
      %v2286 = vpop.xlane.xlu0 %2285
      %v2287 = vsel %vm538, %v1596, 0.0
      %v2288 = vadd.f32 %v1595, %v2287
      %2289 = vadd.xlane.f32.xlu0 %v2288
      %v2290 = vpop.xlane.xlu0 %2289
      %v2291 = vsel %vm538, %v1598, 0.0
      %v2292 = vadd.f32 %v1597, %v2291
      %2293 = vadd.xlane.f32.xlu0 %v2292
      %v2294 = vpop.xlane.xlu0 %2293
      %v2295 = vsel %vm538, %v1600, 0.0
      %v2296 = vadd.f32 %v1599, %v2295
      %2297 = vadd.xlane.f32.xlu0 %v2296
      %v2298 = vpop.xlane.xlu0 %2297
      %v2299 = vsel %vm538, %v1602, 0.0
      %v2300 = vadd.f32 %v1601, %v2299
      %2301 = vadd.xlane.f32.xlu0 %v2300
      %v2302 = vpop.xlane.xlu0 %2301
      %v2303 = vsel %vm538, %v1604, 0.0
      %v2304 = vadd.f32 %v1603, %v2303
      %2305 = vadd.xlane.f32.xlu0 %v2304
      %v2306 = vpop.xlane.xlu0 %2305
      %v2307 = vsel %vm538, %v1606, 0.0
      %v2308 = vadd.f32 %v1605, %v2307
      %2309 = vadd.xlane.f32.xlu0 %v2308
      %v2310 = vpop.xlane.xlu0 %2309
      %v2311 = vsel %vm538, %v1608, 0.0
      %v2312 = vadd.f32 %v1607, %v2311
      %2313 = vadd.xlane.f32.xlu0 %v2312
      %v2314 = vpop.xlane.xlu0 %2313
      %v2315 = vsel %vm538, %v1610, 0.0
      %v2316 = vadd.f32 %v1609, %v2315
      %2317 = vadd.xlane.f32.xlu0 %v2316
      %v2318 = vpop.xlane.xlu0 %2317
      %v2319 = vsel %vm538, %v1612, 0.0
      %v2320 = vadd.f32 %v1611, %v2319
      %2321 = vadd.xlane.f32.xlu0 %v2320
      %v2322 = vpop.xlane.xlu0 %2321
      %v2323 = vsel %vm538, %v1614, 0.0
      %v2324 = vadd.f32 %v1613, %v2323
      %2325 = vadd.xlane.f32.xlu0 %v2324
      %v2326 = vpop.xlane.xlu0 %2325
      %v2327 = vsel %vm538, %v1616, 0.0
      %v2328 = vadd.f32 %v1615, %v2327
      %2329 = vadd.xlane.f32.xlu0 %v2328
      %v2330 = vpop.xlane.xlu0 %2329
      %v2331 = vsel %vm538, %v1618, 0.0
      %v2332 = vadd.f32 %v1617, %v2331
      %2333 = vadd.xlane.f32.xlu0 %v2332
      %v2334 = vpop.xlane.xlu0 %2333
      %v2335 = vsel %vm538, %v1620, 0.0
      %v2336 = vadd.f32 %v1619, %v2335
      %2337 = vadd.xlane.f32.xlu0 %v2336
      %v2338 = vpop.xlane.xlu0 %2337
      %v2339 = vsel %vm538, %v1622, 0.0
      %v2340 = vadd.f32 %v1621, %v2339
      %2341 = vadd.xlane.f32.xlu0 %v2340
      %v2342 = vpop.xlane.xlu0 %2341
      %v2343 = vsel %vm538, %v1624, 0.0
      %v2344 = vadd.f32 %v1623, %v2343
      %2345 = vadd.xlane.f32.xlu0 %v2344
      %v2346 = vpop.xlane.xlu0 %2345
      %v2347 = vsel %vm538, %v1626, 0.0
      %v2348 = vadd.f32 %v1625, %v2347
      %2349 = vadd.xlane.f32.xlu0 %v2348
      %v2350 = vpop.xlane.xlu0 %2349
      %v2351 = vsel %vm538, %v1628, 0.0
      %v2352 = vadd.f32 %v1627, %v2351
      %2353 = vadd.xlane.f32.xlu0 %v2352
      %v2354 = vpop.xlane.xlu0 %2353
      %v2355 = vsel %vm538, %v1630, 0.0
      %v2356 = vadd.f32 %v1629, %v2355
      %2357 = vadd.xlane.f32.xlu0 %v2356
      %v2358 = vpop.xlane.xlu0 %2357
      %v2359 = vmul.f32 %v542, 0.0051020407
      %v2360 = vmul.f32 %v546, 0.0051020407
      %v2361 = vmul.f32 %v550, 0.0051020407
      %v2362 = vmul.f32 %v554, 0.0051020407
      %v2363 = vmul.f32 %v558, 0.0051020407
      %v2364 = vmul.f32 %v562, 0.0051020407
      %v2365 = vmul.f32 %v566, 0.0051020407
      %v2366 = vmul.f32 %v570, 0.0051020407
      %v2367 = vmul.f32 %v574, 0.0051020407
      %v2368 = vmul.f32 %v578, 0.0051020407
      %v2369 = vmul.f32 %v582, 0.0051020407
      %v2370 = vmul.f32 %v586, 0.0051020407
      %v2371 = vmul.f32 %v590, 0.0051020407
      %v2372 = vmul.f32 %v594, 0.0051020407
      %v2373 = vmul.f32 %v598, 0.0051020407
      %v2374 = vmul.f32 %v602, 0.0051020407
      %v2375 = vmul.f32 %v606, 0.0051020407
      %v2376 = vmul.f32 %v610, 0.0051020407
      %v2377 = vmul.f32 %v614, 0.0051020407
      %v2378 = vmul.f32 %v618, 0.0051020407
      %v2379 = vmul.f32 %v622, 0.0051020407
      %v2380 = vmul.f32 %v626, 0.0051020407
      %v2381 = vmul.f32 %v630, 0.0051020407
      %v2382 = vmul.f32 %v634, 0.0051020407
      %v2383 = vmul.f32 %v638, 0.0051020407
      %v2384 = vmul.f32 %v642, 0.0051020407
      %v2385 = vmul.f32 %v646, 0.0051020407
      %v2386 = vmul.f32 %v650, 0.0051020407
      %v2387 = vmul.f32 %v654, 0.0051020407
      %v2388 = vmul.f32 %v658, 0.0051020407
      %v2389 = vmul.f32 %v662, 0.0051020407
      %v2390 = vmul.f32 %v666, 0.0051020407
      %v2391 = vmul.f32 %v670, 0.0051020407
      %v2392 = vmul.f32 %v674, 0.0051020407
      %v2393 = vmul.f32 %v678, 0.0051020407
      %v2394 = vmul.f32 %v682, 0.0051020407
      %v2395 = vmul.f32 %v686, 0.0051020407
      %v2396 = vmul.f32 %v690, 0.0051020407
      %v2397 = vmul.f32 %v694, 0.0051020407
      %v2398 = vmul.f32 %v698, 0.0051020407
      %v2399 = vmul.f32 %v702, 0.0051020407
      %v2400 = vmul.f32 %v706, 0.0051020407
      %v2401 = vmul.f32 %v710, 0.0051020407
      %v2402 = vmul.f32 %v714, 0.0051020407
      %v2403 = vmul.f32 %v718, 0.0051020407
      %v2404 = vmul.f32 %v722, 0.0051020407
      %v2405 = vmul.f32 %v726, 0.0051020407
      %v2406 = vmul.f32 %v730, 0.0051020407
      %v2407 = vmul.f32 %v734, 0.0051020407
      %v2408 = vmul.f32 %v738, 0.0051020407
      %v2409 = vmul.f32 %v742, 0.0051020407
      %v2410 = vmul.f32 %v746, 0.0051020407
      %v2411 = vmul.f32 %v750, 0.0051020407
      %v2412 = vmul.f32 %v754, 0.0051020407
      %v2413 = vmul.f32 %v758, 0.0051020407
      %v2414 = vmul.f32 %v762, 0.0051020407
      %v2415 = vmul.f32 %v766, 0.0051020407
      %v2416 = vmul.f32 %v770, 0.0051020407
      %v2417 = vmul.f32 %v774, 0.0051020407
      %v2418 = vmul.f32 %v778, 0.0051020407
      %v2419 = vmul.f32 %v782, 0.0051020407
      %v2420 = vmul.f32 %v786, 0.0051020407
      %v2421 = vmul.f32 %v790, 0.0051020407
      %v2422 = vmul.f32 %v794, 0.0051020407
      %v2423 = vmul.f32 %v798, 0.0051020407
      %v2424 = vmul.f32 %v802, 0.0051020407
      %v2425 = vmul.f32 %v806, 0.0051020407
      %v2426 = vmul.f32 %v810, 0.0051020407
      %v2427 = vmul.f32 %v814, 0.0051020407
      %v2428 = vmul.f32 %v818, 0.0051020407
      %v2429 = vmul.f32 %v822, 0.0051020407
      %v2430 = vmul.f32 %v826, 0.0051020407
      %v2431 = vmul.f32 %v830, 0.0051020407
      %v2432 = vmul.f32 %v834, 0.0051020407
      %v2433 = vmul.f32 %v838, 0.0051020407
      %v2434 = vmul.f32 %v842, 0.0051020407
      %v2435 = vmul.f32 %v846, 0.0051020407
      %v2436 = vmul.f32 %v850, 0.0051020407
      %v2437 = vmul.f32 %v854, 0.0051020407
      %v2438 = vmul.f32 %v858, 0.0051020407
      %v2439 = vmul.f32 %v862, 0.0051020407
      %v2440 = vmul.f32 %v866, 0.0051020407
      %v2441 = vmul.f32 %v870, 0.0051020407
      %v2442 = vmul.f32 %v874, 0.0051020407
      %v2443 = vmul.f32 %v878, 0.0051020407
      %v2444 = vmul.f32 %v882, 0.0051020407
      %v2445 = vmul.f32 %v886, 0.0051020407
      %v2446 = vmul.f32 %v890, 0.0051020407
      %v2447 = vmul.f32 %v894, 0.0051020407
      %v2448 = vmul.f32 %v898, 0.0051020407
      %v2449 = vmul.f32 %v902, 0.0051020407
      %v2450 = vmul.f32 %v906, 0.0051020407
      %v2451 = vmul.f32 %v910, 0.0051020407
      %v2452 = vmul.f32 %v914, 0.0051020407
      %v2453 = vmul.f32 %v918, 0.0051020407
      %v2454 = vmul.f32 %v922, 0.0051020407
      %v2455 = vmul.f32 %v926, 0.0051020407
      %v2456 = vmul.f32 %v930, 0.0051020407
      %v2457 = vmul.f32 %v934, 0.0051020407
      %v2458 = vmul.f32 %v938, 0.0051020407
      %v2459 = vmul.f32 %v942, 0.0051020407
      %v2460 = vmul.f32 %v946, 0.0051020407
      %v2461 = vmul.f32 %v950, 0.0051020407
      %v2462 = vmul.f32 %v954, 0.0051020407
      %v2463 = vmul.f32 %v958, 0.0051020407
      %v2464 = vmul.f32 %v962, 0.0051020407
      %v2465 = vmul.f32 %v966, 0.0051020407
      %v2466 = vmul.f32 %v970, 0.0051020407
      %v2467 = vmul.f32 %v974, 0.0051020407
      %v2468 = vmul.f32 %v978, 0.0051020407
      %v2469 = vmul.f32 %v982, 0.0051020407
      %v2470 = vmul.f32 %v986, 0.0051020407
      %v2471 = vmul.f32 %v990, 0.0051020407
      %v2472 = vmul.f32 %v994, 0.0051020407
      %v2473 = vmul.f32 %v998, 0.0051020407
      %v2474 = vmul.f32 %v1002, 0.0051020407
      %v2475 = vmul.f32 %v1006, 0.0051020407
      %v2476 = vmul.f32 %v1010, 0.0051020407
      %v2477 = vmul.f32 %v1014, 0.0051020407
      %v2478 = vmul.f32 %v1018, 0.0051020407
      %v2479 = vmul.f32 %v1022, 0.0051020407
      %v2480 = vmul.f32 %v1026, 0.0051020407
      %v2481 = vmul.f32 %v1030, 0.0051020407
      %v2482 = vmul.f32 %v1034, 0.0051020407
      %v2483 = vmul.f32 %v1038, 0.0051020407
      %v2484 = vmul.f32 %v1042, 0.0051020407
      %v2485 = vmul.f32 %v1046, 0.0051020407
      %v2486 = vmul.f32 %v1050, 0.0051020407
      %v2487 = vmul.f32 %v1054, 0.0051020407
      %v2488 = vmul.f32 %v1058, 0.0051020407
      %v2489 = vmul.f32 %v1062, 0.0051020407
      %v2490 = vmul.f32 %v1066, 0.0051020407
      %v2491 = vmul.f32 %v1070, 0.0051020407
      %v2492 = vmul.f32 %v1074, 0.0051020407
      %v2493 = vmul.f32 %v1078, 0.0051020407
      %v2494 = vmul.f32 %v1082, 0.0051020407
      %v2495 = vmul.f32 %v1086, 0.0051020407
      %v2496 = vmul.f32 %v1090, 0.0051020407
      %v2497 = vmul.f32 %v1094, 0.0051020407
      %v2498 = vmul.f32 %v1098, 0.0051020407
      %v2499 = vmul.f32 %v1102, 0.0051020407
      %v2500 = vmul.f32 %v1106, 0.0051020407
      %v2501 = vmul.f32 %v1110, 0.0051020407
      %v2502 = vmul.f32 %v1114, 0.0051020407
      %v2503 = vmul.f32 %v1118, 0.0051020407
      %v2504 = vmul.f32 %v1122, 0.0051020407
      %v2505 = vmul.f32 %v1126, 0.0051020407
      %v2506 = vmul.f32 %v1130, 0.0051020407
      %v2507 = vmul.f32 %v1134, 0.0051020407
      %v2508 = vmul.f32 %v1138, 0.0051020407
      %v2509 = vmul.f32 %v1142, 0.0051020407
      %v2510 = vmul.f32 %v1146, 0.0051020407
      %v2511 = vmul.f32 %v1150, 0.0051020407
      %v2512 = vmul.f32 %v1154, 0.0051020407
      %v2513 = vmul.f32 %v1158, 0.0051020407
      %v2514 = vmul.f32 %v1162, 0.0051020407
      %v2515 = vmul.f32 %v1166, 0.0051020407
      %v2516 = vmul.f32 %v1170, 0.0051020407
      %v2517 = vmul.f32 %v1174, 0.0051020407
      %v2518 = vmul.f32 %v1178, 0.0051020407
      %v2519 = vmul.f32 %v1182, 0.0051020407
      %v2520 = vmul.f32 %v1186, 0.0051020407
      %v2521 = vmul.f32 %v1190, 0.0051020407
      %v2522 = vmul.f32 %v1194, 0.0051020407
      %v2523 = vmul.f32 %v1198, 0.0051020407
      %v2524 = vmul.f32 %v1202, 0.0051020407
      %v2525 = vmul.f32 %v1206, 0.0051020407
      %v2526 = vmul.f32 %v1210, 0.0051020407
      %v2527 = vmul.f32 %v1214, 0.0051020407
      %v2528 = vmul.f32 %v1218, 0.0051020407
      %v2529 = vmul.f32 %v1222, 0.0051020407
      %v2530 = vmul.f32 %v1226, 0.0051020407
      %v2531 = vmul.f32 %v1230, 0.0051020407
      %v2532 = vmul.f32 %v1234, 0.0051020407
      %v2533 = vmul.f32 %v1238, 0.0051020407
      %v2534 = vmul.f32 %v1242, 0.0051020407
      %v2535 = vmul.f32 %v1246, 0.0051020407
      %v2536 = vmul.f32 %v1250, 0.0051020407
      %v2537 = vmul.f32 %v1254, 0.0051020407
      %v2538 = vmul.f32 %v1258, 0.0051020407
      %v2539 = vmul.f32 %v1262, 0.0051020407
      %v2540 = vmul.f32 %v1266, 0.0051020407
      %v2541 = vmul.f32 %v1634, 0.0051020407
      %v2542 = vmul.f32 %v1638, 0.0051020407
      %v2543 = vmul.f32 %v1642, 0.0051020407
      %v2544 = vmul.f32 %v1646, 0.0051020407
      %v2545 = vmul.f32 %v1650, 0.0051020407
      %v2546 = vmul.f32 %v1654, 0.0051020407
      %v2547 = vmul.f32 %v1658, 0.0051020407
      %v2548 = vmul.f32 %v1662, 0.0051020407
      %v2549 = vmul.f32 %v1666, 0.0051020407
      %v2550 = vmul.f32 %v1670, 0.0051020407
      %v2551 = vmul.f32 %v1674, 0.0051020407
      %v2552 = vmul.f32 %v1678, 0.0051020407
      %v2553 = vmul.f32 %v1682, 0.0051020407
      %v2554 = vmul.f32 %v1686, 0.0051020407
      %v2555 = vmul.f32 %v1690, 0.0051020407
      %v2556 = vmul.f32 %v1694, 0.0051020407
      %v2557 = vmul.f32 %v1698, 0.0051020407
      %v2558 = vmul.f32 %v1702, 0.0051020407
      %v2559 = vmul.f32 %v1706, 0.0051020407
      %v2560 = vmul.f32 %v1710, 0.0051020407
      %v2561 = vmul.f32 %v1714, 0.0051020407
      %v2562 = vmul.f32 %v1718, 0.0051020407
      %v2563 = vmul.f32 %v1722, 0.0051020407
      %v2564 = vmul.f32 %v1726, 0.0051020407
      %v2565 = vmul.f32 %v1730, 0.0051020407
      %v2566 = vmul.f32 %v1734, 0.0051020407
      %v2567 = vmul.f32 %v1738, 0.0051020407
      %v2568 = vmul.f32 %v1742, 0.0051020407
      %v2569 = vmul.f32 %v1746, 0.0051020407
      %v2570 = vmul.f32 %v1750, 0.0051020407
      %v2571 = vmul.f32 %v1754, 0.0051020407
      %v2572 = vmul.f32 %v1758, 0.0051020407
      %v2573 = vmul.f32 %v1762, 0.0051020407
      %v2574 = vmul.f32 %v1766, 0.0051020407
      %v2575 = vmul.f32 %v1770, 0.0051020407
      %v2576 = vmul.f32 %v1774, 0.0051020407
      %v2577 = vmul.f32 %v1778, 0.0051020407
      %v2578 = vmul.f32 %v1782, 0.0051020407
      %v2579 = vmul.f32 %v1786, 0.0051020407
      %v2580 = vmul.f32 %v1790, 0.0051020407
      %v2581 = vmul.f32 %v1794, 0.0051020407
      %v2582 = vmul.f32 %v1798, 0.0051020407
      %v2583 = vmul.f32 %v1802, 0.0051020407
      %v2584 = vmul.f32 %v1806, 0.0051020407
      %v2585 = vmul.f32 %v1810, 0.0051020407
      %v2586 = vmul.f32 %v1814, 0.0051020407
      %v2587 = vmul.f32 %v1818, 0.0051020407
      %v2588 = vmul.f32 %v1822, 0.0051020407
      %v2589 = vmul.f32 %v1826, 0.0051020407
      %v2590 = vmul.f32 %v1830, 0.0051020407
      %v2591 = vmul.f32 %v1834, 0.0051020407
      %v2592 = vmul.f32 %v1838, 0.0051020407
      %v2593 = vmul.f32 %v1842, 0.0051020407
      %v2594 = vmul.f32 %v1846, 0.0051020407
      %v2595 = vmul.f32 %v1850, 0.0051020407
      %v2596 = vmul.f32 %v1854, 0.0051020407
      %v2597 = vmul.f32 %v1858, 0.0051020407
      %v2598 = vmul.f32 %v1862, 0.0051020407
      %v2599 = vmul.f32 %v1866, 0.0051020407
      %v2600 = vmul.f32 %v1870, 0.0051020407
      %v2601 = vmul.f32 %v1874, 0.0051020407
      %v2602 = vmul.f32 %v1878, 0.0051020407
      %v2603 = vmul.f32 %v1882, 0.0051020407
      %v2604 = vmul.f32 %v1886, 0.0051020407
      %v2605 = vmul.f32 %v1890, 0.0051020407
      %v2606 = vmul.f32 %v1894, 0.0051020407
      %v2607 = vmul.f32 %v1898, 0.0051020407
      %v2608 = vmul.f32 %v1902, 0.0051020407
      %v2609 = vmul.f32 %v1906, 0.0051020407
      %v2610 = vmul.f32 %v1910, 0.0051020407
      %v2611 = vmul.f32 %v1914, 0.0051020407
      %v2612 = vmul.f32 %v1918, 0.0051020407
      %v2613 = vmul.f32 %v1922, 0.0051020407
      %v2614 = vmul.f32 %v1926, 0.0051020407
      %v2615 = vmul.f32 %v1930, 0.0051020407
      %v2616 = vmul.f32 %v1934, 0.0051020407
      %v2617 = vmul.f32 %v1938, 0.0051020407
      %v2618 = vmul.f32 %v1942, 0.0051020407
      %v2619 = vmul.f32 %v1946, 0.0051020407
      %v2620 = vmul.f32 %v1950, 0.0051020407
      %v2621 = vmul.f32 %v1954, 0.0051020407
      %v2622 = vmul.f32 %v1958, 0.0051020407
      %v2623 = vmul.f32 %v1962, 0.0051020407
      %v2624 = vmul.f32 %v1966, 0.0051020407
      %v2625 = vmul.f32 %v1970, 0.0051020407
      %v2626 = vmul.f32 %v1974, 0.0051020407
      %v2627 = vmul.f32 %v1978, 0.0051020407
      %v2628 = vmul.f32 %v1982, 0.0051020407
      %v2629 = vmul.f32 %v1986, 0.0051020407
      %v2630 = vmul.f32 %v1990, 0.0051020407
      %v2631 = vmul.f32 %v1994, 0.0051020407
      %v2632 = vmul.f32 %v1998, 0.0051020407
      %v2633 = vmul.f32 %v2002, 0.0051020407
      %v2634 = vmul.f32 %v2006, 0.0051020407
      %v2635 = vmul.f32 %v2010, 0.0051020407
      %v2636 = vmul.f32 %v2014, 0.0051020407
      %v2637 = vmul.f32 %v2018, 0.0051020407
      %v2638 = vmul.f32 %v2022, 0.0051020407
      %v2639 = vmul.f32 %v2026, 0.0051020407
      %v2640 = vmul.f32 %v2030, 0.0051020407
      %v2641 = vmul.f32 %v2034, 0.0051020407
      %v2642 = vmul.f32 %v2038, 0.0051020407
      %v2643 = vmul.f32 %v2042, 0.0051020407
      %v2644 = vmul.f32 %v2046, 0.0051020407
      %v2645 = vmul.f32 %v2050, 0.0051020407
      %v2646 = vmul.f32 %v2054, 0.0051020407
      %v2647 = vmul.f32 %v2058, 0.0051020407
      %v2648 = vmul.f32 %v2062, 0.0051020407
      %v2649 = vmul.f32 %v2066, 0.0051020407
      %v2650 = vmul.f32 %v2070, 0.0051020407
      %v2651 = vmul.f32 %v2074, 0.0051020407
      %v2652 = vmul.f32 %v2078, 0.0051020407
      %v2653 = vmul.f32 %v2082, 0.0051020407
      %v2654 = vmul.f32 %v2086, 0.0051020407
      %v2655 = vmul.f32 %v2090, 0.0051020407
      %v2656 = vmul.f32 %v2094, 0.0051020407
      %v2657 = vmul.f32 %v2098, 0.0051020407
      %v2658 = vmul.f32 %v2102, 0.0051020407
      %v2659 = vmul.f32 %v2106, 0.0051020407
      %v2660 = vmul.f32 %v2110, 0.0051020407
      %v2661 = vmul.f32 %v2114, 0.0051020407
      %v2662 = vmul.f32 %v2118, 0.0051020407
      %v2663 = vmul.f32 %v2122, 0.0051020407
      %v2664 = vmul.f32 %v2126, 0.0051020407
      %v2665 = vmul.f32 %v2130, 0.0051020407
      %v2666 = vmul.f32 %v2134, 0.0051020407
      %v2667 = vmul.f32 %v2138, 0.0051020407
      %v2668 = vmul.f32 %v2142, 0.0051020407
      %v2669 = vmul.f32 %v2146, 0.0051020407
      %v2670 = vmul.f32 %v2150, 0.0051020407
      %v2671 = vmul.f32 %v2154, 0.0051020407
      %v2672 = vmul.f32 %v2158, 0.0051020407
      %v2673 = vmul.f32 %v2162, 0.0051020407
      %v2674 = vmul.f32 %v2166, 0.0051020407
      %v2675 = vmul.f32 %v2170, 0.0051020407
      %v2676 = vmul.f32 %v2174, 0.0051020407
      %v2677 = vmul.f32 %v2178, 0.0051020407
      %v2678 = vmul.f32 %v2182, 0.0051020407
      %v2679 = vmul.f32 %v2186, 0.0051020407
      %v2680 = vmul.f32 %v2190, 0.0051020407
      %v2681 = vmul.f32 %v2194, 0.0051020407
      %v2682 = vmul.f32 %v2198, 0.0051020407
      %v2683 = vmul.f32 %v2202, 0.0051020407
      %v2684 = vmul.f32 %v2206, 0.0051020407
      %v2685 = vmul.f32 %v2210, 0.0051020407
      %v2686 = vmul.f32 %v2214, 0.0051020407
      %v2687 = vmul.f32 %v2218, 0.0051020407
      %v2688 = vmul.f32 %v2222, 0.0051020407
      %v2689 = vmul.f32 %v2226, 0.0051020407
      %v2690 = vmul.f32 %v2230, 0.0051020407
      %v2691 = vmul.f32 %v2234, 0.0051020407
      %v2692 = vmul.f32 %v2238, 0.0051020407
      %v2693 = vmul.f32 %v2242, 0.0051020407
      %v2694 = vmul.f32 %v2246, 0.0051020407
      %v2695 = vmul.f32 %v2250, 0.0051020407
      %v2696 = vmul.f32 %v2254, 0.0051020407
      %v2697 = vmul.f32 %v2258, 0.0051020407
      %v2698 = vmul.f32 %v2262, 0.0051020407
      %v2699 = vmul.f32 %v2266, 0.0051020407
      %v2700 = vmul.f32 %v2270, 0.0051020407
      %v2701 = vmul.f32 %v2274, 0.0051020407
      %v2702 = vmul.f32 %v2278, 0.0051020407
      %v2703 = vmul.f32 %v2282, 0.0051020407
      %v2704 = vmul.f32 %v2286, 0.0051020407
      %v2705 = vmul.f32 %v2290, 0.0051020407
      %v2706 = vmul.f32 %v2294, 0.0051020407
      %v2707 = vmul.f32 %v2298, 0.0051020407
      %v2708 = vmul.f32 %v2302, 0.0051020407
      %v2709 = vmul.f32 %v2306, 0.0051020407
      %v2710 = vmul.f32 %v2310, 0.0051020407
      %v2711 = vmul.f32 %v2314, 0.0051020407
      %v2712 = vmul.f32 %v2318, 0.0051020407
      %v2713 = vmul.f32 %v2322, 0.0051020407
      %v2714 = vmul.f32 %v2326, 0.0051020407
      %v2715 = vmul.f32 %v2330, 0.0051020407
      %v2716 = vmul.f32 %v2334, 0.0051020407
      %v2717 = vmul.f32 %v2338, 0.0051020407
      %v2718 = vmul.f32 %v2342, 0.0051020407
      %v2719 = vmul.f32 %v2346, 0.0051020407
      %v2720 = vmul.f32 %v2350, 0.0051020407
      %v2721 = vmul.f32 %v2354, 0.0051020407
      %v2722 = vmul.f32 %v2358, 0.0051020407
      %v2723 = vmul.f32 %v2359, %v2359
      %v2724 = vmul.f32 %v2360, %v2360
      %v2725 = vmul.f32 %v2361, %v2361
      %v2726 = vmul.f32 %v2362, %v2362
      %v2727 = vmul.f32 %v2363, %v2363
      %v2728 = vmul.f32 %v2364, %v2364
      %v2729 = vmul.f32 %v2365, %v2365
      %v2730 = vmul.f32 %v2366, %v2366
      %v2731 = vmul.f32 %v2367, %v2367
      %v2732 = vmul.f32 %v2368, %v2368
      %v2733 = vmul.f32 %v2369, %v2369
      %v2734 = vmul.f32 %v2370, %v2370
      %v2735 = vmul.f32 %v2371, %v2371
      %v2736 = vmul.f32 %v2372, %v2372
      %v2737 = vmul.f32 %v2373, %v2373
      %v2738 = vmul.f32 %v2374, %v2374
      %v2739 = vmul.f32 %v2375, %v2375
      %v2740 = vmul.f32 %v2376, %v2376
      %v2741 = vmul.f32 %v2377, %v2377
      %v2742 = vmul.f32 %v2378, %v2378
      %v2743 = vmul.f32 %v2379, %v2379
      %v2744 = vmul.f32 %v2380, %v2380
      %v2745 = vmul.f32 %v2381, %v2381
      %v2746 = vmul.f32 %v2382, %v2382
      %v2747 = vmul.f32 %v2383, %v2383
      %v2748 = vmul.f32 %v2384, %v2384
      %v2749 = vmul.f32 %v2385, %v2385
      %v2750 = vmul.f32 %v2386, %v2386
      %v2751 = vmul.f32 %v2387, %v2387
      %v2752 = vmul.f32 %v2388, %v2388
      %v2753 = vmul.f32 %v2389, %v2389
      %v2754 = vmul.f32 %v2390, %v2390
      %v2755 = vmul.f32 %v2391, %v2391
      %v2756 = vmul.f32 %v2392, %v2392
      %v2757 = vmul.f32 %v2393, %v2393
      %v2758 = vmul.f32 %v2394, %v2394
      %v2759 = vmul.f32 %v2395, %v2395
      %v2760 = vmul.f32 %v2396, %v2396
      %v2761 = vmul.f32 %v2397, %v2397
      %v2762 = vmul.f32 %v2398, %v2398
      %v2763 = vmul.f32 %v2399, %v2399
      %v2764 = vmul.f32 %v2400, %v2400
      %v2765 = vmul.f32 %v2401, %v2401
      %v2766 = vmul.f32 %v2402, %v2402
      %v2767 = vmul.f32 %v2403, %v2403
      %v2768 = vmul.f32 %v2404, %v2404
      %v2769 = vmul.f32 %v2405, %v2405
      %v2770 = vmul.f32 %v2406, %v2406
      %v2771 = vmul.f32 %v2407, %v2407
      %v2772 = vmul.f32 %v2408, %v2408
      %v2773 = vmul.f32 %v2409, %v2409
      %v2774 = vmul.f32 %v2410, %v2410
      %v2775 = vmul.f32 %v2411, %v2411
      %v2776 = vmul.f32 %v2412, %v2412
      %v2777 = vmul.f32 %v2413, %v2413
      %v2778 = vmul.f32 %v2414, %v2414
      %v2779 = vmul.f32 %v2415, %v2415
      %v2780 = vmul.f32 %v2416, %v2416
      %v2781 = vmul.f32 %v2417, %v2417
      %v2782 = vmul.f32 %v2418, %v2418
      %v2783 = vmul.f32 %v2419, %v2419
      %v2784 = vmul.f32 %v2420, %v2420
      %v2785 = vmul.f32 %v2421, %v2421
      %v2786 = vmul.f32 %v2422, %v2422
      %v2787 = vmul.f32 %v2423, %v2423
      %v2788 = vmul.f32 %v2424, %v2424
      %v2789 = vmul.f32 %v2425, %v2425
      %v2790 = vmul.f32 %v2426, %v2426
      %v2791 = vmul.f32 %v2427, %v2427
      %v2792 = vmul.f32 %v2428, %v2428
      %v2793 = vmul.f32 %v2429, %v2429
      %v2794 = vmul.f32 %v2430, %v2430
      %v2795 = vmul.f32 %v2431, %v2431
      %v2796 = vmul.f32 %v2432, %v2432
      %v2797 = vmul.f32 %v2433, %v2433
      %v2798 = vmul.f32 %v2434, %v2434
      %v2799 = vmul.f32 %v2435, %v2435
      %v2800 = vmul.f32 %v2436, %v2436
      %v2801 = vmul.f32 %v2437, %v2437
      %v2802 = vmul.f32 %v2438, %v2438
      %v2803 = vmul.f32 %v2439, %v2439
      %v2804 = vmul.f32 %v2440, %v2440
      %v2805 = vmul.f32 %v2441, %v2441
      %v2806 = vmul.f32 %v2442, %v2442
      %v2807 = vmul.f32 %v2443, %v2443
      %v2808 = vmul.f32 %v2444, %v2444
      %v2809 = vmul.f32 %v2445, %v2445
      %v2810 = vmul.f32 %v2446, %v2446
      %v2811 = vmul.f32 %v2447, %v2447
      %v2812 = vmul.f32 %v2448, %v2448
      %v2813 = vmul.f32 %v2449, %v2449
      %v2814 = vmul.f32 %v2450, %v2450
      %v2815 = vmul.f32 %v2451, %v2451
      %v2816 = vmul.f32 %v2452, %v2452
      %v2817 = vmul.f32 %v2453, %v2453
      %v2818 = vmul.f32 %v2454, %v2454
      %v2819 = vmul.f32 %v2455, %v2455
      %v2820 = vmul.f32 %v2456, %v2456
      %v2821 = vmul.f32 %v2457, %v2457
      %v2822 = vmul.f32 %v2458, %v2458
      %v2823 = vmul.f32 %v2459, %v2459
      %v2824 = vmul.f32 %v2460, %v2460
      %v2825 = vmul.f32 %v2461, %v2461
      %v2826 = vmul.f32 %v2462, %v2462
      %v2827 = vmul.f32 %v2463, %v2463
      %v2828 = vmul.f32 %v2464, %v2464
      %v2829 = vmul.f32 %v2465, %v2465
      %v2830 = vmul.f32 %v2466, %v2466
      %v2831 = vmul.f32 %v2467, %v2467
      %v2832 = vmul.f32 %v2468, %v2468
      %v2833 = vmul.f32 %v2469, %v2469
      %v2834 = vmul.f32 %v2470, %v2470
      %v2835 = vmul.f32 %v2471, %v2471
      %v2836 = vmul.f32 %v2472, %v2472
      %v2837 = vmul.f32 %v2473, %v2473
      %v2838 = vmul.f32 %v2474, %v2474
      %v2839 = vmul.f32 %v2475, %v2475
      %v2840 = vmul.f32 %v2476, %v2476
      %v2841 = vmul.f32 %v2477, %v2477
      %v2842 = vmul.f32 %v2478, %v2478
      %v2843 = vmul.f32 %v2479, %v2479
      %v2844 = vmul.f32 %v2480, %v2480
      %v2845 = vmul.f32 %v2481, %v2481
      %v2846 = vmul.f32 %v2482, %v2482
      %v2847 = vmul.f32 %v2483, %v2483
      %v2848 = vmul.f32 %v2484, %v2484
      %v2849 = vmul.f32 %v2485, %v2485
      %v2850 = vmul.f32 %v2486, %v2486
      %v2851 = vmul.f32 %v2487, %v2487
      %v2852 = vmul.f32 %v2488, %v2488
      %v2853 = vmul.f32 %v2489, %v2489
      %v2854 = vmul.f32 %v2490, %v2490
      %v2855 = vmul.f32 %v2491, %v2491
      %v2856 = vmul.f32 %v2492, %v2492
      %v2857 = vmul.f32 %v2493, %v2493
      %v2858 = vmul.f32 %v2494, %v2494
      %v2859 = vmul.f32 %v2495, %v2495
      %v2860 = vmul.f32 %v2496, %v2496
      %v2861 = vmul.f32 %v2497, %v2497
      %v2862 = vmul.f32 %v2498, %v2498
      %v2863 = vmul.f32 %v2499, %v2499
      %v2864 = vmul.f32 %v2500, %v2500
      %v2865 = vmul.f32 %v2501, %v2501
      %v2866 = vmul.f32 %v2502, %v2502
      %v2867 = vmul.f32 %v2503, %v2503
      %v2868 = vmul.f32 %v2504, %v2504
      %v2869 = vmul.f32 %v2505, %v2505
      %v2870 = vmul.f32 %v2506, %v2506
      %v2871 = vmul.f32 %v2507, %v2507
      %v2872 = vmul.f32 %v2508, %v2508
      %v2873 = vmul.f32 %v2509, %v2509
      %v2874 = vmul.f32 %v2510, %v2510
      %v2875 = vmul.f32 %v2511, %v2511
      %v2876 = vmul.f32 %v2512, %v2512
      %v2877 = vmul.f32 %v2513, %v2513
      %v2878 = vmul.f32 %v2514, %v2514
      %v2879 = vmul.f32 %v2515, %v2515
      %v2880 = vmul.f32 %v2516, %v2516
      %v2881 = vmul.f32 %v2517, %v2517
      %v2882 = vmul.f32 %v2518, %v2518
      %v2883 = vmul.f32 %v2519, %v2519
      %v2884 = vmul.f32 %v2520, %v2520
      %v2885 = vmul.f32 %v2521, %v2521
      %v2886 = vmul.f32 %v2522, %v2522
      %v2887 = vmul.f32 %v2523, %v2523
      %v2888 = vmul.f32 %v2524, %v2524
      %v2889 = vmul.f32 %v2525, %v2525
      %v2890 = vmul.f32 %v2526, %v2526
      %v2891 = vmul.f32 %v2527, %v2527
      %v2892 = vmul.f32 %v2528, %v2528
      %v2893 = vmul.f32 %v2529, %v2529
      %v2894 = vmul.f32 %v2530, %v2530
      %v2895 = vmul.f32 %v2531, %v2531
      %v2896 = vmul.f32 %v2532, %v2532
      %v2897 = vmul.f32 %v2533, %v2533
      %v2898 = vmul.f32 %v2534, %v2534
      %v2899 = vmul.f32 %v2535, %v2535
      %v2900 = vmul.f32 %v2536, %v2536
      %v2901 = vmul.f32 %v2537, %v2537
      %v2902 = vmul.f32 %v2538, %v2538
      %v2903 = vmul.f32 %v2539, %v2539
      %v2904 = vmul.f32 %v2540, %v2540
      %v2905 = vsub.f32 %v2541, %v2723
      %v2906 = vsub.f32 %v2542, %v2724
      %v2907 = vsub.f32 %v2543, %v2725
      %v2908 = vsub.f32 %v2544, %v2726
      %v2909 = vsub.f32 %v2545, %v2727
      %v2910 = vsub.f32 %v2546, %v2728
      %v2911 = vsub.f32 %v2547, %v2729
      %v2912 = vsub.f32 %v2548, %v2730
      %v2913 = vsub.f32 %v2549, %v2731
      %v2914 = vsub.f32 %v2550, %v2732
      %v2915 = vsub.f32 %v2551, %v2733
      %v2916 = vsub.f32 %v2552, %v2734
      %v2917 = vsub.f32 %v2553, %v2735
      %v2918 = vsub.f32 %v2554, %v2736
      %v2919 = vsub.f32 %v2555, %v2737
      %v2920 = vsub.f32 %v2556, %v2738
      %v2921 = vsub.f32 %v2557, %v2739
      %v2922 = vsub.f32 %v2558, %v2740
      %v2923 = vsub.f32 %v2559, %v2741
      %v2924 = vsub.f32 %v2560, %v2742
      %v2925 = vsub.f32 %v2561, %v2743
      %v2926 = vsub.f32 %v2562, %v2744
      %v2927 = vsub.f32 %v2563, %v2745
      %v2928 = vsub.f32 %v2564, %v2746
      %v2929 = vsub.f32 %v2565, %v2747
      %v2930 = vsub.f32 %v2566, %v2748
      %v2931 = vsub.f32 %v2567, %v2749
      %v2932 = vsub.f32 %v2568, %v2750
      %v2933 = vsub.f32 %v2569, %v2751
      %v2934 = vsub.f32 %v2570, %v2752
      %v2935 = vsub.f32 %v2571, %v2753
      %v2936 = vsub.f32 %v2572, %v2754
      %v2937 = vsub.f32 %v2573, %v2755
      %v2938 = vsub.f32 %v2574, %v2756
      %v2939 = vsub.f32 %v2575, %v2757
      %v2940 = vsub.f32 %v2576, %v2758
      %v2941 = vsub.f32 %v2577, %v2759
      %v2942 = vsub.f32 %v2578, %v2760
      %v2943 = vsub.f32 %v2579, %v2761
      %v2944 = vsub.f32 %v2580, %v2762
      %v2945 = vsub.f32 %v2581, %v2763
      %v2946 = vsub.f32 %v2582, %v2764
      %v2947 = vsub.f32 %v2583, %v2765
      %v2948 = vsub.f32 %v2584, %v2766
      %v2949 = vsub.f32 %v2585, %v2767
      %v2950 = vsub.f32 %v2586, %v2768
      %v2951 = vsub.f32 %v2587, %v2769
      %v2952 = vsub.f32 %v2588, %v2770
      %v2953 = vsub.f32 %v2589, %v2771
      %v2954 = vsub.f32 %v2590, %v2772
      %v2955 = vsub.f32 %v2591, %v2773
      %v2956 = vsub.f32 %v2592, %v2774
      %v2957 = vsub.f32 %v2593, %v2775
      %v2958 = vsub.f32 %v2594, %v2776
      %v2959 = vsub.f32 %v2595, %v2777
      %v2960 = vsub.f32 %v2596, %v2778
      %v2961 = vsub.f32 %v2597, %v2779
      %v2962 = vsub.f32 %v2598, %v2780
      %v2963 = vsub.f32 %v2599, %v2781
      %v2964 = vsub.f32 %v2600, %v2782
      %v2965 = vsub.f32 %v2601, %v2783
      %v2966 = vsub.f32 %v2602, %v2784
      %v2967 = vsub.f32 %v2603, %v2785
      %v2968 = vsub.f32 %v2604, %v2786
      %v2969 = vsub.f32 %v2605, %v2787
      %v2970 = vsub.f32 %v2606, %v2788
      %v2971 = vsub.f32 %v2607, %v2789
      %v2972 = vsub.f32 %v2608, %v2790
      %v2973 = vsub.f32 %v2609, %v2791
      %v2974 = vsub.f32 %v2610, %v2792
      %v2975 = vsub.f32 %v2611, %v2793
      %v2976 = vsub.f32 %v2612, %v2794
      %v2977 = vsub.f32 %v2613, %v2795
      %v2978 = vsub.f32 %v2614, %v2796
      %v2979 = vsub.f32 %v2615, %v2797
      %v2980 = vsub.f32 %v2616, %v2798
      %v2981 = vsub.f32 %v2617, %v2799
      %v2982 = vsub.f32 %v2618, %v2800
      %v2983 = vsub.f32 %v2619, %v2801
      %v2984 = vsub.f32 %v2620, %v2802
      %v2985 = vsub.f32 %v2621, %v2803
      %v2986 = vsub.f32 %v2622, %v2804
      %v2987 = vsub.f32 %v2623, %v2805
      %v2988 = vsub.f32 %v2624, %v2806
      %v2989 = vsub.f32 %v2625, %v2807
      %v2990 = vsub.f32 %v2626, %v2808
      %v2991 = vsub.f32 %v2627, %v2809
      %v2992 = vsub.f32 %v2628, %v2810
      %v2993 = vsub.f32 %v2629, %v2811
      %v2994 = vsub.f32 %v2630, %v2812
      %v2995 = vsub.f32 %v2631, %v2813
      %v2996 = vsub.f32 %v2632, %v2814
      %v2997 = vsub.f32 %v2633, %v2815
      %v2998 = vsub.f32 %v2634, %v2816
      %v2999 = vsub.f32 %v2635, %v2817
      %v3000 = vsub.f32 %v2636, %v2818
      %v3001 = vsub.f32 %v2637, %v2819
      %v3002 = vsub.f32 %v2638, %v2820
      %v3003 = vsub.f32 %v2639, %v2821
      %v3004 = vsub.f32 %v2640, %v2822
      %v3005 = vsub.f32 %v2641, %v2823
      %v3006 = vsub.f32 %v2642, %v2824
      %v3007 = vsub.f32 %v2643, %v2825
      %v3008 = vsub.f32 %v2644, %v2826
      %v3009 = vsub.f32 %v2645, %v2827
      %v3010 = vsub.f32 %v2646, %v2828
      %v3011 = vsub.f32 %v2647, %v2829
      %v3012 = vsub.f32 %v2648, %v2830
      %v3013 = vsub.f32 %v2649, %v2831
      %v3014 = vsub.f32 %v2650, %v2832
      %v3015 = vsub.f32 %v2651, %v2833
      %v3016 = vsub.f32 %v2652, %v2834
      %v3017 = vsub.f32 %v2653, %v2835
      %v3018 = vsub.f32 %v2654, %v2836
      %v3019 = vsub.f32 %v2655, %v2837
      %v3020 = vsub.f32 %v2656, %v2838
      %v3021 = vsub.f32 %v2657, %v2839
      %v3022 = vsub.f32 %v2658, %v2840
      %v3023 = vsub.f32 %v2659, %v2841
      %v3024 = vsub.f32 %v2660, %v2842
      %v3025 = vsub.f32 %v2661, %v2843
      %v3026 = vsub.f32 %v2662, %v2844
      %v3027 = vsub.f32 %v2663, %v2845
      %v3028 = vsub.f32 %v2664, %v2846
      %v3029 = vsub.f32 %v2665, %v2847
      %v3030 = vsub.f32 %v2666, %v2848
      %v3031 = vsub.f32 %v2667, %v2849
      %v3032 = vsub.f32 %v2668, %v2850
      %v3033 = vsub.f32 %v2669, %v2851
      %v3034 = vsub.f32 %v2670, %v2852
      %v3035 = vsub.f32 %v2671, %v2853
      %v3036 = vsub.f32 %v2672, %v2854
      %v3037 = vsub.f32 %v2673, %v2855
      %v3038 = vsub.f32 %v2674, %v2856
      %v3039 = vsub.f32 %v2675, %v2857
      %v3040 = vsub.f32 %v2676, %v2858
      %v3041 = vsub.f32 %v2677, %v2859
      %v3042 = vsub.f32 %v2678, %v2860
      %v3043 = vsub.f32 %v2679, %v2861
      %v3044 = vsub.f32 %v2680, %v2862
      %v3045 = vsub.f32 %v2681, %v2863
      %v3046 = vsub.f32 %v2682, %v2864
      %v3047 = vsub.f32 %v2683, %v2865
      %v3048 = vsub.f32 %v2684, %v2866
      %v3049 = vsub.f32 %v2685, %v2867
      %v3050 = vsub.f32 %v2686, %v2868
      %v3051 = vsub.f32 %v2687, %v2869
      %v3052 = vsub.f32 %v2688, %v2870
      %v3053 = vsub.f32 %v2689, %v2871
      %v3054 = vsub.f32 %v2690, %v2872
      %v3055 = vsub.f32 %v2691, %v2873
      %v3056 = vsub.f32 %v2692, %v2874
      %v3057 = vsub.f32 %v2693, %v2875
      %v3058 = vsub.f32 %v2694, %v2876
      %v3059 = vsub.f32 %v2695, %v2877
      %v3060 = vsub.f32 %v2696, %v2878
      %v3061 = vsub.f32 %v2697, %v2879
      %v3062 = vsub.f32 %v2698, %v2880
      %v3063 = vsub.f32 %v2699, %v2881
      %v3064 = vsub.f32 %v2700, %v2882
      %v3065 = vsub.f32 %v2701, %v2883
      %v3066 = vsub.f32 %v2702, %v2884
      %v3067 = vsub.f32 %v2703, %v2885
      %v3068 = vsub.f32 %v2704, %v2886
      %v3069 = vsub.f32 %v2705, %v2887
      %v3070 = vsub.f32 %v2706, %v2888
      %v3071 = vsub.f32 %v2707, %v2889
      %v3072 = vsub.f32 %v2708, %v2890
      %v3073 = vsub.f32 %v2709, %v2891
      %v3074 = vsub.f32 %v2710, %v2892
      %v3075 = vsub.f32 %v2711, %v2893
      %v3076 = vsub.f32 %v2712, %v2894
      %v3077 = vsub.f32 %v2713, %v2895
      %v3078 = vsub.f32 %v2714, %v2896
      %v3079 = vsub.f32 %v2715, %v2897
      %v3080 = vsub.f32 %v2716, %v2898
      %v3081 = vsub.f32 %v2717, %v2899
      %v3082 = vsub.f32 %v2718, %v2900
      %v3083 = vsub.f32 %v2719, %v2901
      %v3084 = vsub.f32 %v2720, %v2902
      %v3085 = vsub.f32 %v2721, %v2903
      %v3086 = vsub.f32 %v2722, %v2904
      %v3087 = vmax.f32 %v2905, 0.0
      %v3088 = vmax.f32 %v2906, 0.0
      %v3089 = vmax.f32 %v2907, 0.0
      %v3090 = vmax.f32 %v2908, 0.0
      %v3091 = vmax.f32 %v2909, 0.0
      %v3092 = vmax.f32 %v2910, 0.0
      %v3093 = vmax.f32 %v2911, 0.0
      %v3094 = vmax.f32 %v2912, 0.0
      %v3095 = vmax.f32 %v2913, 0.0
      %v3096 = vmax.f32 %v2914, 0.0
      %v3097 = vmax.f32 %v2915, 0.0
      %v3098 = vmax.f32 %v2916, 0.0
      %v3099 = vmax.f32 %v2917, 0.0
      %v3100 = vmax.f32 %v2918, 0.0
      %v3101 = vmax.f32 %v2919, 0.0
      %v3102 = vmax.f32 %v2920, 0.0
      %v3103 = vmax.f32 %v2921, 0.0
      %v3104 = vmax.f32 %v2922, 0.0
      %v3105 = vmax.f32 %v2923, 0.0
      %v3106 = vmax.f32 %v2924, 0.0
      %v3107 = vmax.f32 %v2925, 0.0
      %v3108 = vmax.f32 %v2926, 0.0
      %v3109 = vmax.f32 %v2927, 0.0
      %v3110 = vmax.f32 %v2928, 0.0
      %v3111 = vmax.f32 %v2929, 0.0
      %v3112 = vmax.f32 %v2930, 0.0
      %v3113 = vmax.f32 %v2931, 0.0
      %v3114 = vmax.f32 %v2932, 0.0
      %v3115 = vmax.f32 %v2933, 0.0
      %v3116 = vmax.f32 %v2934, 0.0
      %v3117 = vmax.f32 %v2935, 0.0
      %v3118 = vmax.f32 %v2936, 0.0
      %v3119 = vmax.f32 %v2937, 0.0
      %v3120 = vmax.f32 %v2938, 0.0
      %v3121 = vmax.f32 %v2939, 0.0
      %v3122 = vmax.f32 %v2940, 0.0
      %v3123 = vmax.f32 %v2941, 0.0
      %v3124 = vmax.f32 %v2942, 0.0
      %v3125 = vmax.f32 %v2943, 0.0
      %v3126 = vmax.f32 %v2944, 0.0
      %v3127 = vmax.f32 %v2945, 0.0
      %v3128 = vmax.f32 %v2946, 0.0
      %v3129 = vmax.f32 %v2947, 0.0
      %v3130 = vmax.f32 %v2948, 0.0
      %v3131 = vmax.f32 %v2949, 0.0
      %v3132 = vmax.f32 %v2950, 0.0
      %v3133 = vmax.f32 %v2951, 0.0
      %v3134 = vmax.f32 %v2952, 0.0
      %v3135 = vmax.f32 %v2953, 0.0
      %v3136 = vmax.f32 %v2954, 0.0
      %v3137 = vmax.f32 %v2955, 0.0
      %v3138 = vmax.f32 %v2956, 0.0
      %v3139 = vmax.f32 %v2957, 0.0
      %v3140 = vmax.f32 %v2958, 0.0
      %v3141 = vmax.f32 %v2959, 0.0
      %v3142 = vmax.f32 %v2960, 0.0
      %v3143 = vmax.f32 %v2961, 0.0
      %v3144 = vmax.f32 %v2962, 0.0
      %v3145 = vmax.f32 %v2963, 0.0
      %v3146 = vmax.f32 %v2964, 0.0
      %v3147 = vmax.f32 %v2965, 0.0
      %v3148 = vmax.f32 %v2966, 0.0
      %v3149 = vmax.f32 %v2967, 0.0
      %v3150 = vmax.f32 %v2968, 0.0
      %v3151 = vmax.f32 %v2969, 0.0
      %v3152 = vmax.f32 %v2970, 0.0
      %v3153 = vmax.f32 %v2971, 0.0
      %v3154 = vmax.f32 %v2972, 0.0
      %v3155 = vmax.f32 %v2973, 0.0
      %v3156 = vmax.f32 %v2974, 0.0
      %v3157 = vmax.f32 %v2975, 0.0
      %v3158 = vmax.f32 %v2976, 0.0
      %v3159 = vmax.f32 %v2977, 0.0
      %v3160 = vmax.f32 %v2978, 0.0
      %v3161 = vmax.f32 %v2979, 0.0
      %v3162 = vmax.f32 %v2980, 0.0
      %v3163 = vmax.f32 %v2981, 0.0
      %v3164 = vmax.f32 %v2982, 0.0
      %v3165 = vmax.f32 %v2983, 0.0
      %v3166 = vmax.f32 %v2984, 0.0
      %v3167 = vmax.f32 %v2985, 0.0
      %v3168 = vmax.f32 %v2986, 0.0
      %v3169 = vmax.f32 %v2987, 0.0
      %v3170 = vmax.f32 %v2988, 0.0
      %v3171 = vmax.f32 %v2989, 0.0
      %v3172 = vmax.f32 %v2990, 0.0
      %v3173 = vmax.f32 %v2991, 0.0
      %v3174 = vmax.f32 %v2992, 0.0
      %v3175 = vmax.f32 %v2993, 0.0
      %v3176 = vmax.f32 %v2994, 0.0
      %v3177 = vmax.f32 %v2995, 0.0
      %v3178 = vmax.f32 %v2996, 0.0
      %v3179 = vmax.f32 %v2997, 0.0
      %v3180 = vmax.f32 %v2998, 0.0
      %v3181 = vmax.f32 %v2999, 0.0
      %v3182 = vmax.f32 %v3000, 0.0
      %v3183 = vmax.f32 %v3001, 0.0
      %v3184 = vmax.f32 %v3002, 0.0
      %v3185 = vmax.f32 %v3003, 0.0
      %v3186 = vmax.f32 %v3004, 0.0
      %v3187 = vmax.f32 %v3005, 0.0
      %v3188 = vmax.f32 %v3006, 0.0
      %v3189 = vmax.f32 %v3007, 0.0
      %v3190 = vmax.f32 %v3008, 0.0
      %v3191 = vmax.f32 %v3009, 0.0
      %v3192 = vmax.f32 %v3010, 0.0
      %v3193 = vmax.f32 %v3011, 0.0
      %v3194 = vmax.f32 %v3012, 0.0
      %v3195 = vmax.f32 %v3013, 0.0
      %v3196 = vmax.f32 %v3014, 0.0
      %v3197 = vmax.f32 %v3015, 0.0
      %v3198 = vmax.f32 %v3016, 0.0
      %v3199 = vmax.f32 %v3017, 0.0
      %v3200 = vmax.f32 %v3018, 0.0
      %v3201 = vmax.f32 %v3019, 0.0
      %v3202 = vmax.f32 %v3020, 0.0
      %v3203 = vmax.f32 %v3021, 0.0
      %v3204 = vmax.f32 %v3022, 0.0
      %v3205 = vmax.f32 %v3023, 0.0
      %v3206 = vmax.f32 %v3024, 0.0
      %v3207 = vmax.f32 %v3025, 0.0
      %v3208 = vmax.f32 %v3026, 0.0
      %v3209 = vmax.f32 %v3027, 0.0
      %v3210 = vmax.f32 %v3028, 0.0
      %v3211 = vmax.f32 %v3029, 0.0
      %v3212 = vmax.f32 %v3030, 0.0
      %v3213 = vmax.f32 %v3031, 0.0
      %v3214 = vmax.f32 %v3032, 0.0
      %v3215 = vmax.f32 %v3033, 0.0
      %v3216 = vmax.f32 %v3034, 0.0
      %v3217 = vmax.f32 %v3035, 0.0
      %v3218 = vmax.f32 %v3036, 0.0
      %v3219 = vmax.f32 %v3037, 0.0
      %v3220 = vmax.f32 %v3038, 0.0
      %v3221 = vmax.f32 %v3039, 0.0
      %v3222 = vmax.f32 %v3040, 0.0
      %v3223 = vmax.f32 %v3041, 0.0
      %v3224 = vmax.f32 %v3042, 0.0
      %v3225 = vmax.f32 %v3043, 0.0
      %v3226 = vmax.f32 %v3044, 0.0
      %v3227 = vmax.f32 %v3045, 0.0
      %v3228 = vmax.f32 %v3046, 0.0
      %v3229 = vmax.f32 %v3047, 0.0
      %v3230 = vmax.f32 %v3048, 0.0
      %v3231 = vmax.f32 %v3049, 0.0
      %v3232 = vmax.f32 %v3050, 0.0
      %v3233 = vmax.f32 %v3051, 0.0
      %v3234 = vmax.f32 %v3052, 0.0
      %v3235 = vmax.f32 %v3053, 0.0
      %v3236 = vmax.f32 %v3054, 0.0
      %v3237 = vmax.f32 %v3055, 0.0
      %v3238 = vmax.f32 %v3056, 0.0
      %v3239 = vmax.f32 %v3057, 0.0
      %v3240 = vmax.f32 %v3058, 0.0
      %v3241 = vmax.f32 %v3059, 0.0
      %v3242 = vmax.f32 %v3060, 0.0
      %v3243 = vmax.f32 %v3061, 0.0
      %v3244 = vmax.f32 %v3062, 0.0
      %v3245 = vmax.f32 %v3063, 0.0
      %v3246 = vmax.f32 %v3064, 0.0
      %v3247 = vmax.f32 %v3065, 0.0
      %v3248 = vmax.f32 %v3066, 0.0
      %v3249 = vmax.f32 %v3067, 0.0
      %v3250 = vmax.f32 %v3068, 0.0
      %v3251 = vmax.f32 %v3069, 0.0
      %v3252 = vmax.f32 %v3070, 0.0
      %v3253 = vmax.f32 %v3071, 0.0
      %v3254 = vmax.f32 %v3072, 0.0
      %v3255 = vmax.f32 %v3073, 0.0
      %v3256 = vmax.f32 %v3074, 0.0
      %v3257 = vmax.f32 %v3075, 0.0
      %v3258 = vmax.f32 %v3076, 0.0
      %v3259 = vmax.f32 %v3077, 0.0
      %v3260 = vmax.f32 %v3078, 0.0
      %v3261 = vmax.f32 %v3079, 0.0
      %v3262 = vmax.f32 %v3080, 0.0
      %v3263 = vmax.f32 %v3081, 0.0
      %v3264 = vmax.f32 %v3082, 0.0
      %v3265 = vmax.f32 %v3083, 0.0
      %v3266 = vmax.f32 %v3084, 0.0
      %v3267 = vmax.f32 %v3085, 0.0
      %v3268 = vmax.f32 %v3086, 0.0
      %v3269 = vadd.f32 %v3087, 1e-05
      %v3270 = vadd.f32 %v3088, 1e-05
      %v3271 = vadd.f32 %v3089, 1e-05
      %v3272 = vadd.f32 %v3090, 1e-05
      %v3273 = vadd.f32 %v3091, 1e-05
      %v3274 = vadd.f32 %v3092, 1e-05
      %v3275 = vadd.f32 %v3093, 1e-05
      %v3276 = vadd.f32 %v3094, 1e-05
      %v3277 = vadd.f32 %v3095, 1e-05
      %v3278 = vadd.f32 %v3096, 1e-05
      %v3279 = vadd.f32 %v3097, 1e-05
      %v3280 = vadd.f32 %v3098, 1e-05
      %v3281 = vadd.f32 %v3099, 1e-05
      %v3282 = vadd.f32 %v3100, 1e-05
      %v3283 = vadd.f32 %v3101, 1e-05
      %v3284 = vadd.f32 %v3102, 1e-05
      %v3285 = vadd.f32 %v3103, 1e-05
      %v3286 = vadd.f32 %v3104, 1e-05
      %v3287 = vadd.f32 %v3105, 1e-05
      %v3288 = vadd.f32 %v3106, 1e-05
      %v3289 = vadd.f32 %v3107, 1e-05
      %v3290 = vadd.f32 %v3108, 1e-05
      %v3291 = vadd.f32 %v3109, 1e-05
      %v3292 = vadd.f32 %v3110, 1e-05
      %v3293 = vadd.f32 %v3111, 1e-05
      %v3294 = vadd.f32 %v3112, 1e-05
      %v3295 = vadd.f32 %v3113, 1e-05
      %v3296 = vadd.f32 %v3114, 1e-05
      %v3297 = vadd.f32 %v3115, 1e-05
      %v3298 = vadd.f32 %v3116, 1e-05
      %v3299 = vadd.f32 %v3117, 1e-05
      %v3300 = vadd.f32 %v3118, 1e-05
      %v3301 = vadd.f32 %v3119, 1e-05
      %v3302 = vadd.f32 %v3120, 1e-05
      %v3303 = vadd.f32 %v3121, 1e-05
      %v3304 = vadd.f32 %v3122, 1e-05
      %v3305 = vadd.f32 %v3123, 1e-05
      %v3306 = vadd.f32 %v3124, 1e-05
      %v3307 = vadd.f32 %v3125, 1e-05
      %v3308 = vadd.f32 %v3126, 1e-05
      %v3309 = vadd.f32 %v3127, 1e-05
      %v3310 = vadd.f32 %v3128, 1e-05
      %v3311 = vadd.f32 %v3129, 1e-05
      %v3312 = vadd.f32 %v3130, 1e-05
      %v3313 = vadd.f32 %v3131, 1e-05
      %v3314 = vadd.f32 %v3132, 1e-05
      %v3315 = vadd.f32 %v3133, 1e-05
      %v3316 = vadd.f32 %v3134, 1e-05
      %v3317 = vadd.f32 %v3135, 1e-05
      %v3318 = vadd.f32 %v3136, 1e-05
      %v3319 = vadd.f32 %v3137, 1e-05
      %v3320 = vadd.f32 %v3138, 1e-05
      %v3321 = vadd.f32 %v3139, 1e-05
      %v3322 = vadd.f32 %v3140, 1e-05
      %v3323 = vadd.f32 %v3141, 1e-05
      %v3324 = vadd.f32 %v3142, 1e-05
      %v3325 = vadd.f32 %v3143, 1e-05
      %v3326 = vadd.f32 %v3144, 1e-05
      %v3327 = vadd.f32 %v3145, 1e-05
      %v3328 = vadd.f32 %v3146, 1e-05
      %v3329 = vadd.f32 %v3147, 1e-05
      %v3330 = vadd.f32 %v3148, 1e-05
      %v3331 = vadd.f32 %v3149, 1e-05
      %v3332 = vadd.f32 %v3150, 1e-05
      %v3333 = vadd.f32 %v3151, 1e-05
      %v3334 = vadd.f32 %v3152, 1e-05
      %v3335 = vadd.f32 %v3153, 1e-05
      %v3336 = vadd.f32 %v3154, 1e-05
      %v3337 = vadd.f32 %v3155, 1e-05
      %v3338 = vadd.f32 %v3156, 1e-05
      %v3339 = vadd.f32 %v3157, 1e-05
      %v3340 = vadd.f32 %v3158, 1e-05
      %v3341 = vadd.f32 %v3159, 1e-05
      %v3342 = vadd.f32 %v3160, 1e-05
      %v3343 = vadd.f32 %v3161, 1e-05
      %v3344 = vadd.f32 %v3162, 1e-05
      %v3345 = vadd.f32 %v3163, 1e-05
      %v3346 = vadd.f32 %v3164, 1e-05
      %v3347 = vadd.f32 %v3165, 1e-05
      %v3348 = vadd.f32 %v3166, 1e-05
      %v3349 = vadd.f32 %v3167, 1e-05
      %v3350 = vadd.f32 %v3168, 1e-05
      %v3351 = vadd.f32 %v3169, 1e-05
      %v3352 = vadd.f32 %v3170, 1e-05
      %v3353 = vadd.f32 %v3171, 1e-05
      %v3354 = vadd.f32 %v3172, 1e-05
      %v3355 = vadd.f32 %v3173, 1e-05
      %v3356 = vadd.f32 %v3174, 1e-05
      %v3357 = vadd.f32 %v3175, 1e-05
      %v3358 = vadd.f32 %v3176, 1e-05
      %v3359 = vadd.f32 %v3177, 1e-05
      %v3360 = vadd.f32 %v3178, 1e-05
      %v3361 = vadd.f32 %v3179, 1e-05
      %v3362 = vadd.f32 %v3180, 1e-05
      %v3363 = vadd.f32 %v3181, 1e-05
      %v3364 = vadd.f32 %v3182, 1e-05
      %v3365 = vadd.f32 %v3183, 1e-05
      %v3366 = vadd.f32 %v3184, 1e-05
      %v3367 = vadd.f32 %v3185, 1e-05
      %v3368 = vadd.f32 %v3186, 1e-05
      %v3369 = vadd.f32 %v3187, 1e-05
      %v3370 = vadd.f32 %v3188, 1e-05
      %v3371 = vadd.f32 %v3189, 1e-05
      %v3372 = vadd.f32 %v3190, 1e-05
      %v3373 = vadd.f32 %v3191, 1e-05
      %v3374 = vadd.f32 %v3192, 1e-05
      %v3375 = vadd.f32 %v3193, 1e-05
      %v3376 = vadd.f32 %v3194, 1e-05
      %v3377 = vadd.f32 %v3195, 1e-05
      %v3378 = vadd.f32 %v3196, 1e-05
      %v3379 = vadd.f32 %v3197, 1e-05
      %v3380 = vadd.f32 %v3198, 1e-05
      %v3381 = vadd.f32 %v3199, 1e-05
      %v3382 = vadd.f32 %v3200, 1e-05
      %v3383 = vadd.f32 %v3201, 1e-05
      %v3384 = vadd.f32 %v3202, 1e-05
      %v3385 = vadd.f32 %v3203, 1e-05
      %v3386 = vadd.f32 %v3204, 1e-05
      %v3387 = vadd.f32 %v3205, 1e-05
      %v3388 = vadd.f32 %v3206, 1e-05
      %v3389 = vadd.f32 %v3207, 1e-05
      %v3390 = vadd.f32 %v3208, 1e-05
      %v3391 = vadd.f32 %v3209, 1e-05
      %v3392 = vadd.f32 %v3210, 1e-05
      %v3393 = vadd.f32 %v3211, 1e-05
      %v3394 = vadd.f32 %v3212, 1e-05
      %v3395 = vadd.f32 %v3213, 1e-05
      %v3396 = vadd.f32 %v3214, 1e-05
      %v3397 = vadd.f32 %v3215, 1e-05
      %v3398 = vadd.f32 %v3216, 1e-05
      %v3399 = vadd.f32 %v3217, 1e-05
      %v3400 = vadd.f32 %v3218, 1e-05
      %v3401 = vadd.f32 %v3219, 1e-05
      %v3402 = vadd.f32 %v3220, 1e-05
      %v3403 = vadd.f32 %v3221, 1e-05
      %v3404 = vadd.f32 %v3222, 1e-05
      %v3405 = vadd.f32 %v3223, 1e-05
      %v3406 = vadd.f32 %v3224, 1e-05
      %v3407 = vadd.f32 %v3225, 1e-05
      %v3408 = vadd.f32 %v3226, 1e-05
      %v3409 = vadd.f32 %v3227, 1e-05
      %v3410 = vadd.f32 %v3228, 1e-05
      %v3411 = vadd.f32 %v3229, 1e-05
      %v3412 = vadd.f32 %v3230, 1e-05
      %v3413 = vadd.f32 %v3231, 1e-05
      %v3414 = vadd.f32 %v3232, 1e-05
      %v3415 = vadd.f32 %v3233, 1e-05
      %v3416 = vadd.f32 %v3234, 1e-05
      %v3417 = vadd.f32 %v3235, 1e-05
      %v3418 = vadd.f32 %v3236, 1e-05
      %v3419 = vadd.f32 %v3237, 1e-05
      %v3420 = vadd.f32 %v3238, 1e-05
      %v3421 = vadd.f32 %v3239, 1e-05
      %v3422 = vadd.f32 %v3240, 1e-05
      %v3423 = vadd.f32 %v3241, 1e-05
      %v3424 = vadd.f32 %v3242, 1e-05
      %v3425 = vadd.f32 %v3243, 1e-05
      %v3426 = vadd.f32 %v3244, 1e-05
      %v3427 = vadd.f32 %v3245, 1e-05
      %v3428 = vadd.f32 %v3246, 1e-05
      %v3429 = vadd.f32 %v3247, 1e-05
      %v3430 = vadd.f32 %v3248, 1e-05
      %v3431 = vadd.f32 %v3249, 1e-05
      %v3432 = vadd.f32 %v3250, 1e-05
      %v3433 = vadd.f32 %v3251, 1e-05
      %v3434 = vadd.f32 %v3252, 1e-05
      %v3435 = vadd.f32 %v3253, 1e-05
      %v3436 = vadd.f32 %v3254, 1e-05
      %v3437 = vadd.f32 %v3255, 1e-05
      %v3438 = vadd.f32 %v3256, 1e-05
      %v3439 = vadd.f32 %v3257, 1e-05
      %v3440 = vadd.f32 %v3258, 1e-05
      %v3441 = vadd.f32 %v3259, 1e-05
      %v3442 = vadd.f32 %v3260, 1e-05
      %v3443 = vadd.f32 %v3261, 1e-05
      %v3444 = vadd.f32 %v3262, 1e-05
      %v3445 = vadd.f32 %v3263, 1e-05
      %v3446 = vadd.f32 %v3264, 1e-05
      %v3447 = vadd.f32 %v3265, 1e-05
      %v3448 = vadd.f32 %v3266, 1e-05
      %v3449 = vadd.f32 %v3267, 1e-05
      %v3450 = vadd.f32 %v3268, 1e-05
      %v3451 = vrsqrt.pop %v3269
      %v3452 = vrsqrt.pop %v3270
      %v3453 = vrsqrt.pop %v3271
      %v3454 = vrsqrt.pop %v3272
      %v3455 = vrsqrt.pop %v3273
      %v3456 = vrsqrt.pop %v3274
      %v3457 = vrsqrt.pop %v3275
      %v3458 = vrsqrt.pop %v3276
      %v3459 = vrsqrt.pop %v3277
      %v3460 = vrsqrt.pop %v3278
      %v3461 = vrsqrt.pop %v3279
      %v3462 = vrsqrt.pop %v3280
      %v3463 = vrsqrt.pop %v3281
      %v3464 = vrsqrt.pop %v3282
      %v3465 = vrsqrt.pop %v3283
      %v3466 = vrsqrt.pop %v3284
      %v3467 = vrsqrt.pop %v3285
      %v3468 = vrsqrt.pop %v3286
      %v3469 = vrsqrt.pop %v3287
      %v3470 = vrsqrt.pop %v3288
      %v3471 = vrsqrt.pop %v3289
      %v3472 = vrsqrt.pop %v3290
      %v3473 = vrsqrt.pop %v3291
      %v3474 = vrsqrt.pop %v3292
      %v3475 = vrsqrt.pop %v3293
      %v3476 = vrsqrt.pop %v3294
      %v3477 = vrsqrt.pop %v3295
      %v3478 = vrsqrt.pop %v3296
      %v3479 = vrsqrt.pop %v3297
      %v3480 = vrsqrt.pop %v3298
      %v3481 = vrsqrt.pop %v3299
      %v3482 = vrsqrt.pop %v3300
      %v3483 = vrsqrt.pop %v3301
      %v3484 = vrsqrt.pop %v3302
      %v3485 = vrsqrt.pop %v3303
      %v3486 = vrsqrt.pop %v3304
      %v3487 = vrsqrt.pop %v3305
      %v3488 = vrsqrt.pop %v3306
      %v3489 = vrsqrt.pop %v3307
      %v3490 = vrsqrt.pop %v3308
      %v3491 = vrsqrt.pop %v3309
      %v3492 = vrsqrt.pop %v3310
      %v3493 = vrsqrt.pop %v3311
      %v3494 = vrsqrt.pop %v3312
      %v3495 = vrsqrt.pop %v3313
      %v3496 = vrsqrt.pop %v3314
      %v3497 = vrsqrt.pop %v3315
      %v3498 = vrsqrt.pop %v3316
      %v3499 = vrsqrt.pop %v3317
      %v3500 = vrsqrt.pop %v3318
      %v3501 = vrsqrt.pop %v3319
      %v3502 = vrsqrt.pop %v3320
      %v3503 = vrsqrt.pop %v3321
      %v3504 = vrsqrt.pop %v3322
      %v3505 = vrsqrt.pop %v3323
      %v3506 = vrsqrt.pop %v3324
      %v3507 = vrsqrt.pop %v3325
      %v3508 = vrsqrt.pop %v3326
      %v3509 = vrsqrt.pop %v3327
      %v3510 = vrsqrt.pop %v3328
      %v3511 = vrsqrt.pop %v3329
      %v3512 = vrsqrt.pop %v3330
      %v3513 = vrsqrt.pop %v3331
      %v3514 = vrsqrt.pop %v3332
      %v3515 = vrsqrt.pop %v3333
      %v3516 = vrsqrt.pop %v3334
      %v3517 = vrsqrt.pop %v3335
      %v3518 = vrsqrt.pop %v3336
      %v3519 = vrsqrt.pop %v3337
      %v3520 = vrsqrt.pop %v3338
      %v3521 = vrsqrt.pop %v3339
      %v3522 = vrsqrt.pop %v3340
      %v3523 = vrsqrt.pop %v3341
      %v3524 = vrsqrt.pop %v3342
      %v3525 = vrsqrt.pop %v3343
      %v3526 = vrsqrt.pop %v3344
      %v3527 = vrsqrt.pop %v3345
      %v3528 = vrsqrt.pop %v3346
      %v3529 = vrsqrt.pop %v3347
      %v3530 = vrsqrt.pop %v3348
      %v3531 = vrsqrt.pop %v3349
      %v3532 = vrsqrt.pop %v3350
      %v3533 = vrsqrt.pop %v3351
      %v3534 = vrsqrt.pop %v3352
      %v3535 = vrsqrt.pop %v3353
      %v3536 = vrsqrt.pop %v3354
      %v3537 = vrsqrt.pop %v3355
      %v3538 = vrsqrt.pop %v3356
      %v3539 = vrsqrt.pop %v3357
      %v3540 = vrsqrt.pop %v3358
      %v3541 = vrsqrt.pop %v3359
      %v3542 = vrsqrt.pop %v3360
      %v3543 = vrsqrt.pop %v3361
      %v3544 = vrsqrt.pop %v3362
      %v3545 = vrsqrt.pop %v3363
      %v3546 = vrsqrt.pop %v3364
      %v3547 = vrsqrt.pop %v3365
      %v3548 = vrsqrt.pop %v3366
      %v3549 = vrsqrt.pop %v3367
      %v3550 = vrsqrt.pop %v3368
      %v3551 = vrsqrt.pop %v3369
      %v3552 = vrsqrt.pop %v3370
      %v3553 = vrsqrt.pop %v3371
      %v3554 = vrsqrt.pop %v3372
      %v3555 = vrsqrt.pop %v3373
      %v3556 = vrsqrt.pop %v3374
      %v3557 = vrsqrt.pop %v3375
      %v3558 = vrsqrt.pop %v3376
      %v3559 = vrsqrt.pop %v3377
      %v3560 = vrsqrt.pop %v3378
      %v3561 = vrsqrt.pop %v3379
      %v3562 = vrsqrt.pop %v3380
      %v3563 = vrsqrt.pop %v3381
      %v3564 = vrsqrt.pop %v3382
      %v3565 = vrsqrt.pop %v3383
      %v3566 = vrsqrt.pop %v3384
      %v3567 = vrsqrt.pop %v3385
      %v3568 = vrsqrt.pop %v3386
      %v3569 = vrsqrt.pop %v3387
      %v3570 = vrsqrt.pop %v3388
      %v3571 = vrsqrt.pop %v3389
      %v3572 = vrsqrt.pop %v3390
      %v3573 = vrsqrt.pop %v3391
      %v3574 = vrsqrt.pop %v3392
      %v3575 = vrsqrt.pop %v3393
      %v3576 = vrsqrt.pop %v3394
      %v3577 = vrsqrt.pop %v3395
      %v3578 = vrsqrt.pop %v3396
      %v3579 = vrsqrt.pop %v3397
      %v3580 = vrsqrt.pop %v3398
      %v3581 = vrsqrt.pop %v3399
      %v3582 = vrsqrt.pop %v3400
      %v3583 = vrsqrt.pop %v3401
      %v3584 = vrsqrt.pop %v3402
      %v3585 = vrsqrt.pop %v3403
      %v3586 = vrsqrt.pop %v3404
      %v3587 = vrsqrt.pop %v3405
      %v3588 = vrsqrt.pop %v3406
      %v3589 = vrsqrt.pop %v3407
      %v3590 = vrsqrt.pop %v3408
      %v3591 = vrsqrt.pop %v3409
      %v3592 = vrsqrt.pop %v3410
      %v3593 = vrsqrt.pop %v3411
      %v3594 = vrsqrt.pop %v3412
      %v3595 = vrsqrt.pop %v3413
      %v3596 = vrsqrt.pop %v3414
      %v3597 = vrsqrt.pop %v3415
      %v3598 = vrsqrt.pop %v3416
      %v3599 = vrsqrt.pop %v3417
      %v3600 = vrsqrt.pop %v3418
      %v3601 = vrsqrt.pop %v3419
      %v3602 = vrsqrt.pop %v3420
      %v3603 = vrsqrt.pop %v3421
      %v3604 = vrsqrt.pop %v3422
      %v3605 = vrsqrt.pop %v3423
      %v3606 = vrsqrt.pop %v3424
      %v3607 = vrsqrt.pop %v3425
      %v3608 = vrsqrt.pop %v3426
      %v3609 = vrsqrt.pop %v3427
      %v3610 = vrsqrt.pop %v3428
      %v3611 = vrsqrt.pop %v3429
      %v3612 = vrsqrt.pop %v3430
      %v3613 = vrsqrt.pop %v3431
      %v3614 = vrsqrt.pop %v3432
      %v3615 = vrsqrt.pop %v3433
      %v3616 = vrsqrt.pop %v3434
      %v3617 = vrsqrt.pop %v3435
      %v3618 = vrsqrt.pop %v3436
      %v3619 = vrsqrt.pop %v3437
      %v3620 = vrsqrt.pop %v3438
      %v3621 = vrsqrt.pop %v3439
      %v3622 = vrsqrt.pop %v3440
      %v3623 = vrsqrt.pop %v3441
      %v3624 = vrsqrt.pop %v3442
      %v3625 = vrsqrt.pop %v3443
      %v3626 = vrsqrt.pop %v3444
      %v3627 = vrsqrt.pop %v3445
      %v3628 = vrsqrt.pop %v3446
      %v3629 = vrsqrt.pop %v3447
      %v3630 = vrsqrt.pop %v3448
      %v3631 = vrsqrt.pop %v3449
      %v3632 = vrsqrt.pop %v3450
      %v3633 = vld [vmem:[%s165] sm:$0xff]
      %v3634 = vld [vmem:[%s165 + $0x8] sm:$0xff]
      %v3635 = vld [vmem:[%s165 + $0x10] sm:$0xff]
      %v3636 = vld [vmem:[%s165 + $0x18] sm:$0xff]
      %v3637 = vld [vmem:[%s165 + $0x20] sm:$0xff]
      %v3638 = vld [vmem:[%s165 + $0x28] sm:$0xff]
      %v3639 = vld [vmem:[%s165 + $0x30] sm:$0xff]
      %v3640 = vld [vmem:[%s165 + $0x38] sm:$0xff]
      %v3641 = vld [vmem:[%s165 + $0x40] sm:$0xff]
      %v3642 = vld [vmem:[%s165 + $0x48] sm:$0xff]
      %v3643 = vld [vmem:[%s165 + $0x50] sm:$0xff]
      %v3644 = vld [vmem:[%s165 + $0x58] sm:$0xff]
      %v3645 = vld [vmem:[%s165 + $0x60] sm:$0xff]
      %v3646 = vld [vmem:[%s165 + $0x68] sm:$0xff]
      %v3647 = vld [vmem:[%s165 + $0x70] sm:$0xff]
      %v3648 = vld [vmem:[%s165 + $0x78] sm:$0xff]
      %v3649 = vld [vmem:[%s165 + $0x80] sm:$0xff]
      %v3650 = vld [vmem:[%s165 + $0x88] sm:$0xff]
      %v3651 = vld [vmem:[%s165 + $0x90] sm:$0xff]
      %v3652 = vld [vmem:[%s165 + $0x98] sm:$0xff]
      %v3653 = vld [vmem:[%s165 + $0xa0] sm:$0xff]
      %v3654 = vld [vmem:[%s165 + $0xa8] sm:$0xff]
      %v3655 = vld [vmem:[%s165 + $0xb0] sm:$0xff]
      %v3656 = vld [vmem:[%s165 + $0xb8] sm:$0xff]
      %v3657 = vld [vmem:[%s165 + $0xc0] sm:$0xff]
      %v3658 = vld [vmem:[%s165 + $0xc8] sm:$0xff]
      %v3659 = vld [vmem:[%s165 + $0xd0] sm:$0xff]
      %v3660 = vld [vmem:[%s165 + $0xd8] sm:$0xff]
      %v3661 = vld [vmem:[%s165 + $0xe0] sm:$0xff]
      %v3662 = vld [vmem:[%s165 + $0xe8] sm:$0xff]
      %v3663 = vld [vmem:[%s165 + $0xf0] sm:$0xff]
      %v3664 = vld [vmem:[%s165 + $0xf8] sm:$0xff]
      %v3665 = vld [vmem:[%s165 + $0x100] sm:$0xff]
      %v3666 = vld [vmem:[%s165 + $0x108] sm:$0xff]
      %v3667 = vld [vmem:[%s165 + $0x110] sm:$0xff]
      %v3668 = vld [vmem:[%s165 + $0x118] sm:$0xff]
      %v3669 = vld [vmem:[%s165 + $0x120] sm:$0xff]
      %v3670 = vld [vmem:[%s165 + $0x128] sm:$0xff]
      %v3671 = vld [vmem:[%s165 + $0x130] sm:$0xff]
      %v3672 = vld [vmem:[%s165 + $0x138] sm:$0xff]
      %v3673 = vld [vmem:[%s165 + $0x140] sm:$0xff]
      %v3674 = vld [vmem:[%s165 + $0x148] sm:$0xff]
      %v3675 = vld [vmem:[%s165 + $0x150] sm:$0xff]
      %v3676 = vld [vmem:[%s165 + $0x158] sm:$0xff]
      %v3677 = vld [vmem:[%s165 + $0x160] sm:$0xff]
      %v3678 = vld [vmem:[%s165 + $0x168] sm:$0xff]
      %v3679 = vld [vmem:[%s165 + $0x170] sm:$0xff]
      %v3680 = vld [vmem:[%s165 + $0x178] sm:$0xff]
      %v3681 = vld [vmem:[%s165 + $0x180] sm:$0xff]
      %v3682 = vld [vmem:[%s165 + $0x188] sm:$0xff]
      %v3683 = vld [vmem:[%s165 + $0x190] sm:$0xff]
      %v3684 = vld [vmem:[%s165 + $0x198] sm:$0xff]
      %v3685 = vld [vmem:[%s165 + $0x1a0] sm:$0xff]
      %v3686 = vld [vmem:[%s165 + $0x1a8] sm:$0xff]
      %v3687 = vld [vmem:[%s165 + $0x1b0] sm:$0xff]
      %v3688 = vld [vmem:[%s165 + $0x1b8] sm:$0xff]
      %v3689 = vld [vmem:[%s165 + $0x1c0] sm:$0xff]
      %v3690 = vld [vmem:[%s165 + $0x1c8] sm:$0xff]
      %v3691 = vld [vmem:[%s165 + $0x1d0] sm:$0xff]
      %v3692 = vld [vmem:[%s165 + $0x1d8] sm:$0xff]
      %v3693 = vld [vmem:[%s165 + $0x1e0] sm:$0xff]
      %v3694 = vld [vmem:[%s165 + $0x1e8] sm:$0xff]
      %v3695 = vld [vmem:[%s165 + $0x1f0] sm:$0xff]
      %v3696 = vld [vmem:[%s165 + $0x1f8] sm:$0xff]
      %v3697 = vld [vmem:[%s165 + $0x200] sm:$0xff]
      %v3698 = vld [vmem:[%s165 + $0x208] sm:$0xff]
      %v3699 = vld [vmem:[%s165 + $0x210] sm:$0xff]
      %v3700 = vld [vmem:[%s165 + $0x218] sm:$0xff]
      %v3701 = vld [vmem:[%s165 + $0x220] sm:$0xff]
      %v3702 = vld [vmem:[%s165 + $0x228] sm:$0xff]
      %v3703 = vld [vmem:[%s165 + $0x230] sm:$0xff]
      %v3704 = vld [vmem:[%s165 + $0x238] sm:$0xff]
      %v3705 = vld [vmem:[%s165 + $0x240] sm:$0xff]
      %v3706 = vld [vmem:[%s165 + $0x248] sm:$0xff]
      %v3707 = vld [vmem:[%s165 + $0x250] sm:$0xff]
      %v3708 = vld [vmem:[%s165 + $0x258] sm:$0xff]
      %v3709 = vld [vmem:[%s165 + $0x260] sm:$0xff]
      %v3710 = vld [vmem:[%s165 + $0x268] sm:$0xff]
      %v3711 = vld [vmem:[%s165 + $0x270] sm:$0xff]
      %v3712 = vld [vmem:[%s165 + $0x278] sm:$0xff]
      %v3713 = vld [vmem:[%s165 + $0x280] sm:$0xff]
      %v3714 = vld [vmem:[%s165 + $0x288] sm:$0xff]
      %v3715 = vld [vmem:[%s165 + $0x290] sm:$0xff]
      %v3716 = vld [vmem:[%s165 + $0x298] sm:$0xff]
      %v3717 = vld [vmem:[%s165 + $0x2a0] sm:$0xff]
      %v3718 = vld [vmem:[%s165 + $0x2a8] sm:$0xff]
      %v3719 = vld [vmem:[%s165 + $0x2b0] sm:$0xff]
      %v3720 = vld [vmem:[%s165 + $0x2b8] sm:$0xff]
      %v3721 = vld [vmem:[%s165 + $0x2c0] sm:$0xff]
      %v3722 = vld [vmem:[%s165 + $0x2c8] sm:$0xff]
      %v3723 = vld [vmem:[%s165 + $0x2d0] sm:$0xff]
      %v3724 = vld [vmem:[%s165 + $0x2d8] sm:$0xff]
      %v3725 = vld [vmem:[%s165 + $0x2e0] sm:$0xff]
      %v3726 = vld [vmem:[%s165 + $0x2e8] sm:$0xff]
      %v3727 = vld [vmem:[%s165 + $0x2f0] sm:$0xff]
      %v3728 = vld [vmem:[%s165 + $0x2f8] sm:$0xff]
      %v3729 = vld [vmem:[%s165 + $0x300] sm:$0xff]
      %v3730 = vld [vmem:[%s165 + $0x308] sm:$0xff]
      %v3731 = vld [vmem:[%s165 + $0x310] sm:$0xff]
      %v3732 = vld [vmem:[%s165 + $0x318] sm:$0xff]
      %v3733 = vld [vmem:[%s165 + $0x320] sm:$0xff]
      %v3734 = vld [vmem:[%s165 + $0x328] sm:$0xff]
      %v3735 = vld [vmem:[%s165 + $0x330] sm:$0xff]
      %v3736 = vld [vmem:[%s165 + $0x338] sm:$0xff]
      %v3737 = vld [vmem:[%s165 + $0x340] sm:$0xff]
      %v3738 = vld [vmem:[%s165 + $0x348] sm:$0xff]
      %v3739 = vld [vmem:[%s165 + $0x350] sm:$0xff]
      %v3740 = vld [vmem:[%s165 + $0x358] sm:$0xff]
      %v3741 = vld [vmem:[%s165 + $0x360] sm:$0xff]
      %v3742 = vld [vmem:[%s165 + $0x368] sm:$0xff]
      %v3743 = vld [vmem:[%s165 + $0x370] sm:$0xff]
      %v3744 = vld [vmem:[%s165 + $0x378] sm:$0xff]
      %v3745 = vld [vmem:[%s165 + $0x380] sm:$0xff]
      %v3746 = vld [vmem:[%s165 + $0x388] sm:$0xff]
      %v3747 = vld [vmem:[%s165 + $0x390] sm:$0xff]
      %v3748 = vld [vmem:[%s165 + $0x398] sm:$0xff]
      %v3749 = vld [vmem:[%s165 + $0x3a0] sm:$0xff]
      %v3750 = vld [vmem:[%s165 + $0x3a8] sm:$0xff]
      %v3751 = vld [vmem:[%s165 + $0x3b0] sm:$0xff]
      %v3752 = vld [vmem:[%s165 + $0x3b8] sm:$0xff]
      %v3753 = vld [vmem:[%s165 + $0x3c0] sm:$0xff]
      %v3754 = vld [vmem:[%s165 + $0x3c8] sm:$0xff]
      %v3755 = vld [vmem:[%s165 + $0x3d0] sm:$0xff]
      %v3756 = vld [vmem:[%s165 + $0x3d8] sm:$0xff]
      %v3757 = vld [vmem:[%s165 + $0x3e0] sm:$0xff]
      %v3758 = vld [vmem:[%s165 + $0x3e8] sm:$0xff]
      %v3759 = vld [vmem:[%s165 + $0x3f0] sm:$0xff]
      %v3760 = vld [vmem:[%s165 + $0x3f8] sm:$0xff]
      %v3761 = vld [vmem:[%s165 + $0x400] sm:$0xff]
      %v3762 = vld [vmem:[%s165 + $0x408] sm:$0xff]
      %v3763 = vld [vmem:[%s165 + $0x410] sm:$0xff]
      %v3764 = vld [vmem:[%s165 + $0x418] sm:$0xff]
      %v3765 = vld [vmem:[%s165 + $0x420] sm:$0xff]
      %v3766 = vld [vmem:[%s165 + $0x428] sm:$0xff]
      %v3767 = vld [vmem:[%s165 + $0x430] sm:$0xff]
      %v3768 = vld [vmem:[%s165 + $0x438] sm:$0xff]
      %v3769 = vld [vmem:[%s165 + $0x440] sm:$0xff]
      %v3770 = vld [vmem:[%s165 + $0x448] sm:$0xff]
      %v3771 = vld [vmem:[%s165 + $0x450] sm:$0xff]
      %v3772 = vld [vmem:[%s165 + $0x458] sm:$0xff]
      %v3773 = vld [vmem:[%s165 + $0x460] sm:$0xff]
      %v3774 = vld [vmem:[%s165 + $0x468] sm:$0xff]
      %v3775 = vld [vmem:[%s165 + $0x470] sm:$0xff]
      %v3776 = vld [vmem:[%s165 + $0x478] sm:$0xff]
      %v3777 = vld [vmem:[%s165 + $0x480] sm:$0xff]
      %v3778 = vld [vmem:[%s165 + $0x488] sm:$0xff]
      %v3779 = vld [vmem:[%s165 + $0x490] sm:$0xff]
      %v3780 = vld [vmem:[%s165 + $0x498] sm:$0xff]
      %v3781 = vld [vmem:[%s165 + $0x4a0] sm:$0xff]
      %v3782 = vld [vmem:[%s165 + $0x4a8] sm:$0xff]
      %v3783 = vld [vmem:[%s165 + $0x4b0] sm:$0xff]
      %v3784 = vld [vmem:[%s165 + $0x4b8] sm:$0xff]
      %v3785 = vld [vmem:[%s165 + $0x4c0] sm:$0xff]
      %v3786 = vld [vmem:[%s165 + $0x4c8] sm:$0xff]
      %v3787 = vld [vmem:[%s165 + $0x4d0] sm:$0xff]
      %v3788 = vld [vmem:[%s165 + $0x4d8] sm:$0xff]
      %v3789 = vld [vmem:[%s165 + $0x4e0] sm:$0xff]
      %v3790 = vld [vmem:[%s165 + $0x4e8] sm:$0xff]
      %v3791 = vld [vmem:[%s165 + $0x4f0] sm:$0xff]
      %v3792 = vld [vmem:[%s165 + $0x4f8] sm:$0xff]
      %v3793 = vld [vmem:[%s165 + $0x500] sm:$0xff]
      %v3794 = vld [vmem:[%s165 + $0x508] sm:$0xff]
      %v3795 = vld [vmem:[%s165 + $0x510] sm:$0xff]
      %v3796 = vld [vmem:[%s165 + $0x518] sm:$0xff]
      %v3797 = vld [vmem:[%s165 + $0x520] sm:$0xff]
      %v3798 = vld [vmem:[%s165 + $0x528] sm:$0xff]
      %v3799 = vld [vmem:[%s165 + $0x530] sm:$0xff]
      %v3800 = vld [vmem:[%s165 + $0x538] sm:$0xff]
      %v3801 = vld [vmem:[%s165 + $0x540] sm:$0xff]
      %v3802 = vld [vmem:[%s165 + $0x548] sm:$0xff]
      %v3803 = vld [vmem:[%s165 + $0x550] sm:$0xff]
      %v3804 = vld [vmem:[%s165 + $0x558] sm:$0xff]
      %v3805 = vld [vmem:[%s165 + $0x560] sm:$0xff]
      %v3806 = vld [vmem:[%s165 + $0x568] sm:$0xff]
      %v3807 = vld [vmem:[%s165 + $0x570] sm:$0xff]
      %v3808 = vld [vmem:[%s165 + $0x578] sm:$0xff]
      %v3809 = vld [vmem:[%s165 + $0x580] sm:$0xff]
      %v3810 = vld [vmem:[%s165 + $0x588] sm:$0xff]
      %v3811 = vld [vmem:[%s165 + $0x590] sm:$0xff]
      %v3812 = vld [vmem:[%s165 + $0x598] sm:$0xff]
      %v3813 = vld [vmem:[%s165 + $0x5a0] sm:$0xff]
      %v3814 = vld [vmem:[%s165 + $0x5a8] sm:$0xff]
      %v3815 = vmul.f32 %v3451, %v3633
      %v3816 = vmul.f32 %v3452, %v3634
      %v3817 = vmul.f32 %v3453, %v3635
      %v3818 = vmul.f32 %v3454, %v3636
      %v3819 = vmul.f32 %v3455, %v3637
      %v3820 = vmul.f32 %v3456, %v3638
      %v3821 = vmul.f32 %v3457, %v3639
      %v3822 = vmul.f32 %v3458, %v3640
      %v3823 = vmul.f32 %v3459, %v3641
      %v3824 = vmul.f32 %v3460, %v3642
      %v3825 = vmul.f32 %v3461, %v3643
      %v3826 = vmul.f32 %v3462, %v3644
      %v3827 = vmul.f32 %v3463, %v3645
      %v3828 = vmul.f32 %v3464, %v3646
      %v3829 = vmul.f32 %v3465, %v3647
      %v3830 = vmul.f32 %v3466, %v3648
      %v3831 = vmul.f32 %v3467, %v3649
      %v3832 = vmul.f32 %v3468, %v3650
      %v3833 = vmul.f32 %v3469, %v3651
      %v3834 = vmul.f32 %v3470, %v3652
      %v3835 = vmul.f32 %v3471, %v3653
      %v3836 = vmul.f32 %v3472, %v3654
      %v3837 = vmul.f32 %v3473, %v3655
      %v3838 = vmul.f32 %v3474, %v3656
      %v3839 = vmul.f32 %v3475, %v3657
      %v3840 = vmul.f32 %v3476, %v3658
      %v3841 = vmul.f32 %v3477, %v3659
      %v3842 = vmul.f32 %v3478, %v3660
      %v3843 = vmul.f32 %v3479, %v3661
      %v3844 = vmul.f32 %v3480, %v3662
      %v3845 = vmul.f32 %v3481, %v3663
      %v3846 = vmul.f32 %v3482, %v3664
      %v3847 = vmul.f32 %v3483, %v3665
      %v3848 = vmul.f32 %v3484, %v3666
      %v3849 = vmul.f32 %v3485, %v3667
      %v3850 = vmul.f32 %v3486, %v3668
      %v3851 = vmul.f32 %v3487, %v3669
      %v3852 = vmul.f32 %v3488, %v3670
      %v3853 = vmul.f32 %v3489, %v3671
      %v3854 = vmul.f32 %v3490, %v3672
      %v3855 = vmul.f32 %v3491, %v3673
      %v3856 = vmul.f32 %v3492, %v3674
      %v3857 = vmul.f32 %v3493, %v3675
      %v3858 = vmul.f32 %v3494, %v3676
      %v3859 = vmul.f32 %v3495, %v3677
      %v3860 = vmul.f32 %v3496, %v3678
      %v3861 = vmul.f32 %v3497, %v3679
      %v3862 = vmul.f32 %v3498, %v3680
      %v3863 = vmul.f32 %v3499, %v3681
      %v3864 = vmul.f32 %v3500, %v3682
      %v3865 = vmul.f32 %v3501, %v3683
      %v3866 = vmul.f32 %v3502, %v3684
      %v3867 = vmul.f32 %v3503, %v3685
      %v3868 = vmul.f32 %v3504, %v3686
      %v3869 = vmul.f32 %v3505, %v3687
      %v3870 = vmul.f32 %v3506, %v3688
      %v3871 = vmul.f32 %v3507, %v3689
      %v3872 = vmul.f32 %v3508, %v3690
      %v3873 = vmul.f32 %v3509, %v3691
      %v3874 = vmul.f32 %v3510, %v3692
      %v3875 = vmul.f32 %v3511, %v3693
      %v3876 = vmul.f32 %v3512, %v3694
      %v3877 = vmul.f32 %v3513, %v3695
      %v3878 = vmul.f32 %v3514, %v3696
      %v3879 = vmul.f32 %v3515, %v3697
      %v3880 = vmul.f32 %v3516, %v3698
      %v3881 = vmul.f32 %v3517, %v3699
      %v3882 = vmul.f32 %v3518, %v3700
      %v3883 = vmul.f32 %v3519, %v3701
      %v3884 = vmul.f32 %v3520, %v3702
      %v3885 = vmul.f32 %v3521, %v3703
      %v3886 = vmul.f32 %v3522, %v3704
      %v3887 = vmul.f32 %v3523, %v3705
      %v3888 = vmul.f32 %v3524, %v3706
      %v3889 = vmul.f32 %v3525, %v3707
      %v3890 = vmul.f32 %v3526, %v3708
      %v3891 = vmul.f32 %v3527, %v3709
      %v3892 = vmul.f32 %v3528, %v3710
      %v3893 = vmul.f32 %v3529, %v3711
      %v3894 = vmul.f32 %v3530, %v3712
      %v3895 = vmul.f32 %v3531, %v3713
      %v3896 = vmul.f32 %v3532, %v3714
      %v3897 = vmul.f32 %v3533, %v3715
      %v3898 = vmul.f32 %v3534, %v3716
      %v3899 = vmul.f32 %v3535, %v3717
      %v3900 = vmul.f32 %v3536, %v3718
      %v3901 = vmul.f32 %v3537, %v3719
      %v3902 = vmul.f32 %v3538, %v3720
      %v3903 = vmul.f32 %v3539, %v3721
      %v3904 = vmul.f32 %v3540, %v3722
      %v3905 = vmul.f32 %v3541, %v3723
      %v3906 = vmul.f32 %v3542, %v3724
      %v3907 = vmul.f32 %v3543, %v3725
      %v3908 = vmul.f32 %v3544, %v3726
      %v3909 = vmul.f32 %v3545, %v3727
      %v3910 = vmul.f32 %v3546, %v3728
      %v3911 = vmul.f32 %v3547, %v3729
      %v3912 = vmul.f32 %v3548, %v3730
      %v3913 = vmul.f32 %v3549, %v3731
      %v3914 = vmul.f32 %v3550, %v3732
      %v3915 = vmul.f32 %v3551, %v3733
      %v3916 = vmul.f32 %v3552, %v3734
      %v3917 = vmul.f32 %v3553, %v3735
      %v3918 = vmul.f32 %v3554, %v3736
      %v3919 = vmul.f32 %v3555, %v3737
      %v3920 = vmul.f32 %v3556, %v3738
      %v3921 = vmul.f32 %v3557, %v3739
      %v3922 = vmul.f32 %v3558, %v3740
      %v3923 = vmul.f32 %v3559, %v3741
      %v3924 = vmul.f32 %v3560, %v3742
      %v3925 = vmul.f32 %v3561, %v3743
      %v3926 = vmul.f32 %v3562, %v3744
      %v3927 = vmul.f32 %v3563, %v3745
      %v3928 = vmul.f32 %v3564, %v3746
      %v3929 = vmul.f32 %v3565, %v3747
      %v3930 = vmul.f32 %v3566, %v3748
      %v3931 = vmul.f32 %v3567, %v3749
      %v3932 = vmul.f32 %v3568, %v3750
      %v3933 = vmul.f32 %v3569, %v3751
      %v3934 = vmul.f32 %v3570, %v3752
      %v3935 = vmul.f32 %v3571, %v3753
      %v3936 = vmul.f32 %v3572, %v3754
      %v3937 = vmul.f32 %v3573, %v3755
      %v3938 = vmul.f32 %v3574, %v3756
      %v3939 = vmul.f32 %v3575, %v3757
      %v3940 = vmul.f32 %v3576, %v3758
      %v3941 = vmul.f32 %v3577, %v3759
      %v3942 = vmul.f32 %v3578, %v3760
      %v3943 = vmul.f32 %v3579, %v3761
      %v3944 = vmul.f32 %v3580, %v3762
      %v3945 = vmul.f32 %v3581, %v3763
      %v3946 = vmul.f32 %v3582, %v3764
      %v3947 = vmul.f32 %v3583, %v3765
      %v3948 = vmul.f32 %v3584, %v3766
      %v3949 = vmul.f32 %v3585, %v3767
      %v3950 = vmul.f32 %v3586, %v3768
      %v3951 = vmul.f32 %v3587, %v3769
      %v3952 = vmul.f32 %v3588, %v3770
      %v3953 = vmul.f32 %v3589, %v3771
      %v3954 = vmul.f32 %v3590, %v3772
      %v3955 = vmul.f32 %v3591, %v3773
      %v3956 = vmul.f32 %v3592, %v3774
      %v3957 = vmul.f32 %v3593, %v3775
      %v3958 = vmul.f32 %v3594, %v3776
      %v3959 = vmul.f32 %v3595, %v3777
      %v3960 = vmul.f32 %v3596, %v3778
      %v3961 = vmul.f32 %v3597, %v3779
      %v3962 = vmul.f32 %v3598, %v3780
      %v3963 = vmul.f32 %v3599, %v3781
      %v3964 = vmul.f32 %v3600, %v3782
      %v3965 = vmul.f32 %v3601, %v3783
      %v3966 = vmul.f32 %v3602, %v3784
      %v3967 = vmul.f32 %v3603, %v3785
      %v3968 = vmul.f32 %v3604, %v3786
      %v3969 = vmul.f32 %v3605, %v3787
      %v3970 = vmul.f32 %v3606, %v3788
      %v3971 = vmul.f32 %v3607, %v3789
      %v3972 = vmul.f32 %v3608, %v3790
      %v3973 = vmul.f32 %v3609, %v3791
      %v3974 = vmul.f32 %v3610, %v3792
      %v3975 = vmul.f32 %v3611, %v3793
      %v3976 = vmul.f32 %v3612, %v3794
      %v3977 = vmul.f32 %v3613, %v3795
      %v3978 = vmul.f32 %v3614, %v3796
      %v3979 = vmul.f32 %v3615, %v3797
      %v3980 = vmul.f32 %v3616, %v3798
      %v3981 = vmul.f32 %v3617, %v3799
      %v3982 = vmul.f32 %v3618, %v3800
      %v3983 = vmul.f32 %v3619, %v3801
      %v3984 = vmul.f32 %v3620, %v3802
      %v3985 = vmul.f32 %v3621, %v3803
      %v3986 = vmul.f32 %v3622, %v3804
      %v3987 = vmul.f32 %v3623, %v3805
      %v3988 = vmul.f32 %v3624, %v3806
      %v3989 = vmul.f32 %v3625, %v3807
      %v3990 = vmul.f32 %v3626, %v3808
      %v3991 = vmul.f32 %v3627, %v3809
      %v3992 = vmul.f32 %v3628, %v3810
      %v3993 = vmul.f32 %v3629, %v3811
      %v3994 = vmul.f32 %v3630, %v3812
      %v3995 = vmul.f32 %v3631, %v3813
      %v3996 = vmul.f32 %v3632, %v3814
      %v3997 = vmul.f32 %v2359, %v3815
      %v3998 = vmul.f32 %v2360, %v3816
      %v3999 = vmul.f32 %v2361, %v3817
      %v4000 = vmul.f32 %v2362, %v3818
      %v4001 = vmul.f32 %v2363, %v3819
      %v4002 = vmul.f32 %v2364, %v3820
      %v4003 = vmul.f32 %v2365, %v3821
      %v4004 = vmul.f32 %v2366, %v3822
      %v4005 = vmul.f32 %v2367, %v3823
      %v4006 = vmul.f32 %v2368, %v3824
      %v4007 = vmul.f32 %v2369, %v3825
      %v4008 = vmul.f32 %v2370, %v3826
      %v4009 = vmul.f32 %v2371, %v3827
      %v4010 = vmul.f32 %v2372, %v3828
      %v4011 = vmul.f32 %v2373, %v3829
      %v4012 = vmul.f32 %v2374, %v3830
      %v4013 = vmul.f32 %v2375, %v3831
      %v4014 = vmul.f32 %v2376, %v3832
      %v4015 = vmul.f32 %v2377, %v3833
      %v4016 = vmul.f32 %v2378, %v3834
      %v4017 = vmul.f32 %v2379, %v3835
      %v4018 = vmul.f32 %v2380, %v3836
      %v4019 = vmul.f32 %v2381, %v3837
      %v4020 = vmul.f32 %v2382, %v3838
      %v4021 = vmul.f32 %v2383, %v3839
      %v4022 = vmul.f32 %v2384, %v3840
      %v4023 = vmul.f32 %v2385, %v3841
      %v4024 = vmul.f32 %v2386, %v3842
      %v4025 = vmul.f32 %v2387, %v3843
      %v4026 = vmul.f32 %v2388, %v3844
      %v4027 = vmul.f32 %v2389, %v3845
      %v4028 = vmul.f32 %v2390, %v3846
      %v4029 = vmul.f32 %v2391, %v3847
      %v4030 = vmul.f32 %v2392, %v3848
      %v4031 = vmul.f32 %v2393, %v3849
      %v4032 = vmul.f32 %v2394, %v3850
      %v4033 = vmul.f32 %v2395, %v3851
      %v4034 = vmul.f32 %v2396, %v3852
      %v4035 = vmul.f32 %v2397, %v3853
      %v4036 = vmul.f32 %v2398, %v3854
      %v4037 = vmul.f32 %v2399, %v3855
      %v4038 = vmul.f32 %v2400, %v3856
      %v4039 = vmul.f32 %v2401, %v3857
      %v4040 = vmul.f32 %v2402, %v3858
      %v4041 = vmul.f32 %v2403, %v3859
      %v4042 = vmul.f32 %v2404, %v3860
      %v4043 = vmul.f32 %v2405, %v3861
      %v4044 = vmul.f32 %v2406, %v3862
      %v4045 = vmul.f32 %v2407, %v3863
      %v4046 = vmul.f32 %v2408, %v3864
      %v4047 = vmul.f32 %v2409, %v3865
      %v4048 = vmul.f32 %v2410, %v3866
      %v4049 = vmul.f32 %v2411, %v3867
      %v4050 = vmul.f32 %v2412, %v3868
      %v4051 = vmul.f32 %v2413, %v3869
      %v4052 = vmul.f32 %v2414, %v3870
      %v4053 = vmul.f32 %v2415, %v3871
      %v4054 = vmul.f32 %v2416, %v3872
      %v4055 = vmul.f32 %v2417, %v3873
      %v4056 = vmul.f32 %v2418, %v3874
      %v4057 = vmul.f32 %v2419, %v3875
      %v4058 = vmul.f32 %v2420, %v3876
      %v4059 = vmul.f32 %v2421, %v3877
      %v4060 = vmul.f32 %v2422, %v3878
      %v4061 = vmul.f32 %v2423, %v3879
      %v4062 = vmul.f32 %v2424, %v3880
      %v4063 = vmul.f32 %v2425, %v3881
      %v4064 = vmul.f32 %v2426, %v3882
      %v4065 = vmul.f32 %v2427, %v3883
      %v4066 = vmul.f32 %v2428, %v3884
      %v4067 = vmul.f32 %v2429, %v3885
      %v4068 = vmul.f32 %v2430, %v3886
      %v4069 = vmul.f32 %v2431, %v3887
      %v4070 = vmul.f32 %v2432, %v3888
      %v4071 = vmul.f32 %v2433, %v3889
      %v4072 = vmul.f32 %v2434, %v3890
      %v4073 = vmul.f32 %v2435, %v3891
      %v4074 = vmul.f32 %v2436, %v3892
      %v4075 = vmul.f32 %v2437, %v3893
      %v4076 = vmul.f32 %v2438, %v3894
      %v4077 = vmul.f32 %v2439, %v3895
      %v4078 = vmul.f32 %v2440, %v3896
      %v4079 = vmul.f32 %v2441, %v3897
      %v4080 = vmul.f32 %v2442, %v3898
      %v4081 = vmul.f32 %v2443, %v3899
      %v4082 = vmul.f32 %v2444, %v3900
      %v4083 = vmul.f32 %v2445, %v3901
      %v4084 = vmul.f32 %v2446, %v3902
      %v4085 = vmul.f32 %v2447, %v3903
      %v4086 = vmul.f32 %v2448, %v3904
      %v4087 = vmul.f32 %v2449, %v3905
      %v4088 = vmul.f32 %v2450, %v3906
      %v4089 = vmul.f32 %v2451, %v3907
      %v4090 = vmul.f32 %v2452, %v3908
      %v4091 = vmul.f32 %v2453, %v3909
      %v4092 = vmul.f32 %v2454, %v3910
      %v4093 = vmul.f32 %v2455, %v3911
      %v4094 = vmul.f32 %v2456, %v3912
      %v4095 = vmul.f32 %v2457, %v3913
      %v4096 = vmul.f32 %v2458, %v3914
      %v4097 = vmul.f32 %v2459, %v3915
      %v4098 = vmul.f32 %v2460, %v3916
      %v4099 = vmul.f32 %v2461, %v3917
      %v4100 = vmul.f32 %v2462, %v3918
      %v4101 = vmul.f32 %v2463, %v3919
      %v4102 = vmul.f32 %v2464, %v3920
      %v4103 = vmul.f32 %v2465, %v3921
      %v4104 = vmul.f32 %v2466, %v3922
      %v4105 = vmul.f32 %v2467, %v3923
      %v4106 = vmul.f32 %v2468, %v3924
      %v4107 = vmul.f32 %v2469, %v3925
      %v4108 = vmul.f32 %v2470, %v3926
      %v4109 = vmul.f32 %v2471, %v3927
      %v4110 = vmul.f32 %v2472, %v3928
      %v4111 = vmul.f32 %v2473, %v3929
      %v4112 = vmul.f32 %v2474, %v3930
      %v4113 = vmul.f32 %v2475, %v3931
      %v4114 = vmul.f32 %v2476, %v3932
      %v4115 = vmul.f32 %v2477, %v3933
      %v4116 = vmul.f32 %v2478, %v3934
      %v4117 = vmul.f32 %v2479, %v3935
      %v4118 = vmul.f32 %v2480, %v3936
      %v4119 = vmul.f32 %v2481, %v3937
      %v4120 = vmul.f32 %v2482, %v3938
      %v4121 = vmul.f32 %v2483, %v3939
      %v4122 = vmul.f32 %v2484, %v3940
      %v4123 = vmul.f32 %v2485, %v3941
      %v4124 = vmul.f32 %v2486, %v3942
      %v4125 = vmul.f32 %v2487, %v3943
      %v4126 = vmul.f32 %v2488, %v3944
      %v4127 = vmul.f32 %v2489, %v3945
      %v4128 = vmul.f32 %v2490, %v3946
      %v4129 = vmul.f32 %v2491, %v3947
      %v4130 = vmul.f32 %v2492, %v3948
      %v4131 = vmul.f32 %v2493, %v3949
      %v4132 = vmul.f32 %v2494, %v3950
      %v4133 = vmul.f32 %v2495, %v3951
      %v4134 = vmul.f32 %v2496, %v3952
      %v4135 = vmul.f32 %v2497, %v3953
      %v4136 = vmul.f32 %v2498, %v3954
      %v4137 = vmul.f32 %v2499, %v3955
      %v4138 = vmul.f32 %v2500, %v3956
      %v4139 = vmul.f32 %v2501, %v3957
      %v4140 = vmul.f32 %v2502, %v3958
      %v4141 = vmul.f32 %v2503, %v3959
      %v4142 = vmul.f32 %v2504, %v3960
      %v4143 = vmul.f32 %v2505, %v3961
      %v4144 = vmul.f32 %v2506, %v3962
      %v4145 = vmul.f32 %v2507, %v3963
      %v4146 = vmul.f32 %v2508, %v3964
      %v4147 = vmul.f32 %v2509, %v3965
      %v4148 = vmul.f32 %v2510, %v3966
      %v4149 = vmul.f32 %v2511, %v3967
      %v4150 = vmul.f32 %v2512, %v3968
      %v4151 = vmul.f32 %v2513, %v3969
      %v4152 = vmul.f32 %v2514, %v3970
      %v4153 = vmul.f32 %v2515, %v3971
      %v4154 = vmul.f32 %v2516, %v3972
      %v4155 = vmul.f32 %v2517, %v3973
      %v4156 = vmul.f32 %v2518, %v3974
      %v4157 = vmul.f32 %v2519, %v3975
      %v4158 = vmul.f32 %v2520, %v3976
      %v4159 = vmul.f32 %v2521, %v3977
      %v4160 = vmul.f32 %v2522, %v3978
      %v4161 = vmul.f32 %v2523, %v3979
      %v4162 = vmul.f32 %v2524, %v3980
      %v4163 = vmul.f32 %v2525, %v3981
      %v4164 = vmul.f32 %v2526, %v3982
      %v4165 = vmul.f32 %v2527, %v3983
      %v4166 = vmul.f32 %v2528, %v3984
      %v4167 = vmul.f32 %v2529, %v3985
      %v4168 = vmul.f32 %v2530, %v3986
      %v4169 = vmul.f32 %v2531, %v3987
      %v4170 = vmul.f32 %v2532, %v3988
      %v4171 = vmul.f32 %v2533, %v3989
      %v4172 = vmul.f32 %v2534, %v3990
      %v4173 = vmul.f32 %v2535, %v3991
      %v4174 = vmul.f32 %v2536, %v3992
      %v4175 = vmul.f32 %v2537, %v3993
      %v4176 = vmul.f32 %v2538, %v3994
      %v4177 = vmul.f32 %v2539, %v3995
      %v4178 = vmul.f32 %v2540, %v3996
      %4361 = vrot.lane.b32.xlu0 %v3997, 1
      %v4362 = vpop.permute.xlu0 %4361
      %4363 = vrot.lane.b32.xlu0 %v3998, 1
      %v4364 = vpop.permute.xlu0 %4363
      %4365 = vrot.lane.b32.xlu0 %v3999, 1
      %v4366 = vpop.permute.xlu0 %4365
      %4367 = vrot.lane.b32.xlu0 %v4000, 1
      %v4368 = vpop.permute.xlu0 %4367
      %4369 = vrot.lane.b32.xlu0 %v4001, 1
      %v4370 = vpop.permute.xlu0 %4369
      %4371 = vrot.lane.b32.xlu0 %v4002, 1
      %v4372 = vpop.permute.xlu0 %4371
      %4373 = vrot.lane.b32.xlu0 %v4003, 1
      %v4374 = vpop.permute.xlu0 %4373
      %4375 = vrot.lane.b32.xlu0 %v4004, 1
      %v4376 = vpop.permute.xlu0 %4375
      %4377 = vrot.lane.b32.xlu0 %v4005, 1
      %v4378 = vpop.permute.xlu0 %4377
      %4379 = vrot.lane.b32.xlu0 %v4006, 1
      %v4380 = vpop.permute.xlu0 %4379
      %4381 = vrot.lane.b32.xlu0 %v4007, 1
      %v4382 = vpop.permute.xlu0 %4381
      %4383 = vrot.lane.b32.xlu0 %v4008, 1
      %v4384 = vpop.permute.xlu0 %4383
      %4385 = vrot.lane.b32.xlu0 %v4009, 1
      %v4386 = vpop.permute.xlu0 %4385
      %4387 = vrot.lane.b32.xlu0 %v4010, 1
      %v4388 = vpop.permute.xlu0 %4387
      %4389 = vrot.lane.b32.xlu0 %v4011, 1
      %v4390 = vpop.permute.xlu0 %4389
      %4391 = vrot.lane.b32.xlu0 %v4012, 1
      %v4392 = vpop.permute.xlu0 %4391
      %4393 = vrot.lane.b32.xlu0 %v4013, 1
      %v4394 = vpop.permute.xlu0 %4393
      %4395 = vrot.lane.b32.xlu0 %v4014, 1
      %v4396 = vpop.permute.xlu0 %4395
      %4397 = vrot.lane.b32.xlu0 %v4015, 1
      %v4398 = vpop.permute.xlu0 %4397
      %4399 = vrot.lane.b32.xlu0 %v4016, 1
      %v4400 = vpop.permute.xlu0 %4399
      %4401 = vrot.lane.b32.xlu0 %v4017, 1
      %v4402 = vpop.permute.xlu0 %4401
      %4403 = vrot.lane.b32.xlu0 %v4018, 1
      %v4404 = vpop.permute.xlu0 %4403
      %4405 = vrot.lane.b32.xlu0 %v4019, 1
      %v4406 = vpop.permute.xlu0 %4405
      %4407 = vrot.lane.b32.xlu0 %v4020, 1
      %v4408 = vpop.permute.xlu0 %4407
      %4409 = vrot.lane.b32.xlu0 %v4021, 1
      %v4410 = vpop.permute.xlu0 %4409
      %4411 = vrot.lane.b32.xlu0 %v4022, 1
      %v4412 = vpop.permute.xlu0 %4411
      %4413 = vrot.lane.b32.xlu0 %v4023, 1
      %v4414 = vpop.permute.xlu0 %4413
      %4415 = vrot.lane.b32.xlu0 %v4024, 1
      %v4416 = vpop.permute.xlu0 %4415
      %4417 = vrot.lane.b32.xlu0 %v4025, 1
      %v4418 = vpop.permute.xlu0 %4417
      %4419 = vrot.lane.b32.xlu0 %v4026, 1
      %v4420 = vpop.permute.xlu0 %4419
      %4421 = vrot.lane.b32.xlu0 %v4027, 1
      %v4422 = vpop.permute.xlu0 %4421
      %4423 = vrot.lane.b32.xlu0 %v4028, 1
      %v4424 = vpop.permute.xlu0 %4423
      %4425 = vrot.lane.b32.xlu0 %v4029, 1
      %v4426 = vpop.permute.xlu0 %4425
      %4427 = vrot.lane.b32.xlu0 %v4030, 1
      %v4428 = vpop.permute.xlu0 %4427
      %4429 = vrot.lane.b32.xlu0 %v4031, 1
      %v4430 = vpop.permute.xlu0 %4429
      %4431 = vrot.lane.b32.xlu0 %v4032, 1
      %v4432 = vpop.permute.xlu0 %4431
      %4433 = vrot.lane.b32.xlu0 %v4033, 1
      %v4434 = vpop.permute.xlu0 %4433
      %4435 = vrot.lane.b32.xlu0 %v4034, 1
      %v4436 = vpop.permute.xlu0 %4435
      %4437 = vrot.lane.b32.xlu0 %v4035, 1
      %v4438 = vpop.permute.xlu0 %4437
      %4439 = vrot.lane.b32.xlu0 %v4036, 1
      %v4440 = vpop.permute.xlu0 %4439
      %4441 = vrot.lane.b32.xlu0 %v4037, 1
      %v4442 = vpop.permute.xlu0 %4441
      %4443 = vrot.lane.b32.xlu0 %v4038, 1
      %v4444 = vpop.permute.xlu0 %4443
      %4445 = vrot.lane.b32.xlu0 %v4039, 1
      %v4446 = vpop.permute.xlu0 %4445
      %4447 = vrot.lane.b32.xlu0 %v4040, 1
      %v4448 = vpop.permute.xlu0 %4447
      %4449 = vrot.lane.b32.xlu0 %v4041, 1
      %v4450 = vpop.permute.xlu0 %4449
      %4451 = vrot.lane.b32.xlu0 %v4042, 1
      %v4452 = vpop.permute.xlu0 %4451
      %4453 = vrot.lane.b32.xlu0 %v4043, 1
      %v4454 = vpop.permute.xlu0 %4453
      %4455 = vrot.lane.b32.xlu0 %v4044, 1
      %v4456 = vpop.permute.xlu0 %4455
      %4457 = vrot.lane.b32.xlu0 %v4045, 1
      %v4458 = vpop.permute.xlu0 %4457
      %4459 = vrot.lane.b32.xlu0 %v4046, 1
      %v4460 = vpop.permute.xlu0 %4459
      %4461 = vrot.lane.b32.xlu0 %v4047, 1
      %v4462 = vpop.permute.xlu0 %4461
      %4463 = vrot.lane.b32.xlu0 %v4048, 1
      %v4464 = vpop.permute.xlu0 %4463
      %4465 = vrot.lane.b32.xlu0 %v4049, 1
      %v4466 = vpop.permute.xlu0 %4465
      %4467 = vrot.lane.b32.xlu0 %v4050, 1
      %v4468 = vpop.permute.xlu0 %4467
      %4469 = vrot.lane.b32.xlu0 %v4051, 1
      %v4470 = vpop.permute.xlu0 %4469
      %4471 = vrot.lane.b32.xlu0 %v4052, 1
      %v4472 = vpop.permute.xlu0 %4471
      %4473 = vrot.lane.b32.xlu0 %v4053, 1
      %v4474 = vpop.permute.xlu0 %4473
      %4475 = vrot.lane.b32.xlu0 %v4054, 1
      %v4476 = vpop.permute.xlu0 %4475
      %4477 = vrot.lane.b32.xlu0 %v4055, 1
      %v4478 = vpop.permute.xlu0 %4477
      %4479 = vrot.lane.b32.xlu0 %v4056, 1
      %v4480 = vpop.permute.xlu0 %4479
      %4481 = vrot.lane.b32.xlu0 %v4057, 1
      %v4482 = vpop.permute.xlu0 %4481
      %4483 = vrot.lane.b32.xlu0 %v4058, 1
      %v4484 = vpop.permute.xlu0 %4483
      %4485 = vrot.lane.b32.xlu0 %v4059, 1
      %v4486 = vpop.permute.xlu0 %4485
      %4487 = vrot.lane.b32.xlu0 %v4060, 1
      %v4488 = vpop.permute.xlu0 %4487
      %4489 = vrot.lane.b32.xlu0 %v4061, 1
      %v4490 = vpop.permute.xlu0 %4489
      %4491 = vrot.lane.b32.xlu0 %v4062, 1
      %v4492 = vpop.permute.xlu0 %4491
      %4493 = vrot.lane.b32.xlu0 %v4063, 1
      %v4494 = vpop.permute.xlu0 %4493
      %4495 = vrot.lane.b32.xlu0 %v4064, 1
      %v4496 = vpop.permute.xlu0 %4495
      %4497 = vrot.lane.b32.xlu0 %v4065, 1
      %v4498 = vpop.permute.xlu0 %4497
      %4499 = vrot.lane.b32.xlu0 %v4066, 1
      %v4500 = vpop.permute.xlu0 %4499
      %4501 = vrot.lane.b32.xlu0 %v4067, 1
      %v4502 = vpop.permute.xlu0 %4501
      %4503 = vrot.lane.b32.xlu0 %v4068, 1
      %v4504 = vpop.permute.xlu0 %4503
      %4505 = vrot.lane.b32.xlu0 %v4069, 1
      %v4506 = vpop.permute.xlu0 %4505
      %4507 = vrot.lane.b32.xlu0 %v4070, 1
      %v4508 = vpop.permute.xlu0 %4507
      %4509 = vrot.lane.b32.xlu0 %v4071, 1
      %v4510 = vpop.permute.xlu0 %4509
      %4511 = vrot.lane.b32.xlu0 %v4072, 1
      %v4512 = vpop.permute.xlu0 %4511
      %4513 = vrot.lane.b32.xlu0 %v4073, 1
      %v4514 = vpop.permute.xlu0 %4513
      %4515 = vrot.lane.b32.xlu0 %v4074, 1
      %v4516 = vpop.permute.xlu0 %4515
      %4517 = vrot.lane.b32.xlu0 %v4075, 1
      %v4518 = vpop.permute.xlu0 %4517
      %4519 = vrot.lane.b32.xlu0 %v4076, 1
      %v4520 = vpop.permute.xlu0 %4519
      %4521 = vrot.lane.b32.xlu0 %v4077, 1
      %v4522 = vpop.permute.xlu0 %4521
      %4523 = vrot.lane.b32.xlu0 %v4078, 1
      %v4524 = vpop.permute.xlu0 %4523
      %4525 = vrot.lane.b32.xlu0 %v4079, 1
      %v4526 = vpop.permute.xlu0 %4525
      %4527 = vrot.lane.b32.xlu0 %v4080, 1
      %v4528 = vpop.permute.xlu0 %4527
      %4529 = vrot.lane.b32.xlu0 %v4081, 1
      %v4530 = vpop.permute.xlu0 %4529
      %4531 = vrot.lane.b32.xlu0 %v4082, 1
      %v4532 = vpop.permute.xlu0 %4531
      %4533 = vrot.lane.b32.xlu0 %v4083, 1
      %v4534 = vpop.permute.xlu0 %4533
      %4535 = vrot.lane.b32.xlu0 %v4084, 1
      %v4536 = vpop.permute.xlu0 %4535
      %4537 = vrot.lane.b32.xlu0 %v4085, 1
      %v4538 = vpop.permute.xlu0 %4537
      %4539 = vrot.lane.b32.xlu0 %v4086, 1
      %v4540 = vpop.permute.xlu0 %4539
      %4541 = vrot.lane.b32.xlu0 %v4087, 1
      %v4542 = vpop.permute.xlu0 %4541
      %4543 = vrot.lane.b32.xlu0 %v4088, 1
      %v4544 = vpop.permute.xlu0 %4543
      %4545 = vrot.lane.b32.xlu0 %v4089, 1
      %v4546 = vpop.permute.xlu0 %4545
      %4547 = vrot.lane.b32.xlu0 %v4090, 1
      %v4548 = vpop.permute.xlu0 %4547
      %4549 = vrot.lane.b32.xlu0 %v4091, 1
      %v4550 = vpop.permute.xlu0 %4549
      %4551 = vrot.lane.b32.xlu0 %v4092, 1
      %v4552 = vpop.permute.xlu0 %4551
      %4553 = vrot.lane.b32.xlu0 %v4093, 1
      %v4554 = vpop.permute.xlu0 %4553
      %4555 = vrot.lane.b32.xlu0 %v4094, 1
      %v4556 = vpop.permute.xlu0 %4555
      %4557 = vrot.lane.b32.xlu0 %v4095, 1
      %v4558 = vpop.permute.xlu0 %4557
      %4559 = vrot.lane.b32.xlu0 %v4096, 1
      %v4560 = vpop.permute.xlu0 %4559
      %4561 = vrot.lane.b32.xlu0 %v4097, 1
      %v4562 = vpop.permute.xlu0 %4561
      %4563 = vrot.lane.b32.xlu0 %v4098, 1
      %v4564 = vpop.permute.xlu0 %4563
      %4565 = vrot.lane.b32.xlu0 %v4099, 1
      %v4566 = vpop.permute.xlu0 %4565
      %4567 = vrot.lane.b32.xlu0 %v4100, 1
      %v4568 = vpop.permute.xlu0 %4567
      %4569 = vrot.lane.b32.xlu0 %v4101, 1
      %v4570 = vpop.permute.xlu0 %4569
      %4571 = vrot.lane.b32.xlu0 %v4102, 1
      %v4572 = vpop.permute.xlu0 %4571
      %4573 = vrot.lane.b32.xlu0 %v4103, 1
      %v4574 = vpop.permute.xlu0 %4573
      %4575 = vrot.lane.b32.xlu0 %v4104, 1
      %v4576 = vpop.permute.xlu0 %4575
      %4577 = vrot.lane.b32.xlu0 %v4105, 1
      %v4578 = vpop.permute.xlu0 %4577
      %4579 = vrot.lane.b32.xlu0 %v4106, 1
      %v4580 = vpop.permute.xlu0 %4579
      %4581 = vrot.lane.b32.xlu0 %v4107, 1
      %v4582 = vpop.permute.xlu0 %4581
      %4583 = vrot.lane.b32.xlu0 %v4108, 1
      %v4584 = vpop.permute.xlu0 %4583
      %4585 = vrot.lane.b32.xlu0 %v4109, 1
      %v4586 = vpop.permute.xlu0 %4585
      %4587 = vrot.lane.b32.xlu0 %v4110, 1
      %v4588 = vpop.permute.xlu0 %4587
      %4589 = vrot.lane.b32.xlu0 %v4111, 1
      %v4590 = vpop.permute.xlu0 %4589
      %4591 = vrot.lane.b32.xlu0 %v4112, 1
      %v4592 = vpop.permute.xlu0 %4591
      %4593 = vrot.lane.b32.xlu0 %v4113, 1
      %v4594 = vpop.permute.xlu0 %4593
      %4595 = vrot.lane.b32.xlu0 %v4114, 1
      %v4596 = vpop.permute.xlu0 %4595
      %4597 = vrot.lane.b32.xlu0 %v4115, 1
      %v4598 = vpop.permute.xlu0 %4597
      %4599 = vrot.lane.b32.xlu0 %v4116, 1
      %v4600 = vpop.permute.xlu0 %4599
      %4601 = vrot.lane.b32.xlu0 %v4117, 1
      %v4602 = vpop.permute.xlu0 %4601
      %4603 = vrot.lane.b32.xlu0 %v4118, 1
      %v4604 = vpop.permute.xlu0 %4603
      %4605 = vrot.lane.b32.xlu0 %v4119, 1
      %v4606 = vpop.permute.xlu0 %4605
      %4607 = vrot.lane.b32.xlu0 %v4120, 1
      %v4608 = vpop.permute.xlu0 %4607
      %4609 = vrot.lane.b32.xlu0 %v4121, 1
      %v4610 = vpop.permute.xlu0 %4609
      %4611 = vrot.lane.b32.xlu0 %v4122, 1
      %v4612 = vpop.permute.xlu0 %4611
      %4613 = vrot.lane.b32.xlu0 %v4123, 1
      %v4614 = vpop.permute.xlu0 %4613
      %4615 = vrot.lane.b32.xlu0 %v4124, 1
      %v4616 = vpop.permute.xlu0 %4615
      %4617 = vrot.lane.b32.xlu0 %v4125, 1
      %v4618 = vpop.permute.xlu0 %4617
      %4619 = vrot.lane.b32.xlu0 %v4126, 1
      %v4620 = vpop.permute.xlu0 %4619
      %4621 = vrot.lane.b32.xlu0 %v4127, 1
      %v4622 = vpop.permute.xlu0 %4621
      %4623 = vrot.lane.b32.xlu0 %v4128, 1
      %v4624 = vpop.permute.xlu0 %4623
      %4625 = vrot.lane.b32.xlu0 %v4129, 1
      %v4626 = vpop.permute.xlu0 %4625
      %4627 = vrot.lane.b32.xlu0 %v4130, 1
      %v4628 = vpop.permute.xlu0 %4627
      %4629 = vrot.lane.b32.xlu0 %v4131, 1
      %v4630 = vpop.permute.xlu0 %4629
      %4631 = vrot.lane.b32.xlu0 %v4132, 1
      %v4632 = vpop.permute.xlu0 %4631
      %4633 = vrot.lane.b32.xlu0 %v4133, 1
      %v4634 = vpop.permute.xlu0 %4633
      %4635 = vrot.lane.b32.xlu0 %v4134, 1
      %v4636 = vpop.permute.xlu0 %4635
      %4637 = vrot.lane.b32.xlu0 %v4135, 1
      %v4638 = vpop.permute.xlu0 %4637
      %4639 = vrot.lane.b32.xlu0 %v4136, 1
      %v4640 = vpop.permute.xlu0 %4639
      %4641 = vrot.lane.b32.xlu0 %v4137, 1
      %v4642 = vpop.permute.xlu0 %4641
      %4643 = vrot.lane.b32.xlu0 %v4138, 1
      %v4644 = vpop.permute.xlu0 %4643
      %4645 = vrot.lane.b32.xlu0 %v4139, 1
      %v4646 = vpop.permute.xlu0 %4645
      %4647 = vrot.lane.b32.xlu0 %v4140, 1
      %v4648 = vpop.permute.xlu0 %4647
      %4649 = vrot.lane.b32.xlu0 %v4141, 1
      %v4650 = vpop.permute.xlu0 %4649
      %4651 = vrot.lane.b32.xlu0 %v4142, 1
      %v4652 = vpop.permute.xlu0 %4651
      %4653 = vrot.lane.b32.xlu0 %v4143, 1
      %v4654 = vpop.permute.xlu0 %4653
      %4655 = vrot.lane.b32.xlu0 %v4144, 1
      %v4656 = vpop.permute.xlu0 %4655
      %4657 = vrot.lane.b32.xlu0 %v4145, 1
      %v4658 = vpop.permute.xlu0 %4657
      %4659 = vrot.lane.b32.xlu0 %v4146, 1
      %v4660 = vpop.permute.xlu0 %4659
      %4661 = vrot.lane.b32.xlu0 %v4147, 1
      %v4662 = vpop.permute.xlu0 %4661
      %4663 = vrot.lane.b32.xlu0 %v4148, 1
      %v4664 = vpop.permute.xlu0 %4663
      %4665 = vrot.lane.b32.xlu0 %v4149, 1
      %v4666 = vpop.permute.xlu0 %4665
      %4667 = vrot.lane.b32.xlu0 %v4150, 1
      %v4668 = vpop.permute.xlu0 %4667
      %4669 = vrot.lane.b32.xlu0 %v4151, 1
      %v4670 = vpop.permute.xlu0 %4669
      %4671 = vrot.lane.b32.xlu0 %v4152, 1
      %v4672 = vpop.permute.xlu0 %4671
      %4673 = vrot.lane.b32.xlu0 %v4153, 1
      %v4674 = vpop.permute.xlu0 %4673
      %4675 = vrot.lane.b32.xlu0 %v4154, 1
      %v4676 = vpop.permute.xlu0 %4675
      %4677 = vrot.lane.b32.xlu0 %v4155, 1
      %v4678 = vpop.permute.xlu0 %4677
      %4679 = vrot.lane.b32.xlu0 %v4156, 1
      %v4680 = vpop.permute.xlu0 %4679
      %4681 = vrot.lane.b32.xlu0 %v4157, 1
      %v4682 = vpop.permute.xlu0 %4681
      %4683 = vrot.lane.b32.xlu0 %v4158, 1
      %v4684 = vpop.permute.xlu0 %4683
      %4685 = vrot.lane.b32.xlu0 %v4159, 1
      %v4686 = vpop.permute.xlu0 %4685
      %4687 = vrot.lane.b32.xlu0 %v4160, 1
      %v4688 = vpop.permute.xlu0 %4687
      %4689 = vrot.lane.b32.xlu0 %v4161, 1
      %v4690 = vpop.permute.xlu0 %4689
      %4691 = vrot.lane.b32.xlu0 %v4162, 1
      %v4692 = vpop.permute.xlu0 %4691
      %4693 = vrot.lane.b32.xlu0 %v4163, 1
      %v4694 = vpop.permute.xlu0 %4693
      %4695 = vrot.lane.b32.xlu0 %v4164, 1
      %v4696 = vpop.permute.xlu0 %4695
      %4697 = vrot.lane.b32.xlu0 %v4165, 1
      %v4698 = vpop.permute.xlu0 %4697
      %4699 = vrot.lane.b32.xlu0 %v4166, 1
      %v4700 = vpop.permute.xlu0 %4699
      %4701 = vrot.lane.b32.xlu0 %v4167, 1
      %v4702 = vpop.permute.xlu0 %4701
      %4703 = vrot.lane.b32.xlu0 %v4168, 1
      %v4704 = vpop.permute.xlu0 %4703
      %4705 = vrot.lane.b32.xlu0 %v4169, 1
      %v4706 = vpop.permute.xlu0 %4705
      %4707 = vrot.lane.b32.xlu0 %v4170, 1
      %v4708 = vpop.permute.xlu0 %4707
      %4709 = vrot.lane.b32.xlu0 %v4171, 1
      %v4710 = vpop.permute.xlu0 %4709
      %4711 = vrot.lane.b32.xlu0 %v4172, 1
      %v4712 = vpop.permute.xlu0 %4711
      %4713 = vrot.lane.b32.xlu0 %v4173, 1
      %v4714 = vpop.permute.xlu0 %4713
      %4715 = vrot.lane.b32.xlu0 %v4174, 1
      %v4716 = vpop.permute.xlu0 %4715
      %4717 = vrot.lane.b32.xlu0 %v4175, 1
      %v4718 = vpop.permute.xlu0 %4717
      %4719 = vrot.lane.b32.xlu0 %v4176, 1
      %v4720 = vpop.permute.xlu0 %4719
      %4721 = vrot.lane.b32.xlu0 %v4177, 1
      %v4722 = vpop.permute.xlu0 %4721
      %4723 = vrot.lane.b32.xlu0 %v4178, 1
      %v4724 = vpop.permute.xlu0 %4723
      %v4907 = vsub.f32 %v3633, %v4362
      %v4908 = vsub.f32 %v3634, %v4364
      %v4909 = vsub.f32 %v3635, %v4366
      %v4910 = vsub.f32 %v3636, %v4368
      %v4911 = vsub.f32 %v3637, %v4370
      %v4912 = vsub.f32 %v3638, %v4372
      %v4913 = vsub.f32 %v3639, %v4374
      %v4914 = vsub.f32 %v3640, %v4376
      %v4915 = vsub.f32 %v3641, %v4378
      %v4916 = vsub.f32 %v3642, %v4380
      %v4917 = vsub.f32 %v3643, %v4382
      %v4918 = vsub.f32 %v3644, %v4384
      %v4919 = vsub.f32 %v3645, %v4386
      %v4920 = vsub.f32 %v3646, %v4388
      %v4921 = vsub.f32 %v3647, %v4390
      %v4922 = vsub.f32 %v3648, %v4392
      %v4923 = vsub.f32 %v3649, %v4394
      %v4924 = vsub.f32 %v3650, %v4396
      %v4925 = vsub.f32 %v3651, %v4398
      %v4926 = vsub.f32 %v3652, %v4400
      %v4927 = vsub.f32 %v3653, %v4402
      %v4928 = vsub.f32 %v3654, %v4404
      %v4929 = vsub.f32 %v3655, %v4406
      %v4930 = vsub.f32 %v3656, %v4408
      %v4931 = vsub.f32 %v3657, %v4410
      %v4932 = vsub.f32 %v3658, %v4412
      %v4933 = vsub.f32 %v3659, %v4414
      %v4934 = vsub.f32 %v3660, %v4416
      %v4935 = vsub.f32 %v3661, %v4418
      %v4936 = vsub.f32 %v3662, %v4420
      %v4937 = vsub.f32 %v3663, %v4422
      %v4938 = vsub.f32 %v3664, %v4424
      %v4939 = vsub.f32 %v3665, %v4426
      %v4940 = vsub.f32 %v3666, %v4428
      %v4941 = vsub.f32 %v3667, %v4430
      %v4942 = vsub.f32 %v3668, %v4432
      %v4943 = vsub.f32 %v3669, %v4434
      %v4944 = vsub.f32 %v3670, %v4436
      %v4945 = vsub.f32 %v3671, %v4438
      %v4946 = vsub.f32 %v3672, %v4440
      %v4947 = vsub.f32 %v3673, %v4442
      %v4948 = vsub.f32 %v3674, %v4444
      %v4949 = vsub.f32 %v3675, %v4446
      %v4950 = vsub.f32 %v3676, %v4448
      %v4951 = vsub.f32 %v3677, %v4450
      %v4952 = vsub.f32 %v3678, %v4452
      %v4953 = vsub.f32 %v3679, %v4454
      %v4954 = vsub.f32 %v3680, %v4456
      %v4955 = vsub.f32 %v3681, %v4458
      %v4956 = vsub.f32 %v3682, %v4460
      %v4957 = vsub.f32 %v3683, %v4462
      %v4958 = vsub.f32 %v3684, %v4464
      %v4959 = vsub.f32 %v3685, %v4466
      %v4960 = vsub.f32 %v3686, %v4468
      %v4961 = vsub.f32 %v3687, %v4470
      %v4962 = vsub.f32 %v3688, %v4472
      %v4963 = vsub.f32 %v3689, %v4474
      %v4964 = vsub.f32 %v3690, %v4476
      %v4965 = vsub.f32 %v3691, %v4478
      %v4966 = vsub.f32 %v3692, %v4480
      %v4967 = vsub.f32 %v3693, %v4482
      %v4968 = vsub.f32 %v3694, %v4484
      %v4969 = vsub.f32 %v3695, %v4486
      %v4970 = vsub.f32 %v3696, %v4488
      %v4971 = vsub.f32 %v3697, %v4490
      %v4972 = vsub.f32 %v3698, %v4492
      %v4973 = vsub.f32 %v3699, %v4494
      %v4974 = vsub.f32 %v3700, %v4496
      %v4975 = vsub.f32 %v3701, %v4498
      %v4976 = vsub.f32 %v3702, %v4500
      %v4977 = vsub.f32 %v3703, %v4502
      %v4978 = vsub.f32 %v3704, %v4504
      %v4979 = vsub.f32 %v3705, %v4506
      %v4980 = vsub.f32 %v3706, %v4508
      %v4981 = vsub.f32 %v3707, %v4510
      %v4982 = vsub.f32 %v3708, %v4512
      %v4983 = vsub.f32 %v3709, %v4514
      %v4984 = vsub.f32 %v3710, %v4516
      %v4985 = vsub.f32 %v3711, %v4518
      %v4986 = vsub.f32 %v3712, %v4520
      %v4987 = vsub.f32 %v3713, %v4522
      %v4988 = vsub.f32 %v3714, %v4524
      %v4989 = vsub.f32 %v3715, %v4526
      %v4990 = vsub.f32 %v3716, %v4528
      %v4991 = vsub.f32 %v3717, %v4530
      %v4992 = vsub.f32 %v3718, %v4532
      %v4993 = vsub.f32 %v3719, %v4534
      %v4994 = vsub.f32 %v3720, %v4536
      %v4995 = vsub.f32 %v3721, %v4538
      %v4996 = vsub.f32 %v3722, %v4540
      %v4997 = vsub.f32 %v3723, %v4542
      %v4998 = vsub.f32 %v3724, %v4544
      %v4999 = vsub.f32 %v3725, %v4546
      %v5000 = vsub.f32 %v3726, %v4548
      %v5001 = vsub.f32 %v3727, %v4550
      %v5002 = vsub.f32 %v3728, %v4552
      %v5003 = vsub.f32 %v3729, %v4554
      %v5004 = vsub.f32 %v3730, %v4556
      %v5005 = vsub.f32 %v3731, %v4558
      %v5006 = vsub.f32 %v3732, %v4560
      %v5007 = vsub.f32 %v3733, %v4562
      %v5008 = vsub.f32 %v3734, %v4564
      %v5009 = vsub.f32 %v3735, %v4566
      %v5010 = vsub.f32 %v3736, %v4568
      %v5011 = vsub.f32 %v3737, %v4570
      %v5012 = vsub.f32 %v3738, %v4572
      %v5013 = vsub.f32 %v3739, %v4574
      %v5014 = vsub.f32 %v3740, %v4576
      %v5015 = vsub.f32 %v3741, %v4578
      %v5016 = vsub.f32 %v3742, %v4580
      %v5017 = vsub.f32 %v3743, %v4582
      %v5018 = vsub.f32 %v3744, %v4584
      %v5019 = vsub.f32 %v3745, %v4586
      %v5020 = vsub.f32 %v3746, %v4588
      %v5021 = vsub.f32 %v3747, %v4590
      %v5022 = vsub.f32 %v3748, %v4592
      %v5023 = vsub.f32 %v3749, %v4594
      %v5024 = vsub.f32 %v3750, %v4596
      %v5025 = vsub.f32 %v3751, %v4598
      %v5026 = vsub.f32 %v3752, %v4600
      %v5027 = vsub.f32 %v3753, %v4602
      %v5028 = vsub.f32 %v3754, %v4604
      %v5029 = vsub.f32 %v3755, %v4606
      %v5030 = vsub.f32 %v3756, %v4608
      %v5031 = vsub.f32 %v3757, %v4610
      %v5032 = vsub.f32 %v3758, %v4612
      %v5033 = vsub.f32 %v3759, %v4614
      %v5034 = vsub.f32 %v3760, %v4616
      %v5035 = vsub.f32 %v3761, %v4618
      %v5036 = vsub.f32 %v3762, %v4620
      %v5037 = vsub.f32 %v3763, %v4622
      %v5038 = vsub.f32 %v3764, %v4624
      %v5039 = vsub.f32 %v3765, %v4626
      %v5040 = vsub.f32 %v3766, %v4628
      %v5041 = vsub.f32 %v3767, %v4630
      %v5042 = vsub.f32 %v3768, %v4632
      %v5043 = vsub.f32 %v3769, %v4634
      %v5044 = vsub.f32 %v3770, %v4636
      %v5045 = vsub.f32 %v3771, %v4638
      %v5046 = vsub.f32 %v3772, %v4640
      %v5047 = vsub.f32 %v3773, %v4642
      %v5048 = vsub.f32 %v3774, %v4644
      %v5049 = vsub.f32 %v3775, %v4646
      %v5050 = vsub.f32 %v3776, %v4648
      %v5051 = vsub.f32 %v3777, %v4650
      %v5052 = vsub.f32 %v3778, %v4652
      %v5053 = vsub.f32 %v3779, %v4654
      %v5054 = vsub.f32 %v3780, %v4656
      %v5055 = vsub.f32 %v3781, %v4658
      %v5056 = vsub.f32 %v3782, %v4660
      %v5057 = vsub.f32 %v3783, %v4662
      %v5058 = vsub.f32 %v3784, %v4664
      %v5059 = vsub.f32 %v3785, %v4666
      %v5060 = vsub.f32 %v3786, %v4668
      %v5061 = vsub.f32 %v3787, %v4670
      %v5062 = vsub.f32 %v3788, %v4672
      %v5063 = vsub.f32 %v3789, %v4674
      %v5064 = vsub.f32 %v3790, %v4676
      %v5065 = vsub.f32 %v3791, %v4678
      %v5066 = vsub.f32 %v3792, %v4680
      %v5067 = vsub.f32 %v3793, %v4682
      %v5068 = vsub.f32 %v3794, %v4684
      %v5069 = vsub.f32 %v3795, %v4686
      %v5070 = vsub.f32 %v3796, %v4688
      %v5071 = vsub.f32 %v3797, %v4690
      %v5072 = vsub.f32 %v3798, %v4692
      %v5073 = vsub.f32 %v3799, %v4694
      %v5074 = vsub.f32 %v3800, %v4696
      %v5075 = vsub.f32 %v3801, %v4698
      %v5076 = vsub.f32 %v3802, %v4700
      %v5077 = vsub.f32 %v3803, %v4702
      %v5078 = vsub.f32 %v3804, %v4704
      %v5079 = vsub.f32 %v3805, %v4706
      %v5080 = vsub.f32 %v3806, %v4708
      %v5081 = vsub.f32 %v3807, %v4710
      %v5082 = vsub.f32 %v3808, %v4712
      %v5083 = vsub.f32 %v3809, %v4714
      %v5084 = vsub.f32 %v3810, %v4716
      %v5085 = vsub.f32 %v3811, %v4718
      %v5086 = vsub.f32 %v3812, %v4720
      %v5087 = vsub.f32 %v3813, %v4722
      %v5088 = vsub.f32 %v3814, %v4724
      %5090 = vset.pattern.permute.xlu0 0
      %5091 = vperm.xlu0 %5090, %v3815
      %v5092 = vpop.permute.xlu0 %5091
      %5095 = vset.pattern.permute.xlu0 0
      %5096 = vperm.xlu0 %5095, %v3816
      %v5097 = vpop.permute.xlu0 %5096
      %5100 = vset.pattern.permute.xlu0 0
      %5101 = vperm.xlu0 %5100, %v3817
      %v5102 = vpop.permute.xlu0 %5101
      %5105 = vset.pattern.permute.xlu0 0
      %5106 = vperm.xlu0 %5105, %v3818
      %v5107 = vpop.permute.xlu0 %5106
      %5110 = vset.pattern.permute.xlu0 0
      %5111 = vperm.xlu0 %5110, %v3819
      %v5112 = vpop.permute.xlu0 %5111
      %5115 = vset.pattern.permute.xlu0 0
      %5116 = vperm.xlu0 %5115, %v3820
      %v5117 = vpop.permute.xlu0 %5116
      %5120 = vset.pattern.permute.xlu0 0
      %5121 = vperm.xlu0 %5120, %v3821
      %v5122 = vpop.permute.xlu0 %5121
      %5125 = vset.pattern.permute.xlu0 0
      %5126 = vperm.xlu0 %5125, %v3822
      %v5127 = vpop.permute.xlu0 %5126
      %5130 = vset.pattern.permute.xlu0 0
      %5131 = vperm.xlu0 %5130, %v3823
      %v5132 = vpop.permute.xlu0 %5131
      %5135 = vset.pattern.permute.xlu0 0
      %5136 = vperm.xlu0 %5135, %v3824
      %v5137 = vpop.permute.xlu0 %5136
      %5140 = vset.pattern.permute.xlu0 0
      %5141 = vperm.xlu0 %5140, %v3825
      %v5142 = vpop.permute.xlu0 %5141
      %5145 = vset.pattern.permute.xlu0 0
      %5146 = vperm.xlu0 %5145, %v3826
      %v5147 = vpop.permute.xlu0 %5146
      %5150 = vset.pattern.permute.xlu0 0
      %5151 = vperm.xlu0 %5150, %v3827
      %v5152 = vpop.permute.xlu0 %5151
      %5155 = vset.pattern.permute.xlu0 0
      %5156 = vperm.xlu0 %5155, %v3828
      %v5157 = vpop.permute.xlu0 %5156
      %5160 = vset.pattern.permute.xlu0 0
      %5161 = vperm.xlu0 %5160, %v3829
      %v5162 = vpop.permute.xlu0 %5161
      %5165 = vset.pattern.permute.xlu0 0
      %5166 = vperm.xlu0 %5165, %v3830
      %v5167 = vpop.permute.xlu0 %5166
      %5170 = vset.pattern.permute.xlu0 0
      %5171 = vperm.xlu0 %5170, %v3831
      %v5172 = vpop.permute.xlu0 %5171
      %5175 = vset.pattern.permute.xlu0 0
      %5176 = vperm.xlu0 %5175, %v3832
      %v5177 = vpop.permute.xlu0 %5176
      %5180 = vset.pattern.permute.xlu0 0
      %5181 = vperm.xlu0 %5180, %v3833
      %v5182 = vpop.permute.xlu0 %5181
      %5185 = vset.pattern.permute.xlu0 0
      %5186 = vperm.xlu0 %5185, %v3834
      %v5187 = vpop.permute.xlu0 %5186
      %5190 = vset.pattern.permute.xlu0 0
      %5191 = vperm.xlu0 %5190, %v3835
      %v5192 = vpop.permute.xlu0 %5191
      %5195 = vset.pattern.permute.xlu0 0
      %5196 = vperm.xlu0 %5195, %v3836
      %v5197 = vpop.permute.xlu0 %5196
      %5200 = vset.pattern.permute.xlu0 0
      %5201 = vperm.xlu0 %5200, %v3837
      %v5202 = vpop.permute.xlu0 %5201
      %5205 = vset.pattern.permute.xlu0 0
      %5206 = vperm.xlu0 %5205, %v3838
      %v5207 = vpop.permute.xlu0 %5206
      %5210 = vset.pattern.permute.xlu0 0
      %5211 = vperm.xlu0 %5210, %v3839
      %v5212 = vpop.permute.xlu0 %5211
      %5215 = vset.pattern.permute.xlu0 0
      %5216 = vperm.xlu0 %5215, %v3840
      %v5217 = vpop.permute.xlu0 %5216
      %5220 = vset.pattern.permute.xlu0 0
      %5221 = vperm.xlu0 %5220, %v3841
      %v5222 = vpop.permute.xlu0 %5221
      %5225 = vset.pattern.permute.xlu0 0
      %5226 = vperm.xlu0 %5225, %v3842
      %v5227 = vpop.permute.xlu0 %5226
      %5230 = vset.pattern.permute.xlu0 0
      %5231 = vperm.xlu0 %5230, %v3843
      %v5232 = vpop.permute.xlu0 %5231
      %5235 = vset.pattern.permute.xlu0 0
      %5236 = vperm.xlu0 %5235, %v3844
      %v5237 = vpop.permute.xlu0 %5236
      %5240 = vset.pattern.permute.xlu0 0
      %5241 = vperm.xlu0 %5240, %v3845
      %v5242 = vpop.permute.xlu0 %5241
      %5245 = vset.pattern.permute.xlu0 0
      %5246 = vperm.xlu0 %5245, %v3846
      %v5247 = vpop.permute.xlu0 %5246
      %5250 = vset.pattern.permute.xlu0 0
      %5251 = vperm.xlu0 %5250, %v3847
      %v5252 = vpop.permute.xlu0 %5251
      %5255 = vset.pattern.permute.xlu0 0
      %5256 = vperm.xlu0 %5255, %v3848
      %v5257 = vpop.permute.xlu0 %5256
      %5260 = vset.pattern.permute.xlu0 0
      %5261 = vperm.xlu0 %5260, %v3849
      %v5262 = vpop.permute.xlu0 %5261
      %5265 = vset.pattern.permute.xlu0 0
      %5266 = vperm.xlu0 %5265, %v3850
      %v5267 = vpop.permute.xlu0 %5266
      %5270 = vset.pattern.permute.xlu0 0
      %5271 = vperm.xlu0 %5270, %v3851
      %v5272 = vpop.permute.xlu0 %5271
      %5275 = vset.pattern.permute.xlu0 0
      %5276 = vperm.xlu0 %5275, %v3852
      %v5277 = vpop.permute.xlu0 %5276
      %5280 = vset.pattern.permute.xlu0 0
      %5281 = vperm.xlu0 %5280, %v3853
      %v5282 = vpop.permute.xlu0 %5281
      %5285 = vset.pattern.permute.xlu0 0
      %5286 = vperm.xlu0 %5285, %v3854
      %v5287 = vpop.permute.xlu0 %5286
      %5290 = vset.pattern.permute.xlu0 0
      %5291 = vperm.xlu0 %5290, %v3855
      %v5292 = vpop.permute.xlu0 %5291
      %5295 = vset.pattern.permute.xlu0 0
      %5296 = vperm.xlu0 %5295, %v3856
      %v5297 = vpop.permute.xlu0 %5296
      %5300 = vset.pattern.permute.xlu0 0
      %5301 = vperm.xlu0 %5300, %v3857
      %v5302 = vpop.permute.xlu0 %5301
      %5305 = vset.pattern.permute.xlu0 0
      %5306 = vperm.xlu0 %5305, %v3858
      %v5307 = vpop.permute.xlu0 %5306
      %5310 = vset.pattern.permute.xlu0 0
      %5311 = vperm.xlu0 %5310, %v3859
      %v5312 = vpop.permute.xlu0 %5311
      %5315 = vset.pattern.permute.xlu0 0
      %5316 = vperm.xlu0 %5315, %v3860
      %v5317 = vpop.permute.xlu0 %5316
      %5320 = vset.pattern.permute.xlu0 0
      %5321 = vperm.xlu0 %5320, %v3861
      %v5322 = vpop.permute.xlu0 %5321
      %5325 = vset.pattern.permute.xlu0 0
      %5326 = vperm.xlu0 %5325, %v3862
      %v5327 = vpop.permute.xlu0 %5326
      %5330 = vset.pattern.permute.xlu0 0
      %5331 = vperm.xlu0 %5330, %v3863
      %v5332 = vpop.permute.xlu0 %5331
      %5335 = vset.pattern.permute.xlu0 0
      %5336 = vperm.xlu0 %5335, %v3864
      %v5337 = vpop.permute.xlu0 %5336
      %5340 = vset.pattern.permute.xlu0 0
      %5341 = vperm.xlu0 %5340, %v3865
      %v5342 = vpop.permute.xlu0 %5341
      %5345 = vset.pattern.permute.xlu0 0
      %5346 = vperm.xlu0 %5345, %v3866
      %v5347 = vpop.permute.xlu0 %5346
      %5350 = vset.pattern.permute.xlu0 0
      %5351 = vperm.xlu0 %5350, %v3867
      %v5352 = vpop.permute.xlu0 %5351
      %5355 = vset.pattern.permute.xlu0 0
      %5356 = vperm.xlu0 %5355, %v3868
      %v5357 = vpop.permute.xlu0 %5356
      %5360 = vset.pattern.permute.xlu0 0
      %5361 = vperm.xlu0 %5360, %v3869
      %v5362 = vpop.permute.xlu0 %5361
      %5365 = vset.pattern.permute.xlu0 0
      %5366 = vperm.xlu0 %5365, %v3870
      %v5367 = vpop.permute.xlu0 %5366
      %5370 = vset.pattern.permute.xlu0 0
      %5371 = vperm.xlu0 %5370, %v3871
      %v5372 = vpop.permute.xlu0 %5371
      %5375 = vset.pattern.permute.xlu0 0
      %5376 = vperm.xlu0 %5375, %v3872
      %v5377 = vpop.permute.xlu0 %5376
      %5380 = vset.pattern.permute.xlu0 0
      %5381 = vperm.xlu0 %5380, %v3873
      %v5382 = vpop.permute.xlu0 %5381
      %5385 = vset.pattern.permute.xlu0 0
      %5386 = vperm.xlu0 %5385, %v3874
      %v5387 = vpop.permute.xlu0 %5386
      %5390 = vset.pattern.permute.xlu0 0
      %5391 = vperm.xlu0 %5390, %v3875
      %v5392 = vpop.permute.xlu0 %5391
      %5395 = vset.pattern.permute.xlu0 0
      %5396 = vperm.xlu0 %5395, %v3876
      %v5397 = vpop.permute.xlu0 %5396
      %5400 = vset.pattern.permute.xlu0 0
      %5401 = vperm.xlu0 %5400, %v3877
      %v5402 = vpop.permute.xlu0 %5401
      %5405 = vset.pattern.permute.xlu0 0
      %5406 = vperm.xlu0 %5405, %v3878
      %v5407 = vpop.permute.xlu0 %5406
      %5410 = vset.pattern.permute.xlu0 0
      %5411 = vperm.xlu0 %5410, %v3879
      %v5412 = vpop.permute.xlu0 %5411
      %5415 = vset.pattern.permute.xlu0 0
      %5416 = vperm.xlu0 %5415, %v3880
      %v5417 = vpop.permute.xlu0 %5416
      %5420 = vset.pattern.permute.xlu0 0
      %5421 = vperm.xlu0 %5420, %v3881
      %v5422 = vpop.permute.xlu0 %5421
      %5425 = vset.pattern.permute.xlu0 0
      %5426 = vperm.xlu0 %5425, %v3882
      %v5427 = vpop.permute.xlu0 %5426
      %5430 = vset.pattern.permute.xlu0 0
      %5431 = vperm.xlu0 %5430, %v3883
      %v5432 = vpop.permute.xlu0 %5431
      %5435 = vset.pattern.permute.xlu0 0
      %5436 = vperm.xlu0 %5435, %v3884
      %v5437 = vpop.permute.xlu0 %5436
      %5440 = vset.pattern.permute.xlu0 0
      %5441 = vperm.xlu0 %5440, %v3885
      %v5442 = vpop.permute.xlu0 %5441
      %5445 = vset.pattern.permute.xlu0 0
      %5446 = vperm.xlu0 %5445, %v3886
      %v5447 = vpop.permute.xlu0 %5446
      %5450 = vset.pattern.permute.xlu0 0
      %5451 = vperm.xlu0 %5450, %v3887
      %v5452 = vpop.permute.xlu0 %5451
      %5455 = vset.pattern.permute.xlu0 0
      %5456 = vperm.xlu0 %5455, %v3888
      %v5457 = vpop.permute.xlu0 %5456
      %5460 = vset.pattern.permute.xlu0 0
      %5461 = vperm.xlu0 %5460, %v3889
      %v5462 = vpop.permute.xlu0 %5461
      %5465 = vset.pattern.permute.xlu0 0
      %5466 = vperm.xlu0 %5465, %v3890
      %v5467 = vpop.permute.xlu0 %5466
      %5470 = vset.pattern.permute.xlu0 0
      %5471 = vperm.xlu0 %5470, %v3891
      %v5472 = vpop.permute.xlu0 %5471
      %5475 = vset.pattern.permute.xlu0 0
      %5476 = vperm.xlu0 %5475, %v3892
      %v5477 = vpop.permute.xlu0 %5476
      %5480 = vset.pattern.permute.xlu0 0
      %5481 = vperm.xlu0 %5480, %v3893
      %v5482 = vpop.permute.xlu0 %5481
      %5485 = vset.pattern.permute.xlu0 0
      %5486 = vperm.xlu0 %5485, %v3894
      %v5487 = vpop.permute.xlu0 %5486
      %5490 = vset.pattern.permute.xlu0 0
      %5491 = vperm.xlu0 %5490, %v3895
      %v5492 = vpop.permute.xlu0 %5491
      %5495 = vset.pattern.permute.xlu0 0
      %5496 = vperm.xlu0 %5495, %v3896
      %v5497 = vpop.permute.xlu0 %5496
      %5500 = vset.pattern.permute.xlu0 0
      %5501 = vperm.xlu0 %5500, %v3897
      %v5502 = vpop.permute.xlu0 %5501
      %5505 = vset.pattern.permute.xlu0 0
      %5506 = vperm.xlu0 %5505, %v3898
      %v5507 = vpop.permute.xlu0 %5506
      %5510 = vset.pattern.permute.xlu0 0
      %5511 = vperm.xlu0 %5510, %v3899
      %v5512 = vpop.permute.xlu0 %5511
      %5515 = vset.pattern.permute.xlu0 0
      %5516 = vperm.xlu0 %5515, %v3900
      %v5517 = vpop.permute.xlu0 %5516
      %5520 = vset.pattern.permute.xlu0 0
      %5521 = vperm.xlu0 %5520, %v3901
      %v5522 = vpop.permute.xlu0 %5521
      %5525 = vset.pattern.permute.xlu0 0
      %5526 = vperm.xlu0 %5525, %v3902
      %v5527 = vpop.permute.xlu0 %5526
      %5530 = vset.pattern.permute.xlu0 0
      %5531 = vperm.xlu0 %5530, %v3903
      %v5532 = vpop.permute.xlu0 %5531
      %5535 = vset.pattern.permute.xlu0 0
      %5536 = vperm.xlu0 %5535, %v3904
      %v5537 = vpop.permute.xlu0 %5536
      %5540 = vset.pattern.permute.xlu0 0
      %5541 = vperm.xlu0 %5540, %v3905
      %v5542 = vpop.permute.xlu0 %5541
      %5545 = vset.pattern.permute.xlu0 0
      %5546 = vperm.xlu0 %5545, %v3906
      %v5547 = vpop.permute.xlu0 %5546
      %5550 = vset.pattern.permute.xlu0 0
      %5551 = vperm.xlu0 %5550, %v3907
      %v5552 = vpop.permute.xlu0 %5551
      %5555 = vset.pattern.permute.xlu0 0
      %5556 = vperm.xlu0 %5555, %v3908
      %v5557 = vpop.permute.xlu0 %5556
      %5560 = vset.pattern.permute.xlu0 0
      %5561 = vperm.xlu0 %5560, %v3909
      %v5562 = vpop.permute.xlu0 %5561
      %5565 = vset.pattern.permute.xlu0 0
      %5566 = vperm.xlu0 %5565, %v3910
      %v5567 = vpop.permute.xlu0 %5566
      %5570 = vset.pattern.permute.xlu0 0
      %5571 = vperm.xlu0 %5570, %v3911
      %v5572 = vpop.permute.xlu0 %5571
      %5575 = vset.pattern.permute.xlu0 0
      %5576 = vperm.xlu0 %5575, %v3912
      %v5577 = vpop.permute.xlu0 %5576
      %5580 = vset.pattern.permute.xlu0 0
      %5581 = vperm.xlu0 %5580, %v3913
      %v5582 = vpop.permute.xlu0 %5581
      %5585 = vset.pattern.permute.xlu0 0
      %5586 = vperm.xlu0 %5585, %v3914
      %v5587 = vpop.permute.xlu0 %5586
      %5590 = vset.pattern.permute.xlu0 0
      %5591 = vperm.xlu0 %5590, %v3915
      %v5592 = vpop.permute.xlu0 %5591
      %5595 = vset.pattern.permute.xlu0 0
      %5596 = vperm.xlu0 %5595, %v3916
      %v5597 = vpop.permute.xlu0 %5596
      %5600 = vset.pattern.permute.xlu0 0
      %5601 = vperm.xlu0 %5600, %v3917
      %v5602 = vpop.permute.xlu0 %5601
      %5605 = vset.pattern.permute.xlu0 0
      %5606 = vperm.xlu0 %5605, %v3918
      %v5607 = vpop.permute.xlu0 %5606
      %5610 = vset.pattern.permute.xlu0 0
      %5611 = vperm.xlu0 %5610, %v3919
      %v5612 = vpop.permute.xlu0 %5611
      %5615 = vset.pattern.permute.xlu0 0
      %5616 = vperm.xlu0 %5615, %v3920
      %v5617 = vpop.permute.xlu0 %5616
      %5620 = vset.pattern.permute.xlu0 0
      %5621 = vperm.xlu0 %5620, %v3921
      %v5622 = vpop.permute.xlu0 %5621
      %5625 = vset.pattern.permute.xlu0 0
      %5626 = vperm.xlu0 %5625, %v3922
      %v5627 = vpop.permute.xlu0 %5626
      %5630 = vset.pattern.permute.xlu0 0
      %5631 = vperm.xlu0 %5630, %v3923
      %v5632 = vpop.permute.xlu0 %5631
      %5635 = vset.pattern.permute.xlu0 0
      %5636 = vperm.xlu0 %5635, %v3924
      %v5637 = vpop.permute.xlu0 %5636
      %5640 = vset.pattern.permute.xlu0 0
      %5641 = vperm.xlu0 %5640, %v3925
      %v5642 = vpop.permute.xlu0 %5641
      %5645 = vset.pattern.permute.xlu0 0
      %5646 = vperm.xlu0 %5645, %v3926
      %v5647 = vpop.permute.xlu0 %5646
      %5650 = vset.pattern.permute.xlu0 0
      %5651 = vperm.xlu0 %5650, %v3927
      %v5652 = vpop.permute.xlu0 %5651
      %5655 = vset.pattern.permute.xlu0 0
      %5656 = vperm.xlu0 %5655, %v3928
      %v5657 = vpop.permute.xlu0 %5656
      %5660 = vset.pattern.permute.xlu0 0
      %5661 = vperm.xlu0 %5660, %v3929
      %v5662 = vpop.permute.xlu0 %5661
      %5665 = vset.pattern.permute.xlu0 0
      %5666 = vperm.xlu0 %5665, %v3930
      %v5667 = vpop.permute.xlu0 %5666
      %5670 = vset.pattern.permute.xlu0 0
      %5671 = vperm.xlu0 %5670, %v3931
      %v5672 = vpop.permute.xlu0 %5671
      %5675 = vset.pattern.permute.xlu0 0
      %5676 = vperm.xlu0 %5675, %v3932
      %v5677 = vpop.permute.xlu0 %5676
      %5680 = vset.pattern.permute.xlu0 0
      %5681 = vperm.xlu0 %5680, %v3933
      %v5682 = vpop.permute.xlu0 %5681
      %5685 = vset.pattern.permute.xlu0 0
      %5686 = vperm.xlu0 %5685, %v3934
      %v5687 = vpop.permute.xlu0 %5686
      %5690 = vset.pattern.permute.xlu0 0
      %5691 = vperm.xlu0 %5690, %v3935
      %v5692 = vpop.permute.xlu0 %5691
      %5695 = vset.pattern.permute.xlu0 0
      %5696 = vperm.xlu0 %5695, %v3936
      %v5697 = vpop.permute.xlu0 %5696
      %5700 = vset.pattern.permute.xlu0 0
      %5701 = vperm.xlu0 %5700, %v3937
      %v5702 = vpop.permute.xlu0 %5701
      %5705 = vset.pattern.permute.xlu0 0
      %5706 = vperm.xlu0 %5705, %v3938
      %v5707 = vpop.permute.xlu0 %5706
      %5710 = vset.pattern.permute.xlu0 0
      %5711 = vperm.xlu0 %5710, %v3939
      %v5712 = vpop.permute.xlu0 %5711
      %5715 = vset.pattern.permute.xlu0 0
      %5716 = vperm.xlu0 %5715, %v3940
      %v5717 = vpop.permute.xlu0 %5716
      %5720 = vset.pattern.permute.xlu0 0
      %5721 = vperm.xlu0 %5720, %v3941
      %v5722 = vpop.permute.xlu0 %5721
      %5725 = vset.pattern.permute.xlu0 0
      %5726 = vperm.xlu0 %5725, %v3942
      %v5727 = vpop.permute.xlu0 %5726
      %5730 = vset.pattern.permute.xlu0 0
      %5731 = vperm.xlu0 %5730, %v3943
      %v5732 = vpop.permute.xlu0 %5731
      %5735 = vset.pattern.permute.xlu0 0
      %5736 = vperm.xlu0 %5735, %v3944
      %v5737 = vpop.permute.xlu0 %5736
      %5740 = vset.pattern.permute.xlu0 0
      %5741 = vperm.xlu0 %5740, %v3945
      %v5742 = vpop.permute.xlu0 %5741
      %5745 = vset.pattern.permute.xlu0 0
      %5746 = vperm.xlu0 %5745, %v3946
      %v5747 = vpop.permute.xlu0 %5746
      %5750 = vset.pattern.permute.xlu0 0
      %5751 = vperm.xlu0 %5750, %v3947
      %v5752 = vpop.permute.xlu0 %5751
      %5755 = vset.pattern.permute.xlu0 0
      %5756 = vperm.xlu0 %5755, %v3948
      %v5757 = vpop.permute.xlu0 %5756
      %5760 = vset.pattern.permute.xlu0 0
      %5761 = vperm.xlu0 %5760, %v3949
      %v5762 = vpop.permute.xlu0 %5761
      %5765 = vset.pattern.permute.xlu0 0
      %5766 = vperm.xlu0 %5765, %v3950
      %v5767 = vpop.permute.xlu0 %5766
      %5770 = vset.pattern.permute.xlu0 0
      %5771 = vperm.xlu0 %5770, %v3951
      %v5772 = vpop.permute.xlu0 %5771
      %5775 = vset.pattern.permute.xlu0 0
      %5776 = vperm.xlu0 %5775, %v3952
      %v5777 = vpop.permute.xlu0 %5776
      %5780 = vset.pattern.permute.xlu0 0
      %5781 = vperm.xlu0 %5780, %v3953
      %v5782 = vpop.permute.xlu0 %5781
      %5785 = vset.pattern.permute.xlu0 0
      %5786 = vperm.xlu0 %5785, %v3954
      %v5787 = vpop.permute.xlu0 %5786
      %5790 = vset.pattern.permute.xlu0 0
      %5791 = vperm.xlu0 %5790, %v3955
      %v5792 = vpop.permute.xlu0 %5791
      %5795 = vset.pattern.permute.xlu0 0
      %5796 = vperm.xlu0 %5795, %v3956
      %v5797 = vpop.permute.xlu0 %5796
      %5800 = vset.pattern.permute.xlu0 0
      %5801 = vperm.xlu0 %5800, %v3957
      %v5802 = vpop.permute.xlu0 %5801
      %5805 = vset.pattern.permute.xlu0 0
      %5806 = vperm.xlu0 %5805, %v3958
      %v5807 = vpop.permute.xlu0 %5806
      %5810 = vset.pattern.permute.xlu0 0
      %5811 = vperm.xlu0 %5810, %v3959
      %v5812 = vpop.permute.xlu0 %5811
      %5815 = vset.pattern.permute.xlu0 0
      %5816 = vperm.xlu0 %5815, %v3960
      %v5817 = vpop.permute.xlu0 %5816
      %5820 = vset.pattern.permute.xlu0 0
      %5821 = vperm.xlu0 %5820, %v3961
      %v5822 = vpop.permute.xlu0 %5821
      %5825 = vset.pattern.permute.xlu0 0
      %5826 = vperm.xlu0 %5825, %v3962
      %v5827 = vpop.permute.xlu0 %5826
      %5830 = vset.pattern.permute.xlu0 0
      %5831 = vperm.xlu0 %5830, %v3963
      %v5832 = vpop.permute.xlu0 %5831
      %5835 = vset.pattern.permute.xlu0 0
      %5836 = vperm.xlu0 %5835, %v3964
      %v5837 = vpop.permute.xlu0 %5836
      %5840 = vset.pattern.permute.xlu0 0
      %5841 = vperm.xlu0 %5840, %v3965
      %v5842 = vpop.permute.xlu0 %5841
      %5845 = vset.pattern.permute.xlu0 0
      %5846 = vperm.xlu0 %5845, %v3966
      %v5847 = vpop.permute.xlu0 %5846
      %5850 = vset.pattern.permute.xlu0 0
      %5851 = vperm.xlu0 %5850, %v3967
      %v5852 = vpop.permute.xlu0 %5851
      %5855 = vset.pattern.permute.xlu0 0
      %5856 = vperm.xlu0 %5855, %v3968
      %v5857 = vpop.permute.xlu0 %5856
      %5860 = vset.pattern.permute.xlu0 0
      %5861 = vperm.xlu0 %5860, %v3969
      %v5862 = vpop.permute.xlu0 %5861
      %5865 = vset.pattern.permute.xlu0 0
      %5866 = vperm.xlu0 %5865, %v3970
      %v5867 = vpop.permute.xlu0 %5866
      %5870 = vset.pattern.permute.xlu0 0
      %5871 = vperm.xlu0 %5870, %v3971
      %v5872 = vpop.permute.xlu0 %5871
      %5875 = vset.pattern.permute.xlu0 0
      %5876 = vperm.xlu0 %5875, %v3972
      %v5877 = vpop.permute.xlu0 %5876
      %5880 = vset.pattern.permute.xlu0 0
      %5881 = vperm.xlu0 %5880, %v3973
      %v5882 = vpop.permute.xlu0 %5881
      %5885 = vset.pattern.permute.xlu0 0
      %5886 = vperm.xlu0 %5885, %v3974
      %v5887 = vpop.permute.xlu0 %5886
      %5890 = vset.pattern.permute.xlu0 0
      %5891 = vperm.xlu0 %5890, %v3975
      %v5892 = vpop.permute.xlu0 %5891
      %5895 = vset.pattern.permute.xlu0 0
      %5896 = vperm.xlu0 %5895, %v3976
      %v5897 = vpop.permute.xlu0 %5896
      %5900 = vset.pattern.permute.xlu0 0
      %5901 = vperm.xlu0 %5900, %v3977
      %v5902 = vpop.permute.xlu0 %5901
      %5905 = vset.pattern.permute.xlu0 0
      %5906 = vperm.xlu0 %5905, %v3978
      %v5907 = vpop.permute.xlu0 %5906
      %5910 = vset.pattern.permute.xlu0 0
      %5911 = vperm.xlu0 %5910, %v3979
      %v5912 = vpop.permute.xlu0 %5911
      %5915 = vset.pattern.permute.xlu0 0
      %5916 = vperm.xlu0 %5915, %v3980
      %v5917 = vpop.permute.xlu0 %5916
      %5920 = vset.pattern.permute.xlu0 0
      %5921 = vperm.xlu0 %5920, %v3981
      %v5922 = vpop.permute.xlu0 %5921
      %5925 = vset.pattern.permute.xlu0 0
      %5926 = vperm.xlu0 %5925, %v3982
      %v5927 = vpop.permute.xlu0 %5926
      %5930 = vset.pattern.permute.xlu0 0
      %5931 = vperm.xlu0 %5930, %v3983
      %v5932 = vpop.permute.xlu0 %5931
      %5935 = vset.pattern.permute.xlu0 0
      %5936 = vperm.xlu0 %5935, %v3984
      %v5937 = vpop.permute.xlu0 %5936
      %5940 = vset.pattern.permute.xlu0 0
      %5941 = vperm.xlu0 %5940, %v3985
      %v5942 = vpop.permute.xlu0 %5941
      %5945 = vset.pattern.permute.xlu0 0
      %5946 = vperm.xlu0 %5945, %v3986
      %v5947 = vpop.permute.xlu0 %5946
      %5950 = vset.pattern.permute.xlu0 0
      %5951 = vperm.xlu0 %5950, %v3987
      %v5952 = vpop.permute.xlu0 %5951
      %5955 = vset.pattern.permute.xlu0 0
      %5956 = vperm.xlu0 %5955, %v3988
      %v5957 = vpop.permute.xlu0 %5956
      %5960 = vset.pattern.permute.xlu0 0
      %5961 = vperm.xlu0 %5960, %v3989
      %v5962 = vpop.permute.xlu0 %5961
      %5965 = vset.pattern.permute.xlu0 0
      %5966 = vperm.xlu0 %5965, %v3990
      %v5967 = vpop.permute.xlu0 %5966
      %5970 = vset.pattern.permute.xlu0 0
      %5971 = vperm.xlu0 %5970, %v3991
      %v5972 = vpop.permute.xlu0 %5971
      %5975 = vset.pattern.permute.xlu0 0
      %5976 = vperm.xlu0 %5975, %v3992
      %v5977 = vpop.permute.xlu0 %5976
      %5980 = vset.pattern.permute.xlu0 0
      %5981 = vperm.xlu0 %5980, %v3993
      %v5982 = vpop.permute.xlu0 %5981
      %5985 = vset.pattern.permute.xlu0 0
      %5986 = vperm.xlu0 %5985, %v3994
      %v5987 = vpop.permute.xlu0 %5986
      %5990 = vset.pattern.permute.xlu0 0
      %5991 = vperm.xlu0 %5990, %v3995
      %v5992 = vpop.permute.xlu0 %5991
      %5995 = vset.pattern.permute.xlu0 0
      %5996 = vperm.xlu0 %5995, %v3996
      %v5997 = vpop.permute.xlu0 %5996
      %v5999 = vmul.f32 %v174, %v5092
      %v6000 = vmul.f32 %v175, %v5092
      %v6001 = vmul.f32 %v176, %v5097
      %v6002 = vmul.f32 %v177, %v5097
      %v6003 = vmul.f32 %v178, %v5102
      %v6004 = vmul.f32 %v179, %v5102
      %v6005 = vmul.f32 %v180, %v5107
      %v6006 = vmul.f32 %v181, %v5107
      %v6007 = vmul.f32 %v182, %v5112
      %v6008 = vmul.f32 %v183, %v5112
      %v6009 = vmul.f32 %v184, %v5117
      %v6010 = vmul.f32 %v185, %v5117
      %v6011 = vmul.f32 %v186, %v5122
      %v6012 = vmul.f32 %v187, %v5122
      %v6013 = vmul.f32 %v188, %v5127
      %v6014 = vmul.f32 %v189, %v5127
      %v6015 = vmul.f32 %v190, %v5132
      %v6016 = vmul.f32 %v191, %v5132
      %v6017 = vmul.f32 %v192, %v5137
      %v6018 = vmul.f32 %v193, %v5137
      %v6019 = vmul.f32 %v194, %v5142
      %v6020 = vmul.f32 %v195, %v5142
      %v6021 = vmul.f32 %v196, %v5147
      %v6022 = vmul.f32 %v197, %v5147
      %v6023 = vmul.f32 %v198, %v5152
      %v6024 = vmul.f32 %v199, %v5152
      %v6025 = vmul.f32 %v200, %v5157
      %v6026 = vmul.f32 %v201, %v5157
      %v6027 = vmul.f32 %v202, %v5162
      %v6028 = vmul.f32 %v203, %v5162
      %v6029 = vmul.f32 %v204, %v5167
      %v6030 = vmul.f32 %v205, %v5167
      %v6031 = vmul.f32 %v206, %v5172
      %v6032 = vmul.f32 %v207, %v5172
      %v6033 = vmul.f32 %v208, %v5177
      %v6034 = vmul.f32 %v209, %v5177
      %v6035 = vmul.f32 %v210, %v5182
      %v6036 = vmul.f32 %v211, %v5182
      %v6037 = vmul.f32 %v212, %v5187
      %v6038 = vmul.f32 %v213, %v5187
      %v6039 = vmul.f32 %v214, %v5192
      %v6040 = vmul.f32 %v215, %v5192
      %v6041 = vmul.f32 %v216, %v5197
      %v6042 = vmul.f32 %v217, %v5197
      %v6043 = vmul.f32 %v218, %v5202
      %v6044 = vmul.f32 %v219, %v5202
      %v6045 = vmul.f32 %v220, %v5207
      %v6046 = vmul.f32 %v221, %v5207
      %v6047 = vmul.f32 %v222, %v5212
      %v6048 = vmul.f32 %v223, %v5212
      %v6049 = vmul.f32 %v224, %v5217
      %v6050 = vmul.f32 %v225, %v5217
      %v6051 = vmul.f32 %v226, %v5222
      %v6052 = vmul.f32 %v227, %v5222
      %v6053 = vmul.f32 %v228, %v5227
      %v6054 = vmul.f32 %v229, %v5227
      %v6055 = vmul.f32 %v230, %v5232
      %v6056 = vmul.f32 %v231, %v5232
      %v6057 = vmul.f32 %v232, %v5237
      %v6058 = vmul.f32 %v233, %v5237
      %v6059 = vmul.f32 %v234, %v5242
      %v6060 = vmul.f32 %v235, %v5242
      %v6061 = vmul.f32 %v236, %v5247
      %v6062 = vmul.f32 %v237, %v5247
      %v6063 = vmul.f32 %v238, %v5252
      %v6064 = vmul.f32 %v239, %v5252
      %v6065 = vmul.f32 %v240, %v5257
      %v6066 = vmul.f32 %v241, %v5257
      %v6067 = vmul.f32 %v242, %v5262
      %v6068 = vmul.f32 %v243, %v5262
      %v6069 = vmul.f32 %v244, %v5267
      %v6070 = vmul.f32 %v245, %v5267
      %v6071 = vmul.f32 %v246, %v5272
      %v6072 = vmul.f32 %v247, %v5272
      %v6073 = vmul.f32 %v248, %v5277
      %v6074 = vmul.f32 %v249, %v5277
      %v6075 = vmul.f32 %v250, %v5282
      %v6076 = vmul.f32 %v251, %v5282
      %v6077 = vmul.f32 %v252, %v5287
      %v6078 = vmul.f32 %v253, %v5287
      %v6079 = vmul.f32 %v254, %v5292
      %v6080 = vmul.f32 %v255, %v5292
      %v6081 = vmul.f32 %v256, %v5297
      %v6082 = vmul.f32 %v257, %v5297
      %v6083 = vmul.f32 %v258, %v5302
      %v6084 = vmul.f32 %v259, %v5302
      %v6085 = vmul.f32 %v260, %v5307
      %v6086 = vmul.f32 %v261, %v5307
      %v6087 = vmul.f32 %v262, %v5312
      %v6088 = vmul.f32 %v263, %v5312
      %v6089 = vmul.f32 %v264, %v5317
      %v6090 = vmul.f32 %v265, %v5317
      %v6091 = vmul.f32 %v266, %v5322
      %v6092 = vmul.f32 %v267, %v5322
      %v6093 = vmul.f32 %v268, %v5327
      %v6094 = vmul.f32 %v269, %v5327
      %v6095 = vmul.f32 %v270, %v5332
      %v6096 = vmul.f32 %v271, %v5332
      %v6097 = vmul.f32 %v272, %v5337
      %v6098 = vmul.f32 %v273, %v5337
      %v6099 = vmul.f32 %v274, %v5342
      %v6100 = vmul.f32 %v275, %v5342
      %v6101 = vmul.f32 %v276, %v5347
      %v6102 = vmul.f32 %v277, %v5347
      %v6103 = vmul.f32 %v278, %v5352
      %v6104 = vmul.f32 %v279, %v5352
      %v6105 = vmul.f32 %v280, %v5357
      %v6106 = vmul.f32 %v281, %v5357
      %v6107 = vmul.f32 %v282, %v5362
      %v6108 = vmul.f32 %v283, %v5362
      %v6109 = vmul.f32 %v284, %v5367
      %v6110 = vmul.f32 %v285, %v5367
      %v6111 = vmul.f32 %v286, %v5372
      %v6112 = vmul.f32 %v287, %v5372
      %v6113 = vmul.f32 %v288, %v5377
      %v6114 = vmul.f32 %v289, %v5377
      %v6115 = vmul.f32 %v290, %v5382
      %v6116 = vmul.f32 %v291, %v5382
      %v6117 = vmul.f32 %v292, %v5387
      %v6118 = vmul.f32 %v293, %v5387
      %v6119 = vmul.f32 %v294, %v5392
      %v6120 = vmul.f32 %v295, %v5392
      %v6121 = vmul.f32 %v296, %v5397
      %v6122 = vmul.f32 %v297, %v5397
      %v6123 = vmul.f32 %v298, %v5402
      %v6124 = vmul.f32 %v299, %v5402
      %v6125 = vmul.f32 %v300, %v5407
      %v6126 = vmul.f32 %v301, %v5407
      %v6127 = vmul.f32 %v302, %v5412
      %v6128 = vmul.f32 %v303, %v5412
      %v6129 = vmul.f32 %v304, %v5417
      %v6130 = vmul.f32 %v305, %v5417
      %v6131 = vmul.f32 %v306, %v5422
      %v6132 = vmul.f32 %v307, %v5422
      %v6133 = vmul.f32 %v308, %v5427
      %v6134 = vmul.f32 %v309, %v5427
      %v6135 = vmul.f32 %v310, %v5432
      %v6136 = vmul.f32 %v311, %v5432
      %v6137 = vmul.f32 %v312, %v5437
      %v6138 = vmul.f32 %v313, %v5437
      %v6139 = vmul.f32 %v314, %v5442
      %v6140 = vmul.f32 %v315, %v5442
      %v6141 = vmul.f32 %v316, %v5447
      %v6142 = vmul.f32 %v317, %v5447
      %v6143 = vmul.f32 %v318, %v5452
      %v6144 = vmul.f32 %v319, %v5452
      %v6145 = vmul.f32 %v320, %v5457
      %v6146 = vmul.f32 %v321, %v5457
      %v6147 = vmul.f32 %v322, %v5462
      %v6148 = vmul.f32 %v323, %v5462
      %v6149 = vmul.f32 %v324, %v5467
      %v6150 = vmul.f32 %v325, %v5467
      %v6151 = vmul.f32 %v326, %v5472
      %v6152 = vmul.f32 %v327, %v5472
      %v6153 = vmul.f32 %v328, %v5477
      %v6154 = vmul.f32 %v329, %v5477
      %v6155 = vmul.f32 %v330, %v5482
      %v6156 = vmul.f32 %v331, %v5482
      %v6157 = vmul.f32 %v332, %v5487
      %v6158 = vmul.f32 %v333, %v5487
      %v6159 = vmul.f32 %v334, %v5492
      %v6160 = vmul.f32 %v335, %v5492
      %v6161 = vmul.f32 %v336, %v5497
      %v6162 = vmul.f32 %v337, %v5497
      %v6163 = vmul.f32 %v338, %v5502
      %v6164 = vmul.f32 %v339, %v5502
      %v6165 = vmul.f32 %v340, %v5507
      %v6166 = vmul.f32 %v341, %v5507
      %v6167 = vmul.f32 %v342, %v5512
      %v6168 = vmul.f32 %v343, %v5512
      %v6169 = vmul.f32 %v344, %v5517
      %v6170 = vmul.f32 %v345, %v5517
      %v6171 = vmul.f32 %v346, %v5522
      %v6172 = vmul.f32 %v347, %v5522
      %v6173 = vmul.f32 %v348, %v5527
      %v6174 = vmul.f32 %v349, %v5527
      %v6175 = vmul.f32 %v350, %v5532
      %v6176 = vmul.f32 %v351, %v5532
      %v6177 = vmul.f32 %v352, %v5537
      %v6178 = vmul.f32 %v353, %v5537
      %v6179 = vmul.f32 %v354, %v5542
      %v6180 = vmul.f32 %v355, %v5542
      %v6181 = vmul.f32 %v356, %v5547
      %v6182 = vmul.f32 %v357, %v5547
      %v6183 = vmul.f32 %v358, %v5552
      %v6184 = vmul.f32 %v359, %v5552
      %v6185 = vmul.f32 %v360, %v5557
      %v6186 = vmul.f32 %v361, %v5557
      %v6187 = vmul.f32 %v362, %v5562
      %v6188 = vmul.f32 %v363, %v5562
      %v6189 = vmul.f32 %v364, %v5567
      %v6190 = vmul.f32 %v365, %v5567
      %v6191 = vmul.f32 %v366, %v5572
      %v6192 = vmul.f32 %v367, %v5572
      %v6193 = vmul.f32 %v368, %v5577
      %v6194 = vmul.f32 %v369, %v5577
      %v6195 = vmul.f32 %v370, %v5582
      %v6196 = vmul.f32 %v371, %v5582
      %v6197 = vmul.f32 %v372, %v5587
      %v6198 = vmul.f32 %v373, %v5587
      %v6199 = vmul.f32 %v374, %v5592
      %v6200 = vmul.f32 %v375, %v5592
      %v6201 = vmul.f32 %v376, %v5597
      %v6202 = vmul.f32 %v377, %v5597
      %v6203 = vmul.f32 %v378, %v5602
      %v6204 = vmul.f32 %v379, %v5602
      %v6205 = vmul.f32 %v380, %v5607
      %v6206 = vmul.f32 %v381, %v5607
      %v6207 = vmul.f32 %v382, %v5612
      %v6208 = vmul.f32 %v383, %v5612
      %v6209 = vmul.f32 %v384, %v5617
      %v6210 = vmul.f32 %v385, %v5617
      %v6211 = vmul.f32 %v386, %v5622
      %v6212 = vmul.f32 %v387, %v5622
      %v6213 = vmul.f32 %v388, %v5627
      %v6214 = vmul.f32 %v389, %v5627
      %v6215 = vmul.f32 %v390, %v5632
      %v6216 = vmul.f32 %v391, %v5632
      %v6217 = vmul.f32 %v392, %v5637
      %v6218 = vmul.f32 %v393, %v5637
      %v6219 = vmul.f32 %v394, %v5642
      %v6220 = vmul.f32 %v395, %v5642
      %v6221 = vmul.f32 %v396, %v5647
      %v6222 = vmul.f32 %v397, %v5647
      %v6223 = vmul.f32 %v398, %v5652
      %v6224 = vmul.f32 %v399, %v5652
      %v6225 = vmul.f32 %v400, %v5657
      %v6226 = vmul.f32 %v401, %v5657
      %v6227 = vmul.f32 %v402, %v5662
      %v6228 = vmul.f32 %v403, %v5662
      %v6229 = vmul.f32 %v404, %v5667
      %v6230 = vmul.f32 %v405, %v5667
      %v6231 = vmul.f32 %v406, %v5672
      %v6232 = vmul.f32 %v407, %v5672
      %v6233 = vmul.f32 %v408, %v5677
      %v6234 = vmul.f32 %v409, %v5677
      %v6235 = vmul.f32 %v410, %v5682
      %v6236 = vmul.f32 %v411, %v5682
      %v6237 = vmul.f32 %v412, %v5687
      %v6238 = vmul.f32 %v413, %v5687
      %v6239 = vmul.f32 %v414, %v5692
      %v6240 = vmul.f32 %v415, %v5692
      %v6241 = vmul.f32 %v416, %v5697
      %v6242 = vmul.f32 %v417, %v5697
      %v6243 = vmul.f32 %v418, %v5702
      %v6244 = vmul.f32 %v419, %v5702
      %v6245 = vmul.f32 %v420, %v5707
      %v6246 = vmul.f32 %v421, %v5707
      %v6247 = vmul.f32 %v422, %v5712
      %v6248 = vmul.f32 %v423, %v5712
      %v6249 = vmul.f32 %v424, %v5717
      %v6250 = vmul.f32 %v425, %v5717
      %v6251 = vmul.f32 %v426, %v5722
      %v6252 = vmul.f32 %v427, %v5722
      %v6253 = vmul.f32 %v428, %v5727
      %v6254 = vmul.f32 %v429, %v5727
      %v6255 = vmul.f32 %v430, %v5732
      %v6256 = vmul.f32 %v431, %v5732
      %v6257 = vmul.f32 %v432, %v5737
      %v6258 = vmul.f32 %v433, %v5737
      %v6259 = vmul.f32 %v434, %v5742
      %v6260 = vmul.f32 %v435, %v5742
      %v6261 = vmul.f32 %v436, %v5747
      %v6262 = vmul.f32 %v437, %v5747
      %v6263 = vmul.f32 %v438, %v5752
      %v6264 = vmul.f32 %v439, %v5752
      %v6265 = vmul.f32 %v440, %v5757
      %v6266 = vmul.f32 %v441, %v5757
      %v6267 = vmul.f32 %v442, %v5762
      %v6268 = vmul.f32 %v443, %v5762
      %v6269 = vmul.f32 %v444, %v5767
      %v6270 = vmul.f32 %v445, %v5767
      %v6271 = vmul.f32 %v446, %v5772
      %v6272 = vmul.f32 %v447, %v5772
      %v6273 = vmul.f32 %v448, %v5777
      %v6274 = vmul.f32 %v449, %v5777
      %v6275 = vmul.f32 %v450, %v5782
      %v6276 = vmul.f32 %v451, %v5782
      %v6277 = vmul.f32 %v452, %v5787
      %v6278 = vmul.f32 %v453, %v5787
      %v6279 = vmul.f32 %v454, %v5792
      %v6280 = vmul.f32 %v455, %v5792
      %v6281 = vmul.f32 %v456, %v5797
      %v6282 = vmul.f32 %v457, %v5797
      %v6283 = vmul.f32 %v458, %v5802
      %v6284 = vmul.f32 %v459, %v5802
      %v6285 = vmul.f32 %v460, %v5807
      %v6286 = vmul.f32 %v461, %v5807
      %v6287 = vmul.f32 %v462, %v5812
      %v6288 = vmul.f32 %v463, %v5812
      %v6289 = vmul.f32 %v464, %v5817
      %v6290 = vmul.f32 %v465, %v5817
      %v6291 = vmul.f32 %v466, %v5822
      %v6292 = vmul.f32 %v467, %v5822
      %v6293 = vmul.f32 %v468, %v5827
      %v6294 = vmul.f32 %v469, %v5827
      %v6295 = vmul.f32 %v470, %v5832
      %v6296 = vmul.f32 %v471, %v5832
      %v6297 = vmul.f32 %v472, %v5837
      %v6298 = vmul.f32 %v473, %v5837
      %v6299 = vmul.f32 %v474, %v5842
      %v6300 = vmul.f32 %v475, %v5842
      %v6301 = vmul.f32 %v476, %v5847
      %v6302 = vmul.f32 %v477, %v5847
      %v6303 = vmul.f32 %v478, %v5852
      %v6304 = vmul.f32 %v479, %v5852
      %v6305 = vmul.f32 %v480, %v5857
      %v6306 = vmul.f32 %v481, %v5857
      %v6307 = vmul.f32 %v482, %v5862
      %v6308 = vmul.f32 %v483, %v5862
      %v6309 = vmul.f32 %v484, %v5867
      %v6310 = vmul.f32 %v485, %v5867
      %v6311 = vmul.f32 %v486, %v5872
      %v6312 = vmul.f32 %v487, %v5872
      %v6313 = vmul.f32 %v488, %v5877
      %v6314 = vmul.f32 %v489, %v5877
      %v6315 = vmul.f32 %v490, %v5882
      %v6316 = vmul.f32 %v491, %v5882
      %v6317 = vmul.f32 %v492, %v5887
      %v6318 = vmul.f32 %v493, %v5887
      %v6319 = vmul.f32 %v494, %v5892
      %v6320 = vmul.f32 %v495, %v5892
      %v6321 = vmul.f32 %v496, %v5897
      %v6322 = vmul.f32 %v497, %v5897
      %v6323 = vmul.f32 %v498, %v5902
      %v6324 = vmul.f32 %v499, %v5902
      %v6325 = vmul.f32 %v500, %v5907
      %v6326 = vmul.f32 %v501, %v5907
      %v6327 = vmul.f32 %v502, %v5912
      %v6328 = vmul.f32 %v503, %v5912
      %v6329 = vmul.f32 %v504, %v5917
      %v6330 = vmul.f32 %v505, %v5917
      %v6331 = vmul.f32 %v506, %v5922
      %v6332 = vmul.f32 %v507, %v5922
      %v6333 = vmul.f32 %v508, %v5927
      %v6334 = vmul.f32 %v509, %v5927
      %v6335 = vmul.f32 %v510, %v5932
      %v6336 = vmul.f32 %v511, %v5932
      %v6337 = vmul.f32 %v512, %v5937
      %v6338 = vmul.f32 %v513, %v5937
      %v6339 = vmul.f32 %v514, %v5942
      %v6340 = vmul.f32 %v515, %v5942
      %v6341 = vmul.f32 %v516, %v5947
      %v6342 = vmul.f32 %v517, %v5947
      %v6343 = vmul.f32 %v518, %v5952
      %v6344 = vmul.f32 %v519, %v5952
      %v6345 = vmul.f32 %v520, %v5957
      %v6346 = vmul.f32 %v521, %v5957
      %v6347 = vmul.f32 %v522, %v5962
      %v6348 = vmul.f32 %v523, %v5962
      %v6349 = vmul.f32 %v524, %v5967
      %v6350 = vmul.f32 %v525, %v5967
      %v6351 = vmul.f32 %v526, %v5972
      %v6352 = vmul.f32 %v527, %v5972
      %v6353 = vmul.f32 %v528, %v5977
      %v6354 = vmul.f32 %v529, %v5977
      %v6355 = vmul.f32 %v530, %v5982
      %v6356 = vmul.f32 %v531, %v5982
      %v6357 = vmul.f32 %v532, %v5987
      %v6358 = vmul.f32 %v533, %v5987
      %v6359 = vmul.f32 %v534, %v5992
      %v6360 = vmul.f32 %v535, %v5992
      %v6361 = vmul.f32 %v536, %v5997
      %v6362 = vmul.f32 %v537, %v5997
      %6364 = vset.pattern.permute.xlu0 1
      %6365 = vperm.xlu0 %6364, %v4907
      %v6366 = vpop.permute.xlu0 %6365
      %6369 = vset.pattern.permute.xlu0 1
      %6370 = vperm.xlu0 %6369, %v4908
      %v6371 = vpop.permute.xlu0 %6370
      %6374 = vset.pattern.permute.xlu0 1
      %6375 = vperm.xlu0 %6374, %v4909
      %v6376 = vpop.permute.xlu0 %6375
      %6379 = vset.pattern.permute.xlu0 1
      %6380 = vperm.xlu0 %6379, %v4910
      %v6381 = vpop.permute.xlu0 %6380
      %6384 = vset.pattern.permute.xlu0 1
      %6385 = vperm.xlu0 %6384, %v4911
      %v6386 = vpop.permute.xlu0 %6385
      %6389 = vset.pattern.permute.xlu0 1
      %6390 = vperm.xlu0 %6389, %v4912
      %v6391 = vpop.permute.xlu0 %6390
      %6394 = vset.pattern.permute.xlu0 1
      %6395 = vperm.xlu0 %6394, %v4913
      %v6396 = vpop.permute.xlu0 %6395
      %6399 = vset.pattern.permute.xlu0 1
      %6400 = vperm.xlu0 %6399, %v4914
      %v6401 = vpop.permute.xlu0 %6400
      %6404 = vset.pattern.permute.xlu0 1
      %6405 = vperm.xlu0 %6404, %v4915
      %v6406 = vpop.permute.xlu0 %6405
      %6409 = vset.pattern.permute.xlu0 1
      %6410 = vperm.xlu0 %6409, %v4916
      %v6411 = vpop.permute.xlu0 %6410
      %6414 = vset.pattern.permute.xlu0 1
      %6415 = vperm.xlu0 %6414, %v4917
      %v6416 = vpop.permute.xlu0 %6415
      %6419 = vset.pattern.permute.xlu0 1
      %6420 = vperm.xlu0 %6419, %v4918
      %v6421 = vpop.permute.xlu0 %6420
      %6424 = vset.pattern.permute.xlu0 1
      %6425 = vperm.xlu0 %6424, %v4919
      %v6426 = vpop.permute.xlu0 %6425
      %6429 = vset.pattern.permute.xlu0 1
      %6430 = vperm.xlu0 %6429, %v4920
      %v6431 = vpop.permute.xlu0 %6430
      %6434 = vset.pattern.permute.xlu0 1
      %6435 = vperm.xlu0 %6434, %v4921
      %v6436 = vpop.permute.xlu0 %6435
      %6439 = vset.pattern.permute.xlu0 1
      %6440 = vperm.xlu0 %6439, %v4922
      %v6441 = vpop.permute.xlu0 %6440
      %6444 = vset.pattern.permute.xlu0 1
      %6445 = vperm.xlu0 %6444, %v4923
      %v6446 = vpop.permute.xlu0 %6445
      %6449 = vset.pattern.permute.xlu0 1
      %6450 = vperm.xlu0 %6449, %v4924
      %v6451 = vpop.permute.xlu0 %6450
      %6454 = vset.pattern.permute.xlu0 1
      %6455 = vperm.xlu0 %6454, %v4925
      %v6456 = vpop.permute.xlu0 %6455
      %6459 = vset.pattern.permute.xlu0 1
      %6460 = vperm.xlu0 %6459, %v4926
      %v6461 = vpop.permute.xlu0 %6460
      %6464 = vset.pattern.permute.xlu0 1
      %6465 = vperm.xlu0 %6464, %v4927
      %v6466 = vpop.permute.xlu0 %6465
      %6469 = vset.pattern.permute.xlu0 1
      %6470 = vperm.xlu0 %6469, %v4928
      %v6471 = vpop.permute.xlu0 %6470
      %6474 = vset.pattern.permute.xlu0 1
      %6475 = vperm.xlu0 %6474, %v4929
      %v6476 = vpop.permute.xlu0 %6475
      %6479 = vset.pattern.permute.xlu0 1
      %6480 = vperm.xlu0 %6479, %v4930
      %v6481 = vpop.permute.xlu0 %6480
      %6484 = vset.pattern.permute.xlu0 1
      %6485 = vperm.xlu0 %6484, %v4931
      %v6486 = vpop.permute.xlu0 %6485
      %6489 = vset.pattern.permute.xlu0 1
      %6490 = vperm.xlu0 %6489, %v4932
      %v6491 = vpop.permute.xlu0 %6490
      %6494 = vset.pattern.permute.xlu0 1
      %6495 = vperm.xlu0 %6494, %v4933
      %v6496 = vpop.permute.xlu0 %6495
      %6499 = vset.pattern.permute.xlu0 1
      %6500 = vperm.xlu0 %6499, %v4934
      %v6501 = vpop.permute.xlu0 %6500
      %6504 = vset.pattern.permute.xlu0 1
      %6505 = vperm.xlu0 %6504, %v4935
      %v6506 = vpop.permute.xlu0 %6505
      %6509 = vset.pattern.permute.xlu0 1
      %6510 = vperm.xlu0 %6509, %v4936
      %v6511 = vpop.permute.xlu0 %6510
      %6514 = vset.pattern.permute.xlu0 1
      %6515 = vperm.xlu0 %6514, %v4937
      %v6516 = vpop.permute.xlu0 %6515
      %6519 = vset.pattern.permute.xlu0 1
      %6520 = vperm.xlu0 %6519, %v4938
      %v6521 = vpop.permute.xlu0 %6520
      %6524 = vset.pattern.permute.xlu0 1
      %6525 = vperm.xlu0 %6524, %v4939
      %v6526 = vpop.permute.xlu0 %6525
      %6529 = vset.pattern.permute.xlu0 1
      %6530 = vperm.xlu0 %6529, %v4940
      %v6531 = vpop.permute.xlu0 %6530
      %6534 = vset.pattern.permute.xlu0 1
      %6535 = vperm.xlu0 %6534, %v4941
      %v6536 = vpop.permute.xlu0 %6535
      %6539 = vset.pattern.permute.xlu0 1
      %6540 = vperm.xlu0 %6539, %v4942
      %v6541 = vpop.permute.xlu0 %6540
      %6544 = vset.pattern.permute.xlu0 1
      %6545 = vperm.xlu0 %6544, %v4943
      %v6546 = vpop.permute.xlu0 %6545
      %6549 = vset.pattern.permute.xlu0 1
      %6550 = vperm.xlu0 %6549, %v4944
      %v6551 = vpop.permute.xlu0 %6550
      %6554 = vset.pattern.permute.xlu0 1
      %6555 = vperm.xlu0 %6554, %v4945
      %v6556 = vpop.permute.xlu0 %6555
      %6559 = vset.pattern.permute.xlu0 1
      %6560 = vperm.xlu0 %6559, %v4946
      %v6561 = vpop.permute.xlu0 %6560
      %6564 = vset.pattern.permute.xlu0 1
      %6565 = vperm.xlu0 %6564, %v4947
      %v6566 = vpop.permute.xlu0 %6565
      %6569 = vset.pattern.permute.xlu0 1
      %6570 = vperm.xlu0 %6569, %v4948
      %v6571 = vpop.permute.xlu0 %6570
      %6574 = vset.pattern.permute.xlu0 1
      %6575 = vperm.xlu0 %6574, %v4949
      %v6576 = vpop.permute.xlu0 %6575
      %6579 = vset.pattern.permute.xlu0 1
      %6580 = vperm.xlu0 %6579, %v4950
      %v6581 = vpop.permute.xlu0 %6580
      %6584 = vset.pattern.permute.xlu0 1
      %6585 = vperm.xlu0 %6584, %v4951
      %v6586 = vpop.permute.xlu0 %6585
      %6589 = vset.pattern.permute.xlu0 1
      %6590 = vperm.xlu0 %6589, %v4952
      %v6591 = vpop.permute.xlu0 %6590
      %6594 = vset.pattern.permute.xlu0 1
      %6595 = vperm.xlu0 %6594, %v4953
      %v6596 = vpop.permute.xlu0 %6595
      %6599 = vset.pattern.permute.xlu0 1
      %6600 = vperm.xlu0 %6599, %v4954
      %v6601 = vpop.permute.xlu0 %6600
      %6604 = vset.pattern.permute.xlu0 1
      %6605 = vperm.xlu0 %6604, %v4955
      %v6606 = vpop.permute.xlu0 %6605
      %6609 = vset.pattern.permute.xlu0 1
      %6610 = vperm.xlu0 %6609, %v4956
      %v6611 = vpop.permute.xlu0 %6610
      %6614 = vset.pattern.permute.xlu0 1
      %6615 = vperm.xlu0 %6614, %v4957
      %v6616 = vpop.permute.xlu0 %6615
      %6619 = vset.pattern.permute.xlu0 1
      %6620 = vperm.xlu0 %6619, %v4958
      %v6621 = vpop.permute.xlu0 %6620
      %6624 = vset.pattern.permute.xlu0 1
      %6625 = vperm.xlu0 %6624, %v4959
      %v6626 = vpop.permute.xlu0 %6625
      %6629 = vset.pattern.permute.xlu0 1
      %6630 = vperm.xlu0 %6629, %v4960
      %v6631 = vpop.permute.xlu0 %6630
      %6634 = vset.pattern.permute.xlu0 1
      %6635 = vperm.xlu0 %6634, %v4961
      %v6636 = vpop.permute.xlu0 %6635
      %6639 = vset.pattern.permute.xlu0 1
      %6640 = vperm.xlu0 %6639, %v4962
      %v6641 = vpop.permute.xlu0 %6640
      %6644 = vset.pattern.permute.xlu0 1
      %6645 = vperm.xlu0 %6644, %v4963
      %v6646 = vpop.permute.xlu0 %6645
      %6649 = vset.pattern.permute.xlu0 1
      %6650 = vperm.xlu0 %6649, %v4964
      %v6651 = vpop.permute.xlu0 %6650
      %6654 = vset.pattern.permute.xlu0 1
      %6655 = vperm.xlu0 %6654, %v4965
      %v6656 = vpop.permute.xlu0 %6655
      %6659 = vset.pattern.permute.xlu0 1
      %6660 = vperm.xlu0 %6659, %v4966
      %v6661 = vpop.permute.xlu0 %6660
      %6664 = vset.pattern.permute.xlu0 1
      %6665 = vperm.xlu0 %6664, %v4967
      %v6666 = vpop.permute.xlu0 %6665
      %6669 = vset.pattern.permute.xlu0 1
      %6670 = vperm.xlu0 %6669, %v4968
      %v6671 = vpop.permute.xlu0 %6670
      %6674 = vset.pattern.permute.xlu0 1
      %6675 = vperm.xlu0 %6674, %v4969
      %v6676 = vpop.permute.xlu0 %6675
      %6679 = vset.pattern.permute.xlu0 1
      %6680 = vperm.xlu0 %6679, %v4970
      %v6681 = vpop.permute.xlu0 %6680
      %6684 = vset.pattern.permute.xlu0 1
      %6685 = vperm.xlu0 %6684, %v4971
      %v6686 = vpop.permute.xlu0 %6685
      %6689 = vset.pattern.permute.xlu0 1
      %6690 = vperm.xlu0 %6689, %v4972
      %v6691 = vpop.permute.xlu0 %6690
      %6694 = vset.pattern.permute.xlu0 1
      %6695 = vperm.xlu0 %6694, %v4973
      %v6696 = vpop.permute.xlu0 %6695
      %6699 = vset.pattern.permute.xlu0 1
      %6700 = vperm.xlu0 %6699, %v4974
      %v6701 = vpop.permute.xlu0 %6700
      %6704 = vset.pattern.permute.xlu0 1
      %6705 = vperm.xlu0 %6704, %v4975
      %v6706 = vpop.permute.xlu0 %6705
      %6709 = vset.pattern.permute.xlu0 1
      %6710 = vperm.xlu0 %6709, %v4976
      %v6711 = vpop.permute.xlu0 %6710
      %6714 = vset.pattern.permute.xlu0 1
      %6715 = vperm.xlu0 %6714, %v4977
      %v6716 = vpop.permute.xlu0 %6715
      %6719 = vset.pattern.permute.xlu0 1
      %6720 = vperm.xlu0 %6719, %v4978
      %v6721 = vpop.permute.xlu0 %6720
      %6724 = vset.pattern.permute.xlu0 1
      %6725 = vperm.xlu0 %6724, %v4979
      %v6726 = vpop.permute.xlu0 %6725
      %6729 = vset.pattern.permute.xlu0 1
      %6730 = vperm.xlu0 %6729, %v4980
      %v6731 = vpop.permute.xlu0 %6730
      %6734 = vset.pattern.permute.xlu0 1
      %6735 = vperm.xlu0 %6734, %v4981
      %v6736 = vpop.permute.xlu0 %6735
      %6739 = vset.pattern.permute.xlu0 1
      %6740 = vperm.xlu0 %6739, %v4982
      %v6741 = vpop.permute.xlu0 %6740
      %6744 = vset.pattern.permute.xlu0 1
      %6745 = vperm.xlu0 %6744, %v4983
      %v6746 = vpop.permute.xlu0 %6745
      %6749 = vset.pattern.permute.xlu0 1
      %6750 = vperm.xlu0 %6749, %v4984
      %v6751 = vpop.permute.xlu0 %6750
      %6754 = vset.pattern.permute.xlu0 1
      %6755 = vperm.xlu0 %6754, %v4985
      %v6756 = vpop.permute.xlu0 %6755
      %6759 = vset.pattern.permute.xlu0 1
      %6760 = vperm.xlu0 %6759, %v4986
      %v6761 = vpop.permute.xlu0 %6760
      %6764 = vset.pattern.permute.xlu0 1
      %6765 = vperm.xlu0 %6764, %v4987
      %v6766 = vpop.permute.xlu0 %6765
      %6769 = vset.pattern.permute.xlu0 1
      %6770 = vperm.xlu0 %6769, %v4988
      %v6771 = vpop.permute.xlu0 %6770
      %6774 = vset.pattern.permute.xlu0 1
      %6775 = vperm.xlu0 %6774, %v4989
      %v6776 = vpop.permute.xlu0 %6775
      %6779 = vset.pattern.permute.xlu0 1
      %6780 = vperm.xlu0 %6779, %v4990
      %v6781 = vpop.permute.xlu0 %6780
      %6784 = vset.pattern.permute.xlu0 1
      %6785 = vperm.xlu0 %6784, %v4991
      %v6786 = vpop.permute.xlu0 %6785
      %6789 = vset.pattern.permute.xlu0 1
      %6790 = vperm.xlu0 %6789, %v4992
      %v6791 = vpop.permute.xlu0 %6790
      %6794 = vset.pattern.permute.xlu0 1
      %6795 = vperm.xlu0 %6794, %v4993
      %v6796 = vpop.permute.xlu0 %6795
      %6799 = vset.pattern.permute.xlu0 1
      %6800 = vperm.xlu0 %6799, %v4994
      %v6801 = vpop.permute.xlu0 %6800
      %6804 = vset.pattern.permute.xlu0 1
      %6805 = vperm.xlu0 %6804, %v4995
      %v6806 = vpop.permute.xlu0 %6805
      %6809 = vset.pattern.permute.xlu0 1
      %6810 = vperm.xlu0 %6809, %v4996
      %v6811 = vpop.permute.xlu0 %6810
      %6814 = vset.pattern.permute.xlu0 1
      %6815 = vperm.xlu0 %6814, %v4997
      %v6816 = vpop.permute.xlu0 %6815
      %6819 = vset.pattern.permute.xlu0 1
      %6820 = vperm.xlu0 %6819, %v4998
      %v6821 = vpop.permute.xlu0 %6820
      %6824 = vset.pattern.permute.xlu0 1
      %6825 = vperm.xlu0 %6824, %v4999
      %v6826 = vpop.permute.xlu0 %6825
      %6829 = vset.pattern.permute.xlu0 1
      %6830 = vperm.xlu0 %6829, %v5000
      %v6831 = vpop.permute.xlu0 %6830
      %6834 = vset.pattern.permute.xlu0 1
      %6835 = vperm.xlu0 %6834, %v5001
      %v6836 = vpop.permute.xlu0 %6835
      %6839 = vset.pattern.permute.xlu0 1
      %6840 = vperm.xlu0 %6839, %v5002
      %v6841 = vpop.permute.xlu0 %6840
      %6844 = vset.pattern.permute.xlu0 1
      %6845 = vperm.xlu0 %6844, %v5003
      %v6846 = vpop.permute.xlu0 %6845
      %6849 = vset.pattern.permute.xlu0 1
      %6850 = vperm.xlu0 %6849, %v5004
      %v6851 = vpop.permute.xlu0 %6850
      %6854 = vset.pattern.permute.xlu0 1
      %6855 = vperm.xlu0 %6854, %v5005
      %v6856 = vpop.permute.xlu0 %6855
      %6859 = vset.pattern.permute.xlu0 1
      %6860 = vperm.xlu0 %6859, %v5006
      %v6861 = vpop.permute.xlu0 %6860
      %6864 = vset.pattern.permute.xlu0 1
      %6865 = vperm.xlu0 %6864, %v5007
      %v6866 = vpop.permute.xlu0 %6865
      %6869 = vset.pattern.permute.xlu0 1
      %6870 = vperm.xlu0 %6869, %v5008
      %v6871 = vpop.permute.xlu0 %6870
      %6874 = vset.pattern.permute.xlu0 1
      %6875 = vperm.xlu0 %6874, %v5009
      %v6876 = vpop.permute.xlu0 %6875
      %6879 = vset.pattern.permute.xlu0 1
      %6880 = vperm.xlu0 %6879, %v5010
      %v6881 = vpop.permute.xlu0 %6880
      %6884 = vset.pattern.permute.xlu0 1
      %6885 = vperm.xlu0 %6884, %v5011
      %v6886 = vpop.permute.xlu0 %6885
      %6889 = vset.pattern.permute.xlu0 1
      %6890 = vperm.xlu0 %6889, %v5012
      %v6891 = vpop.permute.xlu0 %6890
      %6894 = vset.pattern.permute.xlu0 1
      %6895 = vperm.xlu0 %6894, %v5013
      %v6896 = vpop.permute.xlu0 %6895
      %6899 = vset.pattern.permute.xlu0 1
      %6900 = vperm.xlu0 %6899, %v5014
      %v6901 = vpop.permute.xlu0 %6900
      %6904 = vset.pattern.permute.xlu0 1
      %6905 = vperm.xlu0 %6904, %v5015
      %v6906 = vpop.permute.xlu0 %6905
      %6909 = vset.pattern.permute.xlu0 1
      %6910 = vperm.xlu0 %6909, %v5016
      %v6911 = vpop.permute.xlu0 %6910
      %6914 = vset.pattern.permute.xlu0 1
      %6915 = vperm.xlu0 %6914, %v5017
      %v6916 = vpop.permute.xlu0 %6915
      %6919 = vset.pattern.permute.xlu0 1
      %6920 = vperm.xlu0 %6919, %v5018
      %v6921 = vpop.permute.xlu0 %6920
      %6924 = vset.pattern.permute.xlu0 1
      %6925 = vperm.xlu0 %6924, %v5019
      %v6926 = vpop.permute.xlu0 %6925
      %6929 = vset.pattern.permute.xlu0 1
      %6930 = vperm.xlu0 %6929, %v5020
      %v6931 = vpop.permute.xlu0 %6930
      %6934 = vset.pattern.permute.xlu0 1
      %6935 = vperm.xlu0 %6934, %v5021
      %v6936 = vpop.permute.xlu0 %6935
      %6939 = vset.pattern.permute.xlu0 1
      %6940 = vperm.xlu0 %6939, %v5022
      %v6941 = vpop.permute.xlu0 %6940
      %6944 = vset.pattern.permute.xlu0 1
      %6945 = vperm.xlu0 %6944, %v5023
      %v6946 = vpop.permute.xlu0 %6945
      %6949 = vset.pattern.permute.xlu0 1
      %6950 = vperm.xlu0 %6949, %v5024
      %v6951 = vpop.permute.xlu0 %6950
      %6954 = vset.pattern.permute.xlu0 1
      %6955 = vperm.xlu0 %6954, %v5025
      %v6956 = vpop.permute.xlu0 %6955
      %6959 = vset.pattern.permute.xlu0 1
      %6960 = vperm.xlu0 %6959, %v5026
      %v6961 = vpop.permute.xlu0 %6960
      %6964 = vset.pattern.permute.xlu0 1
      %6965 = vperm.xlu0 %6964, %v5027
      %v6966 = vpop.permute.xlu0 %6965
      %6969 = vset.pattern.permute.xlu0 1
      %6970 = vperm.xlu0 %6969, %v5028
      %v6971 = vpop.permute.xlu0 %6970
      %6974 = vset.pattern.permute.xlu0 1
      %6975 = vperm.xlu0 %6974, %v5029
      %v6976 = vpop.permute.xlu0 %6975
      %6979 = vset.pattern.permute.xlu0 1
      %6980 = vperm.xlu0 %6979, %v5030
      %v6981 = vpop.permute.xlu0 %6980
      %6984 = vset.pattern.permute.xlu0 1
      %6985 = vperm.xlu0 %6984, %v5031
      %v6986 = vpop.permute.xlu0 %6985
      %6989 = vset.pattern.permute.xlu0 1
      %6990 = vperm.xlu0 %6989, %v5032
      %v6991 = vpop.permute.xlu0 %6990
      %6994 = vset.pattern.permute.xlu0 1
      %6995 = vperm.xlu0 %6994, %v5033
      %v6996 = vpop.permute.xlu0 %6995
      %6999 = vset.pattern.permute.xlu0 1
      %7000 = vperm.xlu0 %6999, %v5034
      %v7001 = vpop.permute.xlu0 %7000
      %7004 = vset.pattern.permute.xlu0 1
      %7005 = vperm.xlu0 %7004, %v5035
      %v7006 = vpop.permute.xlu0 %7005
      %7009 = vset.pattern.permute.xlu0 1
      %7010 = vperm.xlu0 %7009, %v5036
      %v7011 = vpop.permute.xlu0 %7010
      %7014 = vset.pattern.permute.xlu0 1
      %7015 = vperm.xlu0 %7014, %v5037
      %v7016 = vpop.permute.xlu0 %7015
      %7019 = vset.pattern.permute.xlu0 1
      %7020 = vperm.xlu0 %7019, %v5038
      %v7021 = vpop.permute.xlu0 %7020
      %7024 = vset.pattern.permute.xlu0 1
      %7025 = vperm.xlu0 %7024, %v5039
      %v7026 = vpop.permute.xlu0 %7025
      %7029 = vset.pattern.permute.xlu0 1
      %7030 = vperm.xlu0 %7029, %v5040
      %v7031 = vpop.permute.xlu0 %7030
      %7034 = vset.pattern.permute.xlu0 1
      %7035 = vperm.xlu0 %7034, %v5041
      %v7036 = vpop.permute.xlu0 %7035
      %7039 = vset.pattern.permute.xlu0 1
      %7040 = vperm.xlu0 %7039, %v5042
      %v7041 = vpop.permute.xlu0 %7040
      %7044 = vset.pattern.permute.xlu0 1
      %7045 = vperm.xlu0 %7044, %v5043
      %v7046 = vpop.permute.xlu0 %7045
      %7049 = vset.pattern.permute.xlu0 1
      %7050 = vperm.xlu0 %7049, %v5044
      %v7051 = vpop.permute.xlu0 %7050
      %7054 = vset.pattern.permute.xlu0 1
      %7055 = vperm.xlu0 %7054, %v5045
      %v7056 = vpop.permute.xlu0 %7055
      %7059 = vset.pattern.permute.xlu0 1
      %7060 = vperm.xlu0 %7059, %v5046
      %v7061 = vpop.permute.xlu0 %7060
      %7064 = vset.pattern.permute.xlu0 1
      %7065 = vperm.xlu0 %7064, %v5047
      %v7066 = vpop.permute.xlu0 %7065
      %7069 = vset.pattern.permute.xlu0 1
      %7070 = vperm.xlu0 %7069, %v5048
      %v7071 = vpop.permute.xlu0 %7070
      %7074 = vset.pattern.permute.xlu0 1
      %7075 = vperm.xlu0 %7074, %v5049
      %v7076 = vpop.permute.xlu0 %7075
      %7079 = vset.pattern.permute.xlu0 1
      %7080 = vperm.xlu0 %7079, %v5050
      %v7081 = vpop.permute.xlu0 %7080
      %7084 = vset.pattern.permute.xlu0 1
      %7085 = vperm.xlu0 %7084, %v5051
      %v7086 = vpop.permute.xlu0 %7085
      %7089 = vset.pattern.permute.xlu0 1
      %7090 = vperm.xlu0 %7089, %v5052
      %v7091 = vpop.permute.xlu0 %7090
      %7094 = vset.pattern.permute.xlu0 1
      %7095 = vperm.xlu0 %7094, %v5053
      %v7096 = vpop.permute.xlu0 %7095
      %7099 = vset.pattern.permute.xlu0 1
      %7100 = vperm.xlu0 %7099, %v5054
      %v7101 = vpop.permute.xlu0 %7100
      %7104 = vset.pattern.permute.xlu0 1
      %7105 = vperm.xlu0 %7104, %v5055
      %v7106 = vpop.permute.xlu0 %7105
      %7109 = vset.pattern.permute.xlu0 1
      %7110 = vperm.xlu0 %7109, %v5056
      %v7111 = vpop.permute.xlu0 %7110
      %7114 = vset.pattern.permute.xlu0 1
      %7115 = vperm.xlu0 %7114, %v5057
      %v7116 = vpop.permute.xlu0 %7115
      %7119 = vset.pattern.permute.xlu0 1
      %7120 = vperm.xlu0 %7119, %v5058
      %v7121 = vpop.permute.xlu0 %7120
      %7124 = vset.pattern.permute.xlu0 1
      %7125 = vperm.xlu0 %7124, %v5059
      %v7126 = vpop.permute.xlu0 %7125
      %7129 = vset.pattern.permute.xlu0 1
      %7130 = vperm.xlu0 %7129, %v5060
      %v7131 = vpop.permute.xlu0 %7130
      %7134 = vset.pattern.permute.xlu0 1
      %7135 = vperm.xlu0 %7134, %v5061
      %v7136 = vpop.permute.xlu0 %7135
      %7139 = vset.pattern.permute.xlu0 1
      %7140 = vperm.xlu0 %7139, %v5062
      %v7141 = vpop.permute.xlu0 %7140
      %7144 = vset.pattern.permute.xlu0 1
      %7145 = vperm.xlu0 %7144, %v5063
      %v7146 = vpop.permute.xlu0 %7145
      %7149 = vset.pattern.permute.xlu0 1
      %7150 = vperm.xlu0 %7149, %v5064
      %v7151 = vpop.permute.xlu0 %7150
      %7154 = vset.pattern.permute.xlu0 1
      %7155 = vperm.xlu0 %7154, %v5065
      %v7156 = vpop.permute.xlu0 %7155
      %7159 = vset.pattern.permute.xlu0 1
      %7160 = vperm.xlu0 %7159, %v5066
      %v7161 = vpop.permute.xlu0 %7160
      %7164 = vset.pattern.permute.xlu0 1
      %7165 = vperm.xlu0 %7164, %v5067
      %v7166 = vpop.permute.xlu0 %7165
      %7169 = vset.pattern.permute.xlu0 1
      %7170 = vperm.xlu0 %7169, %v5068
      %v7171 = vpop.permute.xlu0 %7170
      %7174 = vset.pattern.permute.xlu0 1
      %7175 = vperm.xlu0 %7174, %v5069
      %v7176 = vpop.permute.xlu0 %7175
      %7179 = vset.pattern.permute.xlu0 1
      %7180 = vperm.xlu0 %7179, %v5070
      %v7181 = vpop.permute.xlu0 %7180
      %7184 = vset.pattern.permute.xlu0 1
      %7185 = vperm.xlu0 %7184, %v5071
      %v7186 = vpop.permute.xlu0 %7185
      %7189 = vset.pattern.permute.xlu0 1
      %7190 = vperm.xlu0 %7189, %v5072
      %v7191 = vpop.permute.xlu0 %7190
      %7194 = vset.pattern.permute.xlu0 1
      %7195 = vperm.xlu0 %7194, %v5073
      %v7196 = vpop.permute.xlu0 %7195
      %7199 = vset.pattern.permute.xlu0 1
      %7200 = vperm.xlu0 %7199, %v5074
      %v7201 = vpop.permute.xlu0 %7200
      %7204 = vset.pattern.permute.xlu0 1
      %7205 = vperm.xlu0 %7204, %v5075
      %v7206 = vpop.permute.xlu0 %7205
      %7209 = vset.pattern.permute.xlu0 1
      %7210 = vperm.xlu0 %7209, %v5076
      %v7211 = vpop.permute.xlu0 %7210
      %7214 = vset.pattern.permute.xlu0 1
      %7215 = vperm.xlu0 %7214, %v5077
      %v7216 = vpop.permute.xlu0 %7215
      %7219 = vset.pattern.permute.xlu0 1
      %7220 = vperm.xlu0 %7219, %v5078
      %v7221 = vpop.permute.xlu0 %7220
      %7224 = vset.pattern.permute.xlu0 1
      %7225 = vperm.xlu0 %7224, %v5079
      %v7226 = vpop.permute.xlu0 %7225
      %7229 = vset.pattern.permute.xlu0 1
      %7230 = vperm.xlu0 %7229, %v5080
      %v7231 = vpop.permute.xlu0 %7230
      %7234 = vset.pattern.permute.xlu0 1
      %7235 = vperm.xlu0 %7234, %v5081
      %v7236 = vpop.permute.xlu0 %7235
      %7239 = vset.pattern.permute.xlu0 1
      %7240 = vperm.xlu0 %7239, %v5082
      %v7241 = vpop.permute.xlu0 %7240
      %7244 = vset.pattern.permute.xlu0 1
      %7245 = vperm.xlu0 %7244, %v5083
      %v7246 = vpop.permute.xlu0 %7245
      %7249 = vset.pattern.permute.xlu0 1
      %7250 = vperm.xlu0 %7249, %v5084
      %v7251 = vpop.permute.xlu0 %7250
      %7254 = vset.pattern.permute.xlu0 1
      %7255 = vperm.xlu0 %7254, %v5085
      %v7256 = vpop.permute.xlu0 %7255
      %7259 = vset.pattern.permute.xlu0 1
      %7260 = vperm.xlu0 %7259, %v5086
      %v7261 = vpop.permute.xlu0 %7260
      %7264 = vset.pattern.permute.xlu0 1
      %7265 = vperm.xlu0 %7264, %v5087
      %v7266 = vpop.permute.xlu0 %7265
      %7269 = vset.pattern.permute.xlu0 1
      %7270 = vperm.xlu0 %7269, %v5088
      %v7271 = vpop.permute.xlu0 %7270
      %v7273 = vadd.f32 %v5999, %v6366
      %v7274 = vadd.f32 %v6000, %v6366
      %v7275 = vadd.f32 %v6001, %v6371
      %v7276 = vadd.f32 %v6002, %v6371
      %v7277 = vadd.f32 %v6003, %v6376
      %v7278 = vadd.f32 %v6004, %v6376
      %v7279 = vadd.f32 %v6005, %v6381
      %v7280 = vadd.f32 %v6006, %v6381
      %v7281 = vadd.f32 %v6007, %v6386
      %v7282 = vadd.f32 %v6008, %v6386
      %v7283 = vadd.f32 %v6009, %v6391
      %v7284 = vadd.f32 %v6010, %v6391
      %v7285 = vadd.f32 %v6011, %v6396
      %v7286 = vadd.f32 %v6012, %v6396
      %v7287 = vadd.f32 %v6013, %v6401
      %v7288 = vadd.f32 %v6014, %v6401
      %v7289 = vadd.f32 %v6015, %v6406
      %v7290 = vadd.f32 %v6016, %v6406
      %v7291 = vadd.f32 %v6017, %v6411
      %v7292 = vadd.f32 %v6018, %v6411
      %v7293 = vadd.f32 %v6019, %v6416
      %v7294 = vadd.f32 %v6020, %v6416
      %v7295 = vadd.f32 %v6021, %v6421
      %v7296 = vadd.f32 %v6022, %v6421
      %v7297 = vadd.f32 %v6023, %v6426
      %v7298 = vadd.f32 %v6024, %v6426
      %v7299 = vadd.f32 %v6025, %v6431
      %v7300 = vadd.f32 %v6026, %v6431
      %v7301 = vadd.f32 %v6027, %v6436
      %v7302 = vadd.f32 %v6028, %v6436
      %v7303 = vadd.f32 %v6029, %v6441
      %v7304 = vadd.f32 %v6030, %v6441
      %v7305 = vadd.f32 %v6031, %v6446
      %v7306 = vadd.f32 %v6032, %v6446
      %v7307 = vadd.f32 %v6033, %v6451
      %v7308 = vadd.f32 %v6034, %v6451
      %v7309 = vadd.f32 %v6035, %v6456
      %v7310 = vadd.f32 %v6036, %v6456
      %v7311 = vadd.f32 %v6037, %v6461
      %v7312 = vadd.f32 %v6038, %v6461
      %v7313 = vadd.f32 %v6039, %v6466
      %v7314 = vadd.f32 %v6040, %v6466
      %v7315 = vadd.f32 %v6041, %v6471
      %v7316 = vadd.f32 %v6042, %v6471
      %v7317 = vadd.f32 %v6043, %v6476
      %v7318 = vadd.f32 %v6044, %v6476
      %v7319 = vadd.f32 %v6045, %v6481
      %v7320 = vadd.f32 %v6046, %v6481
      %v7321 = vadd.f32 %v6047, %v6486
      %v7322 = vadd.f32 %v6048, %v6486
      %v7323 = vadd.f32 %v6049, %v6491
      %v7324 = vadd.f32 %v6050, %v6491
      %v7325 = vadd.f32 %v6051, %v6496
      %v7326 = vadd.f32 %v6052, %v6496
      %v7327 = vadd.f32 %v6053, %v6501
      %v7328 = vadd.f32 %v6054, %v6501
      %v7329 = vadd.f32 %v6055, %v6506
      %v7330 = vadd.f32 %v6056, %v6506
      %v7331 = vadd.f32 %v6057, %v6511
      %v7332 = vadd.f32 %v6058, %v6511
      %v7333 = vadd.f32 %v6059, %v6516
      %v7334 = vadd.f32 %v6060, %v6516
      %v7335 = vadd.f32 %v6061, %v6521
      %v7336 = vadd.f32 %v6062, %v6521
      %v7337 = vadd.f32 %v6063, %v6526
      %v7338 = vadd.f32 %v6064, %v6526
      %v7339 = vadd.f32 %v6065, %v6531
      %v7340 = vadd.f32 %v6066, %v6531
      %v7341 = vadd.f32 %v6067, %v6536
      %v7342 = vadd.f32 %v6068, %v6536
      %v7343 = vadd.f32 %v6069, %v6541
      %v7344 = vadd.f32 %v6070, %v6541
      %v7345 = vadd.f32 %v6071, %v6546
      %v7346 = vadd.f32 %v6072, %v6546
      %v7347 = vadd.f32 %v6073, %v6551
      %v7348 = vadd.f32 %v6074, %v6551
      %v7349 = vadd.f32 %v6075, %v6556
      %v7350 = vadd.f32 %v6076, %v6556
      %v7351 = vadd.f32 %v6077, %v6561
      %v7352 = vadd.f32 %v6078, %v6561
      %v7353 = vadd.f32 %v6079, %v6566
      %v7354 = vadd.f32 %v6080, %v6566
      %v7355 = vadd.f32 %v6081, %v6571
      %v7356 = vadd.f32 %v6082, %v6571
      %v7357 = vadd.f32 %v6083, %v6576
      %v7358 = vadd.f32 %v6084, %v6576
      %v7359 = vadd.f32 %v6085, %v6581
      %v7360 = vadd.f32 %v6086, %v6581
      %v7361 = vadd.f32 %v6087, %v6586
      %v7362 = vadd.f32 %v6088, %v6586
      %v7363 = vadd.f32 %v6089, %v6591
      %v7364 = vadd.f32 %v6090, %v6591
      %v7365 = vadd.f32 %v6091, %v6596
      %v7366 = vadd.f32 %v6092, %v6596
      %v7367 = vadd.f32 %v6093, %v6601
      %v7368 = vadd.f32 %v6094, %v6601
      %v7369 = vadd.f32 %v6095, %v6606
      %v7370 = vadd.f32 %v6096, %v6606
      %v7371 = vadd.f32 %v6097, %v6611
      %v7372 = vadd.f32 %v6098, %v6611
      %v7373 = vadd.f32 %v6099, %v6616
      %v7374 = vadd.f32 %v6100, %v6616
      %v7375 = vadd.f32 %v6101, %v6621
      %v7376 = vadd.f32 %v6102, %v6621
      %v7377 = vadd.f32 %v6103, %v6626
      %v7378 = vadd.f32 %v6104, %v6626
      %v7379 = vadd.f32 %v6105, %v6631
      %v7380 = vadd.f32 %v6106, %v6631
      %v7381 = vadd.f32 %v6107, %v6636
      %v7382 = vadd.f32 %v6108, %v6636
      %v7383 = vadd.f32 %v6109, %v6641
      %v7384 = vadd.f32 %v6110, %v6641
      %v7385 = vadd.f32 %v6111, %v6646
      %v7386 = vadd.f32 %v6112, %v6646
      %v7387 = vadd.f32 %v6113, %v6651
      %v7388 = vadd.f32 %v6114, %v6651
      %v7389 = vadd.f32 %v6115, %v6656
      %v7390 = vadd.f32 %v6116, %v6656
      %v7391 = vadd.f32 %v6117, %v6661
      %v7392 = vadd.f32 %v6118, %v6661
      %v7393 = vadd.f32 %v6119, %v6666
      %v7394 = vadd.f32 %v6120, %v6666
      %v7395 = vadd.f32 %v6121, %v6671
      %v7396 = vadd.f32 %v6122, %v6671
      %v7397 = vadd.f32 %v6123, %v6676
      %v7398 = vadd.f32 %v6124, %v6676
      %v7399 = vadd.f32 %v6125, %v6681
      %v7400 = vadd.f32 %v6126, %v6681
      %v7401 = vadd.f32 %v6127, %v6686
      %v7402 = vadd.f32 %v6128, %v6686
      %v7403 = vadd.f32 %v6129, %v6691
      %v7404 = vadd.f32 %v6130, %v6691
      %v7405 = vadd.f32 %v6131, %v6696
      %v7406 = vadd.f32 %v6132, %v6696
      %v7407 = vadd.f32 %v6133, %v6701
      %v7408 = vadd.f32 %v6134, %v6701
      %v7409 = vadd.f32 %v6135, %v6706
      %v7410 = vadd.f32 %v6136, %v6706
      %v7411 = vadd.f32 %v6137, %v6711
      %v7412 = vadd.f32 %v6138, %v6711
      %v7413 = vadd.f32 %v6139, %v6716
      %v7414 = vadd.f32 %v6140, %v6716
      %v7415 = vadd.f32 %v6141, %v6721
      %v7416 = vadd.f32 %v6142, %v6721
      %v7417 = vadd.f32 %v6143, %v6726
      %v7418 = vadd.f32 %v6144, %v6726
      %v7419 = vadd.f32 %v6145, %v6731
      %v7420 = vadd.f32 %v6146, %v6731
      %v7421 = vadd.f32 %v6147, %v6736
      %v7422 = vadd.f32 %v6148, %v6736
      %v7423 = vadd.f32 %v6149, %v6741
      %v7424 = vadd.f32 %v6150, %v6741
      %v7425 = vadd.f32 %v6151, %v6746
      %v7426 = vadd.f32 %v6152, %v6746
      %v7427 = vadd.f32 %v6153, %v6751
      %v7428 = vadd.f32 %v6154, %v6751
      %v7429 = vadd.f32 %v6155, %v6756
      %v7430 = vadd.f32 %v6156, %v6756
      %v7431 = vadd.f32 %v6157, %v6761
      %v7432 = vadd.f32 %v6158, %v6761
      %v7433 = vadd.f32 %v6159, %v6766
      %v7434 = vadd.f32 %v6160, %v6766
      %v7435 = vadd.f32 %v6161, %v6771
      %v7436 = vadd.f32 %v6162, %v6771
      %v7437 = vadd.f32 %v6163, %v6776
      %v7438 = vadd.f32 %v6164, %v6776
      %v7439 = vadd.f32 %v6165, %v6781
      %v7440 = vadd.f32 %v6166, %v6781
      %v7441 = vadd.f32 %v6167, %v6786
      %v7442 = vadd.f32 %v6168, %v6786
      %v7443 = vadd.f32 %v6169, %v6791
      %v7444 = vadd.f32 %v6170, %v6791
      %v7445 = vadd.f32 %v6171, %v6796
      %v7446 = vadd.f32 %v6172, %v6796
      %v7447 = vadd.f32 %v6173, %v6801
      %v7448 = vadd.f32 %v6174, %v6801
      %v7449 = vadd.f32 %v6175, %v6806
      %v7450 = vadd.f32 %v6176, %v6806
      %v7451 = vadd.f32 %v6177, %v6811
      %v7452 = vadd.f32 %v6178, %v6811
      %v7453 = vadd.f32 %v6179, %v6816
      %v7454 = vadd.f32 %v6180, %v6816
      %v7455 = vadd.f32 %v6181, %v6821
      %v7456 = vadd.f32 %v6182, %v6821
      %v7457 = vadd.f32 %v6183, %v6826
      %v7458 = vadd.f32 %v6184, %v6826
      %v7459 = vadd.f32 %v6185, %v6831
      %v7460 = vadd.f32 %v6186, %v6831
      %v7461 = vadd.f32 %v6187, %v6836
      %v7462 = vadd.f32 %v6188, %v6836
      %v7463 = vadd.f32 %v6189, %v6841
      %v7464 = vadd.f32 %v6190, %v6841
      %v7465 = vadd.f32 %v6191, %v6846
      %v7466 = vadd.f32 %v6192, %v6846
      %v7467 = vadd.f32 %v6193, %v6851
      %v7468 = vadd.f32 %v6194, %v6851
      %v7469 = vadd.f32 %v6195, %v6856
      %v7470 = vadd.f32 %v6196, %v6856
      %v7471 = vadd.f32 %v6197, %v6861
      %v7472 = vadd.f32 %v6198, %v6861
      %v7473 = vadd.f32 %v6199, %v6866
      %v7474 = vadd.f32 %v6200, %v6866
      %v7475 = vadd.f32 %v6201, %v6871
      %v7476 = vadd.f32 %v6202, %v6871
      %v7477 = vadd.f32 %v6203, %v6876
      %v7478 = vadd.f32 %v6204, %v6876
      %v7479 = vadd.f32 %v6205, %v6881
      %v7480 = vadd.f32 %v6206, %v6881
      %v7481 = vadd.f32 %v6207, %v6886
      %v7482 = vadd.f32 %v6208, %v6886
      %v7483 = vadd.f32 %v6209, %v6891
      %v7484 = vadd.f32 %v6210, %v6891
      %v7485 = vadd.f32 %v6211, %v6896
      %v7486 = vadd.f32 %v6212, %v6896
      %v7487 = vadd.f32 %v6213, %v6901
      %v7488 = vadd.f32 %v6214, %v6901
      %v7489 = vadd.f32 %v6215, %v6906
      %v7490 = vadd.f32 %v6216, %v6906
      %v7491 = vadd.f32 %v6217, %v6911
      %v7492 = vadd.f32 %v6218, %v6911
      %v7493 = vadd.f32 %v6219, %v6916
      %v7494 = vadd.f32 %v6220, %v6916
      %v7495 = vadd.f32 %v6221, %v6921
      %v7496 = vadd.f32 %v6222, %v6921
      %v7497 = vadd.f32 %v6223, %v6926
      %v7498 = vadd.f32 %v6224, %v6926
      %v7499 = vadd.f32 %v6225, %v6931
      %v7500 = vadd.f32 %v6226, %v6931
      %v7501 = vadd.f32 %v6227, %v6936
      %v7502 = vadd.f32 %v6228, %v6936
      %v7503 = vadd.f32 %v6229, %v6941
      %v7504 = vadd.f32 %v6230, %v6941
      %v7505 = vadd.f32 %v6231, %v6946
      %v7506 = vadd.f32 %v6232, %v6946
      %v7507 = vadd.f32 %v6233, %v6951
      %v7508 = vadd.f32 %v6234, %v6951
      %v7509 = vadd.f32 %v6235, %v6956
      %v7510 = vadd.f32 %v6236, %v6956
      %v7511 = vadd.f32 %v6237, %v6961
      %v7512 = vadd.f32 %v6238, %v6961
      %v7513 = vadd.f32 %v6239, %v6966
      %v7514 = vadd.f32 %v6240, %v6966
      %v7515 = vadd.f32 %v6241, %v6971
      %v7516 = vadd.f32 %v6242, %v6971
      %v7517 = vadd.f32 %v6243, %v6976
      %v7518 = vadd.f32 %v6244, %v6976
      %v7519 = vadd.f32 %v6245, %v6981
      %v7520 = vadd.f32 %v6246, %v6981
      %v7521 = vadd.f32 %v6247, %v6986
      %v7522 = vadd.f32 %v6248, %v6986
      %v7523 = vadd.f32 %v6249, %v6991
      %v7524 = vadd.f32 %v6250, %v6991
      %v7525 = vadd.f32 %v6251, %v6996
      %v7526 = vadd.f32 %v6252, %v6996
      %v7527 = vadd.f32 %v6253, %v7001
      %v7528 = vadd.f32 %v6254, %v7001
      %v7529 = vadd.f32 %v6255, %v7006
      %v7530 = vadd.f32 %v6256, %v7006
      %v7531 = vadd.f32 %v6257, %v7011
      %v7532 = vadd.f32 %v6258, %v7011
      %v7533 = vadd.f32 %v6259, %v7016
      %v7534 = vadd.f32 %v6260, %v7016
      %v7535 = vadd.f32 %v6261, %v7021
      %v7536 = vadd.f32 %v6262, %v7021
      %v7537 = vadd.f32 %v6263, %v7026
      %v7538 = vadd.f32 %v6264, %v7026
      %v7539 = vadd.f32 %v6265, %v7031
      %v7540 = vadd.f32 %v6266, %v7031
      %v7541 = vadd.f32 %v6267, %v7036
      %v7542 = vadd.f32 %v6268, %v7036
      %v7543 = vadd.f32 %v6269, %v7041
      %v7544 = vadd.f32 %v6270, %v7041
      %v7545 = vadd.f32 %v6271, %v7046
      %v7546 = vadd.f32 %v6272, %v7046
      %v7547 = vadd.f32 %v6273, %v7051
      %v7548 = vadd.f32 %v6274, %v7051
      %v7549 = vadd.f32 %v6275, %v7056
      %v7550 = vadd.f32 %v6276, %v7056
      %v7551 = vadd.f32 %v6277, %v7061
      %v7552 = vadd.f32 %v6278, %v7061
      %v7553 = vadd.f32 %v6279, %v7066
      %v7554 = vadd.f32 %v6280, %v7066
      %v7555 = vadd.f32 %v6281, %v7071
      %v7556 = vadd.f32 %v6282, %v7071
      %v7557 = vadd.f32 %v6283, %v7076
      %v7558 = vadd.f32 %v6284, %v7076
      %v7559 = vadd.f32 %v6285, %v7081
      %v7560 = vadd.f32 %v6286, %v7081
      %v7561 = vadd.f32 %v6287, %v7086
      %v7562 = vadd.f32 %v6288, %v7086
      %v7563 = vadd.f32 %v6289, %v7091
      %v7564 = vadd.f32 %v6290, %v7091
      %v7565 = vadd.f32 %v6291, %v7096
      %v7566 = vadd.f32 %v6292, %v7096
      %v7567 = vadd.f32 %v6293, %v7101
      %v7568 = vadd.f32 %v6294, %v7101
      %v7569 = vadd.f32 %v6295, %v7106
      %v7570 = vadd.f32 %v6296, %v7106
      %v7571 = vadd.f32 %v6297, %v7111
      %v7572 = vadd.f32 %v6298, %v7111
      %v7573 = vadd.f32 %v6299, %v7116
      %v7574 = vadd.f32 %v6300, %v7116
      %v7575 = vadd.f32 %v6301, %v7121
      %v7576 = vadd.f32 %v6302, %v7121
      %v7577 = vadd.f32 %v6303, %v7126
      %v7578 = vadd.f32 %v6304, %v7126
      %v7579 = vadd.f32 %v6305, %v7131
      %v7580 = vadd.f32 %v6306, %v7131
      %v7581 = vadd.f32 %v6307, %v7136
      %v7582 = vadd.f32 %v6308, %v7136
      %v7583 = vadd.f32 %v6309, %v7141
      %v7584 = vadd.f32 %v6310, %v7141
      %v7585 = vadd.f32 %v6311, %v7146
      %v7586 = vadd.f32 %v6312, %v7146
      %v7587 = vadd.f32 %v6313, %v7151
      %v7588 = vadd.f32 %v6314, %v7151
      %v7589 = vadd.f32 %v6315, %v7156
      %v7590 = vadd.f32 %v6316, %v7156
      %v7591 = vadd.f32 %v6317, %v7161
      %v7592 = vadd.f32 %v6318, %v7161
      %v7593 = vadd.f32 %v6319, %v7166
      %v7594 = vadd.f32 %v6320, %v7166
      %v7595 = vadd.f32 %v6321, %v7171
      %v7596 = vadd.f32 %v6322, %v7171
      %v7597 = vadd.f32 %v6323, %v7176
      %v7598 = vadd.f32 %v6324, %v7176
      %v7599 = vadd.f32 %v6325, %v7181
      %v7600 = vadd.f32 %v6326, %v7181
      %v7601 = vadd.f32 %v6327, %v7186
      %v7602 = vadd.f32 %v6328, %v7186
      %v7603 = vadd.f32 %v6329, %v7191
      %v7604 = vadd.f32 %v6330, %v7191
      %v7605 = vadd.f32 %v6331, %v7196
      %v7606 = vadd.f32 %v6332, %v7196
      %v7607 = vadd.f32 %v6333, %v7201
      %v7608 = vadd.f32 %v6334, %v7201
      %v7609 = vadd.f32 %v6335, %v7206
      %v7610 = vadd.f32 %v6336, %v7206
      %v7611 = vadd.f32 %v6337, %v7211
      %v7612 = vadd.f32 %v6338, %v7211
      %v7613 = vadd.f32 %v6339, %v7216
      %v7614 = vadd.f32 %v6340, %v7216
      %v7615 = vadd.f32 %v6341, %v7221
      %v7616 = vadd.f32 %v6342, %v7221
      %v7617 = vadd.f32 %v6343, %v7226
      %v7618 = vadd.f32 %v6344, %v7226
      %v7619 = vadd.f32 %v6345, %v7231
      %v7620 = vadd.f32 %v6346, %v7231
      %v7621 = vadd.f32 %v6347, %v7236
      %v7622 = vadd.f32 %v6348, %v7236
      %v7623 = vadd.f32 %v6349, %v7241
      %v7624 = vadd.f32 %v6350, %v7241
      %v7625 = vadd.f32 %v6351, %v7246
      %v7626 = vadd.f32 %v6352, %v7246
      %v7627 = vadd.f32 %v6353, %v7251
      %v7628 = vadd.f32 %v6354, %v7251
      %v7629 = vadd.f32 %v6355, %v7256
      %v7630 = vadd.f32 %v6356, %v7256
      %v7631 = vadd.f32 %v6357, %v7261
      %v7632 = vadd.f32 %v6358, %v7261
      %v7633 = vadd.f32 %v6359, %v7266
      %v7634 = vadd.f32 %v6360, %v7266
      %v7635 = vadd.f32 %v6361, %v7271
      %v7636 = vadd.f32 %v6362, %v7271
      %7637 = vst [vmem:[%s172] sm:$0xff] %v7273
      %7638 = vst.msk [vmem:[%s172 + $0x8] sm:$0xff] %vm538, %v7274
      %7639 = vst [vmem:[%s172 + $0x10] sm:$0xff] %v7275
      %7640 = vst.msk [vmem:[%s172 + $0x18] sm:$0xff] %vm538, %v7276
      %7641 = vst [vmem:[%s172 + $0x20] sm:$0xff] %v7277
      %7642 = vst.msk [vmem:[%s172 + $0x28] sm:$0xff] %vm538, %v7278
      %7643 = vst [vmem:[%s172 + $0x30] sm:$0xff] %v7279
      %7644 = vst.msk [vmem:[%s172 + $0x38] sm:$0xff] %vm538, %v7280
      %7645 = vst [vmem:[%s172 + $0x40] sm:$0xff] %v7281
      %7646 = vst.msk [vmem:[%s172 + $0x48] sm:$0xff] %vm538, %v7282
      %7647 = vst [vmem:[%s172 + $0x50] sm:$0xff] %v7283
      %7648 = vst.msk [vmem:[%s172 + $0x58] sm:$0xff] %vm538, %v7284
      %7649 = vst [vmem:[%s172 + $0x60] sm:$0xff] %v7285
      %7650 = vst.msk [vmem:[%s172 + $0x68] sm:$0xff] %vm538, %v7286
      %7651 = vst [vmem:[%s172 + $0x70] sm:$0xff] %v7287
      %7652 = vst.msk [vmem:[%s172 + $0x78] sm:$0xff] %vm538, %v7288
      %7653 = vst [vmem:[%s172 + $0x80] sm:$0xff] %v7289
      %7654 = vst.msk [vmem:[%s172 + $0x88] sm:$0xff] %vm538, %v7290
      %7655 = vst [vmem:[%s172 + $0x90] sm:$0xff] %v7291
      %7656 = vst.msk [vmem:[%s172 + $0x98] sm:$0xff] %vm538, %v7292
      %7657 = vst [vmem:[%s172 + $0xa0] sm:$0xff] %v7293
      %7658 = vst.msk [vmem:[%s172 + $0xa8] sm:$0xff] %vm538, %v7294
      %7659 = vst [vmem:[%s172 + $0xb0] sm:$0xff] %v7295
      %7660 = vst.msk [vmem:[%s172 + $0xb8] sm:$0xff] %vm538, %v7296
      %7661 = vst [vmem:[%s172 + $0xc0] sm:$0xff] %v7297
      %7662 = vst.msk [vmem:[%s172 + $0xc8] sm:$0xff] %vm538, %v7298
      %7663 = vst [vmem:[%s172 + $0xd0] sm:$0xff] %v7299
      %7664 = vst.msk [vmem:[%s172 + $0xd8] sm:$0xff] %vm538, %v7300
      %7665 = vst [vmem:[%s172 + $0xe0] sm:$0xff] %v7301
      %7666 = vst.msk [vmem:[%s172 + $0xe8] sm:$0xff] %vm538, %v7302
      %7667 = vst [vmem:[%s172 + $0xf0] sm:$0xff] %v7303
      %7668 = vst.msk [vmem:[%s172 + $0xf8] sm:$0xff] %vm538, %v7304
      %7669 = vst [vmem:[%s172 + $0x100] sm:$0xff] %v7305
      %7670 = vst.msk [vmem:[%s172 + $0x108] sm:$0xff] %vm538, %v7306
      %7671 = vst [vmem:[%s172 + $0x110] sm:$0xff] %v7307
      %7672 = vst.msk [vmem:[%s172 + $0x118] sm:$0xff] %vm538, %v7308
      %7673 = vst [vmem:[%s172 + $0x120] sm:$0xff] %v7309
      %7674 = vst.msk [vmem:[%s172 + $0x128] sm:$0xff] %vm538, %v7310
      %7675 = vst [vmem:[%s172 + $0x130] sm:$0xff] %v7311
      %7676 = vst.msk [vmem:[%s172 + $0x138] sm:$0xff] %vm538, %v7312
      %7677 = vst [vmem:[%s172 + $0x140] sm:$0xff] %v7313
      %7678 = vst.msk [vmem:[%s172 + $0x148] sm:$0xff] %vm538, %v7314
      %7679 = vst [vmem:[%s172 + $0x150] sm:$0xff] %v7315
      %7680 = vst.msk [vmem:[%s172 + $0x158] sm:$0xff] %vm538, %v7316
      %7681 = vst [vmem:[%s172 + $0x160] sm:$0xff] %v7317
      %7682 = vst.msk [vmem:[%s172 + $0x168] sm:$0xff] %vm538, %v7318
      %7683 = vst [vmem:[%s172 + $0x170] sm:$0xff] %v7319
      %7684 = vst.msk [vmem:[%s172 + $0x178] sm:$0xff] %vm538, %v7320
      %7685 = vst [vmem:[%s172 + $0x180] sm:$0xff] %v7321
      %7686 = vst.msk [vmem:[%s172 + $0x188] sm:$0xff] %vm538, %v7322
      %7687 = vst [vmem:[%s172 + $0x190] sm:$0xff] %v7323
      %7688 = vst.msk [vmem:[%s172 + $0x198] sm:$0xff] %vm538, %v7324
      %7689 = vst [vmem:[%s172 + $0x1a0] sm:$0xff] %v7325
      %7690 = vst.msk [vmem:[%s172 + $0x1a8] sm:$0xff] %vm538, %v7326
      %7691 = vst [vmem:[%s172 + $0x1b0] sm:$0xff] %v7327
      %7692 = vst.msk [vmem:[%s172 + $0x1b8] sm:$0xff] %vm538, %v7328
      %7693 = vst [vmem:[%s172 + $0x1c0] sm:$0xff] %v7329
      %7694 = vst.msk [vmem:[%s172 + $0x1c8] sm:$0xff] %vm538, %v7330
      %7695 = vst [vmem:[%s172 + $0x1d0] sm:$0xff] %v7331
      %7696 = vst.msk [vmem:[%s172 + $0x1d8] sm:$0xff] %vm538, %v7332
      %7697 = vst [vmem:[%s172 + $0x1e0] sm:$0xff] %v7333
      %7698 = vst.msk [vmem:[%s172 + $0x1e8] sm:$0xff] %vm538, %v7334
      %7699 = vst [vmem:[%s172 + $0x1f0] sm:$0xff] %v7335
      %7700 = vst.msk [vmem:[%s172 + $0x1f8] sm:$0xff] %vm538, %v7336
      %7701 = vst [vmem:[%s172 + $0x200] sm:$0xff] %v7337
      %7702 = vst.msk [vmem:[%s172 + $0x208] sm:$0xff] %vm538, %v7338
      %7703 = vst [vmem:[%s172 + $0x210] sm:$0xff] %v7339
      %7704 = vst.msk [vmem:[%s172 + $0x218] sm:$0xff] %vm538, %v7340
      %7705 = vst [vmem:[%s172 + $0x220] sm:$0xff] %v7341
      %7706 = vst.msk [vmem:[%s172 + $0x228] sm:$0xff] %vm538, %v7342
      %7707 = vst [vmem:[%s172 + $0x230] sm:$0xff] %v7343
      %7708 = vst.msk [vmem:[%s172 + $0x238] sm:$0xff] %vm538, %v7344
      %7709 = vst [vmem:[%s172 + $0x240] sm:$0xff] %v7345
      %7710 = vst.msk [vmem:[%s172 + $0x248] sm:$0xff] %vm538, %v7346
      %7711 = vst [vmem:[%s172 + $0x250] sm:$0xff] %v7347
      %7712 = vst.msk [vmem:[%s172 + $0x258] sm:$0xff] %vm538, %v7348
      %7713 = vst [vmem:[%s172 + $0x260] sm:$0xff] %v7349
      %7714 = vst.msk [vmem:[%s172 + $0x268] sm:$0xff] %vm538, %v7350
      %7715 = vst [vmem:[%s172 + $0x270] sm:$0xff] %v7351
      %7716 = vst.msk [vmem:[%s172 + $0x278] sm:$0xff] %vm538, %v7352
      %7717 = vst [vmem:[%s172 + $0x280] sm:$0xff] %v7353
      %7718 = vst.msk [vmem:[%s172 + $0x288] sm:$0xff] %vm538, %v7354
      %7719 = vst [vmem:[%s172 + $0x290] sm:$0xff] %v7355
      %7720 = vst.msk [vmem:[%s172 + $0x298] sm:$0xff] %vm538, %v7356
      %7721 = vst [vmem:[%s172 + $0x2a0] sm:$0xff] %v7357
      %7722 = vst.msk [vmem:[%s172 + $0x2a8] sm:$0xff] %vm538, %v7358
      %7723 = vst [vmem:[%s172 + $0x2b0] sm:$0xff] %v7359
      %7724 = vst.msk [vmem:[%s172 + $0x2b8] sm:$0xff] %vm538, %v7360
      %7725 = vst [vmem:[%s172 + $0x2c0] sm:$0xff] %v7361
      %7726 = vst.msk [vmem:[%s172 + $0x2c8] sm:$0xff] %vm538, %v7362
      %7727 = vst [vmem:[%s172 + $0x2d0] sm:$0xff] %v7363
      %7728 = vst.msk [vmem:[%s172 + $0x2d8] sm:$0xff] %vm538, %v7364
      %7729 = vst [vmem:[%s172 + $0x2e0] sm:$0xff] %v7365
      %7730 = vst.msk [vmem:[%s172 + $0x2e8] sm:$0xff] %vm538, %v7366
      %7731 = vst [vmem:[%s172 + $0x2f0] sm:$0xff] %v7367
      %7732 = vst.msk [vmem:[%s172 + $0x2f8] sm:$0xff] %vm538, %v7368
      %7733 = vst [vmem:[%s172 + $0x300] sm:$0xff] %v7369
      %7734 = vst.msk [vmem:[%s172 + $0x308] sm:$0xff] %vm538, %v7370
      %7735 = vst [vmem:[%s172 + $0x310] sm:$0xff] %v7371
      %7736 = vst.msk [vmem:[%s172 + $0x318] sm:$0xff] %vm538, %v7372
      %7737 = vst [vmem:[%s172 + $0x320] sm:$0xff] %v7373
      %7738 = vst.msk [vmem:[%s172 + $0x328] sm:$0xff] %vm538, %v7374
      %7739 = vst [vmem:[%s172 + $0x330] sm:$0xff] %v7375
      %7740 = vst.msk [vmem:[%s172 + $0x338] sm:$0xff] %vm538, %v7376
      %7741 = vst [vmem:[%s172 + $0x340] sm:$0xff] %v7377
      %7742 = vst.msk [vmem:[%s172 + $0x348] sm:$0xff] %vm538, %v7378
      %7743 = vst [vmem:[%s172 + $0x350] sm:$0xff] %v7379
      %7744 = vst.msk [vmem:[%s172 + $0x358] sm:$0xff] %vm538, %v7380
      %7745 = vst [vmem:[%s172 + $0x360] sm:$0xff] %v7381
      %7746 = vst.msk [vmem:[%s172 + $0x368] sm:$0xff] %vm538, %v7382
      %7747 = vst [vmem:[%s172 + $0x370] sm:$0xff] %v7383
      %7748 = vst.msk [vmem:[%s172 + $0x378] sm:$0xff] %vm538, %v7384
      %7749 = vst [vmem:[%s172 + $0x380] sm:$0xff] %v7385
      %7750 = vst.msk [vmem:[%s172 + $0x388] sm:$0xff] %vm538, %v7386
      %7751 = vst [vmem:[%s172 + $0x390] sm:$0xff] %v7387
      %7752 = vst.msk [vmem:[%s172 + $0x398] sm:$0xff] %vm538, %v7388
      %7753 = vst [vmem:[%s172 + $0x3a0] sm:$0xff] %v7389
      %7754 = vst.msk [vmem:[%s172 + $0x3a8] sm:$0xff] %vm538, %v7390
      %7755 = vst [vmem:[%s172 + $0x3b0] sm:$0xff] %v7391
      %7756 = vst.msk [vmem:[%s172 + $0x3b8] sm:$0xff] %vm538, %v7392
      %7757 = vst [vmem:[%s172 + $0x3c0] sm:$0xff] %v7393
      %7758 = vst.msk [vmem:[%s172 + $0x3c8] sm:$0xff] %vm538, %v7394
      %7759 = vst [vmem:[%s172 + $0x3d0] sm:$0xff] %v7395
      %7760 = vst.msk [vmem:[%s172 + $0x3d8] sm:$0xff] %vm538, %v7396
      %7761 = vst [vmem:[%s172 + $0x3e0] sm:$0xff] %v7397
      %7762 = vst.msk [vmem:[%s172 + $0x3e8] sm:$0xff] %vm538, %v7398
      %7763 = vst [vmem:[%s172 + $0x3f0] sm:$0xff] %v7399
      %7764 = vst.msk [vmem:[%s172 + $0x3f8] sm:$0xff] %vm538, %v7400
      %7765 = vst [vmem:[%s172 + $0x400] sm:$0xff] %v7401
      %7766 = vst.msk [vmem:[%s172 + $0x408] sm:$0xff] %vm538, %v7402
      %7767 = vst [vmem:[%s172 + $0x410] sm:$0xff] %v7403
      %7768 = vst.msk [vmem:[%s172 + $0x418] sm:$0xff] %vm538, %v7404
      %7769 = vst [vmem:[%s172 + $0x420] sm:$0xff] %v7405
      %7770 = vst.msk [vmem:[%s172 + $0x428] sm:$0xff] %vm538, %v7406
      %7771 = vst [vmem:[%s172 + $0x430] sm:$0xff] %v7407
      %7772 = vst.msk [vmem:[%s172 + $0x438] sm:$0xff] %vm538, %v7408
      %7773 = vst [vmem:[%s172 + $0x440] sm:$0xff] %v7409
      %7774 = vst.msk [vmem:[%s172 + $0x448] sm:$0xff] %vm538, %v7410
      %7775 = vst [vmem:[%s172 + $0x450] sm:$0xff] %v7411
      %7776 = vst.msk [vmem:[%s172 + $0x458] sm:$0xff] %vm538, %v7412
      %7777 = vst [vmem:[%s172 + $0x460] sm:$0xff] %v7413
      %7778 = vst.msk [vmem:[%s172 + $0x468] sm:$0xff] %vm538, %v7414
      %7779 = vst [vmem:[%s172 + $0x470] sm:$0xff] %v7415
      %7780 = vst.msk [vmem:[%s172 + $0x478] sm:$0xff] %vm538, %v7416
      %7781 = vst [vmem:[%s172 + $0x480] sm:$0xff] %v7417
      %7782 = vst.msk [vmem:[%s172 + $0x488] sm:$0xff] %vm538, %v7418
      %7783 = vst [vmem:[%s172 + $0x490] sm:$0xff] %v7419
      %7784 = vst.msk [vmem:[%s172 + $0x498] sm:$0xff] %vm538, %v7420
      %7785 = vst [vmem:[%s172 + $0x4a0] sm:$0xff] %v7421
      %7786 = vst.msk [vmem:[%s172 + $0x4a8] sm:$0xff] %vm538, %v7422
      %7787 = vst [vmem:[%s172 + $0x4b0] sm:$0xff] %v7423
      %7788 = vst.msk [vmem:[%s172 + $0x4b8] sm:$0xff] %vm538, %v7424
      %7789 = vst [vmem:[%s172 + $0x4c0] sm:$0xff] %v7425
      %7790 = vst.msk [vmem:[%s172 + $0x4c8] sm:$0xff] %vm538, %v7426
      %7791 = vst [vmem:[%s172 + $0x4d0] sm:$0xff] %v7427
      %7792 = vst.msk [vmem:[%s172 + $0x4d8] sm:$0xff] %vm538, %v7428
      %7793 = vst [vmem:[%s172 + $0x4e0] sm:$0xff] %v7429
      %7794 = vst.msk [vmem:[%s172 + $0x4e8] sm:$0xff] %vm538, %v7430
      %7795 = vst [vmem:[%s172 + $0x4f0] sm:$0xff] %v7431
      %7796 = vst.msk [vmem:[%s172 + $0x4f8] sm:$0xff] %vm538, %v7432
      %7797 = vst [vmem:[%s172 + $0x500] sm:$0xff] %v7433
      %7798 = vst.msk [vmem:[%s172 + $0x508] sm:$0xff] %vm538, %v7434
      %7799 = vst [vmem:[%s172 + $0x510] sm:$0xff] %v7435
      %7800 = vst.msk [vmem:[%s172 + $0x518] sm:$0xff] %vm538, %v7436
      %7801 = vst [vmem:[%s172 + $0x520] sm:$0xff] %v7437
      %7802 = vst.msk [vmem:[%s172 + $0x528] sm:$0xff] %vm538, %v7438
      %7803 = vst [vmem:[%s172 + $0x530] sm:$0xff] %v7439
      %7804 = vst.msk [vmem:[%s172 + $0x538] sm:$0xff] %vm538, %v7440
      %7805 = vst [vmem:[%s172 + $0x540] sm:$0xff] %v7441
      %7806 = vst.msk [vmem:[%s172 + $0x548] sm:$0xff] %vm538, %v7442
      %7807 = vst [vmem:[%s172 + $0x550] sm:$0xff] %v7443
      %7808 = vst.msk [vmem:[%s172 + $0x558] sm:$0xff] %vm538, %v7444
      %7809 = vst [vmem:[%s172 + $0x560] sm:$0xff] %v7445
      %7810 = vst.msk [vmem:[%s172 + $0x568] sm:$0xff] %vm538, %v7446
      %7811 = vst [vmem:[%s172 + $0x570] sm:$0xff] %v7447
      %7812 = vst.msk [vmem:[%s172 + $0x578] sm:$0xff] %vm538, %v7448
      %7813 = vst [vmem:[%s172 + $0x580] sm:$0xff] %v7449
      %7814 = vst.msk [vmem:[%s172 + $0x588] sm:$0xff] %vm538, %v7450
      %7815 = vst [vmem:[%s172 + $0x590] sm:$0xff] %v7451
      %7816 = vst.msk [vmem:[%s172 + $0x598] sm:$0xff] %vm538, %v7452
      %7817 = vst [vmem:[%s172 + $0x5a0] sm:$0xff] %v7453
      %7818 = vst.msk [vmem:[%s172 + $0x5a8] sm:$0xff] %vm538, %v7454
      %7819 = vst [vmem:[%s172 + $0x5b0] sm:$0xff] %v7455
      %7820 = vst.msk [vmem:[%s172 + $0x5b8] sm:$0xff] %vm538, %v7456
      %7821 = vst [vmem:[%s172 + $0x5c0] sm:$0xff] %v7457
      %7822 = vst.msk [vmem:[%s172 + $0x5c8] sm:$0xff] %vm538, %v7458
      %7823 = vst [vmem:[%s172 + $0x5d0] sm:$0xff] %v7459
      %7824 = vst.msk [vmem:[%s172 + $0x5d8] sm:$0xff] %vm538, %v7460
      %7825 = vst [vmem:[%s172 + $0x5e0] sm:$0xff] %v7461
      %7826 = vst.msk [vmem:[%s172 + $0x5e8] sm:$0xff] %vm538, %v7462
      %7827 = vst [vmem:[%s172 + $0x5f0] sm:$0xff] %v7463
      %7828 = vst.msk [vmem:[%s172 + $0x5f8] sm:$0xff] %vm538, %v7464
      %7829 = vst [vmem:[%s172 + $0x600] sm:$0xff] %v7465
      %7830 = vst.msk [vmem:[%s172 + $0x608] sm:$0xff] %vm538, %v7466
      %7831 = vst [vmem:[%s172 + $0x610] sm:$0xff] %v7467
      %7832 = vst.msk [vmem:[%s172 + $0x618] sm:$0xff] %vm538, %v7468
      %7833 = vst [vmem:[%s172 + $0x620] sm:$0xff] %v7469
      %7834 = vst.msk [vmem:[%s172 + $0x628] sm:$0xff] %vm538, %v7470
      %7835 = vst [vmem:[%s172 + $0x630] sm:$0xff] %v7471
      %7836 = vst.msk [vmem:[%s172 + $0x638] sm:$0xff] %vm538, %v7472
      %7837 = vst [vmem:[%s172 + $0x640] sm:$0xff] %v7473
      %7838 = vst.msk [vmem:[%s172 + $0x648] sm:$0xff] %vm538, %v7474
      %7839 = vst [vmem:[%s172 + $0x650] sm:$0xff] %v7475
      %7840 = vst.msk [vmem:[%s172 + $0x658] sm:$0xff] %vm538, %v7476
      %7841 = vst [vmem:[%s172 + $0x660] sm:$0xff] %v7477
      %7842 = vst.msk [vmem:[%s172 + $0x668] sm:$0xff] %vm538, %v7478
      %7843 = vst [vmem:[%s172 + $0x670] sm:$0xff] %v7479
      %7844 = vst.msk [vmem:[%s172 + $0x678] sm:$0xff] %vm538, %v7480
      %7845 = vst [vmem:[%s172 + $0x680] sm:$0xff] %v7481
      %7846 = vst.msk [vmem:[%s172 + $0x688] sm:$0xff] %vm538, %v7482
      %7847 = vst [vmem:[%s172 + $0x690] sm:$0xff] %v7483
      %7848 = vst.msk [vmem:[%s172 + $0x698] sm:$0xff] %vm538, %v7484
      %7849 = vst [vmem:[%s172 + $0x6a0] sm:$0xff] %v7485
      %7850 = vst.msk [vmem:[%s172 + $0x6a8] sm:$0xff] %vm538, %v7486
      %7851 = vst [vmem:[%s172 + $0x6b0] sm:$0xff] %v7487
      %7852 = vst.msk [vmem:[%s172 + $0x6b8] sm:$0xff] %vm538, %v7488
      %7853 = vst [vmem:[%s172 + $0x6c0] sm:$0xff] %v7489
      %7854 = vst.msk [vmem:[%s172 + $0x6c8] sm:$0xff] %vm538, %v7490
      %7855 = vst [vmem:[%s172 + $0x6d0] sm:$0xff] %v7491
      %7856 = vst.msk [vmem:[%s172 + $0x6d8] sm:$0xff] %vm538, %v7492
      %7857 = vst [vmem:[%s172 + $0x6e0] sm:$0xff] %v7493
      %7858 = vst.msk [vmem:[%s172 + $0x6e8] sm:$0xff] %vm538, %v7494
      %7859 = vst [vmem:[%s172 + $0x6f0] sm:$0xff] %v7495
      %7860 = vst.msk [vmem:[%s172 + $0x6f8] sm:$0xff] %vm538, %v7496
      %7861 = vst [vmem:[%s172 + $0x700] sm:$0xff] %v7497
      %7862 = vst.msk [vmem:[%s172 + $0x708] sm:$0xff] %vm538, %v7498
      %7863 = vst [vmem:[%s172 + $0x710] sm:$0xff] %v7499
      %7864 = vst.msk [vmem:[%s172 + $0x718] sm:$0xff] %vm538, %v7500
      %7865 = vst [vmem:[%s172 + $0x720] sm:$0xff] %v7501
      %7866 = vst.msk [vmem:[%s172 + $0x728] sm:$0xff] %vm538, %v7502
      %7867 = vst [vmem:[%s172 + $0x730] sm:$0xff] %v7503
      %7868 = vst.msk [vmem:[%s172 + $0x738] sm:$0xff] %vm538, %v7504
      %7869 = vst [vmem:[%s172 + $0x740] sm:$0xff] %v7505
      %7870 = vst.msk [vmem:[%s172 + $0x748] sm:$0xff] %vm538, %v7506
      %7871 = vst [vmem:[%s172 + $0x750] sm:$0xff] %v7507
      %7872 = vst.msk [vmem:[%s172 + $0x758] sm:$0xff] %vm538, %v7508
      %7873 = vst [vmem:[%s172 + $0x760] sm:$0xff] %v7509
      %7874 = vst.msk [vmem:[%s172 + $0x768] sm:$0xff] %vm538, %v7510
      %7875 = vst [vmem:[%s172 + $0x770] sm:$0xff] %v7511
      %7876 = vst.msk [vmem:[%s172 + $0x778] sm:$0xff] %vm538, %v7512
      %7877 = vst [vmem:[%s172 + $0x780] sm:$0xff] %v7513
      %7878 = vst.msk [vmem:[%s172 + $0x788] sm:$0xff] %vm538, %v7514
      %7879 = vst [vmem:[%s172 + $0x790] sm:$0xff] %v7515
      %7880 = vst.msk [vmem:[%s172 + $0x798] sm:$0xff] %vm538, %v7516
      %7881 = vst [vmem:[%s172 + $0x7a0] sm:$0xff] %v7517
      %7882 = vst.msk [vmem:[%s172 + $0x7a8] sm:$0xff] %vm538, %v7518
      %7883 = vst [vmem:[%s172 + $0x7b0] sm:$0xff] %v7519
      %7884 = vst.msk [vmem:[%s172 + $0x7b8] sm:$0xff] %vm538, %v7520
      %7885 = vst [vmem:[%s172 + $0x7c0] sm:$0xff] %v7521
      %7886 = vst.msk [vmem:[%s172 + $0x7c8] sm:$0xff] %vm538, %v7522
      %7887 = vst [vmem:[%s172 + $0x7d0] sm:$0xff] %v7523
      %7888 = vst.msk [vmem:[%s172 + $0x7d8] sm:$0xff] %vm538, %v7524
      %7889 = vst [vmem:[%s172 + $0x7e0] sm:$0xff] %v7525
      %7890 = vst.msk [vmem:[%s172 + $0x7e8] sm:$0xff] %vm538, %v7526
      %7891 = vst [vmem:[%s172 + $0x7f0] sm:$0xff] %v7527
      %7892 = vst.msk [vmem:[%s172 + $0x7f8] sm:$0xff] %vm538, %v7528
      %7893 = vst [vmem:[%s172 + $0x800] sm:$0xff] %v7529
      %7894 = vst.msk [vmem:[%s172 + $0x808] sm:$0xff] %vm538, %v7530
      %7895 = vst [vmem:[%s172 + $0x810] sm:$0xff] %v7531
      %7896 = vst.msk [vmem:[%s172 + $0x818] sm:$0xff] %vm538, %v7532
      %7897 = vst [vmem:[%s172 + $0x820] sm:$0xff] %v7533
      %7898 = vst.msk [vmem:[%s172 + $0x828] sm:$0xff] %vm538, %v7534
      %7899 = vst [vmem:[%s172 + $0x830] sm:$0xff] %v7535
      %7900 = vst.msk [vmem:[%s172 + $0x838] sm:$0xff] %vm538, %v7536
      %7901 = vst [vmem:[%s172 + $0x840] sm:$0xff] %v7537
      %7902 = vst.msk [vmem:[%s172 + $0x848] sm:$0xff] %vm538, %v7538
      %7903 = vst [vmem:[%s172 + $0x850] sm:$0xff] %v7539
      %7904 = vst.msk [vmem:[%s172 + $0x858] sm:$0xff] %vm538, %v7540
      %7905 = vst [vmem:[%s172 + $0x860] sm:$0xff] %v7541
      %7906 = vst.msk [vmem:[%s172 + $0x868] sm:$0xff] %vm538, %v7542
      %7907 = vst [vmem:[%s172 + $0x870] sm:$0xff] %v7543
      %7908 = vst.msk [vmem:[%s172 + $0x878] sm:$0xff] %vm538, %v7544
      %7909 = vst [vmem:[%s172 + $0x880] sm:$0xff] %v7545
      %7910 = vst.msk [vmem:[%s172 + $0x888] sm:$0xff] %vm538, %v7546
      %7911 = vst [vmem:[%s172 + $0x890] sm:$0xff] %v7547
      %7912 = vst.msk [vmem:[%s172 + $0x898] sm:$0xff] %vm538, %v7548
      %7913 = vst [vmem:[%s172 + $0x8a0] sm:$0xff] %v7549
      %7914 = vst.msk [vmem:[%s172 + $0x8a8] sm:$0xff] %vm538, %v7550
      %7915 = vst [vmem:[%s172 + $0x8b0] sm:$0xff] %v7551
      %7916 = vst.msk [vmem:[%s172 + $0x8b8] sm:$0xff] %vm538, %v7552
      %7917 = vst [vmem:[%s172 + $0x8c0] sm:$0xff] %v7553
      %7918 = vst.msk [vmem:[%s172 + $0x8c8] sm:$0xff] %vm538, %v7554
      %7919 = vst [vmem:[%s172 + $0x8d0] sm:$0xff] %v7555
      %7920 = vst.msk [vmem:[%s172 + $0x8d8] sm:$0xff] %vm538, %v7556
      %7921 = vst [vmem:[%s172 + $0x8e0] sm:$0xff] %v7557
      %7922 = vst.msk [vmem:[%s172 + $0x8e8] sm:$0xff] %vm538, %v7558
      %7923 = vst [vmem:[%s172 + $0x8f0] sm:$0xff] %v7559
      %7924 = vst.msk [vmem:[%s172 + $0x8f8] sm:$0xff] %vm538, %v7560
      %7925 = vst [vmem:[%s172 + $0x900] sm:$0xff] %v7561
      %7926 = vst.msk [vmem:[%s172 + $0x908] sm:$0xff] %vm538, %v7562
      %7927 = vst [vmem:[%s172 + $0x910] sm:$0xff] %v7563
      %7928 = vst.msk [vmem:[%s172 + $0x918] sm:$0xff] %vm538, %v7564
      %7929 = vst [vmem:[%s172 + $0x920] sm:$0xff] %v7565
      %7930 = vst.msk [vmem:[%s172 + $0x928] sm:$0xff] %vm538, %v7566
      %7931 = vst [vmem:[%s172 + $0x930] sm:$0xff] %v7567
      %7932 = vst.msk [vmem:[%s172 + $0x938] sm:$0xff] %vm538, %v7568
      %7933 = vst [vmem:[%s172 + $0x940] sm:$0xff] %v7569
      %7934 = vst.msk [vmem:[%s172 + $0x948] sm:$0xff] %vm538, %v7570
      %7935 = vst [vmem:[%s172 + $0x950] sm:$0xff] %v7571
      %7936 = vst.msk [vmem:[%s172 + $0x958] sm:$0xff] %vm538, %v7572
      %7937 = vst [vmem:[%s172 + $0x960] sm:$0xff] %v7573
      %7938 = vst.msk [vmem:[%s172 + $0x968] sm:$0xff] %vm538, %v7574
      %7939 = vst [vmem:[%s172 + $0x970] sm:$0xff] %v7575
      %7940 = vst.msk [vmem:[%s172 + $0x978] sm:$0xff] %vm538, %v7576
      %7941 = vst [vmem:[%s172 + $0x980] sm:$0xff] %v7577
      %7942 = vst.msk [vmem:[%s172 + $0x988] sm:$0xff] %vm538, %v7578
      %7943 = vst [vmem:[%s172 + $0x990] sm:$0xff] %v7579
      %7944 = vst.msk [vmem:[%s172 + $0x998] sm:$0xff] %vm538, %v7580
      %7945 = vst [vmem:[%s172 + $0x9a0] sm:$0xff] %v7581
      %7946 = vst.msk [vmem:[%s172 + $0x9a8] sm:$0xff] %vm538, %v7582
      %7947 = vst [vmem:[%s172 + $0x9b0] sm:$0xff] %v7583
      %7948 = vst.msk [vmem:[%s172 + $0x9b8] sm:$0xff] %vm538, %v7584
      %7949 = vst [vmem:[%s172 + $0x9c0] sm:$0xff] %v7585
      %7950 = vst.msk [vmem:[%s172 + $0x9c8] sm:$0xff] %vm538, %v7586
      %7951 = vst [vmem:[%s172 + $0x9d0] sm:$0xff] %v7587
      %7952 = vst.msk [vmem:[%s172 + $0x9d8] sm:$0xff] %vm538, %v7588
      %7953 = vst [vmem:[%s172 + $0x9e0] sm:$0xff] %v7589
      %7954 = vst.msk [vmem:[%s172 + $0x9e8] sm:$0xff] %vm538, %v7590
      %7955 = vst [vmem:[%s172 + $0x9f0] sm:$0xff] %v7591
      %7956 = vst.msk [vmem:[%s172 + $0x9f8] sm:$0xff] %vm538, %v7592
      %7957 = vst [vmem:[%s172 + $0xa00] sm:$0xff] %v7593
      %7958 = vst.msk [vmem:[%s172 + $0xa08] sm:$0xff] %vm538, %v7594
      %7959 = vst [vmem:[%s172 + $0xa10] sm:$0xff] %v7595
      %7960 = vst.msk [vmem:[%s172 + $0xa18] sm:$0xff] %vm538, %v7596
      %7961 = vst [vmem:[%s172 + $0xa20] sm:$0xff] %v7597
      %7962 = vst.msk [vmem:[%s172 + $0xa28] sm:$0xff] %vm538, %v7598
      %7963 = vst [vmem:[%s172 + $0xa30] sm:$0xff] %v7599
      %7964 = vst.msk [vmem:[%s172 + $0xa38] sm:$0xff] %vm538, %v7600
      %7965 = vst [vmem:[%s172 + $0xa40] sm:$0xff] %v7601
      %7966 = vst.msk [vmem:[%s172 + $0xa48] sm:$0xff] %vm538, %v7602
      %7967 = vst [vmem:[%s172 + $0xa50] sm:$0xff] %v7603
      %7968 = vst.msk [vmem:[%s172 + $0xa58] sm:$0xff] %vm538, %v7604
      %7969 = vst [vmem:[%s172 + $0xa60] sm:$0xff] %v7605
      %7970 = vst.msk [vmem:[%s172 + $0xa68] sm:$0xff] %vm538, %v7606
      %7971 = vst [vmem:[%s172 + $0xa70] sm:$0xff] %v7607
      %7972 = vst.msk [vmem:[%s172 + $0xa78] sm:$0xff] %vm538, %v7608
      %7973 = vst [vmem:[%s172 + $0xa80] sm:$0xff] %v7609
      %7974 = vst.msk [vmem:[%s172 + $0xa88] sm:$0xff] %vm538, %v7610
      %7975 = vst [vmem:[%s172 + $0xa90] sm:$0xff] %v7611
      %7976 = vst.msk [vmem:[%s172 + $0xa98] sm:$0xff] %vm538, %v7612
      %7977 = vst [vmem:[%s172 + $0xaa0] sm:$0xff] %v7613
      %7978 = vst.msk [vmem:[%s172 + $0xaa8] sm:$0xff] %vm538, %v7614
      %7979 = vst [vmem:[%s172 + $0xab0] sm:$0xff] %v7615
      %7980 = vst.msk [vmem:[%s172 + $0xab8] sm:$0xff] %vm538, %v7616
      %7981 = vst [vmem:[%s172 + $0xac0] sm:$0xff] %v7617
      %7982 = vst.msk [vmem:[%s172 + $0xac8] sm:$0xff] %vm538, %v7618
      %7983 = vst [vmem:[%s172 + $0xad0] sm:$0xff] %v7619
      %7984 = vst.msk [vmem:[%s172 + $0xad8] sm:$0xff] %vm538, %v7620
      %7985 = vst [vmem:[%s172 + $0xae0] sm:$0xff] %v7621
      %7986 = vst.msk [vmem:[%s172 + $0xae8] sm:$0xff] %vm538, %v7622
      %7987 = vst [vmem:[%s172 + $0xaf0] sm:$0xff] %v7623
      %7988 = vst.msk [vmem:[%s172 + $0xaf8] sm:$0xff] %vm538, %v7624
      %7989 = vst [vmem:[%s172 + $0xb00] sm:$0xff] %v7625
      %7990 = vst.msk [vmem:[%s172 + $0xb08] sm:$0xff] %vm538, %v7626
      %7991 = vst [vmem:[%s172 + $0xb10] sm:$0xff] %v7627
      %7992 = vst.msk [vmem:[%s172 + $0xb18] sm:$0xff] %vm538, %v7628
      %7993 = vst [vmem:[%s172 + $0xb20] sm:$0xff] %v7629
      %7994 = vst.msk [vmem:[%s172 + $0xb28] sm:$0xff] %vm538, %v7630
      %7995 = vst [vmem:[%s172 + $0xb30] sm:$0xff] %v7631
      %7996 = vst.msk [vmem:[%s172 + $0xb38] sm:$0xff] %vm538, %v7632
      %7997 = vst [vmem:[%s172 + $0xb40] sm:$0xff] %v7633
      %7998 = vst.msk [vmem:[%s172 + $0xb48] sm:$0xff] %vm538, %v7634
      %7999 = vst [vmem:[%s172 + $0xb50] sm:$0xff] %v7635
      %8000 = vst.msk [vmem:[%s172 + $0xb58] sm:$0xff] %vm538, %v7636
      %s8001 = smul.u32 182, %s13
      %p8002 = scmp.lt.s32.totalorder %s8001, 363
      %s8003 = scalar_select %p8002, %s8001, 363
      %s8004 = smul.addr %s8003, 2
      %s8005 = smul.addr %s8004, 8
      %s8006 = scalar_lea.vmem %s2, %s8005
      // Predicated region
      $region29: #{batchnorm2d_pallas.1} parent=27 // pred_check
        %p8007 = pneg %p83
      $region30: #{batchnorm2d_pallas.1} parent=27 // pred_check_branch
        %8009 = sbr.rel (%p8007) target = $region32
      $region31: #{batchnorm2d_pallas.1} parent=27 // pred_region
        %s8010 = smul.u32 182, %s13
      $region32: #{batchnorm2d_pallas.1} parent=27 // pred_fallthru
        _
    $region28: #{batchnorm2d_pallas.1} parent=5 // pred_fallthru
      _
    %p8011 = scmp.le.s32.totalorder 2, %s8
    // Predicated region
    $region33: #{batchnorm2d_pallas.1} parent=5 // pred_check
      %p8012 = pneg %p8011
    $region34: #{batchnorm2d_pallas.1} parent=5 // pred_check_branch
      %8014 = sbr.rel (%p8012) target = $region36
    $region35: #{batchnorm2d_pallas.1} parent=5 // pred_region
      %s8015 = ssub.s32 %s8, 2
      // Predicated region
      $region37: #{batchnorm2d_pallas.1} parent=35 // pred_check
        %p8016 = pneg %p89
      $region38: #{batchnorm2d_pallas.1} parent=35 // pred_check_branch
        %8018 = sbr.rel (%p8016) target = $region40
      $region39: #{batchnorm2d_pallas.1} parent=35 // pred_region
        %s8019 = smul.u32 182, %s14
        %p8020 = scmp.lt.s32.totalorder %s8019, 363
        %s8021 = scalar_select %p8020, %s8019, 363
        %s8022 = smul.addr %s8021, 2
        %s8023 = smul.addr %s8022, 8
        %s8024 = scalar_lea.vmem %s2, %s8023
      $region40: #{batchnorm2d_pallas.1} parent=35 // pred_fallthru
        _
    $region36: #{batchnorm2d_pallas.1} parent=5 // pred_fallthru
      _
  $region6: #{batchnorm2d_pallas.1} parent=0 // loop_footer
    %s12 = sadd.s32 1, %s8
  $region7: #{batchnorm2d_pallas.1} parent=0 // loop_footer_branch
    %7 = sbr.rel target = $region3
  $region8: #{batchnorm2d_pallas.1} parent=0 // loop_exit
    _

</llo_original>
